<compile_context>
chip_gen: v5e
topology: v5e:2x2
jax: 0.10.0
libtpu: 0.0.40
codegen_flags: <defaults>
</compile_context>

<pallas_src>
import functools

import jax
import jax.numpy as jnp
from jax import lax
from jax.experimental import pallas as pl
from jax.experimental.pallas import tpu as pltpu

_VMEM_LIMIT = 64 * 1024 * 1024


# ----------------------------- Kernel A: fused dual-branch -------------------------

def _branch_pair_kernel(x1_ref, x2_ref, lnw_ref, lnb_ref, ww_ref, hw_ref,
                        pw_ref, pbeff_ref, y1_ref, y2_ref, res_ref, xp_ref,
                        *, H, W):
    # Grid: (batch,).  Both branches {x1, x2} are handled in this single step.
    C = x1_ref.shape[-1]
    zf = jnp.float32

    # Zero ONLY the 3-wide halo frame of the padded scratch; the interior is fully
    # overwritten per branch and the taps are read straight from ref slices.
    xp_ref[0:3, :, :] = jnp.zeros((3, W + 6, C), zf)
    xp_ref[H + 3:H + 6, :, :] = jnp.zeros((3, W + 6, C), zf)
    xp_ref[:, 0:3, :] = jnp.zeros((H + 6, 3, C), zf)
    xp_ref[:, W + 3:W + 6, :] = jnp.zeros((H + 6, 3, C), zf)

    def run_branch(x, s, y_ref):
        # ---- LayerNorm over channels (biased variance, eps = 1e-5) ----
        mu = jnp.mean(x, axis=-1, keepdims=True)
        xc = x - mu
        var = jnp.mean(xc * xc, axis=-1, keepdims=True)
        xn = xc * lax.rsqrt(var + 1e-5) * lnw_ref[s] + lnb_ref[s]

        # ---- store xn once into the padded interior; read the 14 taps as slices ----
        xp_ref[3:3 + H, 3:3 + W, :] = xn

        acc = xp_ref[3:3 + H, 0:W, :] * ww_ref[s, 0]           # (1,7) width conv
        for k in range(1, 7):
            acc = acc + xp_ref[3:3 + H, k:k + W, :] * ww_ref[s, k]
        for k in range(7):                                      # (7,1) height conv
            acc = acc + xp_ref[k:k + H, 3:3 + W, :] * hw_ref[s, k]

        # ---- shared 1x1 project_out on the MXU.  Depthwise-conv biases are
        #      pre-folded into pbeff (= pb + (wb + hb) @ W^T) outside the kernel.
        y = jnp.dot(acc.reshape(H * W, C), pw_ref[...],
                    preferred_element_type=jnp.float32) + pbeff_ref[s]
        y_ref[0] = y.reshape(H, W, C)
        return xn

    x1n = run_branch(x1_ref[0], 0, y1_ref)
    x2n = run_branch(x2_ref[0], 1, y2_ref)
    res_ref[0] = x1n + x2n                 # residual x1n + x2n: single write


def branch_pallas(x1, x2, ln_w, ln_b, ww, hw, proj_wt, pb_eff):
    B, H, W, C = x1.shape
    kernel = functools.partial(_branch_pair_kernel, H=H, W=W)
    img = pl.BlockSpec((1, H, W, C), lambda b: (b, 0, 0, 0))
    cost = pl.CostEstimate(
        flops=B * 2 * (2 * H * W * C * C + 40 * H * W * C),
        transcendentals=B * 2 * H * W,
        bytes_accessed=4 * (5 * B * H * W * C + C * C + 20 * C))
    return pl.pallas_call(
        kernel,
        out_shape=(jax.ShapeDtypeStruct((B, H, W, C), jnp.float32),   # proj(out1)
                   jax.ShapeDtypeStruct((B, H, W, C), jnp.float32),   # proj(out2)
                   jax.ShapeDtypeStruct((B, H, W, C), jnp.float32)),  # x1n + x2n
        grid=(B,),
        in_specs=[
            img, img,
            pl.BlockSpec((2, C), lambda b: (0, 0)),        # ln weight  {norm1, norm2}
            pl.BlockSpec((2, C), lambda b: (0, 0)),        # ln bias
            pl.BlockSpec((2, 7, C), lambda b: (0, 0, 0)),  # (1,7) dw weights
            pl.BlockSpec((2, 7, C), lambda b: (0, 0, 0)),  # (7,1) dw weights
            pl.BlockSpec((C, C), lambda b: (0, 0)),        # project_out W^T (shared)
            pl.BlockSpec((2, C), lambda b: (0, 0)),        # folded projection bias
        ],
        out_specs=(img, img, img),
        scratch_shapes=[pltpu.VMEM((H + 6, W + 6, C), jnp.float32)],
        compiler_params=pltpu.CompilerParams(
            dimension_semantics=("parallel",),
            vmem_limit_bytes=_VMEM_LIMIT),
        cost_estimate=cost,
    )(x1, x2, ln_w, ln_b, ww, hw, proj_wt, pb_eff)


# ----------------------------- Kernel B: attention ---------------------------------

def _cross_attn_kernel(q_ref, kv_ref, o_ref):
    # Block: (1, 1, L, D) -- one (batch, head) pair per grid step.  k == v here.
    q = q_ref[0, 0]
    kv = kv_ref[0, 0]
    eps = 1e-12
    qn = q * lax.rsqrt(jnp.maximum(jnp.sum(q * q, -1, keepdims=True), eps * eps))
    kn = kv * lax.rsqrt(jnp.maximum(jnp.sum(kv * kv, -1, keepdims=True), eps * eps))
    # Contract the LAST dim of both operands (no explicit transpose of K).
    attn = lax.dot_general(qn, kn, dimension_numbers=(((1,), (1,)), ((), ())),
                           preferred_element_type=jnp.float32)        # (L, L)
    attn = attn - jnp.max(attn, axis=-1, keepdims=True)
    p = jnp.exp(attn)
    a = p / jnp.sum(p, axis=-1, keepdims=True)      # exact division (torch parity)
    o_ref[0, 0] = jnp.dot(a, kv, preferred_element_type=jnp.float32) + qn


def cross_attn_pallas(q, kv):
    B, HD, L, D = q.shape
    spec = pl.BlockSpec((1, 1, L, D), lambda b, h: (b, h, 0, 0))
    cost = pl.CostEstimate(
        flops=B * HD * (4 * L * L * D + 10 * L * D),
        transcendentals=B * HD * (L * L + 2 * L),
        bytes_accessed=4 * B * HD * 3 * L * D)
    return pl.pallas_call(
        _cross_attn_kernel,
        out_shape=jax.ShapeDtypeStruct((B, HD, L, D), jnp.float32),
        grid=(B, HD),
        in_specs=[spec, spec],
        out_specs=spec,
        compiler_params=pltpu.CompilerParams(
            dimension_semantics=("parallel", "parallel"),
            vmem_limit_bytes=_VMEM_LIMIT),
        cost_estimate=cost,
    )(q, kv)


# ----------------------------- Kernel C: fused final projection --------------------

def _final_proj_kernel(y3_ref, y4_ref, res_ref, w_ref, b2_ref, o_ref):
    # proj(out3) + proj(out4) + res == (out3 + out4) @ W^T + 2*b + res
    o_ref[...] = (
        jnp.dot(y3_ref[...] + y4_ref[...], w_ref[...],
                preferred_element_type=jnp.float32)
        + b2_ref[...] + res_ref[...]
    )


def _pick_tile_m(M, target):
    t = min(target, M)
    t -= t % 8
    while t >= 8:
        if M % t == 0:
            return t
        t -= 8
    return 0


def final_project_pallas(y3, y4, res, proj_wt, proj_b, *, target_tile_m=1024):
    M, C = y3.shape
    tm = _pick_tile_m(M, target_tile_m)
    if tm == 0:
        # Rare fallback (M has no multiple-of-8 divisor <= target): pad the tail.
        tm = min(target_tile_m, ((M + 7) // 8) * 8)
        Mp = pl.cdiv(M, tm) * tm
        pad = ((0, Mp - M), (0, 0))
        y3, y4, res = jnp.pad(y3, pad), jnp.pad(y4, pad), jnp.pad(res, pad)
    else:
        Mp = M
    cost = pl.CostEstimate(flops=2 * Mp * C * C + 3 * Mp * C, transcendentals=0,
                           bytes_accessed=4 * (4 * Mp * C + C * C + C))
    out = pl.pallas_call(
        _final_proj_kernel,
        out_shape=jax.ShapeDtypeStruct((Mp, C), jnp.float32),
        grid=(Mp // tm,),
        in_specs=[
            pl.BlockSpec((tm, C), lambda i: (i, 0)),
            pl.BlockSpec((tm, C), lambda i: (i, 0)),
            pl.BlockSpec((tm, C), lambda i: (i, 0)),
            pl.BlockSpec((C, C), lambda i: (0, 0)),
            pl.BlockSpec((1, C), lambda i: (0, 0)),
        ],
        out_specs=pl.BlockSpec((tm, C), lambda i: (i, 0)),
        compiler_params=pltpu.CompilerParams(
            dimension_semantics=("parallel",),
            vmem_limit_bytes=_VMEM_LIMIT),
        cost_estimate=cost,
    )(y3, y4, res, proj_wt, (2.0 * proj_b).reshape(1, C))
    return out if Mp == M else out[:M]


# ----------------------------- Forward (glue) ---------------------------------------

def cross_atten_forward(x1_nchw, x2_nchw, params, num_heads):
    B, C, H, W = x1_nchw.shape
    cdim = C // num_heads

    # NCHW -> NHWC (layout glue; kept in plain JAX).
    x1_hwc = jnp.transpose(x1_nchw, (0, 2, 3, 1))
    x2_hwc = jnp.transpose(x2_nchw, (0, 2, 3, 1))

    proj_wt = jnp.transpose(params["proj_w"])                 # (Cin, Cout), hoisted
    proj_b = params["proj_b"]
    # Fold depthwise-conv biases into the branch projection bias (linearity).
    dwb = params["dww_b"] + params["dwh_b"]                   # (2, C)
    pb_eff = dwb @ proj_wt + proj_b[None, :]                  # (2, C)

    # Fused LayerNorm -> (1,7)+(7,1) dwconv -> project_out for both branches,
    # plus res = x1n + x2n, in one pallas_call.
    out1, out2, res_hwc = branch_pallas(
        x1_hwc, x2_hwc, params["ln_w"], params["ln_b"],
        params["dww_w"], params["dwh_w"], proj_wt, pb_eff)

    # einops rearranges 'b (head c) h w -> b head h (w c)' / '-> b head w (h c)'
    def to_h_wc(x):   # (B,H,W,C) -> (B, head, H, W*cdim)
        return (x.reshape(B, H, W, num_heads, cdim)
                 .transpose(0, 3, 1, 2, 4)
                 .reshape(B, num_heads, H, W * cdim))

    def to_w_hc(x):   # (B,H,W,C) -> (B, head, W, H*cdim)
        return (x.reshape(B, H, W, num_heads, cdim)
                 .transpose(0, 3, 2, 1, 4)
                 .reshape(B, num_heads, W, H * cdim))

    kv1 = to_h_wc(out1)                  # k1 == v1
    kv2 = to_w_hc(out2)                  # k2 == v2
    q1 = to_h_wc(out2)
    q2 = to_w_hc(out1)

    out3 = cross_attn_pallas(q1, kv1)    # (B, head, H, W*cdim)
    out4 = cross_attn_pallas(q2, kv2)    # (B, head, W, H*cdim)

    # inverse rearranges back to NHWC
    out3_hwc = (out3.reshape(B, num_heads, H, W, cdim)
                    .transpose(0, 2, 3, 1, 4).reshape(B, H, W, C))
    out4_hwc = (out4.reshape(B, num_heads, W, H, cdim)
                    .transpose(0, 3, 2, 1, 4).reshape(B, H, W, C))

    # proj(out3) + proj(out4) + x1n + x2n: single row-tiled kernel via linearity.
    M = B * H * W
    y = final_project_pallas(out3_hwc.reshape(M, C), out4_hwc.reshape(M, C),
                             res_hwc.reshape(M, C), proj_wt, proj_b)
    return jnp.transpose(y.reshape(B, H, W, C), (0, 3, 1, 2))   # NHWC -> NCHW


# ----------------------------- Pure-JAX reference ------------------------------------

def _reference_forward(x1, x2, params, num_heads):
    B, C, H, W = x1.shape
    cdim = C // num_heads

    def layer_norm(x, w, b):
        xt = jnp.transpose(x, (0, 2, 3, 1))
        mu = jnp.mean(xt, -1, keepdims=True)
        var = jnp.mean((xt - mu) ** 2, -1, keepdims=True)
        y = (xt - mu) / jnp.sqrt(var + 1e-5) * w + b
        return jnp.transpose(y, (0, 3, 1, 2))

    def dwconv_w(x, w, b):   # Conv2d(dim, dim, (1,7), padding=(0,3), groups=dim)
        xp = jnp.pad(x, ((0, 0), (0, 0), (0, 0), (3, 3)))
        out = sum(xp[..., k:k + W] * w[k][None, :, None, None] for k in range(7))
        return out + b[None, :, None, None]

    def dwconv_h(x, w, b):   # Conv2d(dim, dim, (7,1), padding=(3,0), groups=dim)
        xp = jnp.pad(x, ((0, 0), (0, 0), (3, 3), (0, 0)))
        out = sum(xp[:, :, k:k + H, :] * w[k][None, :, None, None] for k in range(7))
        return out + b[None, :, None, None]

    def proj(x):
        return (jnp.einsum('oc,bchw->bohw', params["proj_w"], x)
                + params["proj_b"][None, :, None, None])

    x1n = layer_norm(x1, params["ln_w"][0], params["ln_b"][0])
    x2n = layer_norm(x2, params["ln_w"][1], params["ln_b"][1])
    out1 = (dwconv_w(x1n, params["dww_w"][0], params["dww_b"][0])
            + dwconv_h(x1n, params["dwh_w"][0], params["dwh_b"][0]))
    out2 = (dwconv_w(x2n, params["dww_w"][1], params["dww_b"][1])
            + dwconv_h(x2n, params["dwh_w"][1], params["dwh_b"][1]))
    out1, out2 = proj(out1), proj(out2)

    def r_h(x):   # 'b (head c) h w -> b head h (w c)'
        return (x.reshape(B, num_heads, cdim, H, W)
                 .transpose(0, 1, 3, 4, 2).reshape(B, num_heads, H, W * cdim))

    def r_w(x):   # 'b (head c) h w -> b head w (h c)'
        return (x.reshape(B, num_heads, cdim, H, W)
                 .transpose(0, 1, 4, 3, 2).reshape(B, num_heads, W, H * cdim))

    def l2n(x):
        return x / jnp.maximum(jnp.linalg.norm(x, axis=-1, keepdims=True), 1e-12)

    k1 = r_h(out1); v1 = r_h(out1)
    k2 = r_w(out2); v2 = r_w(out2)
    q1 = l2n(r_h(out2)); q2 = l2n(r_w(out1))
    k1 = l2n(k1); k2 = l2n(k2)

    attn1 = jax.nn.softmax(q1 @ jnp.swapaxes(k1, -1, -2), axis=-1)
    out3 = attn1 @ v1 + q1
    attn2 = jax.nn.softmax(q2 @ jnp.swapaxes(k2, -1, -2), axis=-1)
    out4 = attn2 @ v2 + q2

    out3 = (out3.reshape(B, num_heads, H, W, cdim)
                .transpose(0, 1, 4, 2, 3).reshape(B, C, H, W))
    out4 = (out4.reshape(B, num_heads, W, H, cdim)
                .transpose(0, 1, 4, 3, 2).reshape(B, C, H, W))
    return proj(out3) + proj(out4) + x1n + x2n


# ----------------------------- Param init --------------------------------------------

def init_params(dim, key):
    ks = jax.random.split(key, 6)
    C = dim
    rnd = lambda k, shape: (0.1 * jax.random.normal(k, shape)).astype(jnp.float32)
    return {
        # LayerNorm (WithBias) for {norm1, norm2}: weight = 1, bias = 0
        "ln_w": jnp.ones((2, C), jnp.float32),
        "ln_b": jnp.zeros((2, C), jnp.float32),
        # depthwise (1,7) width convs {conv1_1_1, conv2_1_1}: 7 taps x C channels
        "dww_w": rnd(ks[0], (2, 7, C)), "dww_b": rnd(ks[1], (2, C)),
        # depthwise (7,1) height convs {conv1_2_1, conv2_2_1}
        "dwh_w": rnd(ks[2], (2, 7, C)), "dwh_b": rnd(ks[3], (2, C)),
        # shared project_out: Conv2d(dim, dim, 1) -> weight (C_out, C_in), bias (C,)
        "proj_w": rnd(ks[4], (C, C)), "proj_b": rnd(ks[5], (C,)),
    }


# ----------------------------- Main ---------------------------------------------------

if __name__ == "__main__":
    B, dim, num_heads, H, W = 2, 8, 2, 16, 16

    key = jax.random.PRNGKey(0)
    k_p, k_x1, k_x2 = jax.random.split(key, 3)
    params = init_params(dim, k_p)

    x1 = jax.random.normal(k_x1, (B, dim, H, W), dtype=jnp.float32)
    x2 = jax.random.normal(k_x2, (B, dim, H, W), dtype=jnp.float32)

    fwd = jax.jit(functools.partial(cross_atten_forward, num_heads=num_heads))
    out = fwd(x1, x2, params)
    jax.block_until_ready(out)

    assert out.shape == (B, dim, H, W)
    assert bool(jnp.all(jnp.isfinite(out)))

    ref = _reference_forward(x1, x2, params, num_heads)
    max_err = float(jnp.max(jnp.abs(out - ref)))
    assert bool(jnp.allclose(out, ref, atol=2e-3, rtol=2e-3)), max_err

    print("KERNEL_OK")
</pallas_src>

<mosaic_0001>
module attributes {stable_mosaic.version = 11 : i64} {
  func.func @_branch_pair_kernel(%arg0: i32, %arg1: memref<1x16x16x8xf32, #tpu.memory_space<vmem>>, %arg2: memref<1x16x16x8xf32, #tpu.memory_space<vmem>>, %arg3: memref<2x8xf32, #tpu.memory_space<vmem>>, %arg4: memref<2x8xf32, #tpu.memory_space<vmem>>, %arg5: memref<2x7x8xf32, #tpu.memory_space<vmem>>, %arg6: memref<2x7x8xf32, #tpu.memory_space<vmem>>, %arg7: memref<8x8xf32, #tpu.memory_space<vmem>>, %arg8: memref<2x8xf32, #tpu.memory_space<vmem>>, %arg9: memref<1x16x16x8xf32, #tpu.memory_space<vmem>>, %arg10: memref<1x16x16x8xf32, #tpu.memory_space<vmem>>, %arg11: memref<1x16x16x8xf32, #tpu.memory_space<vmem>>, %arg12: memref<22x22x8xf32, #tpu.memory_space<vmem>>) attributes {dimension_semantics = [#tpu.dimension_semantics<parallel>], iteration_bounds = array<i64: 2>, scalar_prefetch = 0 : i64, scratch_operands = 1 : i64, tpu.core_type = #tpu.core_type<tc>, window_params = [{transform_indices = @transform_0, window_bounds = array<i64: 1, 16, 16, 8>}, {transform_indices = @transform_1, window_bounds = array<i64: 1, 16, 16, 8>}, {pipeline_mode = #tpu.pipeline_mode<synchronous>, transform_indices = @transform_2, window_bounds = array<i64: 2, 8>}, {pipeline_mode = #tpu.pipeline_mode<synchronous>, transform_indices = @transform_3, window_bounds = array<i64: 2, 8>}, {pipeline_mode = #tpu.pipeline_mode<synchronous>, transform_indices = @transform_4, window_bounds = array<i64: 2, 7, 8>}, {pipeline_mode = #tpu.pipeline_mode<synchronous>, transform_indices = @transform_5, window_bounds = array<i64: 2, 7, 8>}, {pipeline_mode = #tpu.pipeline_mode<synchronous>, transform_indices = @transform_6, window_bounds = array<i64: 8, 8>}, {pipeline_mode = #tpu.pipeline_mode<synchronous>, transform_indices = @transform_7, window_bounds = array<i64: 2, 8>}, {transform_indices = @transform_8, window_bounds = array<i64: 1, 16, 16, 8>}, {transform_indices = @transform_9, window_bounds = array<i64: 1, 16, 16, 8>}, {transform_indices = @transform_10, window_bounds = array<i64: 1, 16, 16, 8>}]} {
    %cst = arith.constant 0.000000e+00 : f32
    %0 = vector.broadcast %cst : f32 to vector<3x22x8xf32>
    %c0 = arith.constant 0 : index
    %c0_0 = arith.constant 0 : index
    %c0_1 = arith.constant 0 : index
    %1 = vector.load %arg12[%c0, %c0_0, %c0_1] : memref<22x22x8xf32, #tpu.memory_space<vmem>>, vector<3x22x8xf32>
    tpu.vector_store %arg12[%c0, %c0_0, %c0_1], %0 {strides = array<i32>} : memref<22x22x8xf32, #tpu.memory_space<vmem>>, vector<3x22x8xf32>,
    %cst_2 = arith.constant 0.000000e+00 : f32
    %2 = vector.broadcast %cst_2 : f32 to vector<3x22x8xf32>
    %c19 = arith.constant 19 : index
    %c0_3 = arith.constant 0 : index
    %c0_4 = arith.constant 0 : index
    %3 = vector.load %arg12[%c19, %c0_3, %c0_4] : memref<22x22x8xf32, #tpu.memory_space<vmem>>, vector<3x22x8xf32>
    tpu.vector_store %arg12[%c19, %c0_3, %c0_4], %2 {strides = array<i32>} : memref<22x22x8xf32, #tpu.memory_space<vmem>>, vector<3x22x8xf32>,
    %cst_5 = arith.constant 0.000000e+00 : f32
    %4 = vector.broadcast %cst_5 : f32 to vector<22x3x8xf32>
    %c0_6 = arith.constant 0 : index
    %c0_7 = arith.constant 0 : index
    %c0_8 = arith.constant 0 : index
    %5 = vector.load %arg12[%c0_6, %c0_7, %c0_8] : memref<22x22x8xf32, #tpu.memory_space<vmem>>, vector<22x3x8xf32>
    tpu.vector_store %arg12[%c0_6, %c0_7, %c0_8], %4 {strides = array<i32>} : memref<22x22x8xf32, #tpu.memory_space<vmem>>, vector<22x3x8xf32>,
    %cst_9 = arith.constant 0.000000e+00 : f32
    %6 = vector.broadcast %cst_9 : f32 to vector<22x3x8xf32>
    %c0_10 = arith.constant 0 : index
    %c19_11 = arith.constant 19 : index
    %c0_12 = arith.constant 0 : index
    %7 = vector.load %arg12[%c0_10, %c19_11, %c0_12] : memref<22x22x8xf32, #tpu.memory_space<vmem>>, vector<22x3x8xf32>
    tpu.vector_store %arg12[%c0_10, %c19_11, %c0_12], %6 {strides = array<i32>} : memref<22x22x8xf32, #tpu.memory_space<vmem>>, vector<22x3x8xf32>,
    %c0_13 = arith.constant 0 : index
    %c0_14 = arith.constant 0 : index
    %c0_15 = arith.constant 0 : index
    %c0_16 = arith.constant 0 : index
    %8 = vector.load %arg1[%c0_13, %c0_14, %c0_15, %c0_16] : memref<1x16x16x8xf32, #tpu.memory_space<vmem>>, vector<1x16x16x8xf32>
    %9 = vector.shape_cast %8 : vector<1x16x16x8xf32> to vector<16x16x8xf32>
    %cst_17 = arith.constant dense<0.000000e+00> : vector<16x16xf32>
    %10 = vector.multi_reduction <add>, %9, %cst_17 [2] : vector<16x16x8xf32> to vector<16x16xf32>
    %11 = vector.shape_cast %10 : vector<16x16xf32> to vector<16x16x1xf32>
    %cst_18 = arith.constant 8.000000e+00 : f32
    %12 = vector.broadcast %cst_18 : f32 to vector<16x16x1xf32>
    %13 = arith.divf %11, %12 : vector<16x16x1xf32>
    %14 = vector.broadcast %13 : vector<16x16x1xf32> to vector<16x16x8xf32>
    %15 = arith.subf %9, %14 : vector<16x16x8xf32>
    %16 = arith.mulf %15, %15 : vector<16x16x8xf32>
    %cst_19 = arith.constant dense<0.000000e+00> : vector<16x16xf32>
    %17 = vector.multi_reduction <add>, %16, %cst_19 [2] : vector<16x16x8xf32> to vector<16x16xf32>
    %18 = vector.shape_cast %17 : vector<16x16xf32> to vector<16x16x1xf32>
    %cst_20 = arith.constant 8.000000e+00 : f32
    %19 = vector.broadcast %cst_20 : f32 to vector<16x16x1xf32>
    %20 = arith.divf %18, %19 : vector<16x16x1xf32>
    %cst_21 = arith.constant 9.99999974E-6 : f32
    %21 = vector.broadcast %cst_21 : f32 to vector<16x16x1xf32>
    %22 = arith.addf %20, %21 : vector<16x16x1xf32>
    %23 = math.rsqrt %22 : vector<16x16x1xf32>
    %24 = vector.broadcast %23 : vector<16x16x1xf32> to vector<16x16x8xf32>
    %25 = arith.mulf %15, %24 : vector<16x16x8xf32>
    %c0_22 = arith.constant 0 : index
    %c0_23 = arith.constant 0 : index
    %26 = vector.load %arg3[%c0_22, %c0_23] : memref<2x8xf32, #tpu.memory_space<vmem>>, vector<1x8xf32>
    %27 = vector.shape_cast %26 : vector<1x8xf32> to vector<8xf32>
    %28 = vector.shape_cast %27 : vector<8xf32> to vector<1x1x8xf32>
    %29 = vector.broadcast %28 : vector<1x1x8xf32> to vector<16x16x8xf32>
    %30 = arith.mulf %25, %29 : vector<16x16x8xf32>
    %c0_24 = arith.constant 0 : index
    %c0_25 = arith.constant 0 : index
    %31 = vector.load %arg4[%c0_24, %c0_25] : memref<2x8xf32, #tpu.memory_space<vmem>>, vector<1x8xf32>
    %32 = vector.shape_cast %31 : vector<1x8xf32> to vector<8xf32>
    %33 = vector.shape_cast %32 : vector<8xf32> to vector<1x1x8xf32>
    %34 = vector.broadcast %33 : vector<1x1x8xf32> to vector<16x16x8xf32>
    %35 = arith.addf %30, %34 : vector<16x16x8xf32>
    %c3 = arith.constant 3 : index
    %c3_26 = arith.constant 3 : index
    %c0_27 = arith.constant 0 : index
    %36 = vector.load %arg12[%c3, %c3_26, %c0_27] : memref<22x22x8xf32, #tpu.memory_space<vmem>>, vector<16x16x8xf32>
    tpu.vector_store %arg12[%c3, %c3_26, %c0_27], %35 {strides = array<i32>} : memref<22x22x8xf32, #tpu.memory_space<vmem>>, vector<16x16x8xf32>,
    %c3_28 = arith.constant 3 : index
    %c0_29 = arith.constant 0 : index
    %c0_30 = arith.constant 0 : index
    %37 = vector.load %arg12[%c3_28, %c0_29, %c0_30] : memref<22x22x8xf32, #tpu.memory_space<vmem>>, vector<16x16x8xf32>
    %c0_31 = arith.constant 0 : index
    %c0_32 = arith.constant 0 : index
    %c0_33 = arith.constant 0 : index
    %38 = vector.load %arg5[%c0_31, %c0_32, %c0_33] : memref<2x7x8xf32, #tpu.memory_space<vmem>>, vector<1x1x8xf32>
    %39 = vector.shape_cast %38 : vector<1x1x8xf32> to vector<8xf32>
    %40 = vector.shape_cast %39 : vector<8xf32> to vector<1x1x8xf32>
    %41 = vector.broadcast %40 : vector<1x1x8xf32> to vector<16x16x8xf32>
    %42 = arith.mulf %37, %41 : vector<16x16x8xf32>
    %c3_34 = arith.constant 3 : index
    %c1 = arith.constant 1 : index
    %c0_35 = arith.constant 0 : index
    %43 = vector.load %arg12[%c3_34, %c1, %c0_35] : memref<22x22x8xf32, #tpu.memory_space<vmem>>, vector<16x16x8xf32>
    %c0_36 = arith.constant 0 : index
    %c1_37 = arith.constant 1 : index
    %c0_38 = arith.constant 0 : index
    %44 = vector.load %arg5[%c0_36, %c1_37, %c0_38] : memref<2x7x8xf32, #tpu.memory_space<vmem>>, vector<1x1x8xf32>
    %45 = vector.shape_cast %44 : vector<1x1x8xf32> to vector<8xf32>
    %46 = vector.shape_cast %45 : vector<8xf32> to vector<1x1x8xf32>
    %47 = vector.broadcast %46 : vector<1x1x8xf32> to vector<16x16x8xf32>
    %48 = arith.mulf %43, %47 : vector<16x16x8xf32>
    %49 = arith.addf %42, %48 : vector<16x16x8xf32>
    %c3_39 = arith.constant 3 : index
    %c2 = arith.constant 2 : index
    %c0_40 = arith.constant 0 : index
    %50 = vector.load %arg12[%c3_39, %c2, %c0_40] : memref<22x22x8xf32, #tpu.memory_space<vmem>>, vector<16x16x8xf32>
    %c0_41 = arith.constant 0 : index
    %c2_42 = arith.constant 2 : index
    %c0_43 = arith.constant 0 : index
    %51 = vector.load %arg5[%c0_41, %c2_42, %c0_43] : memref<2x7x8xf32, #tpu.memory_space<vmem>>, vector<1x1x8xf32>
    %52 = vector.shape_cast %51 : vector<1x1x8xf32> to vector<8xf32>
    %53 = vector.shape_cast %52 : vector<8xf32> to vector<1x1x8xf32>
    %54 = vector.broadcast %53 : vector<1x1x8xf32> to vector<16x16x8xf32>
    %55 = arith.mulf %50, %54 : vector<16x16x8xf32>
    %56 = arith.addf %49, %55 : vector<16x16x8xf32>
    %c3_44 = arith.constant 3 : index
    %c3_45 = arith.constant 3 : index
    %c0_46 = arith.constant 0 : index
    %57 = vector.load %arg12[%c3_44, %c3_45, %c0_46] : memref<22x22x8xf32, #tpu.memory_space<vmem>>, vector<16x16x8xf32>
    %c0_47 = arith.constant 0 : index
    %c3_48 = arith.constant 3 : index
    %c0_49 = arith.constant 0 : index
    %58 = vector.load %arg5[%c0_47, %c3_48, %c0_49] : memref<2x7x8xf32, #tpu.memory_space<vmem>>, vector<1x1x8xf32>
    %59 = vector.shape_cast %58 : vector<1x1x8xf32> to vector<8xf32>
    %60 = vector.shape_cast %59 : vector<8xf32> to vector<1x1x8xf32>
    %61 = vector.broadcast %60 : vector<1x1x8xf32> to vector<16x16x8xf32>
    %62 = arith.mulf %57, %61 : vector<16x16x8xf32>
    %63 = arith.addf %56, %62 : vector<16x16x8xf32>
    %c3_50 = arith.constant 3 : index
    %c4 = arith.constant 4 : index
    %c0_51 = arith.constant 0 : index
    %64 = vector.load %arg12[%c3_50, %c4, %c0_51] : memref<22x22x8xf32, #tpu.memory_space<vmem>>, vector<16x16x8xf32>
    %c0_52 = arith.constant 0 : index
    %c4_53 = arith.constant 4 : index
    %c0_54 = arith.constant 0 : index
    %65 = vector.load %arg5[%c0_52, %c4_53, %c0_54] : memref<2x7x8xf32, #tpu.memory_space<vmem>>, vector<1x1x8xf32>
    %66 = vector.shape_cast %65 : vector<1x1x8xf32> to vector<8xf32>
    %67 = vector.shape_cast %66 : vector<8xf32> to vector<1x1x8xf32>
    %68 = vector.broadcast %67 : vector<1x1x8xf32> to vector<16x16x8xf32>
    %69 = arith.mulf %64, %68 : vector<16x16x8xf32>
    %70 = arith.addf %63, %69 : vector<16x16x8xf32>
    %c3_55 = arith.constant 3 : index
    %c5 = arith.constant 5 : index
    %c0_56 = arith.constant 0 : index
    %71 = vector.load %arg12[%c3_55, %c5, %c0_56] : memref<22x22x8xf32, #tpu.memory_space<vmem>>, vector<16x16x8xf32>
    %c0_57 = arith.constant 0 : index
    %c5_58 = arith.constant 5 : index
    %c0_59 = arith.constant 0 : index
    %72 = vector.load %arg5[%c0_57, %c5_58, %c0_59] : memref<2x7x8xf32, #tpu.memory_space<vmem>>, vector<1x1x8xf32>
    %73 = vector.shape_cast %72 : vector<1x1x8xf32> to vector<8xf32>
    %74 = vector.shape_cast %73 : vector<8xf32> to vector<1x1x8xf32>
    %75 = vector.broadcast %74 : vector<1x1x8xf32> to vector<16x16x8xf32>
    %76 = arith.mulf %71, %75 : vector<16x16x8xf32>
    %77 = arith.addf %70, %76 : vector<16x16x8xf32>
    %c3_60 = arith.constant 3 : index
    %c6 = arith.constant 6 : index
    %c0_61 = arith.constant 0 : index
    %78 = vector.load %arg12[%c3_60, %c6, %c0_61] : memref<22x22x8xf32, #tpu.memory_space<vmem>>, vector<16x16x8xf32>
    %c0_62 = arith.constant 0 : index
    %c6_63 = arith.constant 6 : index
    %c0_64 = arith.constant 0 : index
    %79 = vector.load %arg5[%c0_62, %c6_63, %c0_64] : memref<2x7x8xf32, #tpu.memory_space<vmem>>, vector<1x1x8xf32>
    %80 = vector.shape_cast %79 : vector<1x1x8xf32> to vector<8xf32>
    %81 = vector.shape_cast %80 : vector<8xf32> to vector<1x1x8xf32>
    %82 = vector.broadcast %81 : vector<1x1x8xf32> to vector<16x16x8xf32>
    %83 = arith.mulf %78, %82 : vector<16x16x8xf32>
    %84 = arith.addf %77, %83 : vector<16x16x8xf32>
    %c0_65 = arith.constant 0 : index
    %c3_66 = arith.constant 3 : index
    %c0_67 = arith.constant 0 : index
    %85 = vector.load %arg12[%c0_65, %c3_66, %c0_67] : memref<22x22x8xf32, #tpu.memory_space<vmem>>, vector<16x16x8xf32>
    %c0_68 = arith.constant 0 : index
    %c0_69 = arith.constant 0 : index
    %c0_70 = arith.constant 0 : index
    %86 = vector.load %arg6[%c0_68, %c0_69, %c0_70] : memref<2x7x8xf32, #tpu.memory_space<vmem>>, vector<1x1x8xf32>
    %87 = vector.shape_cast %86 : vector<1x1x8xf32> to vector<8xf32>
    %88 = vector.shape_cast %87 : vector<8xf32> to vector<1x1x8xf32>
    %89 = vector.broadcast %88 : vector<1x1x8xf32> to vector<16x16x8xf32>
    %90 = arith.mulf %85, %89 : vector<16x16x8xf32>
    %91 = arith.addf %84, %90 : vector<16x16x8xf32>
    %c1_71 = arith.constant 1 : index
    %c3_72 = arith.constant 3 : index
    %c0_73 = arith.constant 0 : index
    %92 = vector.load %arg12[%c1_71, %c3_72, %c0_73] : memref<22x22x8xf32, #tpu.memory_space<vmem>>, vector<16x16x8xf32>
    %c0_74 = arith.constant 0 : index
    %c1_75 = arith.constant 1 : index
    %c0_76 = arith.constant 0 : index
    %93 = vector.load %arg6[%c0_74, %c1_75, %c0_76] : memref<2x7x8xf32, #tpu.memory_space<vmem>>, vector<1x1x8xf32>
    %94 = vector.shape_cast %93 : vector<1x1x8xf32> to vector<8xf32>
    %95 = vector.shape_cast %94 : vector<8xf32> to vector<1x1x8xf32>
    %96 = vector.broadcast %95 : vector<1x1x8xf32> to vector<16x16x8xf32>
    %97 = arith.mulf %92, %96 : vector<16x16x8xf32>
    %98 = arith.addf %91, %97 : vector<16x16x8xf32>
    %c2_77 = arith.constant 2 : index
    %c3_78 = arith.constant 3 : index
    %c0_79 = arith.constant 0 : index
    %99 = vector.load %arg12[%c2_77, %c3_78, %c0_79] : memref<22x22x8xf32, #tpu.memory_space<vmem>>, vector<16x16x8xf32>
    %c0_80 = arith.constant 0 : index
    %c2_81 = arith.constant 2 : index
    %c0_82 = arith.constant 0 : index
    %100 = vector.load %arg6[%c0_80, %c2_81, %c0_82] : memref<2x7x8xf32, #tpu.memory_space<vmem>>, vector<1x1x8xf32>
    %101 = vector.shape_cast %100 : vector<1x1x8xf32> to vector<8xf32>
    %102 = vector.shape_cast %101 : vector<8xf32> to vector<1x1x8xf32>
    %103 = vector.broadcast %102 : vector<1x1x8xf32> to vector<16x16x8xf32>
    %104 = arith.mulf %99, %103 : vector<16x16x8xf32>
    %105 = arith.addf %98, %104 : vector<16x16x8xf32>
    %c3_83 = arith.constant 3 : index
    %c3_84 = arith.constant 3 : index
    %c0_85 = arith.constant 0 : index
    %106 = vector.load %arg12[%c3_83, %c3_84, %c0_85] : memref<22x22x8xf32, #tpu.memory_space<vmem>>, vector<16x16x8xf32>
    %c0_86 = arith.constant 0 : index
    %c3_87 = arith.constant 3 : index
    %c0_88 = arith.constant 0 : index
    %107 = vector.load %arg6[%c0_86, %c3_87, %c0_88] : memref<2x7x8xf32, #tpu.memory_space<vmem>>, vector<1x1x8xf32>
    %108 = vector.shape_cast %107 : vector<1x1x8xf32> to vector<8xf32>
    %109 = vector.shape_cast %108 : vector<8xf32> to vector<1x1x8xf32>
    %110 = vector.broadcast %109 : vector<1x1x8xf32> to vector<16x16x8xf32>
    %111 = arith.mulf %106, %110 : vector<16x16x8xf32>
    %112 = arith.addf %105, %111 : vector<16x16x8xf32>
    %c4_89 = arith.constant 4 : index
    %c3_90 = arith.constant 3 : index
    %c0_91 = arith.constant 0 : index
    %113 = vector.load %arg12[%c4_89, %c3_90, %c0_91] : memref<22x22x8xf32, #tpu.memory_space<vmem>>, vector<16x16x8xf32>
    %c0_92 = arith.constant 0 : index
    %c4_93 = arith.constant 4 : index
    %c0_94 = arith.constant 0 : index
    %114 = vector.load %arg6[%c0_92, %c4_93, %c0_94] : memref<2x7x8xf32, #tpu.memory_space<vmem>>, vector<1x1x8xf32>
    %115 = vector.shape_cast %114 : vector<1x1x8xf32> to vector<8xf32>
    %116 = vector.shape_cast %115 : vector<8xf32> to vector<1x1x8xf32>
    %117 = vector.broadcast %116 : vector<1x1x8xf32> to vector<16x16x8xf32>
    %118 = arith.mulf %113, %117 : vector<16x16x8xf32>
    %119 = arith.addf %112, %118 : vector<16x16x8xf32>
    %c5_95 = arith.constant 5 : index
    %c3_96 = arith.constant 3 : index
    %c0_97 = arith.constant 0 : index
    %120 = vector.load %arg12[%c5_95, %c3_96, %c0_97] : memref<22x22x8xf32, #tpu.memory_space<vmem>>, vector<16x16x8xf32>
    %c0_98 = arith.constant 0 : index
    %c5_99 = arith.constant 5 : index
    %c0_100 = arith.constant 0 : index
    %121 = vector.load %arg6[%c0_98, %c5_99, %c0_100] : memref<2x7x8xf32, #tpu.memory_space<vmem>>, vector<1x1x8xf32>
    %122 = vector.shape_cast %121 : vector<1x1x8xf32> to vector<8xf32>
    %123 = vector.shape_cast %122 : vector<8xf32> to vector<1x1x8xf32>
    %124 = vector.broadcast %123 : vector<1x1x8xf32> to vector<16x16x8xf32>
    %125 = arith.mulf %120, %124 : vector<16x16x8xf32>
    %126 = arith.addf %119, %125 : vector<16x16x8xf32>
    %c6_101 = arith.constant 6 : index
    %c3_102 = arith.constant 3 : index
    %c0_103 = arith.constant 0 : index
    %127 = vector.load %arg12[%c6_101, %c3_102, %c0_103] : memref<22x22x8xf32, #tpu.memory_space<vmem>>, vector<16x16x8xf32>
    %c0_104 = arith.constant 0 : index
    %c6_105 = arith.constant 6 : index
    %c0_106 = arith.constant 0 : index
    %128 = vector.load %arg6[%c0_104, %c6_105, %c0_106] : memref<2x7x8xf32, #tpu.memory_space<vmem>>, vector<1x1x8xf32>
    %129 = vector.shape_cast %128 : vector<1x1x8xf32> to vector<8xf32>
    %130 = vector.shape_cast %129 : vector<8xf32> to vector<1x1x8xf32>
    %131 = vector.broadcast %130 : vector<1x1x8xf32> to vector<16x16x8xf32>
    %132 = arith.mulf %127, %131 : vector<16x16x8xf32>
    %133 = arith.addf %126, %132 : vector<16x16x8xf32>
    %134 = vector.shape_cast %133 : vector<16x16x8xf32> to vector<256x8xf32>
    %c0_107 = arith.constant 0 : index
    %c0_108 = arith.constant 0 : index
    %135 = vector.load %arg7[%c0_107, %c0_108] : memref<8x8xf32, #tpu.memory_space<vmem>>, vector<8x8xf32>
    %cst_109 = arith.constant dense<0.000000e+00> : vector<256x8xf32>
    %136 = tpu.matmul %134, %135, %cst_109 {dimension_numbers = #tpu.dot_dimension_numbers<[1], [0], [0], [1], [0, 0, 1, 1], [], []>} : vector<256x8xf32>, vector<8x8xf32>, vector<256x8xf32> -> vector<256x8xf32>
    %c0_110 = arith.constant 0 : index
    %c0_111 = arith.constant 0 : index
    %137 = vector.load %arg8[%c0_110, %c0_111] : memref<2x8xf32, #tpu.memory_space<vmem>>, vector<1x8xf32>
    %138 = vector.shape_cast %137 : vector<1x8xf32> to vector<8xf32>
    %139 = vector.shape_cast %138 : vector<8xf32> to vector<1x8xf32>
    %140 = vector.broadcast %139 : vector<1x8xf32> to vector<256x8xf32>
    %141 = arith.addf %136, %140 : vector<256x8xf32>
    %142 = vector.shape_cast %141 : vector<256x8xf32> to vector<16x16x8xf32>
    %c0_112 = arith.constant 0 : index
    %c0_113 = arith.constant 0 : index
    %c0_114 = arith.constant 0 : index
    %c0_115 = arith.constant 0 : index
    %143 = vector.load %arg9[%c0_112, %c0_113, %c0_114, %c0_115] : memref<1x16x16x8xf32, #tpu.memory_space<vmem>>, vector<1x16x16x8xf32>
    %144 = vector.shape_cast %143 : vector<1x16x16x8xf32> to vector<16x16x8xf32>
    %145 = vector.shape_cast %142 : vector<16x16x8xf32> to vector<1x16x16x8xf32>
    tpu.vector_store %arg9[%c0_112, %c0_113, %c0_114, %c0_115], %145 {strides = array<i32>} : memref<1x16x16x8xf32, #tpu.memory_space<vmem>>, vector<1x16x16x8xf32>,
    %c0_116 = arith.constant 0 : index
    %c0_117 = arith.constant 0 : index
    %c0_118 = arith.constant 0 : index
    %c0_119 = arith.constant 0 : index
    %146 = vector.load %arg2[%c0_116, %c0_117, %c0_118, %c0_119] : memref<1x16x16x8xf32, #tpu.memory_space<vmem>>, vector<1x16x16x8xf32>
    %147 = vector.shape_cast %146 : vector<1x16x16x8xf32> to vector<16x16x8xf32>
    %cst_120 = arith.constant dense<0.000000e+00> : vector<16x16xf32>
    %148 = vector.multi_reduction <add>, %147, %cst_120 [2] : vector<16x16x8xf32> to vector<16x16xf32>
    %149 = vector.shape_cast %148 : vector<16x16xf32> to vector<16x16x1xf32>
    %cst_121 = arith.constant 8.000000e+00 : f32
    %150 = vector.broadcast %cst_121 : f32 to vector<16x16x1xf32>
    %151 = arith.divf %149, %150 : vector<16x16x1xf32>
    %152 = vector.broadcast %151 : vector<16x16x1xf32> to vector<16x16x8xf32>
    %153 = arith.subf %147, %152 : vector<16x16x8xf32>
    %154 = arith.mulf %153, %153 : vector<16x16x8xf32>
    %cst_122 = arith.constant dense<0.000000e+00> : vector<16x16xf32>
    %155 = vector.multi_reduction <add>, %154, %cst_122 [2] : vector<16x16x8xf32> to vector<16x16xf32>
    %156 = vector.shape_cast %155 : vector<16x16xf32> to vector<16x16x1xf32>
    %cst_123 = arith.constant 8.000000e+00 : f32
    %157 = vector.broadcast %cst_123 : f32 to vector<16x16x1xf32>
    %158 = arith.divf %156, %157 : vector<16x16x1xf32>
    %cst_124 = arith.constant 9.99999974E-6 : f32
    %159 = vector.broadcast %cst_124 : f32 to vector<16x16x1xf32>
    %160 = arith.addf %158, %159 : vector<16x16x1xf32>
    %161 = math.rsqrt %160 : vector<16x16x1xf32>
    %162 = vector.broadcast %161 : vector<16x16x1xf32> to vector<16x16x8xf32>
    %163 = arith.mulf %153, %162 : vector<16x16x8xf32>
    %c1_125 = arith.constant 1 : index
    %c0_126 = arith.constant 0 : index
    %164 = vector.load %arg3[%c1_125, %c0_126] : memref<2x8xf32, #tpu.memory_space<vmem>>, vector<1x8xf32>
    %165 = vector.shape_cast %164 : vector<1x8xf32> to vector<8xf32>
    %166 = vector.shape_cast %165 : vector<8xf32> to vector<1x1x8xf32>
    %167 = vector.broadcast %166 : vector<1x1x8xf32> to vector<16x16x8xf32>
    %168 = arith.mulf %163, %167 : vector<16x16x8xf32>
    %c1_127 = arith.constant 1 : index
    %c0_128 = arith.constant 0 : index
    %169 = vector.load %arg4[%c1_127, %c0_128] : memref<2x8xf32, #tpu.memory_space<vmem>>, vector<1x8xf32>
    %170 = vector.shape_cast %169 : vector<1x8xf32> to vector<8xf32>
    %171 = vector.shape_cast %170 : vector<8xf32> to vector<1x1x8xf32>
    %172 = vector.broadcast %171 : vector<1x1x8xf32> to vector<16x16x8xf32>
    %173 = arith.addf %168, %172 : vector<16x16x8xf32>
    %c3_129 = arith.constant 3 : index
    %c3_130 = arith.constant 3 : index
    %c0_131 = arith.constant 0 : index
    %174 = vector.load %arg12[%c3_129, %c3_130, %c0_131] : memref<22x22x8xf32, #tpu.memory_space<vmem>>, vector<16x16x8xf32>
    tpu.vector_store %arg12[%c3_129, %c3_130, %c0_131], %173 {strides = array<i32>} : memref<22x22x8xf32, #tpu.memory_space<vmem>>, vector<16x16x8xf32>,
    %c3_132 = arith.constant 3 : index
    %c0_133 = arith.constant 0 : index
    %c0_134 = arith.constant 0 : index
    %175 = vector.load %arg12[%c3_132, %c0_133, %c0_134] : memref<22x22x8xf32, #tpu.memory_space<vmem>>, vector<16x16x8xf32>
    %c1_135 = arith.constant 1 : index
    %c0_136 = arith.constant 0 : index
    %c0_137 = arith.constant 0 : index
    %176 = vector.load %arg5[%c1_135, %c0_136, %c0_137] : memref<2x7x8xf32, #tpu.memory_space<vmem>>, vector<1x1x8xf32>
    %177 = vector.shape_cast %176 : vector<1x1x8xf32> to vector<8xf32>
    %178 = vector.shape_cast %177 : vector<8xf32> to vector<1x1x8xf32>
    %179 = vector.broadcast %178 : vector<1x1x8xf32> to vector<16x16x8xf32>
    %180 = arith.mulf %175, %179 : vector<16x16x8xf32>
    %c3_138 = arith.constant 3 : index
    %c1_139 = arith.constant 1 : index
    %c0_140 = arith.constant 0 : index
    %181 = vector.load %arg12[%c3_138, %c1_139, %c0_140] : memref<22x22x8xf32, #tpu.memory_space<vmem>>, vector<16x16x8xf32>
    %c1_141 = arith.constant 1 : index
    %c1_142 = arith.constant 1 : index
    %c0_143 = arith.constant 0 : index
    %182 = vector.load %arg5[%c1_141, %c1_142, %c0_143] : memref<2x7x8xf32, #tpu.memory_space<vmem>>, vector<1x1x8xf32>
    %183 = vector.shape_cast %182 : vector<1x1x8xf32> to vector<8xf32>
    %184 = vector.shape_cast %183 : vector<8xf32> to vector<1x1x8xf32>
    %185 = vector.broadcast %184 : vector<1x1x8xf32> to vector<16x16x8xf32>
    %186 = arith.mulf %181, %185 : vector<16x16x8xf32>
    %187 = arith.addf %180, %186 : vector<16x16x8xf32>
    %c3_144 = arith.constant 3 : index
    %c2_145 = arith.constant 2 : index
    %c0_146 = arith.constant 0 : index
    %188 = vector.load %arg12[%c3_144, %c2_145, %c0_146] : memref<22x22x8xf32, #tpu.memory_space<vmem>>, vector<16x16x8xf32>
    %c1_147 = arith.constant 1 : index
    %c2_148 = arith.constant 2 : index
    %c0_149 = arith.constant 0 : index
    %189 = vector.load %arg5[%c1_147, %c2_148, %c0_149] : memref<2x7x8xf32, #tpu.memory_space<vmem>>, vector<1x1x8xf32>
    %190 = vector.shape_cast %189 : vector<1x1x8xf32> to vector<8xf32>
    %191 = vector.shape_cast %190 : vector<8xf32> to vector<1x1x8xf32>
    %192 = vector.broadcast %191 : vector<1x1x8xf32> to vector<16x16x8xf32>
    %193 = arith.mulf %188, %192 : vector<16x16x8xf32>
    %194 = arith.addf %187, %193 : vector<16x16x8xf32>
    %c3_150 = arith.constant 3 : index
    %c3_151 = arith.constant 3 : index
    %c0_152 = arith.constant 0 : index
    %195 = vector.load %arg12[%c3_150, %c3_151, %c0_152] : memref<22x22x8xf32, #tpu.memory_space<vmem>>, vector<16x16x8xf32>
    %c1_153 = arith.constant 1 : index
    %c3_154 = arith.constant 3 : index
    %c0_155 = arith.constant 0 : index
    %196 = vector.load %arg5[%c1_153, %c3_154, %c0_155] : memref<2x7x8xf32, #tpu.memory_space<vmem>>, vector<1x1x8xf32>
    %197 = vector.shape_cast %196 : vector<1x1x8xf32> to vector<8xf32>
    %198 = vector.shape_cast %197 : vector<8xf32> to vector<1x1x8xf32>
    %199 = vector.broadcast %198 : vector<1x1x8xf32> to vector<16x16x8xf32>
    %200 = arith.mulf %195, %199 : vector<16x16x8xf32>
    %201 = arith.addf %194, %200 : vector<16x16x8xf32>
    %c3_156 = arith.constant 3 : index
    %c4_157 = arith.constant 4 : index
    %c0_158 = arith.constant 0 : index
    %202 = vector.load %arg12[%c3_156, %c4_157, %c0_158] : memref<22x22x8xf32, #tpu.memory_space<vmem>>, vector<16x16x8xf32>
    %c1_159 = arith.constant 1 : index
    %c4_160 = arith.constant 4 : index
    %c0_161 = arith.constant 0 : index
    %203 = vector.load %arg5[%c1_159, %c4_160, %c0_161] : memref<2x7x8xf32, #tpu.memory_space<vmem>>, vector<1x1x8xf32>
    %204 = vector.shape_cast %203 : vector<1x1x8xf32> to vector<8xf32>
    %205 = vector.shape_cast %204 : vector<8xf32> to vector<1x1x8xf32>
    %206 = vector.broadcast %205 : vector<1x1x8xf32> to vector<16x16x8xf32>
    %207 = arith.mulf %202, %206 : vector<16x16x8xf32>
    %208 = arith.addf %201, %207 : vector<16x16x8xf32>
    %c3_162 = arith.constant 3 : index
    %c5_163 = arith.constant 5 : index
    %c0_164 = arith.constant 0 : index
    %209 = vector.load %arg12[%c3_162, %c5_163, %c0_164] : memref<22x22x8xf32, #tpu.memory_space<vmem>>, vector<16x16x8xf32>
    %c1_165 = arith.constant 1 : index
    %c5_166 = arith.constant 5 : index
    %c0_167 = arith.constant 0 : index
    %210 = vector.load %arg5[%c1_165, %c5_166, %c0_167] : memref<2x7x8xf32, #tpu.memory_space<vmem>>, vector<1x1x8xf32>
    %211 = vector.shape_cast %210 : vector<1x1x8xf32> to vector<8xf32>
    %212 = vector.shape_cast %211 : vector<8xf32> to vector<1x1x8xf32>
    %213 = vector.broadcast %212 : vector<1x1x8xf32> to vector<16x16x8xf32>
    %214 = arith.mulf %209, %213 : vector<16x16x8xf32>
    %215 = arith.addf %208, %214 : vector<16x16x8xf32>
    %c3_168 = arith.constant 3 : index
    %c6_169 = arith.constant 6 : index
    %c0_170 = arith.constant 0 : index
    %216 = vector.load %arg12[%c3_168, %c6_169, %c0_170] : memref<22x22x8xf32, #tpu.memory_space<vmem>>, vector<16x16x8xf32>
    %c1_171 = arith.constant 1 : index
    %c6_172 = arith.constant 6 : index
    %c0_173 = arith.constant 0 : index
    %217 = vector.load %arg5[%c1_171, %c6_172, %c0_173] : memref<2x7x8xf32, #tpu.memory_space<vmem>>, vector<1x1x8xf32>
    %218 = vector.shape_cast %217 : vector<1x1x8xf32> to vector<8xf32>
    %219 = vector.shape_cast %218 : vector<8xf32> to vector<1x1x8xf32>
    %220 = vector.broadcast %219 : vector<1x1x8xf32> to vector<16x16x8xf32>
    %221 = arith.mulf %216, %220 : vector<16x16x8xf32>
    %222 = arith.addf %215, %221 : vector<16x16x8xf32>
    %c0_174 = arith.constant 0 : index
    %c3_175 = arith.constant 3 : index
    %c0_176 = arith.constant 0 : index
    %223 = vector.load %arg12[%c0_174, %c3_175, %c0_176] : memref<22x22x8xf32, #tpu.memory_space<vmem>>, vector<16x16x8xf32>
    %c1_177 = arith.constant 1 : index
    %c0_178 = arith.constant 0 : index
    %c0_179 = arith.constant 0 : index
    %224 = vector.load %arg6[%c1_177, %c0_178, %c0_179] : memref<2x7x8xf32, #tpu.memory_space<vmem>>, vector<1x1x8xf32>
    %225 = vector.shape_cast %224 : vector<1x1x8xf32> to vector<8xf32>
    %226 = vector.shape_cast %225 : vector<8xf32> to vector<1x1x8xf32>
    %227 = vector.broadcast %226 : vector<1x1x8xf32> to vector<16x16x8xf32>
    %228 = arith.mulf %223, %227 : vector<16x16x8xf32>
    %229 = arith.addf %222, %228 : vector<16x16x8xf32>
    %c1_180 = arith.constant 1 : index
    %c3_181 = arith.constant 3 : index
    %c0_182 = arith.constant 0 : index
    %230 = vector.load %arg12[%c1_180, %c3_181, %c0_182] : memref<22x22x8xf32, #tpu.memory_space<vmem>>, vector<16x16x8xf32>
    %c1_183 = arith.constant 1 : index
    %c1_184 = arith.constant 1 : index
    %c0_185 = arith.constant 0 : index
    %231 = vector.load %arg6[%c1_183, %c1_184, %c0_185] : memref<2x7x8xf32, #tpu.memory_space<vmem>>, vector<1x1x8xf32>
    %232 = vector.shape_cast %231 : vector<1x1x8xf32> to vector<8xf32>
    %233 = vector.shape_cast %232 : vector<8xf32> to vector<1x1x8xf32>
    %234 = vector.broadcast %233 : vector<1x1x8xf32> to vector<16x16x8xf32>
    %235 = arith.mulf %230, %234 : vector<16x16x8xf32>
    %236 = arith.addf %229, %235 : vector<16x16x8xf32>
    %c2_186 = arith.constant 2 : index
    %c3_187 = arith.constant 3 : index
    %c0_188 = arith.constant 0 : index
    %237 = vector.load %arg12[%c2_186, %c3_187, %c0_188] : memref<22x22x8xf32, #tpu.memory_space<vmem>>, vector<16x16x8xf32>
    %c1_189 = arith.constant 1 : index
    %c2_190 = arith.constant 2 : index
    %c0_191 = arith.constant 0 : index
    %238 = vector.load %arg6[%c1_189, %c2_190, %c0_191] : memref<2x7x8xf32, #tpu.memory_space<vmem>>, vector<1x1x8xf32>
    %239 = vector.shape_cast %238 : vector<1x1x8xf32> to vector<8xf32>
    %240 = vector.shape_cast %239 : vector<8xf32> to vector<1x1x8xf32>
    %241 = vector.broadcast %240 : vector<1x1x8xf32> to vector<16x16x8xf32>
    %242 = arith.mulf %237, %241 : vector<16x16x8xf32>
    %243 = arith.addf %236, %242 : vector<16x16x8xf32>
    %c3_192 = arith.constant 3 : index
    %c3_193 = arith.constant 3 : index
    %c0_194 = arith.constant 0 : index
    %244 = vector.load %arg12[%c3_192, %c3_193, %c0_194] : memref<22x22x8xf32, #tpu.memory_space<vmem>>, vector<16x16x8xf32>
    %c1_195 = arith.constant 1 : index
    %c3_196 = arith.constant 3 : index
    %c0_197 = arith.constant 0 : index
    %245 = vector.load %arg6[%c1_195, %c3_196, %c0_197] : memref<2x7x8xf32, #tpu.memory_space<vmem>>, vector<1x1x8xf32>
    %246 = vector.shape_cast %245 : vector<1x1x8xf32> to vector<8xf32>
    %247 = vector.shape_cast %246 : vector<8xf32> to vector<1x1x8xf32>
    %248 = vector.broadcast %247 : vector<1x1x8xf32> to vector<16x16x8xf32>
    %249 = arith.mulf %244, %248 : vector<16x16x8xf32>
    %250 = arith.addf %243, %249 : vector<16x16x8xf32>
    %c4_198 = arith.constant 4 : index
    %c3_199 = arith.constant 3 : index
    %c0_200 = arith.constant 0 : index
    %251 = vector.load %arg12[%c4_198, %c3_199, %c0_200] : memref<22x22x8xf32, #tpu.memory_space<vmem>>, vector<16x16x8xf32>
    %c1_201 = arith.constant 1 : index
    %c4_202 = arith.constant 4 : index
    %c0_203 = arith.constant 0 : index
    %252 = vector.load %arg6[%c1_201, %c4_202, %c0_203] : memref<2x7x8xf32, #tpu.memory_space<vmem>>, vector<1x1x8xf32>
    %253 = vector.shape_cast %252 : vector<1x1x8xf32> to vector<8xf32>
    %254 = vector.shape_cast %253 : vector<8xf32> to vector<1x1x8xf32>
    %255 = vector.broadcast %254 : vector<1x1x8xf32> to vector<16x16x8xf32>
    %256 = arith.mulf %251, %255 : vector<16x16x8xf32>
    %257 = arith.addf %250, %256 : vector<16x16x8xf32>
    %c5_204 = arith.constant 5 : index
    %c3_205 = arith.constant 3 : index
    %c0_206 = arith.constant 0 : index
    %258 = vector.load %arg12[%c5_204, %c3_205, %c0_206] : memref<22x22x8xf32, #tpu.memory_space<vmem>>, vector<16x16x8xf32>
    %c1_207 = arith.constant 1 : index
    %c5_208 = arith.constant 5 : index
    %c0_209 = arith.constant 0 : index
    %259 = vector.load %arg6[%c1_207, %c5_208, %c0_209] : memref<2x7x8xf32, #tpu.memory_space<vmem>>, vector<1x1x8xf32>
    %260 = vector.shape_cast %259 : vector<1x1x8xf32> to vector<8xf32>
    %261 = vector.shape_cast %260 : vector<8xf32> to vector<1x1x8xf32>
    %262 = vector.broadcast %261 : vector<1x1x8xf32> to vector<16x16x8xf32>
    %263 = arith.mulf %258, %262 : vector<16x16x8xf32>
    %264 = arith.addf %257, %263 : vector<16x16x8xf32>
    %c6_210 = arith.constant 6 : index
    %c3_211 = arith.constant 3 : index
    %c0_212 = arith.constant 0 : index
    %265 = vector.load %arg12[%c6_210, %c3_211, %c0_212] : memref<22x22x8xf32, #tpu.memory_space<vmem>>, vector<16x16x8xf32>
    %c1_213 = arith.constant 1 : index
    %c6_214 = arith.constant 6 : index
    %c0_215 = arith.constant 0 : index
    %266 = vector.load %arg6[%c1_213, %c6_214, %c0_215] : memref<2x7x8xf32, #tpu.memory_space<vmem>>, vector<1x1x8xf32>
    %267 = vector.shape_cast %266 : vector<1x1x8xf32> to vector<8xf32>
    %268 = vector.shape_cast %267 : vector<8xf32> to vector<1x1x8xf32>
    %269 = vector.broadcast %268 : vector<1x1x8xf32> to vector<16x16x8xf32>
    %270 = arith.mulf %265, %269 : vector<16x16x8xf32>
    %271 = arith.addf %264, %270 : vector<16x16x8xf32>
    %272 = vector.shape_cast %271 : vector<16x16x8xf32> to vector<256x8xf32>
    %c0_216 = arith.constant 0 : index
    %c0_217 = arith.constant 0 : index
    %273 = vector.load %arg7[%c0_216, %c0_217] : memref<8x8xf32, #tpu.memory_space<vmem>>, vector<8x8xf32>
    %cst_218 = arith.constant dense<0.000000e+00> : vector<256x8xf32>
    %274 = tpu.matmul %272, %273, %cst_218 {dimension_numbers = #tpu.dot_dimension_numbers<[1], [0], [0], [1], [0, 0, 1, 1], [], []>} : vector<256x8xf32>, vector<8x8xf32>, vector<256x8xf32> -> vector<256x8xf32>
    %c1_219 = arith.constant 1 : index
    %c0_220 = arith.constant 0 : index
    %275 = vector.load %arg8[%c1_219, %c0_220] : memref<2x8xf32, #tpu.memory_space<vmem>>, vector<1x8xf32>
    %276 = vector.shape_cast %275 : vector<1x8xf32> to vector<8xf32>
    %277 = vector.shape_cast %276 : vector<8xf32> to vector<1x8xf32>
    %278 = vector.broadcast %277 : vector<1x8xf32> to vector<256x8xf32>
    %279 = arith.addf %274, %278 : vector<256x8xf32>
    %280 = vector.shape_cast %279 : vector<256x8xf32> to vector<16x16x8xf32>
    %c0_221 = arith.constant 0 : index
    %c0_222 = arith.constant 0 : index
    %c0_223 = arith.constant 0 : index
    %c0_224 = arith.constant 0 : index
    %281 = vector.load %arg10[%c0_221, %c0_222, %c0_223, %c0_224] : memref<1x16x16x8xf32, #tpu.memory_space<vmem>>, vector<1x16x16x8xf32>
    %282 = vector.shape_cast %281 : vector<1x16x16x8xf32> to vector<16x16x8xf32>
    %283 = vector.shape_cast %280 : vector<16x16x8xf32> to vector<1x16x16x8xf32>
    tpu.vector_store %arg10[%c0_221, %c0_222, %c0_223, %c0_224], %283 {strides = array<i32>} : memref<1x16x16x8xf32, #tpu.memory_space<vmem>>, vector<1x16x16x8xf32>,
    %284 = arith.addf %35, %173 : vector<16x16x8xf32>
    %c0_225 = arith.constant 0 : index
    %c0_226 = arith.constant 0 : index
    %c0_227 = arith.constant 0 : index
    %c0_228 = arith.constant 0 : index
    %285 = vector.load %arg11[%c0_225, %c0_226, %c0_227, %c0_228] : memref<1x16x16x8xf32, #tpu.memory_space<vmem>>, vector<1x16x16x8xf32>
    %286 = vector.shape_cast %285 : vector<1x16x16x8xf32> to vector<16x16x8xf32>
    %287 = vector.shape_cast %284 : vector<16x16x8xf32> to vector<1x16x16x8xf32>
    tpu.vector_store %arg11[%c0_225, %c0_226, %c0_227, %c0_228], %287 {strides = array<i32>} : memref<1x16x16x8xf32, #tpu.memory_space<vmem>>, vector<1x16x16x8xf32>,
    return
  }
  func.func @transform_0(%arg0: i32) -> (i32, i32, i32, i32) {
    %c0_i32 = arith.constant 0 : i32
    %c0_i32_0 = arith.constant 0 : i32
    %c0_i32_1 = arith.constant 0 : i32
    %c0_i32_2 = arith.constant 0 : i32
    return %arg0, %c0_i32, %c0_i32_0, %c0_i32_1 : i32, i32, i32, i32
  }
  func.func @transform_1(%arg0: i32) -> (i32, i32, i32, i32) {
    %c0_i32 = arith.constant 0 : i32
    %c0_i32_0 = arith.constant 0 : i32
    %c0_i32_1 = arith.constant 0 : i32
    %c0_i32_2 = arith.constant 0 : i32
    return %arg0, %c0_i32, %c0_i32_0, %c0_i32_1 : i32, i32, i32, i32
  }
  func.func @transform_2(%arg0: i32) -> (i32, i32) {
    %c0_i32 = arith.constant 0 : i32
    %c0_i32_0 = arith.constant 0 : i32
    %c0_i32_1 = arith.constant 0 : i32
    return %c0_i32, %c0_i32_0 : i32, i32
  }
  func.func @transform_3(%arg0: i32) -> (i32, i32) {
    %c0_i32 = arith.constant 0 : i32
    %c0_i32_0 = arith.constant 0 : i32
    %c0_i32_1 = arith.constant 0 : i32
    return %c0_i32, %c0_i32_0 : i32, i32
  }
  func.func @transform_4(%arg0: i32) -> (i32, i32, i32) {
    %c0_i32 = arith.constant 0 : i32
    %c0_i32_0 = arith.constant 0 : i32
    %c0_i32_1 = arith.constant 0 : i32
    %c0_i32_2 = arith.constant 0 : i32
    return %c0_i32, %c0_i32_0, %c0_i32_1 : i32, i32, i32
  }
  func.func @transform_5(%arg0: i32) -> (i32, i32, i32) {
    %c0_i32 = arith.constant 0 : i32
    %c0_i32_0 = arith.constant 0 : i32
    %c0_i32_1 = arith.constant 0 : i32
    %c0_i32_2 = arith.constant 0 : i32
    return %c0_i32, %c0_i32_0, %c0_i32_1 : i32, i32, i32
  }
  func.func @transform_6(%arg0: i32) -> (i32, i32) {
    %c0_i32 = arith.constant 0 : i32
    %c0_i32_0 = arith.constant 0 : i32
    %c0_i32_1 = arith.constant 0 : i32
    return %c0_i32, %c0_i32_0 : i32, i32
  }
  func.func @transform_7(%arg0: i32) -> (i32, i32) {
    %c0_i32 = arith.constant 0 : i32
    %c0_i32_0 = arith.constant 0 : i32
    %c0_i32_1 = arith.constant 0 : i32
    return %c0_i32, %c0_i32_0 : i32, i32
  }
  func.func @transform_8(%arg0: i32) -> (i32, i32, i32, i32) {
    %c0_i32 = arith.constant 0 : i32
    %c0_i32_0 = arith.constant 0 : i32
    %c0_i32_1 = arith.constant 0 : i32
    %c0_i32_2 = arith.constant 0 : i32
    return %arg0, %c0_i32, %c0_i32_0, %c0_i32_1 : i32, i32, i32, i32
  }
  func.func @transform_9(%arg0: i32) -> (i32, i32, i32, i32) {
    %c0_i32 = arith.constant 0 : i32
    %c0_i32_0 = arith.constant 0 : i32
    %c0_i32_1 = arith.constant 0 : i32
    %c0_i32_2 = arith.constant 0 : i32
    return %arg0, %c0_i32, %c0_i32_0, %c0_i32_1 : i32, i32, i32, i32
  }
  func.func @transform_10(%arg0: i32) -> (i32, i32, i32, i32) {
    %c0_i32 = arith.constant 0 : i32
    %c0_i32_0 = arith.constant 0 : i32
    %c0_i32_1 = arith.constant 0 : i32
    %c0_i32_2 = arith.constant 0 : i32
    return %arg0, %c0_i32, %c0_i32_0, %c0_i32_1 : i32, i32, i32, i32
  }
}

module attributes {stable_mosaic.version = 11 : i64} {
  func.func @_cross_attn_kernel(%arg0: i32, %arg1: i32, %arg2: memref<1x1x16x64xf32, #tpu.memory_space<vmem>>, %arg3: memref<1x1x16x64xf32, #tpu.memory_space<vmem>>, %arg4: memref<1x1x16x64xf32, #tpu.memory_space<vmem>>) attributes {dimension_semantics = [#tpu.dimension_semantics<parallel>, #tpu.dimension_semantics<parallel>], iteration_bounds = array<i64: 2, 2>, scalar_prefetch = 0 : i64, scratch_operands = 0 : i64, tpu.core_type = #tpu.core_type<tc>, window_params = [{transform_indices = @transform_0, window_bounds = array<i64: 1, 1, 16, 64>}, {transform_indices = @transform_1, window_bounds = array<i64: 1, 1, 16, 64>}, {transform_indices = @transform_2, window_bounds = array<i64: 1, 1, 16, 64>}]} {
    %c0 = arith.constant 0 : index
    %c0_0 = arith.constant 0 : index
    %c0_1 = arith.constant 0 : index
    %c0_2 = arith.constant 0 : index
    %0 = vector.load %arg2[%c0, %c0_0, %c0_1, %c0_2] : memref<1x1x16x64xf32, #tpu.memory_space<vmem>>, vector<1x1x16x64xf32>
    %1 = vector.shape_cast %0 : vector<1x1x16x64xf32> to vector<16x64xf32>
    %c0_3 = arith.constant 0 : index
    %c0_4 = arith.constant 0 : index
    %c0_5 = arith.constant 0 : index
    %c0_6 = arith.constant 0 : index
    %2 = vector.load %arg3[%c0_3, %c0_4, %c0_5, %c0_6] : memref<1x1x16x64xf32, #tpu.memory_space<vmem>>, vector<1x1x16x64xf32>
    %3 = vector.shape_cast %2 : vector<1x1x16x64xf32> to vector<16x64xf32>
    %4 = arith.mulf %1, %1 : vector<16x64xf32>
    %cst = arith.constant dense<0.000000e+00> : vector<16xf32>
    %5 = vector.multi_reduction <add>, %4, %cst [1] : vector<16x64xf32> to vector<16xf32>
    %6 = vector.shape_cast %5 : vector<16xf32> to vector<16x1xf32>
    %cst_7 = arith.constant 1.000000e-24 : f32
    %7 = vector.broadcast %cst_7 : f32 to vector<16x1xf32>
    %8 = arith.maximumf %6, %7 : vector<16x1xf32>
    %9 = math.rsqrt %8 : vector<16x1xf32>
    %10 = vector.broadcast %9 : vector<16x1xf32> to vector<16x64xf32>
    %11 = arith.mulf %1, %10 : vector<16x64xf32>
    %12 = arith.mulf %3, %3 : vector<16x64xf32>
    %cst_8 = arith.constant dense<0.000000e+00> : vector<16xf32>
    %13 = vector.multi_reduction <add>, %12, %cst_8 [1] : vector<16x64xf32> to vector<16xf32>
    %14 = vector.shape_cast %13 : vector<16xf32> to vector<16x1xf32>
    %cst_9 = arith.constant 1.000000e-24 : f32
    %15 = vector.broadcast %cst_9 : f32 to vector<16x1xf32>
    %16 = arith.maximumf %14, %15 : vector<16x1xf32>
    %17 = math.rsqrt %16 : vector<16x1xf32>
    %18 = vector.broadcast %17 : vector<16x1xf32> to vector<16x64xf32>
    %19 = arith.mulf %3, %18 : vector<16x64xf32>
    %cst_10 = arith.constant dense<0.000000e+00> : vector<16x16xf32>
    %20 = tpu.matmul %11, %19, %cst_10 {dimension_numbers = #tpu.dot_dimension_numbers<[1], [1], [0], [0], [0, 0, 1, 0], [], []>} : vector<16x64xf32>, vector<16x64xf32>, vector<16x16xf32> -> vector<16x16xf32>
    %cst_11 = arith.constant dense<0xFF800000> : vector<16xf32>
    %21 = vector.multi_reduction <maximumf>, %20, %cst_11 [1] : vector<16x16xf32> to vector<16xf32>
    %22 = vector.shape_cast %21 : vector<16xf32> to vector<16x1xf32>
    %23 = vector.broadcast %22 : vector<16x1xf32> to vector<16x16xf32>
    %24 = arith.subf %20, %23 : vector<16x16xf32>
    %25 = math.exp %24 : vector<16x16xf32>
    %cst_12 = arith.constant dense<0.000000e+00> : vector<16xf32>
    %26 = vector.multi_reduction <add>, %25, %cst_12 [1] : vector<16x16xf32> to vector<16xf32>
    %27 = vector.shape_cast %26 : vector<16xf32> to vector<16x1xf32>
    %28 = vector.broadcast %27 : vector<16x1xf32> to vector<16x16xf32>
    %29 = arith.divf %25, %28 : vector<16x16xf32>
    %cst_13 = arith.constant dense<0.000000e+00> : vector<16x64xf32>
    %30 = tpu.matmul %29, %3, %cst_13 {dimension_numbers = #tpu.dot_dimension_numbers<[1], [0], [0], [1], [0, 0, 1, 1], [], []>} : vector<16x16xf32>, vector<16x64xf32>, vector<16x64xf32> -> vector<16x64xf32>
    %31 = arith.addf %30, %11 : vector<16x64xf32>
    %c0_14 = arith.constant 0 : index
    %c0_15 = arith.constant 0 : index
    %c0_16 = arith.constant 0 : index
    %c0_17 = arith.constant 0 : index
    %32 = vector.load %arg4[%c0_14, %c0_15, %c0_16, %c0_17] : memref<1x1x16x64xf32, #tpu.memory_space<vmem>>, vector<1x1x16x64xf32>
    %33 = vector.shape_cast %32 : vector<1x1x16x64xf32> to vector<16x64xf32>
    %34 = vector.shape_cast %31 : vector<16x64xf32> to vector<1x1x16x64xf32>
    tpu.vector_store %arg4[%c0_14, %c0_15, %c0_16, %c0_17], %34 {strides = array<i32>} : memref<1x1x16x64xf32, #tpu.memory_space<vmem>>, vector<1x1x16x64xf32>,
    return
  }
  func.func @transform_0(%arg0: i32, %arg1: i32) -> (i32, i32, i32, i32) {
    %c0_i32 = arith.constant 0 : i32
    %c0_i32_0 = arith.constant 0 : i32
    %c0_i32_1 = arith.constant 0 : i32
    return %arg0, %arg1, %c0_i32, %c0_i32_0 : i32, i32, i32, i32
  }
  func.func @transform_1(%arg0: i32, %arg1: i32) -> (i32, i32, i32, i32) {
    %c0_i32 = arith.constant 0 : i32
    %c0_i32_0 = arith.constant 0 : i32
    %c0_i32_1 = arith.constant 0 : i32
    return %arg0, %arg1, %c0_i32, %c0_i32_0 : i32, i32, i32, i32
  }
  func.func @transform_2(%arg0: i32, %arg1: i32) -> (i32, i32, i32, i32) {
    %c0_i32 = arith.constant 0 : i32
    %c0_i32_0 = arith.constant 0 : i32
    %c0_i32_1 = arith.constant 0 : i32
    return %arg0, %arg1, %c0_i32, %c0_i32_0 : i32, i32, i32, i32
  }
}

module attributes {stable_mosaic.version = 11 : i64} {
  func.func @_final_proj_kernel(%arg0: i32, %arg1: memref<512x8xf32, #tpu.memory_space<vmem>>, %arg2: memref<512x8xf32, #tpu.memory_space<vmem>>, %arg3: memref<512x8xf32, #tpu.memory_space<vmem>>, %arg4: memref<8x8xf32, #tpu.memory_space<vmem>>, %arg5: memref<1x8xf32, #tpu.memory_space<vmem>>, %arg6: memref<512x8xf32, #tpu.memory_space<vmem>>) attributes {dimension_semantics = [#tpu.dimension_semantics<parallel>], iteration_bounds = array<i64: 1>, scalar_prefetch = 0 : i64, scratch_operands = 0 : i64, tpu.core_type = #tpu.core_type<tc>, window_params = [{transform_indices = @transform_0, window_bounds = array<i64: 512, 8>}, {transform_indices = @transform_1, window_bounds = array<i64: 512, 8>}, {transform_indices = @transform_2, window_bounds = array<i64: 512, 8>}, {pipeline_mode = #tpu.pipeline_mode<synchronous>, transform_indices = @transform_3, window_bounds = array<i64: 8, 8>}, {pipeline_mode = #tpu.pipeline_mode<synchronous>, transform_indices = @transform_4, window_bounds = array<i64: 1, 8>}, {transform_indices = @transform_5, window_bounds = array<i64: 512, 8>}]} {
    %c0 = arith.constant 0 : index
    %c0_0 = arith.constant 0 : index
    %0 = vector.load %arg1[%c0, %c0_0] : memref<512x8xf32, #tpu.memory_space<vmem>>, vector<512x8xf32>
    %c0_1 = arith.constant 0 : index
    %c0_2 = arith.constant 0 : index
    %1 = vector.load %arg2[%c0_1, %c0_2] : memref<512x8xf32, #tpu.memory_space<vmem>>, vector<512x8xf32>
    %2 = arith.addf %0, %1 : vector<512x8xf32>
    %c0_3 = arith.constant 0 : index
    %c0_4 = arith.constant 0 : index
    %3 = vector.load %arg4[%c0_3, %c0_4] : memref<8x8xf32, #tpu.memory_space<vmem>>, vector<8x8xf32>
    %cst = arith.constant dense<0.000000e+00> : vector<512x8xf32>
    %4 = tpu.matmul %2, %3, %cst {dimension_numbers = #tpu.dot_dimension_numbers<[1], [0], [0], [1], [0, 0, 1, 1], [], []>} : vector<512x8xf32>, vector<8x8xf32>, vector<512x8xf32> -> vector<512x8xf32>
    %c0_5 = arith.constant 0 : index
    %c0_6 = arith.constant 0 : index
    %5 = vector.load %arg5[%c0_5, %c0_6] : memref<1x8xf32, #tpu.memory_space<vmem>>, vector<1x8xf32>
    %6 = vector.broadcast %5 : vector<1x8xf32> to vector<512x8xf32>
    %7 = arith.addf %4, %6 : vector<512x8xf32>
    %c0_7 = arith.constant 0 : index
    %c0_8 = arith.constant 0 : index
    %8 = vector.load %arg3[%c0_7, %c0_8] : memref<512x8xf32, #tpu.memory_space<vmem>>, vector<512x8xf32>
    %9 = arith.addf %7, %8 : vector<512x8xf32>
    %c0_9 = arith.constant 0 : index
    %c0_10 = arith.constant 0 : index
    %10 = vector.load %arg6[%c0_9, %c0_10] : memref<512x8xf32, #tpu.memory_space<vmem>>, vector<512x8xf32>
    tpu.vector_store %arg6[%c0_9, %c0_10], %9 {strides = array<i32>} : memref<512x8xf32, #tpu.memory_space<vmem>>, vector<512x8xf32>,
    return
  }
  func.func @transform_0(%arg0: i32) -> (i32, i32) {
    %c0_i32 = arith.constant 0 : i32
    %c0_i32_0 = arith.constant 0 : i32
    return %arg0, %c0_i32 : i32, i32
  }
  func.func @transform_1(%arg0: i32) -> (i32, i32) {
    %c0_i32 = arith.constant 0 : i32
    %c0_i32_0 = arith.constant 0 : i32
    return %arg0, %c0_i32 : i32, i32
  }
  func.func @transform_2(%arg0: i32) -> (i32, i32) {
    %c0_i32 = arith.constant 0 : i32
    %c0_i32_0 = arith.constant 0 : i32
    return %arg0, %c0_i32 : i32, i32
  }
  func.func @transform_3(%arg0: i32) -> (i32, i32) {
    %c0_i32 = arith.constant 0 : i32
    %c0_i32_0 = arith.constant 0 : i32
    %c0_i32_1 = arith.constant 0 : i32
    return %c0_i32, %c0_i32_0 : i32, i32
  }
  func.func @transform_4(%arg0: i32) -> (i32, i32) {
    %c0_i32 = arith.constant 0 : i32
    %c0_i32_0 = arith.constant 0 : i32
    %c0_i32_1 = arith.constant 0 : i32
    return %c0_i32, %c0_i32_0 : i32, i32
  }
  func.func @transform_5(%arg0: i32) -> (i32, i32) {
    %c0_i32 = arith.constant 0 : i32
    %c0_i32_0 = arith.constant 0 : i32
    return %arg0, %c0_i32 : i32, i32
  }
}

</mosaic_0001>

<llo_original>
// kernel: cross_atten_forward.6
$region0: #{cross_atten_forward.6}
  #allocation0 [shape = 'u32[]', space=smem, size = 0x4, offset = 0x4, fixed_abs, tag = 'smem constant byte address 0x4 - core index']
  #allocation1 [shape = 'u32[72,128]{1,0:T(1,128)}', space=vmem, size = 0x9000, scoped, tag = 'internal scratch']
  %s0 = inlined_call_operand.vmem [shape: f32[2,2,16,64], index: 0, kind: input, shape index: {}]
  %s1 = inlined_call_operand.vmem [shape: f32[2,2,16,64], index: 1, kind: input, shape index: {}]
  %s2 = inlined_call_operand.vmem [shape: f32[2,2,16,64], index: 2, kind: output, shape index: {}]
  %s3 = sld [smem:[#allocation0]]
  $region41: #{cross_atten_forward.6} parent=0
    _
  %s5 = ssub.s32 1, %s3
  %s6 = scalar_select 0, %s5, %s3
  loop: start=0, step=1, limit=6
  $region2: #{cross_atten_forward.6} parent=0 // loop_pre_header
    _
  $region3: #{cross_atten_forward.6} parent=0 // loop_header
    %s8 = sphi 0, %s12
    %p9 = scmp.ge.s32.totalorder %s8, 6
    %s15 = sphi 0, %s27
    %s16 = sphi 0, %s23
    %s17 = sphi 0, %s15
    %s18 = sphi 0, %s16
    %s19 = sphi 0, %s17
    %s20 = sphi 0, %s18
    %s32 = sphi 0, %s34
    %s35 = sphi 0, %s32
    %s36 = sphi 0, %s35
    %s52 = sphi 0, %s36
    %s60 = sphi 0, %s62
    %s63 = sphi 0, %s60
    %s64 = sphi 0, %s63
    %s80 = sphi 0, %s64
    %s88 = sphi 0, %s90
    %s91 = sphi 0, %s88
    %s92 = sphi 0, %s91
    %s108 = sphi 0, %s92
  $region4: #{cross_atten_forward.6} parent=0 // loop_header_branch
    %11 = sbr.rel (%p9) target = $region8
  $region5: #{cross_atten_forward.6} parent=0 // loop_body
    %s13 = ssub.s32 %s8, 1
    %s14 = ssub.s32 %s8, 2
    %s21 = sadd.s32 1, %s16
    %p22 = scmp.ge.s32.totalorder %s21, 2
    %s23 = scalar_select %p22, 0, %s21
    %s24 = sadd.s32 1, %s15
    %s25 = scalar_select %p22, %s24, %s15
    %p26 = scmp.ge.s32.totalorder %s25, 2
    %s27 = scalar_select %p26, 0, %s25
    %s28 = ssub.s32 %s15, %s27
    %s29 = ssub.s32 %s16, %s23
    %s30 = sor.u32 %s28, %s29
    %p31 = scmp.eq.s32.totalorder %s30, 0
    %s33 = sadd.s32 %s32, 1
    %s34 = scalar_select %p31, %s32, %s33
    %p37 = pneg %p31
    %p38 = scmp.eq.s32.totalorder %s8, 3
    %p39 = por %p37, %p38
    %p40 = scmp.ne.s32.totalorder %s32, %s35
    %p41 = scmp.eq.s32.totalorder %s8, 0
    %p42 = por %p40, %p41
    %p43 = scmp.ne.s32.totalorder %s32, %s35
    %p44 = scmp.eq.s32.totalorder %s13, 3
    %p45 = por %p43, %p44
    %p46 = scmp.ne.s32.totalorder %s35, %s36
    %p47 = scmp.eq.s32.totalorder %s13, 0
    %p48 = por %p46, %p47
    %p49 = scmp.ne.s32.totalorder %s35, %s36
    %p50 = scmp.eq.s32.totalorder %s14, 3
    %p51 = por %p49, %p50
    %p53 = scmp.ne.s32.totalorder %s36, %s52
    %p54 = scmp.eq.s32.totalorder %s14, 0
    %p55 = por %p53, %p54
    %s56 = ssub.s32 %s15, %s27
    %s57 = ssub.s32 %s16, %s23
    %s58 = sor.u32 %s56, %s57
    %p59 = scmp.eq.s32.totalorder %s58, 0
    %s61 = sadd.s32 %s60, 1
    %s62 = scalar_select %p59, %s60, %s61
    %p65 = pneg %p59
    %p66 = scmp.eq.s32.totalorder %s8, 3
    %p67 = por %p65, %p66
    %p68 = scmp.ne.s32.totalorder %s60, %s63
    %p69 = scmp.eq.s32.totalorder %s8, 0
    %p70 = por %p68, %p69
    %p71 = scmp.ne.s32.totalorder %s60, %s63
    %p72 = scmp.eq.s32.totalorder %s13, 3
    %p73 = por %p71, %p72
    %p74 = scmp.ne.s32.totalorder %s63, %s64
    %p75 = scmp.eq.s32.totalorder %s13, 0
    %p76 = por %p74, %p75
    %p77 = scmp.ne.s32.totalorder %s63, %s64
    %p78 = scmp.eq.s32.totalorder %s14, 3
    %p79 = por %p77, %p78
    %p81 = scmp.ne.s32.totalorder %s64, %s80
    %p82 = scmp.eq.s32.totalorder %s14, 0
    %p83 = por %p81, %p82
    %s84 = ssub.s32 %s15, %s27
    %s85 = ssub.s32 %s16, %s23
    %s86 = sor.u32 %s84, %s85
    %p87 = scmp.eq.s32.totalorder %s86, 0
    %s89 = sadd.s32 %s88, 1
    %s90 = scalar_select %p87, %s88, %s89
    %p93 = pneg %p87
    %p94 = scmp.eq.s32.totalorder %s8, 3
    %p95 = por %p93, %p94
    %p96 = scmp.ne.s32.totalorder %s88, %s91
    %p97 = scmp.eq.s32.totalorder %s8, 0
    %p98 = por %p96, %p97
    %p99 = scmp.ne.s32.totalorder %s88, %s91
    %p100 = scmp.eq.s32.totalorder %s13, 3
    %p101 = por %p99, %p100
    %p102 = scmp.ne.s32.totalorder %s91, %s92
    %p103 = scmp.eq.s32.totalorder %s13, 0
    %p104 = por %p102, %p103
    %p105 = scmp.ne.s32.totalorder %s91, %s92
    %p106 = scmp.eq.s32.totalorder %s14, 3
    %p107 = por %p105, %p106
    %p109 = scmp.ne.s32.totalorder %s92, %s108
    %p110 = scmp.eq.s32.totalorder %s14, 0
    %p111 = por %p109, %p110
    %p112 = scmp.le.s32.totalorder 1, %s8
    %p113 = scmp.lt.s32.totalorder %s8, 5
    %p114 = pnand %p112, %p113
    %p115 = pneg %p114
    // Predicated region
    $region9: #{cross_atten_forward.6} parent=5 // pred_check
      _
    $region10: #{cross_atten_forward.6} parent=5 // pred_check_branch
      %117 = sbr.rel (%p114) target = $region12
    $region11: #{cross_atten_forward.6} parent=5 // pred_region
      %s118 = ssub.s32 %s8, 1
    $region12: #{cross_atten_forward.6} parent=5 // pred_fallthru
      _
    %p119 = scmp.lt.s32.totalorder %s8, 4
    // Predicated region
    $region13: #{cross_atten_forward.6} parent=5 // pred_check
      %p120 = pneg %p119
    $region14: #{cross_atten_forward.6} parent=5 // pred_check_branch
      %122 = sbr.rel (%p120) target = $region16
    $region15: #{cross_atten_forward.6} parent=5 // pred_region
      // Predicated region
      $region17: #{cross_atten_forward.6} parent=15 // pred_check
        %p123 = pneg %p42
      $region18: #{cross_atten_forward.6} parent=15 // pred_check_branch
        %125 = sbr.rel (%p123) target = $region20
      $region19: #{cross_atten_forward.6} parent=15 // pred_region
        %p126 = scmp.lt.s32.totalorder %s15, 1
        %s127 = scalar_select %p126, %s15, 1
        %p128 = scmp.lt.s32.totalorder %s16, 1
        %s129 = scalar_select %p128, %s16, 1
        %s130 = smul.addr %s129, 2
        %s131 = smul.addr %s127, 4
        %s132 = sadd.s32 %s130, %s131
        %s133 = smul.addr %s132, 8
        %s134 = scalar_lea.vmem %s0, %s133
      $region20: #{cross_atten_forward.6} parent=15 // pred_fallthru
        _
      // Predicated region
      $region21: #{cross_atten_forward.6} parent=15 // pred_check
        %p135 = pneg %p70
      $region22: #{cross_atten_forward.6} parent=15 // pred_check_branch
        %137 = sbr.rel (%p135) target = $region24
      $region23: #{cross_atten_forward.6} parent=15 // pred_region
        %p138 = scmp.lt.s32.totalorder %s15, 1
        %s139 = scalar_select %p138, %s15, 1
        %p140 = scmp.lt.s32.totalorder %s16, 1
        %s141 = scalar_select %p140, %s16, 1
        %s142 = smul.addr %s141, 2
        %s143 = smul.addr %s139, 4
        %s144 = sadd.s32 %s142, %s143
        %s145 = smul.addr %s144, 8
        %s146 = scalar_lea.vmem %s1, %s145
      $region24: #{cross_atten_forward.6} parent=15 // pred_fallthru
        _
    $region16: #{cross_atten_forward.6} parent=5 // pred_fallthru
      _
    %p147 = scmp.le.s32.totalorder 1, %s8
    %p148 = scmp.lt.s32.totalorder %s8, 5
    %p149 = pnand %p147, %p148
    %p150 = pneg %p149
    // Predicated region
    $region25: #{cross_atten_forward.6} parent=5 // pred_check
      _
    $region26: #{cross_atten_forward.6} parent=5 // pred_check_branch
      %152 = sbr.rel (%p149) target = $region28
    $region27: #{cross_atten_forward.6} parent=5 // pred_region
      %s153 = ssub.s32 %s8, 1
      %p154 = scmp.lt.s32.totalorder %s17, 1
      %s155 = scalar_select %p154, %s17, 1
      %p156 = scmp.lt.s32.totalorder %s18, 1
      %s157 = scalar_select %p156, %s18, 1
      %s158 = smul.addr %s157, 2
      %s159 = smul.addr %s155, 4
      %s160 = sadd.s32 %s158, %s159
      %s161 = smul.addr %s160, 8
      %s162 = scalar_lea.vmem %s0, %s161
      %p163 = pneg %p48
      %p164 = pneg %p45
      %p165 = scmp.lt.s32.totalorder %s17, 1
      %s166 = scalar_select %p165, %s17, 1
      %p167 = scmp.lt.s32.totalorder %s18, 1
      %s168 = scalar_select %p167, %s18, 1
      %s169 = smul.addr %s168, 2
      %s170 = smul.addr %s166, 4
      %s171 = sadd.s32 %s169, %s170
      %s172 = smul.addr %s171, 8
      %s173 = scalar_lea.vmem %s1, %s172
      %p174 = pneg %p76
      %p175 = pneg %p73
      %p176 = pneg %p104
      %p177 = pneg %p101
      %p178 = scmp.lt.s32.totalorder %s17, 1
      %s179 = scalar_select %p178, %s17, 1
      %p180 = scmp.lt.s32.totalorder %s18, 1
      %s181 = scalar_select %p180, %s18, 1
      %s182 = smul.addr %s181, 2
      %s183 = smul.addr %s179, 4
      %s184 = sadd.s32 %s182, %s183
      %s185 = smul.addr %s184, 8
      %s186 = scalar_lea.vmem %s2, %s185
      %p187 = scmp.lt.s32.totalorder %s17, 1
      %s188 = scalar_select %p187, %s17, 1
      %p189 = scmp.lt.s32.totalorder %s18, 1
      %s190 = scalar_select %p189, %s18, 1
      %s191 = smul.addr %s190, 2
      %s192 = smul.addr %s188, 4
      %s193 = sadd.s32 %s191, %s192
      %s194 = smul.addr %s193, 8
      %s195 = scalar_lea.vmem %s0, %s194
      %p196 = scmp.lt.s32.totalorder %s17, 1
      %s197 = scalar_select %p196, %s17, 1
      %p198 = scmp.lt.s32.totalorder %s18, 1
      %s199 = scalar_select %p198, %s18, 1
      %s200 = smul.addr %s199, 2
      %s201 = smul.addr %s197, 4
      %s202 = sadd.s32 %s200, %s201
      %s203 = smul.addr %s202, 8
      %s204 = scalar_lea.vmem %s1, %s203
      %p205 = scmp.lt.s32.totalorder %s17, 1
      %s206 = scalar_select %p205, %s17, 1
      %p207 = scmp.lt.s32.totalorder %s18, 1
      %s208 = scalar_select %p207, %s18, 1
      %s209 = smul.addr %s208, 2
      %s210 = smul.addr %s206, 4
      %s211 = sadd.s32 %s209, %s210
      %s212 = smul.addr %s211, 8
      %s213 = scalar_lea.vmem %s2, %s212
      %v214 = vld [vmem:[%s195] sm:$0xff]
      %v215 = vld [vmem:[%s195 + $0x8] sm:$0xff]
      %v216 = vld [vmem:[%s204] sm:$0xff]
      %v217 = vld [vmem:[%s204 + $0x8] sm:$0xff]
      %v218 = vmul.f32 %v214, %v214
      %v219 = vmul.f32 %v215, %v215
      %vm220 = vcmask 523264
      %v221 = vsel %vm220, %v218, 0.0
      %222 = vadd.xlane.f32.xlu0 %v221
      %v223 = vpop.xlane.xlu0 %222
      %v224 = vsel %vm220, %v219, 0.0
      %225 = vadd.xlane.f32.xlu0 %v224
      %v226 = vpop.xlane.xlu0 %225
      %v227 = vmax.f32 %v223, 1e-24
      %v228 = vmax.f32 %v226, 1e-24
      %v229 = vrsqrt.pop %v227
      %v230 = vmul.f32 %v229, %v227
      %v231 = vmul.f32 %v230, %v229
      %v232 = vmul.f32 0.5, %v231
      %v233 = vsub.f32 1.5, %v232
      %v234 = vmul.f32 %v229, %v233
      %vm235 = vweird.f32 %v227
      %vm236 = vweird.f32 %v229
      %vm237 = vmor %vm235, %vm236
      %v238 = vsel %vm237, %v229, %v234
      %v239 = vrsqrt.pop %v228
      %v240 = vmul.f32 %v239, %v228
      %v241 = vmul.f32 %v240, %v239
      %v242 = vmul.f32 0.5, %v241
      %v243 = vsub.f32 1.5, %v242
      %v244 = vmul.f32 %v239, %v243
      %vm245 = vweird.f32 %v228
      %vm246 = vweird.f32 %v239
      %vm247 = vmor %vm245, %vm246
      %v248 = vsel %vm247, %v239, %v244
      %v249 = vmul.f32 %v214, %v238
      %v250 = vmul.f32 %v215, %v248
      %v251 = vmul.f32 %v216, %v216
      %v252 = vmul.f32 %v217, %v217
      %v253 = vsel %vm220, %v251, 0.0
      %254 = vadd.xlane.f32.xlu0 %v253
      %v255 = vpop.xlane.xlu0 %254
      %v256 = vsel %vm220, %v252, 0.0
      %257 = vadd.xlane.f32.xlu0 %v256
      %v258 = vpop.xlane.xlu0 %257
      %v259 = vmax.f32 %v255, 1e-24
      %v260 = vmax.f32 %v258, 1e-24
      %v261 = vrsqrt.pop %v259
      %v262 = vmul.f32 %v261, %v259
      %v263 = vmul.f32 %v262, %v261
      %v264 = vmul.f32 0.5, %v263
      %v265 = vsub.f32 1.5, %v264
      %v266 = vmul.f32 %v261, %v265
      %vm267 = vweird.f32 %v259
      %vm268 = vweird.f32 %v261
      %vm269 = vmor %vm267, %vm268
      %v270 = vsel %vm269, %v261, %v266
      %v271 = vrsqrt.pop %v260
      %v272 = vmul.f32 %v271, %v260
      %v273 = vmul.f32 %v272, %v271
      %v274 = vmul.f32 0.5, %v273
      %v275 = vsub.f32 1.5, %v274
      %v276 = vmul.f32 %v271, %v275
      %vm277 = vweird.f32 %v260
      %vm278 = vweird.f32 %v271
      %vm279 = vmor %vm277, %vm278
      %v280 = vsel %vm279, %v271, %v276
      %v281 = vmul.f32 %v216, %v270
      %v282 = vmul.f32 %v217, %v280
      %v284 = vsel %vm220, %v249, 0
      %v287 = vsel %vm220, %v250, 0
      %v290 = vsel %vm220, %v281, 0
      %v293 = vsel %vm220, %v282, 0
      %295 = vmatpush.xpose.msra.mxu0 0.0
      %296 = vmatpush.xpose.msra.mxu0 0.0
      %297 = vmatpush.xpose.msra.mxu0 0.0
      %298 = vmatpush.xpose.msra.mxu0 0.0
      %299 = vmatpush.xpose.msra.mxu0 0.0
      %300 = vmatpush.xpose.msra.mxu0 0.0
      %301 = vmatpush.xpose.msra.mxu0 0.0
      %302 = vmatpush.xpose.msra.mxu0 0.0
      %303 = vmatpush.xpose.msra.mxu0 0.0
      %304 = vmatpush.xpose.msra.mxu0 0.0
      %305 = vmatpush.xpose.msra.mxu0 0.0
      %306 = vmatpush.xpose.msra.mxu0 0.0
      %307 = vmatpush.xpose.msra.mxu0 0.0
      %308 = vmatpush.xpose.msra.mxu0 0.0
      %309 = vmatpush.xpose.msra.mxu0 %v293
      %310 = vmatpush.xpose.msra.mxu0 %v290
      %311 = vmatmul.f32.gmra.mxu0 %v284
      %v312 = vpop.f32.mrf.mxu0
      %v313 = vadd.f32 0.0, %v312
      %314 = vmatmul.f32.gmra.mxu0 %v287
      %v315 = vpop.f32.mrf.mxu0
      %v316 = vadd.f32 0.0, %v315
      %317 = vdwg.mxu0
      %vm318 = vcmask 130048
      %v319 = vsel %vm318, %v313, -inf
      %320 = vmax.xlane.f32.xlu0 %v319
      %v321 = vpop.xlane.xlu0 %320
      %v322 = vsel %vm318, %v316, -inf
      %323 = vmax.xlane.f32.xlu0 %v322
      %v324 = vpop.xlane.xlu0 %323
      %v325 = vsub.f32 %v313, %v321
      %v326 = vsub.f32 %v316, %v324
      %v327 = vmul.f32 %v325, 1.442695
      %v328 = vpow.pop %v327
      %v329 = vmul.f32 %v326, 1.442695
      %v330 = vpow.pop %v329
      %v331 = vsel %vm318, %v328, 0.0
      %332 = vadd.xlane.f32.xlu0 %v331
      %v333 = vpop.xlane.xlu0 %332
      %v334 = vsel %vm318, %v330, 0.0
      %335 = vadd.xlane.f32.xlu0 %v334
      %v336 = vpop.xlane.xlu0 %335
      %v337 = vrcp.pop %v333
      %v338 = vmul.f32 %v333, %v337
      %v339 = vsub.f32 1.0, %v338
      %v340 = vmul.f32 %v337, %v339
      %v341 = vadd.f32 %v337, %v340
      %vm342 = vweird.f32 %v333
      %vm343 = vweird.f32 %v337
      %vm344 = vmor %vm342, %vm343
      %v345 = vsel %vm344, %v337, %v341
      %v346 = vand.u32 2147483647, %v333
      %vm347 = vcmp.eq.f32.partialorder %v346, 8.507059e+37
      %v348 = vand.u32 %v333, 2147483648
      %v349 = vor.u32 1.1754944e-38, %v348
      %v350 = vsel %vm347, %v349, %v345
      %v351 = vmul.f32 %v328, %v350
      %v352 = vrcp.pop %v336
      %v353 = vmul.f32 %v336, %v352
      %v354 = vsub.f32 1.0, %v353
      %v355 = vmul.f32 %v352, %v354
      %v356 = vadd.f32 %v352, %v355
      %vm357 = vweird.f32 %v336
      %vm358 = vweird.f32 %v352
      %vm359 = vmor %vm357, %vm358
      %v360 = vsel %vm359, %v352, %v356
      %v361 = vand.u32 2147483647, %v336
      %vm362 = vcmp.eq.f32.partialorder %v361, 8.507059e+37
      %v363 = vand.u32 %v336, 2147483648
      %v364 = vor.u32 1.1754944e-38, %v363
      %v365 = vsel %vm362, %v364, %v360
      %v366 = vmul.f32 %v330, %v365
      %v368 = vsel %vm318, %v351, 0
      %v371 = vsel %vm318, %v366, 0
      %373 = vmatpush.msra.mxu0 0.0
      %374 = vmatpush.msra.mxu0 0.0
      %375 = vmatpush.msra.mxu0 0.0
      %376 = vmatpush.msra.mxu0 0.0
      %377 = vmatpush.msra.mxu0 0.0
      %378 = vmatpush.msra.mxu0 0.0
      %379 = vmatpush.msra.mxu0 0.0
      %380 = vmatpush.msra.mxu0 0.0
      %381 = vmatpush.msra.mxu0 0.0
      %382 = vmatpush.msra.mxu0 0.0
      %383 = vmatpush.msra.mxu0 0.0
      %384 = vmatpush.msra.mxu0 0.0
      %385 = vmatpush.msra.mxu0 0.0
      %386 = vmatpush.msra.mxu0 0.0
      %387 = vmatpush.msra.mxu0 %v217
      %388 = vmatpush.msra.mxu0 %v216
      %389 = vmatmul.f32.gmra.mxu0 %v368
      %v390 = vpop.f32.mrf.mxu0
      %v391 = vadd.f32 %v249, %v390
      %392 = vmatmul.f32.gmra.mxu0 %v371
      %v393 = vpop.f32.mrf.mxu0
      %v394 = vadd.f32 %v250, %v393
      %395 = vdwg.mxu0
      %396 = vst.msk [vmem:[%s213] sm:$0xff] %vm220, %v391
      %397 = vst.msk [vmem:[%s213 + $0x8] sm:$0xff] %vm220, %v394
      %p398 = scmp.lt.s32.totalorder %s17, 1
      %s399 = scalar_select %p398, %s17, 1
      %p400 = scmp.lt.s32.totalorder %s18, 1
      %s401 = scalar_select %p400, %s18, 1
      %s402 = smul.addr %s401, 2
      %s403 = smul.addr %s399, 4
      %s404 = sadd.s32 %s402, %s403
      %s405 = smul.addr %s404, 8
      %s406 = scalar_lea.vmem %s2, %s405
      // Predicated region
      $region29: #{cross_atten_forward.6} parent=27 // pred_check
        %p407 = pneg %p101
      $region30: #{cross_atten_forward.6} parent=27 // pred_check_branch
        %409 = sbr.rel (%p407) target = $region32
      $region31: #{cross_atten_forward.6} parent=27 // pred_region
        _
      $region32: #{cross_atten_forward.6} parent=27 // pred_fallthru
        _
    $region28: #{cross_atten_forward.6} parent=5 // pred_fallthru
      _
    %p410 = scmp.le.s32.totalorder 2, %s8
    // Predicated region
    $region33: #{cross_atten_forward.6} parent=5 // pred_check
      %p411 = pneg %p410
    $region34: #{cross_atten_forward.6} parent=5 // pred_check_branch
      %413 = sbr.rel (%p411) target = $region36
    $region35: #{cross_atten_forward.6} parent=5 // pred_region
      %s414 = ssub.s32 %s8, 2
      // Predicated region
      $region37: #{cross_atten_forward.6} parent=35 // pred_check
        %p415 = pneg %p107
      $region38: #{cross_atten_forward.6} parent=35 // pred_check_branch
        %417 = sbr.rel (%p415) target = $region40
      $region39: #{cross_atten_forward.6} parent=35 // pred_region
        %p418 = scmp.lt.s32.totalorder %s19, 1
        %s419 = scalar_select %p418, %s19, 1
        %p420 = scmp.lt.s32.totalorder %s20, 1
        %s421 = scalar_select %p420, %s20, 1
        %s422 = smul.addr %s421, 2
        %s423 = smul.addr %s419, 4
        %s424 = sadd.s32 %s422, %s423
        %s425 = smul.addr %s424, 8
        %s426 = scalar_lea.vmem %s2, %s425
      $region40: #{cross_atten_forward.6} parent=35 // pred_fallthru
        _
    $region36: #{cross_atten_forward.6} parent=5 // pred_fallthru
      _
  $region6: #{cross_atten_forward.6} parent=0 // loop_footer
    %s12 = sadd.s32 1, %s8
  $region7: #{cross_atten_forward.6} parent=0 // loop_footer_branch
    %7 = sbr.rel target = $region3
  $region8: #{cross_atten_forward.6} parent=0 // loop_exit
    _

// kernel: cross_atten_forward.7
$region0: #{cross_atten_forward.7}
  #allocation0 [shape = 'u32[]', space=smem, size = 0x4, offset = 0x4, fixed_abs, tag = 'smem constant byte address 0x4 - core index']
  #allocation1 [shape = 'u32[72,128]{1,0:T(1,128)}', space=vmem, size = 0x9000, scoped, tag = 'internal scratch']
  %s0 = inlined_call_operand.vmem [shape: f32[512,8], index: 0, kind: input, shape index: {}]
  %s1 = inlined_call_operand.vmem [shape: f32[512,8], index: 1, kind: input, shape index: {}]
  %s2 = inlined_call_operand.vmem [shape: f32[512,8], index: 2, kind: input, shape index: {}]
  %s3 = inlined_call_operand.vmem [shape: f32[8,8], index: 3, kind: input, shape index: {}]
  %s4 = inlined_call_operand.vmem [shape: f32[1,8], index: 4, kind: input, shape index: {}]
  %s5 = inlined_call_operand.vmem [shape: f32[512,8], index: 5, kind: output, shape index: {}]
  %s6 = sld [smem:[#allocation0]]
  $region30: #{cross_atten_forward.7} parent=0
    _
  %s8 = ssub.s32 1, %s6
  %s9 = scalar_select 0, %s8, %s6
  // Predicated region
  $region2: #{cross_atten_forward.7} parent=0 // pred_check
    _
  $region3: #{cross_atten_forward.7} parent=0 // pred_check_branch
    %11 = sbr.rel (0) target = $region5
  $region4: #{cross_atten_forward.7} parent=0 // pred_region
    _
  $region5: #{cross_atten_forward.7} parent=0 // pred_fallthru
    _
  // Predicated region
  $region6: #{cross_atten_forward.7} parent=0 // pred_check
    _
  $region7: #{cross_atten_forward.7} parent=0 // pred_check_branch
    %13 = sbr.rel (0) target = $region9
  $region8: #{cross_atten_forward.7} parent=0 // pred_region
    _
  $region9: #{cross_atten_forward.7} parent=0 // pred_fallthru
    _
  // Predicated region
  $region10: #{cross_atten_forward.7} parent=0 // pred_check
    _
  $region11: #{cross_atten_forward.7} parent=0 // pred_check_branch
    %15 = sbr.rel (0) target = $region13
  $region12: #{cross_atten_forward.7} parent=0 // pred_region
    _
  $region13: #{cross_atten_forward.7} parent=0 // pred_fallthru
    _
  // Predicated region
  $region14: #{cross_atten_forward.7} parent=0 // pred_check
    _
  $region15: #{cross_atten_forward.7} parent=0 // pred_check_branch
    %17 = sbr.rel (0) target = $region17
  $region16: #{cross_atten_forward.7} parent=0 // pred_region
    _
  $region17: #{cross_atten_forward.7} parent=0 // pred_fallthru
    _
  // Predicated region
  $region18: #{cross_atten_forward.7} parent=0 // pred_check
    _
  $region19: #{cross_atten_forward.7} parent=0 // pred_check_branch
    %19 = sbr.rel (0) target = $region21
  $region20: #{cross_atten_forward.7} parent=0 // pred_region
    _
  $region21: #{cross_atten_forward.7} parent=0 // pred_fallthru
    _
  %v20 = vld [vmem:[%s0] sm:$0xff]
  %v21 = vld [vmem:[%s0 + $0x8] sm:$0xff]
  %v22 = vld [vmem:[%s0 + $0x10] sm:$0xff]
  %v23 = vld [vmem:[%s0 + $0x18] sm:$0xff]
  %v24 = vld [vmem:[%s0 + $0x20] sm:$0xff]
  %v25 = vld [vmem:[%s0 + $0x28] sm:$0xff]
  %v26 = vld [vmem:[%s0 + $0x30] sm:$0xff]
  %v27 = vld [vmem:[%s0 + $0x38] sm:$0xff]
  %v28 = vld [vmem:[%s0 + $0x40] sm:$0xff]
  %v29 = vld [vmem:[%s0 + $0x48] sm:$0xff]
  %v30 = vld [vmem:[%s0 + $0x50] sm:$0xff]
  %v31 = vld [vmem:[%s0 + $0x58] sm:$0xff]
  %v32 = vld [vmem:[%s0 + $0x60] sm:$0xff]
  %v33 = vld [vmem:[%s0 + $0x68] sm:$0xff]
  %v34 = vld [vmem:[%s0 + $0x70] sm:$0xff]
  %v35 = vld [vmem:[%s0 + $0x78] sm:$0xff]
  %v36 = vld [vmem:[%s0 + $0x80] sm:$0xff]
  %v37 = vld [vmem:[%s0 + $0x88] sm:$0xff]
  %v38 = vld [vmem:[%s0 + $0x90] sm:$0xff]
  %v39 = vld [vmem:[%s0 + $0x98] sm:$0xff]
  %v40 = vld [vmem:[%s0 + $0xa0] sm:$0xff]
  %v41 = vld [vmem:[%s0 + $0xa8] sm:$0xff]
  %v42 = vld [vmem:[%s0 + $0xb0] sm:$0xff]
  %v43 = vld [vmem:[%s0 + $0xb8] sm:$0xff]
  %v44 = vld [vmem:[%s0 + $0xc0] sm:$0xff]
  %v45 = vld [vmem:[%s0 + $0xc8] sm:$0xff]
  %v46 = vld [vmem:[%s0 + $0xd0] sm:$0xff]
  %v47 = vld [vmem:[%s0 + $0xd8] sm:$0xff]
  %v48 = vld [vmem:[%s0 + $0xe0] sm:$0xff]
  %v49 = vld [vmem:[%s0 + $0xe8] sm:$0xff]
  %v50 = vld [vmem:[%s0 + $0xf0] sm:$0xff]
  %v51 = vld [vmem:[%s0 + $0xf8] sm:$0xff]
  %v52 = vld [vmem:[%s0 + $0x100] sm:$0xff]
  %v53 = vld [vmem:[%s0 + $0x108] sm:$0xff]
  %v54 = vld [vmem:[%s0 + $0x110] sm:$0xff]
  %v55 = vld [vmem:[%s0 + $0x118] sm:$0xff]
  %v56 = vld [vmem:[%s0 + $0x120] sm:$0xff]
  %v57 = vld [vmem:[%s0 + $0x128] sm:$0xff]
  %v58 = vld [vmem:[%s0 + $0x130] sm:$0xff]
  %v59 = vld [vmem:[%s0 + $0x138] sm:$0xff]
  %v60 = vld [vmem:[%s0 + $0x140] sm:$0xff]
  %v61 = vld [vmem:[%s0 + $0x148] sm:$0xff]
  %v62 = vld [vmem:[%s0 + $0x150] sm:$0xff]
  %v63 = vld [vmem:[%s0 + $0x158] sm:$0xff]
  %v64 = vld [vmem:[%s0 + $0x160] sm:$0xff]
  %v65 = vld [vmem:[%s0 + $0x168] sm:$0xff]
  %v66 = vld [vmem:[%s0 + $0x170] sm:$0xff]
  %v67 = vld [vmem:[%s0 + $0x178] sm:$0xff]
  %v68 = vld [vmem:[%s0 + $0x180] sm:$0xff]
  %v69 = vld [vmem:[%s0 + $0x188] sm:$0xff]
  %v70 = vld [vmem:[%s0 + $0x190] sm:$0xff]
  %v71 = vld [vmem:[%s0 + $0x198] sm:$0xff]
  %v72 = vld [vmem:[%s0 + $0x1a0] sm:$0xff]
  %v73 = vld [vmem:[%s0 + $0x1a8] sm:$0xff]
  %v74 = vld [vmem:[%s0 + $0x1b0] sm:$0xff]
  %v75 = vld [vmem:[%s0 + $0x1b8] sm:$0xff]
  %v76 = vld [vmem:[%s0 + $0x1c0] sm:$0xff]
  %v77 = vld [vmem:[%s0 + $0x1c8] sm:$0xff]
  %v78 = vld [vmem:[%s0 + $0x1d0] sm:$0xff]
  %v79 = vld [vmem:[%s0 + $0x1d8] sm:$0xff]
  %v80 = vld [vmem:[%s0 + $0x1e0] sm:$0xff]
  %v81 = vld [vmem:[%s0 + $0x1e8] sm:$0xff]
  %v82 = vld [vmem:[%s0 + $0x1f0] sm:$0xff]
  %v83 = vld [vmem:[%s0 + $0x1f8] sm:$0xff]
  %v84 = vld [vmem:[%s1] sm:$0xff]
  %v85 = vld [vmem:[%s1 + $0x8] sm:$0xff]
  %v86 = vld [vmem:[%s1 + $0x10] sm:$0xff]
  %v87 = vld [vmem:[%s1 + $0x18] sm:$0xff]
  %v88 = vld [vmem:[%s1 + $0x20] sm:$0xff]
  %v89 = vld [vmem:[%s1 + $0x28] sm:$0xff]
  %v90 = vld [vmem:[%s1 + $0x30] sm:$0xff]
  %v91 = vld [vmem:[%s1 + $0x38] sm:$0xff]
  %v92 = vld [vmem:[%s1 + $0x40] sm:$0xff]
  %v93 = vld [vmem:[%s1 + $0x48] sm:$0xff]
  %v94 = vld [vmem:[%s1 + $0x50] sm:$0xff]
  %v95 = vld [vmem:[%s1 + $0x58] sm:$0xff]
  %v96 = vld [vmem:[%s1 + $0x60] sm:$0xff]
  %v97 = vld [vmem:[%s1 + $0x68] sm:$0xff]
  %v98 = vld [vmem:[%s1 + $0x70] sm:$0xff]
  %v99 = vld [vmem:[%s1 + $0x78] sm:$0xff]
  %v100 = vld [vmem:[%s1 + $0x80] sm:$0xff]
  %v101 = vld [vmem:[%s1 + $0x88] sm:$0xff]
  %v102 = vld [vmem:[%s1 + $0x90] sm:$0xff]
  %v103 = vld [vmem:[%s1 + $0x98] sm:$0xff]
  %v104 = vld [vmem:[%s1 + $0xa0] sm:$0xff]
  %v105 = vld [vmem:[%s1 + $0xa8] sm:$0xff]
  %v106 = vld [vmem:[%s1 + $0xb0] sm:$0xff]
  %v107 = vld [vmem:[%s1 + $0xb8] sm:$0xff]
  %v108 = vld [vmem:[%s1 + $0xc0] sm:$0xff]
  %v109 = vld [vmem:[%s1 + $0xc8] sm:$0xff]
  %v110 = vld [vmem:[%s1 + $0xd0] sm:$0xff]
  %v111 = vld [vmem:[%s1 + $0xd8] sm:$0xff]
  %v112 = vld [vmem:[%s1 + $0xe0] sm:$0xff]
  %v113 = vld [vmem:[%s1 + $0xe8] sm:$0xff]
  %v114 = vld [vmem:[%s1 + $0xf0] sm:$0xff]
  %v115 = vld [vmem:[%s1 + $0xf8] sm:$0xff]
  %v116 = vld [vmem:[%s1 + $0x100] sm:$0xff]
  %v117 = vld [vmem:[%s1 + $0x108] sm:$0xff]
  %v118 = vld [vmem:[%s1 + $0x110] sm:$0xff]
  %v119 = vld [vmem:[%s1 + $0x118] sm:$0xff]
  %v120 = vld [vmem:[%s1 + $0x120] sm:$0xff]
  %v121 = vld [vmem:[%s1 + $0x128] sm:$0xff]
  %v122 = vld [vmem:[%s1 + $0x130] sm:$0xff]
  %v123 = vld [vmem:[%s1 + $0x138] sm:$0xff]
  %v124 = vld [vmem:[%s1 + $0x140] sm:$0xff]
  %v125 = vld [vmem:[%s1 + $0x148] sm:$0xff]
  %v126 = vld [vmem:[%s1 + $0x150] sm:$0xff]
  %v127 = vld [vmem:[%s1 + $0x158] sm:$0xff]
  %v128 = vld [vmem:[%s1 + $0x160] sm:$0xff]
  %v129 = vld [vmem:[%s1 + $0x168] sm:$0xff]
  %v130 = vld [vmem:[%s1 + $0x170] sm:$0xff]
  %v131 = vld [vmem:[%s1 + $0x178] sm:$0xff]
  %v132 = vld [vmem:[%s1 + $0x180] sm:$0xff]
  %v133 = vld [vmem:[%s1 + $0x188] sm:$0xff]
  %v134 = vld [vmem:[%s1 + $0x190] sm:$0xff]
  %v135 = vld [vmem:[%s1 + $0x198] sm:$0xff]
  %v136 = vld [vmem:[%s1 + $0x1a0] sm:$0xff]
  %v137 = vld [vmem:[%s1 + $0x1a8] sm:$0xff]
  %v138 = vld [vmem:[%s1 + $0x1b0] sm:$0xff]
  %v139 = vld [vmem:[%s1 + $0x1b8] sm:$0xff]
  %v140 = vld [vmem:[%s1 + $0x1c0] sm:$0xff]
  %v141 = vld [vmem:[%s1 + $0x1c8] sm:$0xff]
  %v142 = vld [vmem:[%s1 + $0x1d0] sm:$0xff]
  %v143 = vld [vmem:[%s1 + $0x1d8] sm:$0xff]
  %v144 = vld [vmem:[%s1 + $0x1e0] sm:$0xff]
  %v145 = vld [vmem:[%s1 + $0x1e8] sm:$0xff]
  %v146 = vld [vmem:[%s1 + $0x1f0] sm:$0xff]
  %v147 = vld [vmem:[%s1 + $0x1f8] sm:$0xff]
  %v148 = vadd.f32 %v20, %v84
  %v149 = vadd.f32 %v21, %v85
  %v150 = vadd.f32 %v22, %v86
  %v151 = vadd.f32 %v23, %v87
  %v152 = vadd.f32 %v24, %v88
  %v153 = vadd.f32 %v25, %v89
  %v154 = vadd.f32 %v26, %v90
  %v155 = vadd.f32 %v27, %v91
  %v156 = vadd.f32 %v28, %v92
  %v157 = vadd.f32 %v29, %v93
  %v158 = vadd.f32 %v30, %v94
  %v159 = vadd.f32 %v31, %v95
  %v160 = vadd.f32 %v32, %v96
  %v161 = vadd.f32 %v33, %v97
  %v162 = vadd.f32 %v34, %v98
  %v163 = vadd.f32 %v35, %v99
  %v164 = vadd.f32 %v36, %v100
  %v165 = vadd.f32 %v37, %v101
  %v166 = vadd.f32 %v38, %v102
  %v167 = vadd.f32 %v39, %v103
  %v168 = vadd.f32 %v40, %v104
  %v169 = vadd.f32 %v41, %v105
  %v170 = vadd.f32 %v42, %v106
  %v171 = vadd.f32 %v43, %v107
  %v172 = vadd.f32 %v44, %v108
  %v173 = vadd.f32 %v45, %v109
  %v174 = vadd.f32 %v46, %v110
  %v175 = vadd.f32 %v47, %v111
  %v176 = vadd.f32 %v48, %v112
  %v177 = vadd.f32 %v49, %v113
  %v178 = vadd.f32 %v50, %v114
  %v179 = vadd.f32 %v51, %v115
  %v180 = vadd.f32 %v52, %v116
  %v181 = vadd.f32 %v53, %v117
  %v182 = vadd.f32 %v54, %v118
  %v183 = vadd.f32 %v55, %v119
  %v184 = vadd.f32 %v56, %v120
  %v185 = vadd.f32 %v57, %v121
  %v186 = vadd.f32 %v58, %v122
  %v187 = vadd.f32 %v59, %v123
  %v188 = vadd.f32 %v60, %v124
  %v189 = vadd.f32 %v61, %v125
  %v190 = vadd.f32 %v62, %v126
  %v191 = vadd.f32 %v63, %v127
  %v192 = vadd.f32 %v64, %v128
  %v193 = vadd.f32 %v65, %v129
  %v194 = vadd.f32 %v66, %v130
  %v195 = vadd.f32 %v67, %v131
  %v196 = vadd.f32 %v68, %v132
  %v197 = vadd.f32 %v69, %v133
  %v198 = vadd.f32 %v70, %v134
  %v199 = vadd.f32 %v71, %v135
  %v200 = vadd.f32 %v72, %v136
  %v201 = vadd.f32 %v73, %v137
  %v202 = vadd.f32 %v74, %v138
  %v203 = vadd.f32 %v75, %v139
  %v204 = vadd.f32 %v76, %v140
  %v205 = vadd.f32 %v77, %v141
  %v206 = vadd.f32 %v78, %v142
  %v207 = vadd.f32 %v79, %v143
  %v208 = vadd.f32 %v80, %v144
  %v209 = vadd.f32 %v81, %v145
  %v210 = vadd.f32 %v82, %v146
  %v211 = vadd.f32 %v83, %v147
  %v212 = vld [vmem:[%s3] sm:$0xff]
  %v213 = vld [vmem:[%s4] sm:$0x1]
  %v215 = vperm.slane %v213, 0
  %vm217 = vcmask 64512
  %v219 = vsel %vm217, %v148, 0
  %v222 = vsel %vm217, %v149, 0
  %v225 = vsel %vm217, %v150, 0
  %v228 = vsel %vm217, %v151, 0
  %v231 = vsel %vm217, %v152, 0
  %v234 = vsel %vm217, %v153, 0
  %v237 = vsel %vm217, %v154, 0
  %v240 = vsel %vm217, %v155, 0
  %v243 = vsel %vm217, %v156, 0
  %v246 = vsel %vm217, %v157, 0
  %v249 = vsel %vm217, %v158, 0
  %v252 = vsel %vm217, %v159, 0
  %v255 = vsel %vm217, %v160, 0
  %v258 = vsel %vm217, %v161, 0
  %v261 = vsel %vm217, %v162, 0
  %v264 = vsel %vm217, %v163, 0
  %v267 = vsel %vm217, %v164, 0
  %v270 = vsel %vm217, %v165, 0
  %v273 = vsel %vm217, %v166, 0
  %v276 = vsel %vm217, %v167, 0
  %v279 = vsel %vm217, %v168, 0
  %v282 = vsel %vm217, %v169, 0
  %v285 = vsel %vm217, %v170, 0
  %v288 = vsel %vm217, %v171, 0
  %v291 = vsel %vm217, %v172, 0
  %v294 = vsel %vm217, %v173, 0
  %v297 = vsel %vm217, %v174, 0
  %v300 = vsel %vm217, %v175, 0
  %v303 = vsel %vm217, %v176, 0
  %v306 = vsel %vm217, %v177, 0
  %v309 = vsel %vm217, %v178, 0
  %v312 = vsel %vm217, %v179, 0
  %v315 = vsel %vm217, %v180, 0
  %v318 = vsel %vm217, %v181, 0
  %v321 = vsel %vm217, %v182, 0
  %v324 = vsel %vm217, %v183, 0
  %v327 = vsel %vm217, %v184, 0
  %v330 = vsel %vm217, %v185, 0
  %v333 = vsel %vm217, %v186, 0
  %v336 = vsel %vm217, %v187, 0
  %v339 = vsel %vm217, %v188, 0
  %v342 = vsel %vm217, %v189, 0
  %v345 = vsel %vm217, %v190, 0
  %v348 = vsel %vm217, %v191, 0
  %v351 = vsel %vm217, %v192, 0
  %v354 = vsel %vm217, %v193, 0
  %v357 = vsel %vm217, %v194, 0
  %v360 = vsel %vm217, %v195, 0
  %v363 = vsel %vm217, %v196, 0
  %v366 = vsel %vm217, %v197, 0
  %v369 = vsel %vm217, %v198, 0
  %v372 = vsel %vm217, %v199, 0
  %v375 = vsel %vm217, %v200, 0
  %v378 = vsel %vm217, %v201, 0
  %v381 = vsel %vm217, %v202, 0
  %v384 = vsel %vm217, %v203, 0
  %v387 = vsel %vm217, %v204, 0
  %v390 = vsel %vm217, %v205, 0
  %v393 = vsel %vm217, %v206, 0
  %v396 = vsel %vm217, %v207, 0
  %v399 = vsel %vm217, %v208, 0
  %v402 = vsel %vm217, %v209, 0
  %v405 = vsel %vm217, %v210, 0
  %v408 = vsel %vm217, %v211, 0
  %410 = vmatpush.msra.mxu0 0.0
  %411 = vmatpush.msra.mxu0 0.0
  %412 = vmatpush.msra.mxu0 0.0
  %413 = vmatpush.msra.mxu0 0.0
  %414 = vmatpush.msra.mxu0 0.0
  %415 = vmatpush.msra.mxu0 0.0
  %416 = vmatpush.msra.mxu0 0.0
  %417 = vmatpush.msra.mxu0 0.0
  %418 = vmatpush.msra.mxu0 0.0
  %419 = vmatpush.msra.mxu0 0.0
  %420 = vmatpush.msra.mxu0 0.0
  %421 = vmatpush.msra.mxu0 0.0
  %422 = vmatpush.msra.mxu0 0.0
  %423 = vmatpush.msra.mxu0 0.0
  %424 = vmatpush.msra.mxu0 0.0
  %425 = vmatpush.msra.mxu0 %v212
  %426 = vmatmul.f32.gmra.mxu0 %v219
  %v427 = vpop.f32.mrf.mxu0
  %v428 = vadd.f32 %v215, %v427
  %429 = vmatmul.f32.gmra.mxu0 %v222
  %v430 = vpop.f32.mrf.mxu0
  %v431 = vadd.f32 %v215, %v430
  %432 = vmatmul.f32.gmra.mxu0 %v225
  %v433 = vpop.f32.mrf.mxu0
  %v434 = vadd.f32 %v215, %v433
  %435 = vmatmul.f32.gmra.mxu0 %v228
  %v436 = vpop.f32.mrf.mxu0
  %v437 = vadd.f32 %v215, %v436
  %438 = vmatmul.f32.gmra.mxu0 %v231
  %v439 = vpop.f32.mrf.mxu0
  %v440 = vadd.f32 %v215, %v439
  %441 = vmatmul.f32.gmra.mxu0 %v234
  %v442 = vpop.f32.mrf.mxu0
  %v443 = vadd.f32 %v215, %v442
  %444 = vmatmul.f32.gmra.mxu0 %v237
  %v445 = vpop.f32.mrf.mxu0
  %v446 = vadd.f32 %v215, %v445
  %447 = vmatmul.f32.gmra.mxu0 %v240
  %v448 = vpop.f32.mrf.mxu0
  %v449 = vadd.f32 %v215, %v448
  %450 = vmatmul.f32.gmra.mxu0 %v243
  %v451 = vpop.f32.mrf.mxu0
  %v452 = vadd.f32 %v215, %v451
  %453 = vmatmul.f32.gmra.mxu0 %v246
  %v454 = vpop.f32.mrf.mxu0
  %v455 = vadd.f32 %v215, %v454
  %456 = vmatmul.f32.gmra.mxu0 %v249
  %v457 = vpop.f32.mrf.mxu0
  %v458 = vadd.f32 %v215, %v457
  %459 = vmatmul.f32.gmra.mxu0 %v252
  %v460 = vpop.f32.mrf.mxu0
  %v461 = vadd.f32 %v215, %v460
  %462 = vmatmul.f32.gmra.mxu0 %v255
  %v463 = vpop.f32.mrf.mxu0
  %v464 = vadd.f32 %v215, %v463
  %465 = vmatmul.f32.gmra.mxu0 %v258
  %v466 = vpop.f32.mrf.mxu0
  %v467 = vadd.f32 %v215, %v466
  %468 = vmatmul.f32.gmra.mxu0 %v261
  %v469 = vpop.f32.mrf.mxu0
  %v470 = vadd.f32 %v215, %v469
  %471 = vmatmul.f32.gmra.mxu0 %v264
  %v472 = vpop.f32.mrf.mxu0
  %v473 = vadd.f32 %v215, %v472
  %474 = vmatmul.f32.gmra.mxu0 %v267
  %v475 = vpop.f32.mrf.mxu0
  %v476 = vadd.f32 %v215, %v475
  %477 = vmatmul.f32.gmra.mxu0 %v270
  %v478 = vpop.f32.mrf.mxu0
  %v479 = vadd.f32 %v215, %v478
  %480 = vmatmul.f32.gmra.mxu0 %v273
  %v481 = vpop.f32.mrf.mxu0
  %v482 = vadd.f32 %v215, %v481
  %483 = vmatmul.f32.gmra.mxu0 %v276
  %v484 = vpop.f32.mrf.mxu0
  %v485 = vadd.f32 %v215, %v484
  %486 = vmatmul.f32.gmra.mxu0 %v279
  %v487 = vpop.f32.mrf.mxu0
  %v488 = vadd.f32 %v215, %v487
  %489 = vmatmul.f32.gmra.mxu0 %v282
  %v490 = vpop.f32.mrf.mxu0
  %v491 = vadd.f32 %v215, %v490
  %492 = vmatmul.f32.gmra.mxu0 %v285
  %v493 = vpop.f32.mrf.mxu0
  %v494 = vadd.f32 %v215, %v493
  %495 = vmatmul.f32.gmra.mxu0 %v288
  %v496 = vpop.f32.mrf.mxu0
  %v497 = vadd.f32 %v215, %v496
  %498 = vmatmul.f32.gmra.mxu0 %v291
  %v499 = vpop.f32.mrf.mxu0
  %v500 = vadd.f32 %v215, %v499
  %501 = vmatmul.f32.gmra.mxu0 %v294
  %v502 = vpop.f32.mrf.mxu0
  %v503 = vadd.f32 %v215, %v502
  %504 = vmatmul.f32.gmra.mxu0 %v297
  %v505 = vpop.f32.mrf.mxu0
  %v506 = vadd.f32 %v215, %v505
  %507 = vmatmul.f32.gmra.mxu0 %v300
  %v508 = vpop.f32.mrf.mxu0
  %v509 = vadd.f32 %v215, %v508
  %510 = vmatmul.f32.gmra.mxu0 %v303
  %v511 = vpop.f32.mrf.mxu0
  %v512 = vadd.f32 %v215, %v511
  %513 = vmatmul.f32.gmra.mxu0 %v306
  %v514 = vpop.f32.mrf.mxu0
  %v515 = vadd.f32 %v215, %v514
  %516 = vmatmul.f32.gmra.mxu0 %v309
  %v517 = vpop.f32.mrf.mxu0
  %v518 = vadd.f32 %v215, %v517
  %519 = vmatmul.f32.gmra.mxu0 %v312
  %v520 = vpop.f32.mrf.mxu0
  %v521 = vadd.f32 %v215, %v520
  %522 = vmatmul.f32.gmra.mxu0 %v315
  %v523 = vpop.f32.mrf.mxu0
  %v524 = vadd.f32 %v215, %v523
  %525 = vmatmul.f32.gmra.mxu0 %v318
  %v526 = vpop.f32.mrf.mxu0
  %v527 = vadd.f32 %v215, %v526
  %528 = vmatmul.f32.gmra.mxu0 %v321
  %v529 = vpop.f32.mrf.mxu0
  %v530 = vadd.f32 %v215, %v529
  %531 = vmatmul.f32.gmra.mxu0 %v324
  %v532 = vpop.f32.mrf.mxu0
  %v533 = vadd.f32 %v215, %v532
  %534 = vmatmul.f32.gmra.mxu0 %v327
  %v535 = vpop.f32.mrf.mxu0
  %v536 = vadd.f32 %v215, %v535
  %537 = vmatmul.f32.gmra.mxu0 %v330
  %v538 = vpop.f32.mrf.mxu0
  %v539 = vadd.f32 %v215, %v538
  %540 = vmatmul.f32.gmra.mxu0 %v333
  %v541 = vpop.f32.mrf.mxu0
  %v542 = vadd.f32 %v215, %v541
  %543 = vmatmul.f32.gmra.mxu0 %v336
  %v544 = vpop.f32.mrf.mxu0
  %v545 = vadd.f32 %v215, %v544
  %546 = vmatmul.f32.gmra.mxu0 %v339
  %v547 = vpop.f32.mrf.mxu0
  %v548 = vadd.f32 %v215, %v547
  %549 = vmatmul.f32.gmra.mxu0 %v342
  %v550 = vpop.f32.mrf.mxu0
  %v551 = vadd.f32 %v215, %v550
  %552 = vmatmul.f32.gmra.mxu0 %v345
  %v553 = vpop.f32.mrf.mxu0
  %v554 = vadd.f32 %v215, %v553
  %555 = vmatmul.f32.gmra.mxu0 %v348
  %v556 = vpop.f32.mrf.mxu0
  %v557 = vadd.f32 %v215, %v556
  %558 = vmatmul.f32.gmra.mxu0 %v351
  %v559 = vpop.f32.mrf.mxu0
  %v560 = vadd.f32 %v215, %v559
  %561 = vmatmul.f32.gmra.mxu0 %v354
  %v562 = vpop.f32.mrf.mxu0
  %v563 = vadd.f32 %v215, %v562
  %564 = vmatmul.f32.gmra.mxu0 %v357
  %v565 = vpop.f32.mrf.mxu0
  %v566 = vadd.f32 %v215, %v565
  %567 = vmatmul.f32.gmra.mxu0 %v360
  %v568 = vpop.f32.mrf.mxu0
  %v569 = vadd.f32 %v215, %v568
  %570 = vmatmul.f32.gmra.mxu0 %v363
  %v571 = vpop.f32.mrf.mxu0
  %v572 = vadd.f32 %v215, %v571
  %573 = vmatmul.f32.gmra.mxu0 %v366
  %v574 = vpop.f32.mrf.mxu0
  %v575 = vadd.f32 %v215, %v574
  %576 = vmatmul.f32.gmra.mxu0 %v369
  %v577 = vpop.f32.mrf.mxu0
  %v578 = vadd.f32 %v215, %v577
  %579 = vmatmul.f32.gmra.mxu0 %v372
  %v580 = vpop.f32.mrf.mxu0
  %v581 = vadd.f32 %v215, %v580
  %582 = vmatmul.f32.gmra.mxu0 %v375
  %v583 = vpop.f32.mrf.mxu0
  %v584 = vadd.f32 %v215, %v583
  %585 = vmatmul.f32.gmra.mxu0 %v378
  %v586 = vpop.f32.mrf.mxu0
  %v587 = vadd.f32 %v215, %v586
  %588 = vmatmul.f32.gmra.mxu0 %v381
  %v589 = vpop.f32.mrf.mxu0
  %v590 = vadd.f32 %v215, %v589
  %591 = vmatmul.f32.gmra.mxu0 %v384
  %v592 = vpop.f32.mrf.mxu0
  %v593 = vadd.f32 %v215, %v592
  %594 = vmatmul.f32.gmra.mxu0 %v387
  %v595 = vpop.f32.mrf.mxu0
  %v596 = vadd.f32 %v215, %v595
  %597 = vmatmul.f32.gmra.mxu0 %v390
  %v598 = vpop.f32.mrf.mxu0
  %v599 = vadd.f32 %v215, %v598
  %600 = vmatmul.f32.gmra.mxu0 %v393
  %v601 = vpop.f32.mrf.mxu0
  %v602 = vadd.f32 %v215, %v601
  %603 = vmatmul.f32.gmra.mxu0 %v396
  %v604 = vpop.f32.mrf.mxu0
  %v605 = vadd.f32 %v215, %v604
  %606 = vmatmul.f32.gmra.mxu0 %v399
  %v607 = vpop.f32.mrf.mxu0
  %v608 = vadd.f32 %v215, %v607
  %609 = vmatmul.f32.gmra.mxu0 %v402
  %v610 = vpop.f32.mrf.mxu0
  %v611 = vadd.f32 %v215, %v610
  %612 = vmatmul.f32.gmra.mxu0 %v405
  %v613 = vpop.f32.mrf.mxu0
  %v614 = vadd.f32 %v215, %v613
  %615 = vmatmul.f32.gmra.mxu0 %v408
  %v616 = vpop.f32.mrf.mxu0
  %v617 = vadd.f32 %v215, %v616
  %618 = vdwg.mxu0
  %v619 = vld [vmem:[%s2] sm:$0xff]
  %v620 = vld [vmem:[%s2 + $0x8] sm:$0xff]
  %v621 = vld [vmem:[%s2 + $0x10] sm:$0xff]
  %v622 = vld [vmem:[%s2 + $0x18] sm:$0xff]
  %v623 = vld [vmem:[%s2 + $0x20] sm:$0xff]
  %v624 = vld [vmem:[%s2 + $0x28] sm:$0xff]
  %v625 = vld [vmem:[%s2 + $0x30] sm:$0xff]
  %v626 = vld [vmem:[%s2 + $0x38] sm:$0xff]
  %v627 = vld [vmem:[%s2 + $0x40] sm:$0xff]
  %v628 = vld [vmem:[%s2 + $0x48] sm:$0xff]
  %v629 = vld [vmem:[%s2 + $0x50] sm:$0xff]
  %v630 = vld [vmem:[%s2 + $0x58] sm:$0xff]
  %v631 = vld [vmem:[%s2 + $0x60] sm:$0xff]
  %v632 = vld [vmem:[%s2 + $0x68] sm:$0xff]
  %v633 = vld [vmem:[%s2 + $0x70] sm:$0xff]
  %v634 = vld [vmem:[%s2 + $0x78] sm:$0xff]
  %v635 = vld [vmem:[%s2 + $0x80] sm:$0xff]
  %v636 = vld [vmem:[%s2 + $0x88] sm:$0xff]
  %v637 = vld [vmem:[%s2 + $0x90] sm:$0xff]
  %v638 = vld [vmem:[%s2 + $0x98] sm:$0xff]
  %v639 = vld [vmem:[%s2 + $0xa0] sm:$0xff]
  %v640 = vld [vmem:[%s2 + $0xa8] sm:$0xff]
  %v641 = vld [vmem:[%s2 + $0xb0] sm:$0xff]
  %v642 = vld [vmem:[%s2 + $0xb8] sm:$0xff]
  %v643 = vld [vmem:[%s2 + $0xc0] sm:$0xff]
  %v644 = vld [vmem:[%s2 + $0xc8] sm:$0xff]
  %v645 = vld [vmem:[%s2 + $0xd0] sm:$0xff]
  %v646 = vld [vmem:[%s2 + $0xd8] sm:$0xff]
  %v647 = vld [vmem:[%s2 + $0xe0] sm:$0xff]
  %v648 = vld [vmem:[%s2 + $0xe8] sm:$0xff]
  %v649 = vld [vmem:[%s2 + $0xf0] sm:$0xff]
  %v650 = vld [vmem:[%s2 + $0xf8] sm:$0xff]
  %v651 = vld [vmem:[%s2 + $0x100] sm:$0xff]
  %v652 = vld [vmem:[%s2 + $0x108] sm:$0xff]
  %v653 = vld [vmem:[%s2 + $0x110] sm:$0xff]
  %v654 = vld [vmem:[%s2 + $0x118] sm:$0xff]
  %v655 = vld [vmem:[%s2 + $0x120] sm:$0xff]
  %v656 = vld [vmem:[%s2 + $0x128] sm:$0xff]
  %v657 = vld [vmem:[%s2 + $0x130] sm:$0xff]
  %v658 = vld [vmem:[%s2 + $0x138] sm:$0xff]
  %v659 = vld [vmem:[%s2 + $0x140] sm:$0xff]
  %v660 = vld [vmem:[%s2 + $0x148] sm:$0xff]
  %v661 = vld [vmem:[%s2 + $0x150] sm:$0xff]
  %v662 = vld [vmem:[%s2 + $0x158] sm:$0xff]
  %v663 = vld [vmem:[%s2 + $0x160] sm:$0xff]
  %v664 = vld [vmem:[%s2 + $0x168] sm:$0xff]
  %v665 = vld [vmem:[%s2 + $0x170] sm:$0xff]
  %v666 = vld [vmem:[%s2 + $0x178] sm:$0xff]
  %v667 = vld [vmem:[%s2 + $0x180] sm:$0xff]
  %v668 = vld [vmem:[%s2 + $0x188] sm:$0xff]
  %v669 = vld [vmem:[%s2 + $0x190] sm:$0xff]
  %v670 = vld [vmem:[%s2 + $0x198] sm:$0xff]
  %v671 = vld [vmem:[%s2 + $0x1a0] sm:$0xff]
  %v672 = vld [vmem:[%s2 + $0x1a8] sm:$0xff]
  %v673 = vld [vmem:[%s2 + $0x1b0] sm:$0xff]
  %v674 = vld [vmem:[%s2 + $0x1b8] sm:$0xff]
  %v675 = vld [vmem:[%s2 + $0x1c0] sm:$0xff]
  %v676 = vld [vmem:[%s2 + $0x1c8] sm:$0xff]
  %v677 = vld [vmem:[%s2 + $0x1d0] sm:$0xff]
  %v678 = vld [vmem:[%s2 + $0x1d8] sm:$0xff]
  %v679 = vld [vmem:[%s2 + $0x1e0] sm:$0xff]
  %v680 = vld [vmem:[%s2 + $0x1e8] sm:$0xff]
  %v681 = vld [vmem:[%s2 + $0x1f0] sm:$0xff]
  %v682 = vld [vmem:[%s2 + $0x1f8] sm:$0xff]
  %v683 = vadd.f32 %v428, %v619
  %v684 = vadd.f32 %v431, %v620
  %v685 = vadd.f32 %v434, %v621
  %v686 = vadd.f32 %v437, %v622
  %v687 = vadd.f32 %v440, %v623
  %v688 = vadd.f32 %v443, %v624
  %v689 = vadd.f32 %v446, %v625
  %v690 = vadd.f32 %v449, %v626
  %v691 = vadd.f32 %v452, %v627
  %v692 = vadd.f32 %v455, %v628
  %v693 = vadd.f32 %v458, %v629
  %v694 = vadd.f32 %v461, %v630
  %v695 = vadd.f32 %v464, %v631
  %v696 = vadd.f32 %v467, %v632
  %v697 = vadd.f32 %v470, %v633
  %v698 = vadd.f32 %v473, %v634
  %v699 = vadd.f32 %v476, %v635
  %v700 = vadd.f32 %v479, %v636
  %v701 = vadd.f32 %v482, %v637
  %v702 = vadd.f32 %v485, %v638
  %v703 = vadd.f32 %v488, %v639
  %v704 = vadd.f32 %v491, %v640
  %v705 = vadd.f32 %v494, %v641
  %v706 = vadd.f32 %v497, %v642
  %v707 = vadd.f32 %v500, %v643
  %v708 = vadd.f32 %v503, %v644
  %v709 = vadd.f32 %v506, %v645
  %v710 = vadd.f32 %v509, %v646
  %v711 = vadd.f32 %v512, %v647
  %v712 = vadd.f32 %v515, %v648
  %v713 = vadd.f32 %v518, %v649
  %v714 = vadd.f32 %v521, %v650
  %v715 = vadd.f32 %v524, %v651
  %v716 = vadd.f32 %v527, %v652
  %v717 = vadd.f32 %v530, %v653
  %v718 = vadd.f32 %v533, %v654
  %v719 = vadd.f32 %v536, %v655
  %v720 = vadd.f32 %v539, %v656
  %v721 = vadd.f32 %v542, %v657
  %v722 = vadd.f32 %v545, %v658
  %v723 = vadd.f32 %v548, %v659
  %v724 = vadd.f32 %v551, %v660
  %v725 = vadd.f32 %v554, %v661
  %v726 = vadd.f32 %v557, %v662
  %v727 = vadd.f32 %v560, %v663
  %v728 = vadd.f32 %v563, %v664
  %v729 = vadd.f32 %v566, %v665
  %v730 = vadd.f32 %v569, %v666
  %v731 = vadd.f32 %v572, %v667
  %v732 = vadd.f32 %v575, %v668
  %v733 = vadd.f32 %v578, %v669
  %v734 = vadd.f32 %v581, %v670
  %v735 = vadd.f32 %v584, %v671
  %v736 = vadd.f32 %v587, %v672
  %v737 = vadd.f32 %v590, %v673
  %v738 = vadd.f32 %v593, %v674
  %v739 = vadd.f32 %v596, %v675
  %v740 = vadd.f32 %v599, %v676
  %v741 = vadd.f32 %v602, %v677
  %v742 = vadd.f32 %v605, %v678
  %v743 = vadd.f32 %v608, %v679
  %v744 = vadd.f32 %v611, %v680
  %v745 = vadd.f32 %v614, %v681
  %v746 = vadd.f32 %v617, %v682
  %747 = vst.msk [vmem:[%s5] sm:$0xff] %vm217, %v683
  %748 = vst.msk [vmem:[%s5 + $0x8] sm:$0xff] %vm217, %v684
  %749 = vst.msk [vmem:[%s5 + $0x10] sm:$0xff] %vm217, %v685
  %750 = vst.msk [vmem:[%s5 + $0x18] sm:$0xff] %vm217, %v686
  %751 = vst.msk [vmem:[%s5 + $0x20] sm:$0xff] %vm217, %v687
  %752 = vst.msk [vmem:[%s5 + $0x28] sm:$0xff] %vm217, %v688
  %753 = vst.msk [vmem:[%s5 + $0x30] sm:$0xff] %vm217, %v689
  %754 = vst.msk [vmem:[%s5 + $0x38] sm:$0xff] %vm217, %v690
  %755 = vst.msk [vmem:[%s5 + $0x40] sm:$0xff] %vm217, %v691
  %756 = vst.msk [vmem:[%s5 + $0x48] sm:$0xff] %vm217, %v692
  %757 = vst.msk [vmem:[%s5 + $0x50] sm:$0xff] %vm217, %v693
  %758 = vst.msk [vmem:[%s5 + $0x58] sm:$0xff] %vm217, %v694
  %759 = vst.msk [vmem:[%s5 + $0x60] sm:$0xff] %vm217, %v695
  %760 = vst.msk [vmem:[%s5 + $0x68] sm:$0xff] %vm217, %v696
  %761 = vst.msk [vmem:[%s5 + $0x70] sm:$0xff] %vm217, %v697
  %762 = vst.msk [vmem:[%s5 + $0x78] sm:$0xff] %vm217, %v698
  %763 = vst.msk [vmem:[%s5 + $0x80] sm:$0xff] %vm217, %v699
  %764 = vst.msk [vmem:[%s5 + $0x88] sm:$0xff] %vm217, %v700
  %765 = vst.msk [vmem:[%s5 + $0x90] sm:$0xff] %vm217, %v701
  %766 = vst.msk [vmem:[%s5 + $0x98] sm:$0xff] %vm217, %v702
  %767 = vst.msk [vmem:[%s5 + $0xa0] sm:$0xff] %vm217, %v703
  %768 = vst.msk [vmem:[%s5 + $0xa8] sm:$0xff] %vm217, %v704
  %769 = vst.msk [vmem:[%s5 + $0xb0] sm:$0xff] %vm217, %v705
  %770 = vst.msk [vmem:[%s5 + $0xb8] sm:$0xff] %vm217, %v706
  %771 = vst.msk [vmem:[%s5 + $0xc0] sm:$0xff] %vm217, %v707
  %772 = vst.msk [vmem:[%s5 + $0xc8] sm:$0xff] %vm217, %v708
  %773 = vst.msk [vmem:[%s5 + $0xd0] sm:$0xff] %vm217, %v709
  %774 = vst.msk [vmem:[%s5 + $0xd8] sm:$0xff] %vm217, %v710
  %775 = vst.msk [vmem:[%s5 + $0xe0] sm:$0xff] %vm217, %v711
  %776 = vst.msk [vmem:[%s5 + $0xe8] sm:$0xff] %vm217, %v712
  %777 = vst.msk [vmem:[%s5 + $0xf0] sm:$0xff] %vm217, %v713
  %778 = vst.msk [vmem:[%s5 + $0xf8] sm:$0xff] %vm217, %v714
  %779 = vst.msk [vmem:[%s5 + $0x100] sm:$0xff] %vm217, %v715
  %780 = vst.msk [vmem:[%s5 + $0x108] sm:$0xff] %vm217, %v716
  %781 = vst.msk [vmem:[%s5 + $0x110] sm:$0xff] %vm217, %v717
  %782 = vst.msk [vmem:[%s5 + $0x118] sm:$0xff] %vm217, %v718
  %783 = vst.msk [vmem:[%s5 + $0x120] sm:$0xff] %vm217, %v719
  %784 = vst.msk [vmem:[%s5 + $0x128] sm:$0xff] %vm217, %v720
  %785 = vst.msk [vmem:[%s5 + $0x130] sm:$0xff] %vm217, %v721
  %786 = vst.msk [vmem:[%s5 + $0x138] sm:$0xff] %vm217, %v722
  %787 = vst.msk [vmem:[%s5 + $0x140] sm:$0xff] %vm217, %v723
  %788 = vst.msk [vmem:[%s5 + $0x148] sm:$0xff] %vm217, %v724
  %789 = vst.msk [vmem:[%s5 + $0x150] sm:$0xff] %vm217, %v725
  %790 = vst.msk [vmem:[%s5 + $0x158] sm:$0xff] %vm217, %v726
  %791 = vst.msk [vmem:[%s5 + $0x160] sm:$0xff] %vm217, %v727
  %792 = vst.msk [vmem:[%s5 + $0x168] sm:$0xff] %vm217, %v728
  %793 = vst.msk [vmem:[%s5 + $0x170] sm:$0xff] %vm217, %v729
  %794 = vst.msk [vmem:[%s5 + $0x178] sm:$0xff] %vm217, %v730
  %795 = vst.msk [vmem:[%s5 + $0x180] sm:$0xff] %vm217, %v731
  %796 = vst.msk [vmem:[%s5 + $0x188] sm:$0xff] %vm217, %v732
  %797 = vst.msk [vmem:[%s5 + $0x190] sm:$0xff] %vm217, %v733
  %798 = vst.msk [vmem:[%s5 + $0x198] sm:$0xff] %vm217, %v734
  %799 = vst.msk [vmem:[%s5 + $0x1a0] sm:$0xff] %vm217, %v735
  %800 = vst.msk [vmem:[%s5 + $0x1a8] sm:$0xff] %vm217, %v736
  %801 = vst.msk [vmem:[%s5 + $0x1b0] sm:$0xff] %vm217, %v737
  %802 = vst.msk [vmem:[%s5 + $0x1b8] sm:$0xff] %vm217, %v738
  %803 = vst.msk [vmem:[%s5 + $0x1c0] sm:$0xff] %vm217, %v739
  %804 = vst.msk [vmem:[%s5 + $0x1c8] sm:$0xff] %vm217, %v740
  %805 = vst.msk [vmem:[%s5 + $0x1d0] sm:$0xff] %vm217, %v741
  %806 = vst.msk [vmem:[%s5 + $0x1d8] sm:$0xff] %vm217, %v742
  %807 = vst.msk [vmem:[%s5 + $0x1e0] sm:$0xff] %vm217, %v743
  %808 = vst.msk [vmem:[%s5 + $0x1e8] sm:$0xff] %vm217, %v744
  %809 = vst.msk [vmem:[%s5 + $0x1f0] sm:$0xff] %vm217, %v745
  %810 = vst.msk [vmem:[%s5 + $0x1f8] sm:$0xff] %vm217, %v746
  // Predicated region
  $region22: #{cross_atten_forward.7} parent=0 // pred_check
    _
  $region23: #{cross_atten_forward.7} parent=0 // pred_check_branch
    %812 = sbr.rel (0) target = $region25
  $region24: #{cross_atten_forward.7} parent=0 // pred_region
    _
  $region25: #{cross_atten_forward.7} parent=0 // pred_fallthru
    _
  // Predicated region
  $region26: #{cross_atten_forward.7} parent=0 // pred_check
    _
  $region27: #{cross_atten_forward.7} parent=0 // pred_check_branch
    %814 = sbr.rel (0) target = $region29
  $region28: #{cross_atten_forward.7} parent=0 // pred_region
    _
  $region29: #{cross_atten_forward.7} parent=0 // pred_fallthru
    _

// kernel: cross_atten_forward.4
$region0: #{cross_atten_forward.4}
  #allocation0 [shape = 'u32[]', space=smem, size = 0x4, offset = 0x4, fixed_abs, tag = 'smem constant byte address 0x4 - core index']
  #allocation1 [shape = 'u32[72,128]{1,0:T(1,128)}', space=vmem, size = 0x9000, scoped, tag = 'internal scratch']
  #allocation2 [shape = 'f32[22,22,8]{2,1,0:T(8,128)}', space=vmem, size = 0x42000, scoped, tag = 'scratch operand']
  %s0 = inlined_call_operand.vmem [shape: f32[2,16,16,8], index: 0, kind: input, shape index: {}]
  %s1 = inlined_call_operand.vmem [shape: f32[2,16,16,8], index: 1, kind: input, shape index: {}]
  %s2 = inlined_call_operand.vmem [shape: f32[2,8], index: 2, kind: input, shape index: {}]
  %s3 = inlined_call_operand.vmem [shape: f32[2,8], index: 3, kind: input, shape index: {}]
  %s4 = inlined_call_operand.vmem [shape: f32[2,7,8], index: 4, kind: input, shape index: {}]
  %s5 = inlined_call_operand.vmem [shape: f32[2,7,8], index: 5, kind: input, shape index: {}]
  %s6 = inlined_call_operand.vmem [shape: f32[8,8], index: 6, kind: input, shape index: {}]
  %s7 = inlined_call_operand.vmem [shape: f32[2,8], index: 7, kind: input, shape index: {}]
  %s8 = inlined_call_operand.vmem [shape: f32[2,16,16,8], index: 8, kind: output, shape index: {0}]
  %s9 = inlined_call_operand.vmem [shape: f32[2,16,16,8], index: 9, kind: output, shape index: {1}]
  %s10 = inlined_call_operand.vmem [shape: f32[2,16,16,8], index: 10, kind: output, shape index: {2}]
  %11 = xla_tuple %s8, %s9, %s10
  %s12 = sld [smem:[#allocation0]]
  $region81: #{cross_atten_forward.4} parent=0
    _
  %s14 = ssub.s32 1, %s12
  %s15 = scalar_select 0, %s14, %s12
  loop: start=0, step=1, limit=4
  $region2: #{cross_atten_forward.4} parent=0 // loop_pre_header
    _
  $region3: #{cross_atten_forward.4} parent=0 // loop_header
    %s17 = sphi 0, %s21
    %p18 = scmp.ge.s32.totalorder %s17, 4
    %s27 = sphi 0, %s29
    %s30 = sphi 0, %s27
    %s31 = sphi 0, %s30
    %s47 = sphi 0, %s31
    %s53 = sphi 0, %s55
    %s56 = sphi 0, %s53
    %s57 = sphi 0, %s56
    %s73 = sphi 0, %s57
    %s77 = sphi 0, %s77
    %s79 = sphi 0, %s77
    %s80 = sphi 0, %s79
    %s94 = sphi 0, %s80
    %s98 = sphi 0, %s98
    %s100 = sphi 0, %s98
    %s101 = sphi 0, %s100
    %s115 = sphi 0, %s101
    %s119 = sphi 0, %s119
    %s121 = sphi 0, %s119
    %s122 = sphi 0, %s121
    %s136 = sphi 0, %s122
    %s140 = sphi 0, %s140
    %s142 = sphi 0, %s140
    %s143 = sphi 0, %s142
    %s157 = sphi 0, %s143
    %s161 = sphi 0, %s161
    %s163 = sphi 0, %s161
    %s164 = sphi 0, %s163
    %s178 = sphi 0, %s164
    %s182 = sphi 0, %s182
    %s184 = sphi 0, %s182
    %s185 = sphi 0, %s184
    %s199 = sphi 0, %s185
    %s205 = sphi 0, %s207
    %s208 = sphi 0, %s205
    %s209 = sphi 0, %s208
    %s225 = sphi 0, %s209
    %s231 = sphi 0, %s233
    %s234 = sphi 0, %s231
    %s235 = sphi 0, %s234
    %s251 = sphi 0, %s235
    %s257 = sphi 0, %s259
    %s260 = sphi 0, %s257
    %s261 = sphi 0, %s260
    %s277 = sphi 0, %s261
  $region4: #{cross_atten_forward.4} parent=0 // loop_header_branch
    %20 = sbr.rel (%p18) target = $region8
  $region5: #{cross_atten_forward.4} parent=0 // loop_body
    %s22 = ssub.s32 %s17, 1
    %s23 = ssub.s32 %s17, 2
    %s24 = sadd.s32 %s17, 1
    %s25 = ssub.s32 %s17, %s24
    %p26 = scmp.eq.s32.totalorder %s25, 0
    %s28 = sadd.s32 %s27, 1
    %s29 = scalar_select %p26, %s27, %s28
    %p32 = pneg %p26
    %p33 = scmp.eq.s32.totalorder %s17, 1
    %p34 = por %p32, %p33
    %p35 = scmp.ne.s32.totalorder %s27, %s30
    %p36 = scmp.eq.s32.totalorder %s17, 0
    %p37 = por %p35, %p36
    %p38 = scmp.ne.s32.totalorder %s27, %s30
    %p39 = scmp.eq.s32.totalorder %s22, 1
    %p40 = por %p38, %p39
    %p41 = scmp.ne.s32.totalorder %s30, %s31
    %p42 = scmp.eq.s32.totalorder %s22, 0
    %p43 = por %p41, %p42
    %p44 = scmp.ne.s32.totalorder %s30, %s31
    %p45 = scmp.eq.s32.totalorder %s23, 1
    %p46 = por %p44, %p45
    %p48 = scmp.ne.s32.totalorder %s31, %s47
    %p49 = scmp.eq.s32.totalorder %s23, 0
    %p50 = por %p48, %p49
    %s51 = ssub.s32 %s17, %s24
    %p52 = scmp.eq.s32.totalorder %s51, 0
    %s54 = sadd.s32 %s53, 1
    %s55 = scalar_select %p52, %s53, %s54
    %p58 = pneg %p52
    %p59 = scmp.eq.s32.totalorder %s17, 1
    %p60 = por %p58, %p59
    %p61 = scmp.ne.s32.totalorder %s53, %s56
    %p62 = scmp.eq.s32.totalorder %s17, 0
    %p63 = por %p61, %p62
    %p64 = scmp.ne.s32.totalorder %s53, %s56
    %p65 = scmp.eq.s32.totalorder %s22, 1
    %p66 = por %p64, %p65
    %p67 = scmp.ne.s32.totalorder %s56, %s57
    %p68 = scmp.eq.s32.totalorder %s22, 0
    %p69 = por %p67, %p68
    %p70 = scmp.ne.s32.totalorder %s56, %s57
    %p71 = scmp.eq.s32.totalorder %s23, 1
    %p72 = por %p70, %p71
    %p74 = scmp.ne.s32.totalorder %s57, %s73
    %p75 = scmp.eq.s32.totalorder %s23, 0
    %p76 = por %p74, %p75
    %s78 = sadd.s32 %s77, 1
    %p81 = scmp.eq.s32.totalorder %s17, 1
    %p82 = scmp.ne.s32.totalorder %s77, %s79
    %p83 = scmp.eq.s32.totalorder %s17, 0
    %p84 = por %p82, %p83
    %p85 = scmp.ne.s32.totalorder %s77, %s79
    %p86 = scmp.eq.s32.totalorder %s22, 1
    %p87 = por %p85, %p86
    %p88 = scmp.ne.s32.totalorder %s79, %s80
    %p89 = scmp.eq.s32.totalorder %s22, 0
    %p90 = por %p88, %p89
    %p91 = scmp.ne.s32.totalorder %s79, %s80
    %p92 = scmp.eq.s32.totalorder %s23, 1
    %p93 = por %p91, %p92
    %p95 = scmp.ne.s32.totalorder %s80, %s94
    %p96 = scmp.eq.s32.totalorder %s23, 0
    %p97 = por %p95, %p96
    %s99 = sadd.s32 %s98, 1
    %p102 = scmp.eq.s32.totalorder %s17, 1
    %p103 = scmp.ne.s32.totalorder %s98, %s100
    %p104 = scmp.eq.s32.totalorder %s17, 0
    %p105 = por %p103, %p104
    %p106 = scmp.ne.s32.totalorder %s98, %s100
    %p107 = scmp.eq.s32.totalorder %s22, 1
    %p108 = por %p106, %p107
    %p109 = scmp.ne.s32.totalorder %s100, %s101
    %p110 = scmp.eq.s32.totalorder %s22, 0
    %p111 = por %p109, %p110
    %p112 = scmp.ne.s32.totalorder %s100, %s101
    %p113 = scmp.eq.s32.totalorder %s23, 1
    %p114 = por %p112, %p113
    %p116 = scmp.ne.s32.totalorder %s101, %s115
    %p117 = scmp.eq.s32.totalorder %s23, 0
    %p118 = por %p116, %p117
    %s120 = sadd.s32 %s119, 1
    %p123 = scmp.eq.s32.totalorder %s17, 1
    %p124 = scmp.ne.s32.totalorder %s119, %s121
    %p125 = scmp.eq.s32.totalorder %s17, 0
    %p126 = por %p124, %p125
    %p127 = scmp.ne.s32.totalorder %s119, %s121
    %p128 = scmp.eq.s32.totalorder %s22, 1
    %p129 = por %p127, %p128
    %p130 = scmp.ne.s32.totalorder %s121, %s122
    %p131 = scmp.eq.s32.totalorder %s22, 0
    %p132 = por %p130, %p131
    %p133 = scmp.ne.s32.totalorder %s121, %s122
    %p134 = scmp.eq.s32.totalorder %s23, 1
    %p135 = por %p133, %p134
    %p137 = scmp.ne.s32.totalorder %s122, %s136
    %p138 = scmp.eq.s32.totalorder %s23, 0
    %p139 = por %p137, %p138
    %s141 = sadd.s32 %s140, 1
    %p144 = scmp.eq.s32.totalorder %s17, 1
    %p145 = scmp.ne.s32.totalorder %s140, %s142
    %p146 = scmp.eq.s32.totalorder %s17, 0
    %p147 = por %p145, %p146
    %p148 = scmp.ne.s32.totalorder %s140, %s142
    %p149 = scmp.eq.s32.totalorder %s22, 1
    %p150 = por %p148, %p149
    %p151 = scmp.ne.s32.totalorder %s142, %s143
    %p152 = scmp.eq.s32.totalorder %s22, 0
    %p153 = por %p151, %p152
    %p154 = scmp.ne.s32.totalorder %s142, %s143
    %p155 = scmp.eq.s32.totalorder %s23, 1
    %p156 = por %p154, %p155
    %p158 = scmp.ne.s32.totalorder %s143, %s157
    %p159 = scmp.eq.s32.totalorder %s23, 0
    %p160 = por %p158, %p159
    %s162 = sadd.s32 %s161, 1
    %p165 = scmp.eq.s32.totalorder %s17, 1
    %p166 = scmp.ne.s32.totalorder %s161, %s163
    %p167 = scmp.eq.s32.totalorder %s17, 0
    %p168 = por %p166, %p167
    %p169 = scmp.ne.s32.totalorder %s161, %s163
    %p170 = scmp.eq.s32.totalorder %s22, 1
    %p171 = por %p169, %p170
    %p172 = scmp.ne.s32.totalorder %s163, %s164
    %p173 = scmp.eq.s32.totalorder %s22, 0
    %p174 = por %p172, %p173
    %p175 = scmp.ne.s32.totalorder %s163, %s164
    %p176 = scmp.eq.s32.totalorder %s23, 1
    %p177 = por %p175, %p176
    %p179 = scmp.ne.s32.totalorder %s164, %s178
    %p180 = scmp.eq.s32.totalorder %s23, 0
    %p181 = por %p179, %p180
    %s183 = sadd.s32 %s182, 1
    %p186 = scmp.eq.s32.totalorder %s17, 1
    %p187 = scmp.ne.s32.totalorder %s182, %s184
    %p188 = scmp.eq.s32.totalorder %s17, 0
    %p189 = por %p187, %p188
    %p190 = scmp.ne.s32.totalorder %s182, %s184
    %p191 = scmp.eq.s32.totalorder %s22, 1
    %p192 = por %p190, %p191
    %p193 = scmp.ne.s32.totalorder %s184, %s185
    %p194 = scmp.eq.s32.totalorder %s22, 0
    %p195 = por %p193, %p194
    %p196 = scmp.ne.s32.totalorder %s184, %s185
    %p197 = scmp.eq.s32.totalorder %s23, 1
    %p198 = por %p196, %p197
    %p200 = scmp.ne.s32.totalorder %s185, %s199
    %p201 = scmp.eq.s32.totalorder %s23, 0
    %p202 = por %p200, %p201
    %s203 = ssub.s32 %s17, %s24
    %p204 = scmp.eq.s32.totalorder %s203, 0
    %s206 = sadd.s32 %s205, 1
    %s207 = scalar_select %p204, %s205, %s206
    %p210 = pneg %p204
    %p211 = scmp.eq.s32.totalorder %s17, 1
    %p212 = por %p210, %p211
    %p213 = scmp.ne.s32.totalorder %s205, %s208
    %p214 = scmp.eq.s32.totalorder %s17, 0
    %p215 = por %p213, %p214
    %p216 = scmp.ne.s32.totalorder %s205, %s208
    %p217 = scmp.eq.s32.totalorder %s22, 1
    %p218 = por %p216, %p217
    %p219 = scmp.ne.s32.totalorder %s208, %s209
    %p220 = scmp.eq.s32.totalorder %s22, 0
    %p221 = por %p219, %p220
    %p222 = scmp.ne.s32.totalorder %s208, %s209
    %p223 = scmp.eq.s32.totalorder %s23, 1
    %p224 = por %p222, %p223
    %p226 = scmp.ne.s32.totalorder %s209, %s225
    %p227 = scmp.eq.s32.totalorder %s23, 0
    %p228 = por %p226, %p227
    %s229 = ssub.s32 %s17, %s24
    %p230 = scmp.eq.s32.totalorder %s229, 0
    %s232 = sadd.s32 %s231, 1
    %s233 = scalar_select %p230, %s231, %s232
    %p236 = pneg %p230
    %p237 = scmp.eq.s32.totalorder %s17, 1
    %p238 = por %p236, %p237
    %p239 = scmp.ne.s32.totalorder %s231, %s234
    %p240 = scmp.eq.s32.totalorder %s17, 0
    %p241 = por %p239, %p240
    %p242 = scmp.ne.s32.totalorder %s231, %s234
    %p243 = scmp.eq.s32.totalorder %s22, 1
    %p244 = por %p242, %p243
    %p245 = scmp.ne.s32.totalorder %s234, %s235
    %p246 = scmp.eq.s32.totalorder %s22, 0
    %p247 = por %p245, %p246
    %p248 = scmp.ne.s32.totalorder %s234, %s235
    %p249 = scmp.eq.s32.totalorder %s23, 1
    %p250 = por %p248, %p249
    %p252 = scmp.ne.s32.totalorder %s235, %s251
    %p253 = scmp.eq.s32.totalorder %s23, 0
    %p254 = por %p252, %p253
    %s255 = ssub.s32 %s17, %s24
    %p256 = scmp.eq.s32.totalorder %s255, 0
    %s258 = sadd.s32 %s257, 1
    %s259 = scalar_select %p256, %s257, %s258
    %p262 = pneg %p256
    %p263 = scmp.eq.s32.totalorder %s17, 1
    %p264 = por %p262, %p263
    %p265 = scmp.ne.s32.totalorder %s257, %s260
    %p266 = scmp.eq.s32.totalorder %s17, 0
    %p267 = por %p265, %p266
    %p268 = scmp.ne.s32.totalorder %s257, %s260
    %p269 = scmp.eq.s32.totalorder %s22, 1
    %p270 = por %p268, %p269
    %p271 = scmp.ne.s32.totalorder %s260, %s261
    %p272 = scmp.eq.s32.totalorder %s22, 0
    %p273 = por %p271, %p272
    %p274 = scmp.ne.s32.totalorder %s260, %s261
    %p275 = scmp.eq.s32.totalorder %s23, 1
    %p276 = por %p274, %p275
    %p278 = scmp.ne.s32.totalorder %s261, %s277
    %p279 = scmp.eq.s32.totalorder %s23, 0
    %p280 = por %p278, %p279
    %p281 = scmp.le.s32.totalorder 1, %s17
    %p282 = scmp.lt.s32.totalorder %s17, 3
    %p283 = pnand %p281, %p282
    %p284 = pneg %p283
    // Predicated region
    $region9: #{cross_atten_forward.4} parent=5 // pred_check
      _
    $region10: #{cross_atten_forward.4} parent=5 // pred_check_branch
      %286 = sbr.rel (%p283) target = $region12
    $region11: #{cross_atten_forward.4} parent=5 // pred_region
      %s287 = ssub.s32 %s17, 1
      // Predicated region
      $region13: #{cross_atten_forward.4} parent=11 // pred_check
        %p288 = pneg %p90
      $region14: #{cross_atten_forward.4} parent=11 // pred_check_branch
        %290 = sbr.rel (%p288) target = $region16
      $region15: #{cross_atten_forward.4} parent=11 // pred_region
        _
      $region16: #{cross_atten_forward.4} parent=11 // pred_fallthru
        _
      // Predicated region
      $region17: #{cross_atten_forward.4} parent=11 // pred_check
        %p291 = pneg %p111
      $region18: #{cross_atten_forward.4} parent=11 // pred_check_branch
        %293 = sbr.rel (%p291) target = $region20
      $region19: #{cross_atten_forward.4} parent=11 // pred_region
        _
      $region20: #{cross_atten_forward.4} parent=11 // pred_fallthru
        _
      // Predicated region
      $region21: #{cross_atten_forward.4} parent=11 // pred_check
        %p294 = pneg %p132
      $region22: #{cross_atten_forward.4} parent=11 // pred_check_branch
        %296 = sbr.rel (%p294) target = $region24
      $region23: #{cross_atten_forward.4} parent=11 // pred_region
        _
      $region24: #{cross_atten_forward.4} parent=11 // pred_fallthru
        _
      // Predicated region
      $region25: #{cross_atten_forward.4} parent=11 // pred_check
        %p297 = pneg %p153
      $region26: #{cross_atten_forward.4} parent=11 // pred_check_branch
        %299 = sbr.rel (%p297) target = $region28
      $region27: #{cross_atten_forward.4} parent=11 // pred_region
        _
      $region28: #{cross_atten_forward.4} parent=11 // pred_fallthru
        _
      // Predicated region
      $region29: #{cross_atten_forward.4} parent=11 // pred_check
        %p300 = pneg %p174
      $region30: #{cross_atten_forward.4} parent=11 // pred_check_branch
        %302 = sbr.rel (%p300) target = $region32
      $region31: #{cross_atten_forward.4} parent=11 // pred_region
        _
      $region32: #{cross_atten_forward.4} parent=11 // pred_fallthru
        _
      // Predicated region
      $region33: #{cross_atten_forward.4} parent=11 // pred_check
        %p303 = pneg %p195
      $region34: #{cross_atten_forward.4} parent=11 // pred_check_branch
        %305 = sbr.rel (%p303) target = $region36
      $region35: #{cross_atten_forward.4} parent=11 // pred_region
        _
      $region36: #{cross_atten_forward.4} parent=11 // pred_fallthru
        _
    $region12: #{cross_atten_forward.4} parent=5 // pred_fallthru
      _
    %p306 = scmp.lt.s32.totalorder %s17, 2
    // Predicated region
    $region37: #{cross_atten_forward.4} parent=5 // pred_check
      %p307 = pneg %p306
    $region38: #{cross_atten_forward.4} parent=5 // pred_check_branch
      %309 = sbr.rel (%p307) target = $region40
    $region39: #{cross_atten_forward.4} parent=5 // pred_region
      // Predicated region
      $region41: #{cross_atten_forward.4} parent=39 // pred_check
        %p310 = pneg %p37
      $region42: #{cross_atten_forward.4} parent=39 // pred_check_branch
        %312 = sbr.rel (%p310) target = $region44
      $region43: #{cross_atten_forward.4} parent=39 // pred_region
        %p313 = scmp.lt.s32.totalorder %s17, 1
        %s314 = scalar_select %p313, %s17, 1
        %s315 = smul.addr %s314, 32
        %s316 = smul.addr %s315, 8
        %s317 = scalar_lea.vmem %s0, %s316
      $region44: #{cross_atten_forward.4} parent=39 // pred_fallthru
        _
      // Predicated region
      $region45: #{cross_atten_forward.4} parent=39 // pred_check
        %p318 = pneg %p63
      $region46: #{cross_atten_forward.4} parent=39 // pred_check_branch
        %320 = sbr.rel (%p318) target = $region48
      $region47: #{cross_atten_forward.4} parent=39 // pred_region
        %p321 = scmp.lt.s32.totalorder %s17, 1
        %s322 = scalar_select %p321, %s17, 1
        %s323 = smul.addr %s322, 32
        %s324 = smul.addr %s323, 8
        %s325 = scalar_lea.vmem %s1, %s324
      $region48: #{cross_atten_forward.4} parent=39 // pred_fallthru
        _
    $region40: #{cross_atten_forward.4} parent=5 // pred_fallthru
      _
    %p326 = scmp.le.s32.totalorder 1, %s17
    %p327 = scmp.lt.s32.totalorder %s17, 3
    %p328 = pnand %p326, %p327
    %p329 = pneg %p328
    // Predicated region
    $region49: #{cross_atten_forward.4} parent=5 // pred_check
      _
    $region50: #{cross_atten_forward.4} parent=5 // pred_check_branch
      %331 = sbr.rel (%p328) target = $region52
    $region51: #{cross_atten_forward.4} parent=5 // pred_region
      %s332 = ssub.s32 %s17, 1
      %p333 = scmp.lt.s32.totalorder %s22, 1
      %s334 = scalar_select %p333, %s22, 1
      %s335 = smul.addr %s334, 32
      %s336 = smul.addr %s335, 8
      %s337 = scalar_lea.vmem %s0, %s336
      %p338 = pneg %p43
      %p339 = pneg %p40
      %p340 = scmp.lt.s32.totalorder %s22, 1
      %s341 = scalar_select %p340, %s22, 1
      %s342 = smul.addr %s341, 32
      %s343 = smul.addr %s342, 8
      %s344 = scalar_lea.vmem %s1, %s343
      %p345 = pneg %p69
      %p346 = pneg %p66
      %p347 = pneg %p90
      %p348 = pneg %p87
      %p349 = pneg %p111
      %p350 = pneg %p108
      %p351 = pneg %p132
      %p352 = pneg %p129
      %p353 = pneg %p153
      %p354 = pneg %p150
      %p355 = pneg %p174
      %p356 = pneg %p171
      %p357 = pneg %p195
      %p358 = pneg %p192
      %p359 = pneg %p221
      %p360 = pneg %p218
      %p361 = scmp.lt.s32.totalorder %s22, 1
      %s362 = scalar_select %p361, %s22, 1
      %s363 = smul.addr %s362, 32
      %s364 = smul.addr %s363, 8
      %s365 = scalar_lea.vmem %s8, %s364
      %p366 = pneg %p247
      %p367 = pneg %p244
      %p368 = scmp.lt.s32.totalorder %s22, 1
      %s369 = scalar_select %p368, %s22, 1
      %s370 = smul.addr %s369, 32
      %s371 = smul.addr %s370, 8
      %s372 = scalar_lea.vmem %s9, %s371
      %p373 = pneg %p273
      %p374 = pneg %p270
      %p375 = scmp.lt.s32.totalorder %s22, 1
      %s376 = scalar_select %p375, %s22, 1
      %s377 = smul.addr %s376, 32
      %s378 = smul.addr %s377, 8
      %s379 = scalar_lea.vmem %s10, %s378
      %p380 = scmp.lt.s32.totalorder %s22, 1
      %s381 = scalar_select %p380, %s22, 1
      %s382 = smul.addr %s381, 32
      %s383 = smul.addr %s382, 8
      %s384 = scalar_lea.vmem %s0, %s383
      %p385 = scmp.lt.s32.totalorder %s22, 1
      %s386 = scalar_select %p385, %s22, 1
      %s387 = smul.addr %s386, 32
      %s388 = smul.addr %s387, 8
      %s389 = scalar_lea.vmem %s1, %s388
      %p390 = scmp.lt.s32.totalorder %s22, 1
      %s391 = scalar_select %p390, %s22, 1
      %s392 = smul.addr %s391, 32
      %s393 = smul.addr %s392, 8
      %s394 = scalar_lea.vmem %s8, %s393
      %p395 = scmp.lt.s32.totalorder %s22, 1
      %s396 = scalar_select %p395, %s22, 1
      %s397 = smul.addr %s396, 32
      %s398 = smul.addr %s397, 8
      %s399 = scalar_lea.vmem %s9, %s398
      %p400 = scmp.lt.s32.totalorder %s22, 1
      %s401 = scalar_select %p400, %s22, 1
      %s402 = smul.addr %s401, 32
      %s403 = smul.addr %s402, 8
      %s404 = scalar_lea.vmem %s10, %s403
      %vm405 = vcmask 64512
      %406 = vst.msk [vmem:[#allocation2] sm:$0xff] %vm405, 0.0
      %407 = vst.msk [vmem:[#allocation2 + $0x8] sm:$0xff] %vm405, 0.0
      %vm408 = vcmask 62464
      %409 = vst.msk [vmem:[#allocation2 + $0x10] sm:$0x3f] %vm408, 0.0
      %410 = vst.msk [vmem:[#allocation2 + $0x18] sm:$0xff] %vm405, 0.0
      %411 = vst.msk [vmem:[#allocation2 + $0x20] sm:$0xff] %vm405, 0.0
      %412 = vst.msk [vmem:[#allocation2 + $0x28] sm:$0x3f] %vm408, 0.0
      %413 = vst.msk [vmem:[#allocation2 + $0x30] sm:$0xff] %vm405, 0.0
      %414 = vst.msk [vmem:[#allocation2 + $0x38] sm:$0xff] %vm405, 0.0
      %415 = vst.msk [vmem:[#allocation2 + $0x40] sm:$0x3f] %vm408, 0.0
      %s416 = scalar_lea.vmem [#allocation2], 456
      %417 = vst.msk [vmem:[%s416] sm:$0xff] %vm405, 0.0
      %418 = vst.msk [vmem:[%s416 + $0x8] sm:$0xff] %vm405, 0.0
      %419 = vst.msk [vmem:[%s416 + $0x10] sm:$0x3f] %vm408, 0.0
      %420 = vst.msk [vmem:[%s416 + $0x18] sm:$0xff] %vm405, 0.0
      %421 = vst.msk [vmem:[%s416 + $0x20] sm:$0xff] %vm405, 0.0
      %422 = vst.msk [vmem:[%s416 + $0x28] sm:$0x3f] %vm408, 0.0
      %423 = vst.msk [vmem:[%s416 + $0x30] sm:$0xff] %vm405, 0.0
      %424 = vst.msk [vmem:[%s416 + $0x38] sm:$0xff] %vm405, 0.0
      %425 = vst.msk [vmem:[%s416 + $0x40] sm:$0x3f] %vm408, 0.0
      %vm426 = vcmask 59392
      %427 = vst.msk [vmem:[#allocation2] sm:$0x7] %vm426, 0.0
      %428 = vst.msk [vmem:[#allocation2 + $0x18] sm:$0x7] %vm426, 0.0
      %429 = vst.msk [vmem:[#allocation2 + $0x30] sm:$0x7] %vm426, 0.0
      %430 = vst.msk [vmem:[#allocation2 + $0x48] sm:$0x7] %vm426, 0.0
      %431 = vst.msk [vmem:[#allocation2 + $0x60] sm:$0x7] %vm426, 0.0
      %432 = vst.msk [vmem:[#allocation2 + $0x78] sm:$0x7] %vm426, 0.0
      %433 = vst.msk [vmem:[#allocation2 + $0x90] sm:$0x7] %vm426, 0.0
      %434 = vst.msk [vmem:[#allocation2 + $0xa8] sm:$0x7] %vm426, 0.0
      %435 = vst.msk [vmem:[#allocation2 + $0xc0] sm:$0x7] %vm426, 0.0
      %436 = vst.msk [vmem:[#allocation2 + $0xd8] sm:$0x7] %vm426, 0.0
      %437 = vst.msk [vmem:[#allocation2 + $0xf0] sm:$0x7] %vm426, 0.0
      %438 = vst.msk [vmem:[#allocation2 + $0x108] sm:$0x7] %vm426, 0.0
      %439 = vst.msk [vmem:[#allocation2 + $0x120] sm:$0x7] %vm426, 0.0
      %440 = vst.msk [vmem:[#allocation2 + $0x138] sm:$0x7] %vm426, 0.0
      %441 = vst.msk [vmem:[#allocation2 + $0x150] sm:$0x7] %vm426, 0.0
      %442 = vst.msk [vmem:[#allocation2 + $0x168] sm:$0x7] %vm426, 0.0
      %443 = vst.msk [vmem:[#allocation2 + $0x180] sm:$0x7] %vm426, 0.0
      %444 = vst.msk [vmem:[#allocation2 + $0x198] sm:$0x7] %vm426, 0.0
      %445 = vst.msk [vmem:[#allocation2 + $0x1b0] sm:$0x7] %vm426, 0.0
      %446 = vst.msk [vmem:[#allocation2 + $0x1c8] sm:$0x7] %vm426, 0.0
      %447 = vst.msk [vmem:[#allocation2 + $0x1e0] sm:$0x7] %vm426, 0.0
      %448 = vst.msk [vmem:[#allocation2 + $0x1f8] sm:$0x7] %vm426, 0.0
      %449 = vst.msk [vmem:[#allocation2 + $0x13] sm:$0x7] %vm426, 0.0
      %450 = vst.msk [vmem:[#allocation2 + $0x2b] sm:$0x7] %vm426, 0.0
      %451 = vst.msk [vmem:[#allocation2 + $0x43] sm:$0x7] %vm426, 0.0
      %452 = vst.msk [vmem:[#allocation2 + $0x5b] sm:$0x7] %vm426, 0.0
      %453 = vst.msk [vmem:[#allocation2 + $0x73] sm:$0x7] %vm426, 0.0
      %454 = vst.msk [vmem:[#allocation2 + $0x8b] sm:$0x7] %vm426, 0.0
      %455 = vst.msk [vmem:[#allocation2 + $0xa3] sm:$0x7] %vm426, 0.0
      %456 = vst.msk [vmem:[#allocation2 + $0xbb] sm:$0x7] %vm426, 0.0
      %457 = vst.msk [vmem:[#allocation2 + $0xd3] sm:$0x7] %vm426, 0.0
      %458 = vst.msk [vmem:[#allocation2 + $0xeb] sm:$0x7] %vm426, 0.0
      %459 = vst.msk [vmem:[#allocation2 + $0x103] sm:$0x7] %vm426, 0.0
      %460 = vst.msk [vmem:[#allocation2 + $0x11b] sm:$0x7] %vm426, 0.0
      %461 = vst.msk [vmem:[#allocation2 + $0x133] sm:$0x7] %vm426, 0.0
      %462 = vst.msk [vmem:[#allocation2 + $0x14b] sm:$0x7] %vm426, 0.0
      %463 = vst.msk [vmem:[#allocation2 + $0x163] sm:$0x7] %vm426, 0.0
      %464 = vst.msk [vmem:[#allocation2 + $0x17b] sm:$0x7] %vm426, 0.0
      %465 = vst.msk [vmem:[#allocation2 + $0x193] sm:$0x7] %vm426, 0.0
      %466 = vst.msk [vmem:[#allocation2 + $0x1ab] sm:$0x7] %vm426, 0.0
      %467 = vst.msk [vmem:[#allocation2 + $0x1c3] sm:$0x7] %vm426, 0.0
      %468 = vst.msk [vmem:[#allocation2 + $0x1db] sm:$0x7] %vm426, 0.0
      %469 = vst.msk [vmem:[#allocation2 + $0x1f3] sm:$0x7] %vm426, 0.0
      %470 = vst.msk [vmem:[#allocation2 + $0x20b] sm:$0x7] %vm426, 0.0
      %v471 = vld [vmem:[%s384] sm:$0xff]
      %v472 = vld [vmem:[%s384 + $0x8] sm:$0xff]
      %v473 = vld [vmem:[%s384 + $0x10] sm:$0xff]
      %v474 = vld [vmem:[%s384 + $0x18] sm:$0xff]
      %v475 = vld [vmem:[%s384 + $0x20] sm:$0xff]
      %v476 = vld [vmem:[%s384 + $0x28] sm:$0xff]
      %v477 = vld [vmem:[%s384 + $0x30] sm:$0xff]
      %v478 = vld [vmem:[%s384 + $0x38] sm:$0xff]
      %v479 = vld [vmem:[%s384 + $0x40] sm:$0xff]
      %v480 = vld [vmem:[%s384 + $0x48] sm:$0xff]
      %v481 = vld [vmem:[%s384 + $0x50] sm:$0xff]
      %v482 = vld [vmem:[%s384 + $0x58] sm:$0xff]
      %v483 = vld [vmem:[%s384 + $0x60] sm:$0xff]
      %v484 = vld [vmem:[%s384 + $0x68] sm:$0xff]
      %v485 = vld [vmem:[%s384 + $0x70] sm:$0xff]
      %v486 = vld [vmem:[%s384 + $0x78] sm:$0xff]
      %v487 = vld [vmem:[%s384 + $0x80] sm:$0xff]
      %v488 = vld [vmem:[%s384 + $0x88] sm:$0xff]
      %v489 = vld [vmem:[%s384 + $0x90] sm:$0xff]
      %v490 = vld [vmem:[%s384 + $0x98] sm:$0xff]
      %v491 = vld [vmem:[%s384 + $0xa0] sm:$0xff]
      %v492 = vld [vmem:[%s384 + $0xa8] sm:$0xff]
      %v493 = vld [vmem:[%s384 + $0xb0] sm:$0xff]
      %v494 = vld [vmem:[%s384 + $0xb8] sm:$0xff]
      %v495 = vld [vmem:[%s384 + $0xc0] sm:$0xff]
      %v496 = vld [vmem:[%s384 + $0xc8] sm:$0xff]
      %v497 = vld [vmem:[%s384 + $0xd0] sm:$0xff]
      %v498 = vld [vmem:[%s384 + $0xd8] sm:$0xff]
      %v499 = vld [vmem:[%s384 + $0xe0] sm:$0xff]
      %v500 = vld [vmem:[%s384 + $0xe8] sm:$0xff]
      %v501 = vld [vmem:[%s384 + $0xf0] sm:$0xff]
      %v502 = vld [vmem:[%s384 + $0xf8] sm:$0xff]
      %v503 = vsel %vm405, %v471, 0.0
      %504 = vadd.xlane.f32.xlu0 %v503
      %v505 = vpop.xlane.xlu0 %504
      %v506 = vsel %vm405, %v472, 0.0
      %507 = vadd.xlane.f32.xlu0 %v506
      %v508 = vpop.xlane.xlu0 %507
      %v509 = vsel %vm405, %v473, 0.0
      %510 = vadd.xlane.f32.xlu0 %v509
      %v511 = vpop.xlane.xlu0 %510
      %v512 = vsel %vm405, %v474, 0.0
      %513 = vadd.xlane.f32.xlu0 %v512
      %v514 = vpop.xlane.xlu0 %513
      %v515 = vsel %vm405, %v475, 0.0
      %516 = vadd.xlane.f32.xlu0 %v515
      %v517 = vpop.xlane.xlu0 %516
      %v518 = vsel %vm405, %v476, 0.0
      %519 = vadd.xlane.f32.xlu0 %v518
      %v520 = vpop.xlane.xlu0 %519
      %v521 = vsel %vm405, %v477, 0.0
      %522 = vadd.xlane.f32.xlu0 %v521
      %v523 = vpop.xlane.xlu0 %522
      %v524 = vsel %vm405, %v478, 0.0
      %525 = vadd.xlane.f32.xlu0 %v524
      %v526 = vpop.xlane.xlu0 %525
      %v527 = vsel %vm405, %v479, 0.0
      %528 = vadd.xlane.f32.xlu0 %v527
      %v529 = vpop.xlane.xlu0 %528
      %v530 = vsel %vm405, %v480, 0.0
      %531 = vadd.xlane.f32.xlu0 %v530
      %v532 = vpop.xlane.xlu0 %531
      %v533 = vsel %vm405, %v481, 0.0
      %534 = vadd.xlane.f32.xlu0 %v533
      %v535 = vpop.xlane.xlu0 %534
      %v536 = vsel %vm405, %v482, 0.0
      %537 = vadd.xlane.f32.xlu0 %v536
      %v538 = vpop.xlane.xlu0 %537
      %v539 = vsel %vm405, %v483, 0.0
      %540 = vadd.xlane.f32.xlu0 %v539
      %v541 = vpop.xlane.xlu0 %540
      %v542 = vsel %vm405, %v484, 0.0
      %543 = vadd.xlane.f32.xlu0 %v542
      %v544 = vpop.xlane.xlu0 %543
      %v545 = vsel %vm405, %v485, 0.0
      %546 = vadd.xlane.f32.xlu0 %v545
      %v547 = vpop.xlane.xlu0 %546
      %v548 = vsel %vm405, %v486, 0.0
      %549 = vadd.xlane.f32.xlu0 %v548
      %v550 = vpop.xlane.xlu0 %549
      %v551 = vsel %vm405, %v487, 0.0
      %552 = vadd.xlane.f32.xlu0 %v551
      %v553 = vpop.xlane.xlu0 %552
      %v554 = vsel %vm405, %v488, 0.0
      %555 = vadd.xlane.f32.xlu0 %v554
      %v556 = vpop.xlane.xlu0 %555
      %v557 = vsel %vm405, %v489, 0.0
      %558 = vadd.xlane.f32.xlu0 %v557
      %v559 = vpop.xlane.xlu0 %558
      %v560 = vsel %vm405, %v490, 0.0
      %561 = vadd.xlane.f32.xlu0 %v560
      %v562 = vpop.xlane.xlu0 %561
      %v563 = vsel %vm405, %v491, 0.0
      %564 = vadd.xlane.f32.xlu0 %v563
      %v565 = vpop.xlane.xlu0 %564
      %v566 = vsel %vm405, %v492, 0.0
      %567 = vadd.xlane.f32.xlu0 %v566
      %v568 = vpop.xlane.xlu0 %567
      %v569 = vsel %vm405, %v493, 0.0
      %570 = vadd.xlane.f32.xlu0 %v569
      %v571 = vpop.xlane.xlu0 %570
      %v572 = vsel %vm405, %v494, 0.0
      %573 = vadd.xlane.f32.xlu0 %v572
      %v574 = vpop.xlane.xlu0 %573
      %v575 = vsel %vm405, %v495, 0.0
      %576 = vadd.xlane.f32.xlu0 %v575
      %v577 = vpop.xlane.xlu0 %576
      %v578 = vsel %vm405, %v496, 0.0
      %579 = vadd.xlane.f32.xlu0 %v578
      %v580 = vpop.xlane.xlu0 %579
      %v581 = vsel %vm405, %v497, 0.0
      %582 = vadd.xlane.f32.xlu0 %v581
      %v583 = vpop.xlane.xlu0 %582
      %v584 = vsel %vm405, %v498, 0.0
      %585 = vadd.xlane.f32.xlu0 %v584
      %v586 = vpop.xlane.xlu0 %585
      %v587 = vsel %vm405, %v499, 0.0
      %588 = vadd.xlane.f32.xlu0 %v587
      %v589 = vpop.xlane.xlu0 %588
      %v590 = vsel %vm405, %v500, 0.0
      %591 = vadd.xlane.f32.xlu0 %v590
      %v592 = vpop.xlane.xlu0 %591
      %v593 = vsel %vm405, %v501, 0.0
      %594 = vadd.xlane.f32.xlu0 %v593
      %v595 = vpop.xlane.xlu0 %594
      %v596 = vsel %vm405, %v502, 0.0
      %597 = vadd.xlane.f32.xlu0 %v596
      %v598 = vpop.xlane.xlu0 %597
      %v599 = vrcp.pop 8.0
      %v600 = vmul.f32 8.0, %v599
      %v601 = vsub.f32 1.0, %v600
      %v602 = vmul.f32 %v599, %v601
      %v603 = vadd.f32 %v599, %v602
      %vm604 = vweird.f32 %v599
      %v605 = vsel %vm604, %v599, %v603
      %v606 = vmul.f32 %v505, %v605
      %v607 = vmul.f32 %v508, %v605
      %v608 = vmul.f32 %v511, %v605
      %v609 = vmul.f32 %v514, %v605
      %v610 = vmul.f32 %v517, %v605
      %v611 = vmul.f32 %v520, %v605
      %v612 = vmul.f32 %v523, %v605
      %v613 = vmul.f32 %v526, %v605
      %v614 = vmul.f32 %v529, %v605
      %v615 = vmul.f32 %v532, %v605
      %v616 = vmul.f32 %v535, %v605
      %v617 = vmul.f32 %v538, %v605
      %v618 = vmul.f32 %v541, %v605
      %v619 = vmul.f32 %v544, %v605
      %v620 = vmul.f32 %v547, %v605
      %v621 = vmul.f32 %v550, %v605
      %v622 = vmul.f32 %v553, %v605
      %v623 = vmul.f32 %v556, %v605
      %v624 = vmul.f32 %v559, %v605
      %v625 = vmul.f32 %v562, %v605
      %v626 = vmul.f32 %v565, %v605
      %v627 = vmul.f32 %v568, %v605
      %v628 = vmul.f32 %v571, %v605
      %v629 = vmul.f32 %v574, %v605
      %v630 = vmul.f32 %v577, %v605
      %v631 = vmul.f32 %v580, %v605
      %v632 = vmul.f32 %v583, %v605
      %v633 = vmul.f32 %v586, %v605
      %v634 = vmul.f32 %v589, %v605
      %v635 = vmul.f32 %v592, %v605
      %v636 = vmul.f32 %v595, %v605
      %v637 = vmul.f32 %v598, %v605
      %v638 = vsub.f32 %v471, %v606
      %v639 = vsub.f32 %v472, %v607
      %v640 = vsub.f32 %v473, %v608
      %v641 = vsub.f32 %v474, %v609
      %v642 = vsub.f32 %v475, %v610
      %v643 = vsub.f32 %v476, %v611
      %v644 = vsub.f32 %v477, %v612
      %v645 = vsub.f32 %v478, %v613
      %v646 = vsub.f32 %v479, %v614
      %v647 = vsub.f32 %v480, %v615
      %v648 = vsub.f32 %v481, %v616
      %v649 = vsub.f32 %v482, %v617
      %v650 = vsub.f32 %v483, %v618
      %v651 = vsub.f32 %v484, %v619
      %v652 = vsub.f32 %v485, %v620
      %v653 = vsub.f32 %v486, %v621
      %v654 = vsub.f32 %v487, %v622
      %v655 = vsub.f32 %v488, %v623
      %v656 = vsub.f32 %v489, %v624
      %v657 = vsub.f32 %v490, %v625
      %v658 = vsub.f32 %v491, %v626
      %v659 = vsub.f32 %v492, %v627
      %v660 = vsub.f32 %v493, %v628
      %v661 = vsub.f32 %v494, %v629
      %v662 = vsub.f32 %v495, %v630
      %v663 = vsub.f32 %v496, %v631
      %v664 = vsub.f32 %v497, %v632
      %v665 = vsub.f32 %v498, %v633
      %v666 = vsub.f32 %v499, %v634
      %v667 = vsub.f32 %v500, %v635
      %v668 = vsub.f32 %v501, %v636
      %v669 = vsub.f32 %v502, %v637
      %v670 = vmul.f32 %v638, %v638
      %v671 = vmul.f32 %v639, %v639
      %v672 = vmul.f32 %v640, %v640
      %v673 = vmul.f32 %v641, %v641
      %v674 = vmul.f32 %v642, %v642
      %v675 = vmul.f32 %v643, %v643
      %v676 = vmul.f32 %v644, %v644
      %v677 = vmul.f32 %v645, %v645
      %v678 = vmul.f32 %v646, %v646
      %v679 = vmul.f32 %v647, %v647
      %v680 = vmul.f32 %v648, %v648
      %v681 = vmul.f32 %v649, %v649
      %v682 = vmul.f32 %v650, %v650
      %v683 = vmul.f32 %v651, %v651
      %v684 = vmul.f32 %v652, %v652
      %v685 = vmul.f32 %v653, %v653
      %v686 = vmul.f32 %v654, %v654
      %v687 = vmul.f32 %v655, %v655
      %v688 = vmul.f32 %v656, %v656
      %v689 = vmul.f32 %v657, %v657
      %v690 = vmul.f32 %v658, %v658
      %v691 = vmul.f32 %v659, %v659
      %v692 = vmul.f32 %v660, %v660
      %v693 = vmul.f32 %v661, %v661
      %v694 = vmul.f32 %v662, %v662
      %v695 = vmul.f32 %v663, %v663
      %v696 = vmul.f32 %v664, %v664
      %v697 = vmul.f32 %v665, %v665
      %v698 = vmul.f32 %v666, %v666
      %v699 = vmul.f32 %v667, %v667
      %v700 = vmul.f32 %v668, %v668
      %v701 = vmul.f32 %v669, %v669
      %v702 = vsel %vm405, %v670, 0.0
      %703 = vadd.xlane.f32.xlu0 %v702
      %v704 = vpop.xlane.xlu0 %703
      %v705 = vsel %vm405, %v671, 0.0
      %706 = vadd.xlane.f32.xlu0 %v705
      %v707 = vpop.xlane.xlu0 %706
      %v708 = vsel %vm405, %v672, 0.0
      %709 = vadd.xlane.f32.xlu0 %v708
      %v710 = vpop.xlane.xlu0 %709
      %v711 = vsel %vm405, %v673, 0.0
      %712 = vadd.xlane.f32.xlu0 %v711
      %v713 = vpop.xlane.xlu0 %712
      %v714 = vsel %vm405, %v674, 0.0
      %715 = vadd.xlane.f32.xlu0 %v714
      %v716 = vpop.xlane.xlu0 %715
      %v717 = vsel %vm405, %v675, 0.0
      %718 = vadd.xlane.f32.xlu0 %v717
      %v719 = vpop.xlane.xlu0 %718
      %v720 = vsel %vm405, %v676, 0.0
      %721 = vadd.xlane.f32.xlu0 %v720
      %v722 = vpop.xlane.xlu0 %721
      %v723 = vsel %vm405, %v677, 0.0
      %724 = vadd.xlane.f32.xlu0 %v723
      %v725 = vpop.xlane.xlu0 %724
      %v726 = vsel %vm405, %v678, 0.0
      %727 = vadd.xlane.f32.xlu0 %v726
      %v728 = vpop.xlane.xlu0 %727
      %v729 = vsel %vm405, %v679, 0.0
      %730 = vadd.xlane.f32.xlu0 %v729
      %v731 = vpop.xlane.xlu0 %730
      %v732 = vsel %vm405, %v680, 0.0
      %733 = vadd.xlane.f32.xlu0 %v732
      %v734 = vpop.xlane.xlu0 %733
      %v735 = vsel %vm405, %v681, 0.0
      %736 = vadd.xlane.f32.xlu0 %v735
      %v737 = vpop.xlane.xlu0 %736
      %v738 = vsel %vm405, %v682, 0.0
      %739 = vadd.xlane.f32.xlu0 %v738
      %v740 = vpop.xlane.xlu0 %739
      %v741 = vsel %vm405, %v683, 0.0
      %742 = vadd.xlane.f32.xlu0 %v741
      %v743 = vpop.xlane.xlu0 %742
      %v744 = vsel %vm405, %v684, 0.0
      %745 = vadd.xlane.f32.xlu0 %v744
      %v746 = vpop.xlane.xlu0 %745
      %v747 = vsel %vm405, %v685, 0.0
      %748 = vadd.xlane.f32.xlu0 %v747
      %v749 = vpop.xlane.xlu0 %748
      %v750 = vsel %vm405, %v686, 0.0
      %751 = vadd.xlane.f32.xlu0 %v750
      %v752 = vpop.xlane.xlu0 %751
      %v753 = vsel %vm405, %v687, 0.0
      %754 = vadd.xlane.f32.xlu0 %v753
      %v755 = vpop.xlane.xlu0 %754
      %v756 = vsel %vm405, %v688, 0.0
      %757 = vadd.xlane.f32.xlu0 %v756
      %v758 = vpop.xlane.xlu0 %757
      %v759 = vsel %vm405, %v689, 0.0
      %760 = vadd.xlane.f32.xlu0 %v759
      %v761 = vpop.xlane.xlu0 %760
      %v762 = vsel %vm405, %v690, 0.0
      %763 = vadd.xlane.f32.xlu0 %v762
      %v764 = vpop.xlane.xlu0 %763
      %v765 = vsel %vm405, %v691, 0.0
      %766 = vadd.xlane.f32.xlu0 %v765
      %v767 = vpop.xlane.xlu0 %766
      %v768 = vsel %vm405, %v692, 0.0
      %769 = vadd.xlane.f32.xlu0 %v768
      %v770 = vpop.xlane.xlu0 %769
      %v771 = vsel %vm405, %v693, 0.0
      %772 = vadd.xlane.f32.xlu0 %v771
      %v773 = vpop.xlane.xlu0 %772
      %v774 = vsel %vm405, %v694, 0.0
      %775 = vadd.xlane.f32.xlu0 %v774
      %v776 = vpop.xlane.xlu0 %775
      %v777 = vsel %vm405, %v695, 0.0
      %778 = vadd.xlane.f32.xlu0 %v777
      %v779 = vpop.xlane.xlu0 %778
      %v780 = vsel %vm405, %v696, 0.0
      %781 = vadd.xlane.f32.xlu0 %v780
      %v782 = vpop.xlane.xlu0 %781
      %v783 = vsel %vm405, %v697, 0.0
      %784 = vadd.xlane.f32.xlu0 %v783
      %v785 = vpop.xlane.xlu0 %784
      %v786 = vsel %vm405, %v698, 0.0
      %787 = vadd.xlane.f32.xlu0 %v786
      %v788 = vpop.xlane.xlu0 %787
      %v789 = vsel %vm405, %v699, 0.0
      %790 = vadd.xlane.f32.xlu0 %v789
      %v791 = vpop.xlane.xlu0 %790
      %v792 = vsel %vm405, %v700, 0.0
      %793 = vadd.xlane.f32.xlu0 %v792
      %v794 = vpop.xlane.xlu0 %793
      %v795 = vsel %vm405, %v701, 0.0
      %796 = vadd.xlane.f32.xlu0 %v795
      %v797 = vpop.xlane.xlu0 %796
      %v798 = vmul.f32 %v704, %v605
      %v799 = vmul.f32 %v707, %v605
      %v800 = vmul.f32 %v710, %v605
      %v801 = vmul.f32 %v713, %v605
      %v802 = vmul.f32 %v716, %v605
      %v803 = vmul.f32 %v719, %v605
      %v804 = vmul.f32 %v722, %v605
      %v805 = vmul.f32 %v725, %v605
      %v806 = vmul.f32 %v728, %v605
      %v807 = vmul.f32 %v731, %v605
      %v808 = vmul.f32 %v734, %v605
      %v809 = vmul.f32 %v737, %v605
      %v810 = vmul.f32 %v740, %v605
      %v811 = vmul.f32 %v743, %v605
      %v812 = vmul.f32 %v746, %v605
      %v813 = vmul.f32 %v749, %v605
      %v814 = vmul.f32 %v752, %v605
      %v815 = vmul.f32 %v755, %v605
      %v816 = vmul.f32 %v758, %v605
      %v817 = vmul.f32 %v761, %v605
      %v818 = vmul.f32 %v764, %v605
      %v819 = vmul.f32 %v767, %v605
      %v820 = vmul.f32 %v770, %v605
      %v821 = vmul.f32 %v773, %v605
      %v822 = vmul.f32 %v776, %v605
      %v823 = vmul.f32 %v779, %v605
      %v824 = vmul.f32 %v782, %v605
      %v825 = vmul.f32 %v785, %v605
      %v826 = vmul.f32 %v788, %v605
      %v827 = vmul.f32 %v791, %v605
      %v828 = vmul.f32 %v794, %v605
      %v829 = vmul.f32 %v797, %v605
      %v830 = vadd.f32 %v798, 1e-05
      %v831 = vadd.f32 %v799, 1e-05
      %v832 = vadd.f32 %v800, 1e-05
      %v833 = vadd.f32 %v801, 1e-05
      %v834 = vadd.f32 %v802, 1e-05
      %v835 = vadd.f32 %v803, 1e-05
      %v836 = vadd.f32 %v804, 1e-05
      %v837 = vadd.f32 %v805, 1e-05
      %v838 = vadd.f32 %v806, 1e-05
      %v839 = vadd.f32 %v807, 1e-05
      %v840 = vadd.f32 %v808, 1e-05
      %v841 = vadd.f32 %v809, 1e-05
      %v842 = vadd.f32 %v810, 1e-05
      %v843 = vadd.f32 %v811, 1e-05
      %v844 = vadd.f32 %v812, 1e-05
      %v845 = vadd.f32 %v813, 1e-05
      %v846 = vadd.f32 %v814, 1e-05
      %v847 = vadd.f32 %v815, 1e-05
      %v848 = vadd.f32 %v816, 1e-05
      %v849 = vadd.f32 %v817, 1e-05
      %v850 = vadd.f32 %v818, 1e-05
      %v851 = vadd.f32 %v819, 1e-05
      %v852 = vadd.f32 %v820, 1e-05
      %v853 = vadd.f32 %v821, 1e-05
      %v854 = vadd.f32 %v822, 1e-05
      %v855 = vadd.f32 %v823, 1e-05
      %v856 = vadd.f32 %v824, 1e-05
      %v857 = vadd.f32 %v825, 1e-05
      %v858 = vadd.f32 %v826, 1e-05
      %v859 = vadd.f32 %v827, 1e-05
      %v860 = vadd.f32 %v828, 1e-05
      %v861 = vadd.f32 %v829, 1e-05
      %v862 = vrsqrt.pop %v830
      %v863 = vmul.f32 %v862, %v830
      %v864 = vmul.f32 %v863, %v862
      %v865 = vmul.f32 0.5, %v864
      %v866 = vsub.f32 1.5, %v865
      %v867 = vmul.f32 %v862, %v866
      %vm868 = vweird.f32 %v830
      %vm869 = vweird.f32 %v862
      %vm870 = vmor %vm868, %vm869
      %v871 = vsel %vm870, %v862, %v867
      %v872 = vrsqrt.pop %v831
      %v873 = vmul.f32 %v872, %v831
      %v874 = vmul.f32 %v873, %v872
      %v875 = vmul.f32 0.5, %v874
      %v876 = vsub.f32 1.5, %v875
      %v877 = vmul.f32 %v872, %v876
      %vm878 = vweird.f32 %v831
      %vm879 = vweird.f32 %v872
      %vm880 = vmor %vm878, %vm879
      %v881 = vsel %vm880, %v872, %v877
      %v882 = vrsqrt.pop %v832
      %v883 = vmul.f32 %v882, %v832
      %v884 = vmul.f32 %v883, %v882
      %v885 = vmul.f32 0.5, %v884
      %v886 = vsub.f32 1.5, %v885
      %v887 = vmul.f32 %v882, %v886
      %vm888 = vweird.f32 %v832
      %vm889 = vweird.f32 %v882
      %vm890 = vmor %vm888, %vm889
      %v891 = vsel %vm890, %v882, %v887
      %v892 = vrsqrt.pop %v833
      %v893 = vmul.f32 %v892, %v833
      %v894 = vmul.f32 %v893, %v892
      %v895 = vmul.f32 0.5, %v894
      %v896 = vsub.f32 1.5, %v895
      %v897 = vmul.f32 %v892, %v896
      %vm898 = vweird.f32 %v833
      %vm899 = vweird.f32 %v892
      %vm900 = vmor %vm898, %vm899
      %v901 = vsel %vm900, %v892, %v897
      %v902 = vrsqrt.pop %v834
      %v903 = vmul.f32 %v902, %v834
      %v904 = vmul.f32 %v903, %v902
      %v905 = vmul.f32 0.5, %v904
      %v906 = vsub.f32 1.5, %v905
      %v907 = vmul.f32 %v902, %v906
      %vm908 = vweird.f32 %v834
      %vm909 = vweird.f32 %v902
      %vm910 = vmor %vm908, %vm909
      %v911 = vsel %vm910, %v902, %v907
      %v912 = vrsqrt.pop %v835
      %v913 = vmul.f32 %v912, %v835
      %v914 = vmul.f32 %v913, %v912
      %v915 = vmul.f32 0.5, %v914
      %v916 = vsub.f32 1.5, %v915
      %v917 = vmul.f32 %v912, %v916
      %vm918 = vweird.f32 %v835
      %vm919 = vweird.f32 %v912
      %vm920 = vmor %vm918, %vm919
      %v921 = vsel %vm920, %v912, %v917
      %v922 = vrsqrt.pop %v836
      %v923 = vmul.f32 %v922, %v836
      %v924 = vmul.f32 %v923, %v922
      %v925 = vmul.f32 0.5, %v924
      %v926 = vsub.f32 1.5, %v925
      %v927 = vmul.f32 %v922, %v926
      %vm928 = vweird.f32 %v836
      %vm929 = vweird.f32 %v922
      %vm930 = vmor %vm928, %vm929
      %v931 = vsel %vm930, %v922, %v927
      %v932 = vrsqrt.pop %v837
      %v933 = vmul.f32 %v932, %v837
      %v934 = vmul.f32 %v933, %v932
      %v935 = vmul.f32 0.5, %v934
      %v936 = vsub.f32 1.5, %v935
      %v937 = vmul.f32 %v932, %v936
      %vm938 = vweird.f32 %v837
      %vm939 = vweird.f32 %v932
      %vm940 = vmor %vm938, %vm939
      %v941 = vsel %vm940, %v932, %v937
      %v942 = vrsqrt.pop %v838
      %v943 = vmul.f32 %v942, %v838
      %v944 = vmul.f32 %v943, %v942
      %v945 = vmul.f32 0.5, %v944
      %v946 = vsub.f32 1.5, %v945
      %v947 = vmul.f32 %v942, %v946
      %vm948 = vweird.f32 %v838
      %vm949 = vweird.f32 %v942
      %vm950 = vmor %vm948, %vm949
      %v951 = vsel %vm950, %v942, %v947
      %v952 = vrsqrt.pop %v839
      %v953 = vmul.f32 %v952, %v839
      %v954 = vmul.f32 %v953, %v952
      %v955 = vmul.f32 0.5, %v954
      %v956 = vsub.f32 1.5, %v955
      %v957 = vmul.f32 %v952, %v956
      %vm958 = vweird.f32 %v839
      %vm959 = vweird.f32 %v952
      %vm960 = vmor %vm958, %vm959
      %v961 = vsel %vm960, %v952, %v957
      %v962 = vrsqrt.pop %v840
      %v963 = vmul.f32 %v962, %v840
      %v964 = vmul.f32 %v963, %v962
      %v965 = vmul.f32 0.5, %v964
      %v966 = vsub.f32 1.5, %v965
      %v967 = vmul.f32 %v962, %v966
      %vm968 = vweird.f32 %v840
      %vm969 = vweird.f32 %v962
      %vm970 = vmor %vm968, %vm969
      %v971 = vsel %vm970, %v962, %v967
      %v972 = vrsqrt.pop %v841
      %v973 = vmul.f32 %v972, %v841
      %v974 = vmul.f32 %v973, %v972
      %v975 = vmul.f32 0.5, %v974
      %v976 = vsub.f32 1.5, %v975
      %v977 = vmul.f32 %v972, %v976
      %vm978 = vweird.f32 %v841
      %vm979 = vweird.f32 %v972
      %vm980 = vmor %vm978, %vm979
      %v981 = vsel %vm980, %v972, %v977
      %v982 = vrsqrt.pop %v842
      %v983 = vmul.f32 %v982, %v842
      %v984 = vmul.f32 %v983, %v982
      %v985 = vmul.f32 0.5, %v984
      %v986 = vsub.f32 1.5, %v985
      %v987 = vmul.f32 %v982, %v986
      %vm988 = vweird.f32 %v842
      %vm989 = vweird.f32 %v982
      %vm990 = vmor %vm988, %vm989
      %v991 = vsel %vm990, %v982, %v987
      %v992 = vrsqrt.pop %v843
      %v993 = vmul.f32 %v992, %v843
      %v994 = vmul.f32 %v993, %v992
      %v995 = vmul.f32 0.5, %v994
      %v996 = vsub.f32 1.5, %v995
      %v997 = vmul.f32 %v992, %v996
      %vm998 = vweird.f32 %v843
      %vm999 = vweird.f32 %v992
      %vm1000 = vmor %vm998, %vm999
      %v1001 = vsel %vm1000, %v992, %v997
      %v1002 = vrsqrt.pop %v844
      %v1003 = vmul.f32 %v1002, %v844
      %v1004 = vmul.f32 %v1003, %v1002
      %v1005 = vmul.f32 0.5, %v1004
      %v1006 = vsub.f32 1.5, %v1005
      %v1007 = vmul.f32 %v1002, %v1006
      %vm1008 = vweird.f32 %v844
      %vm1009 = vweird.f32 %v1002
      %vm1010 = vmor %vm1008, %vm1009
      %v1011 = vsel %vm1010, %v1002, %v1007
      %v1012 = vrsqrt.pop %v845
      %v1013 = vmul.f32 %v1012, %v845
      %v1014 = vmul.f32 %v1013, %v1012
      %v1015 = vmul.f32 0.5, %v1014
      %v1016 = vsub.f32 1.5, %v1015
      %v1017 = vmul.f32 %v1012, %v1016
      %vm1018 = vweird.f32 %v845
      %vm1019 = vweird.f32 %v1012
      %vm1020 = vmor %vm1018, %vm1019
      %v1021 = vsel %vm1020, %v1012, %v1017
      %v1022 = vrsqrt.pop %v846
      %v1023 = vmul.f32 %v1022, %v846
      %v1024 = vmul.f32 %v1023, %v1022
      %v1025 = vmul.f32 0.5, %v1024
      %v1026 = vsub.f32 1.5, %v1025
      %v1027 = vmul.f32 %v1022, %v1026
      %vm1028 = vweird.f32 %v846
      %vm1029 = vweird.f32 %v1022
      %vm1030 = vmor %vm1028, %vm1029
      %v1031 = vsel %vm1030, %v1022, %v1027
      %v1032 = vrsqrt.pop %v847
      %v1033 = vmul.f32 %v1032, %v847
      %v1034 = vmul.f32 %v1033, %v1032
      %v1035 = vmul.f32 0.5, %v1034
      %v1036 = vsub.f32 1.5, %v1035
      %v1037 = vmul.f32 %v1032, %v1036
      %vm1038 = vweird.f32 %v847
      %vm1039 = vweird.f32 %v1032
      %vm1040 = vmor %vm1038, %vm1039
      %v1041 = vsel %vm1040, %v1032, %v1037
      %v1042 = vrsqrt.pop %v848
      %v1043 = vmul.f32 %v1042, %v848
      %v1044 = vmul.f32 %v1043, %v1042
      %v1045 = vmul.f32 0.5, %v1044
      %v1046 = vsub.f32 1.5, %v1045
      %v1047 = vmul.f32 %v1042, %v1046
      %vm1048 = vweird.f32 %v848
      %vm1049 = vweird.f32 %v1042
      %vm1050 = vmor %vm1048, %vm1049
      %v1051 = vsel %vm1050, %v1042, %v1047
      %v1052 = vrsqrt.pop %v849
      %v1053 = vmul.f32 %v1052, %v849
      %v1054 = vmul.f32 %v1053, %v1052
      %v1055 = vmul.f32 0.5, %v1054
      %v1056 = vsub.f32 1.5, %v1055
      %v1057 = vmul.f32 %v1052, %v1056
      %vm1058 = vweird.f32 %v849
      %vm1059 = vweird.f32 %v1052
      %vm1060 = vmor %vm1058, %vm1059
      %v1061 = vsel %vm1060, %v1052, %v1057
      %v1062 = vrsqrt.pop %v850
      %v1063 = vmul.f32 %v1062, %v850
      %v1064 = vmul.f32 %v1063, %v1062
      %v1065 = vmul.f32 0.5, %v1064
      %v1066 = vsub.f32 1.5, %v1065
      %v1067 = vmul.f32 %v1062, %v1066
      %vm1068 = vweird.f32 %v850
      %vm1069 = vweird.f32 %v1062
      %vm1070 = vmor %vm1068, %vm1069
      %v1071 = vsel %vm1070, %v1062, %v1067
      %v1072 = vrsqrt.pop %v851
      %v1073 = vmul.f32 %v1072, %v851
      %v1074 = vmul.f32 %v1073, %v1072
      %v1075 = vmul.f32 0.5, %v1074
      %v1076 = vsub.f32 1.5, %v1075
      %v1077 = vmul.f32 %v1072, %v1076
      %vm1078 = vweird.f32 %v851
      %vm1079 = vweird.f32 %v1072
      %vm1080 = vmor %vm1078, %vm1079
      %v1081 = vsel %vm1080, %v1072, %v1077
      %v1082 = vrsqrt.pop %v852
      %v1083 = vmul.f32 %v1082, %v852
      %v1084 = vmul.f32 %v1083, %v1082
      %v1085 = vmul.f32 0.5, %v1084
      %v1086 = vsub.f32 1.5, %v1085
      %v1087 = vmul.f32 %v1082, %v1086
      %vm1088 = vweird.f32 %v852
      %vm1089 = vweird.f32 %v1082
      %vm1090 = vmor %vm1088, %vm1089
      %v1091 = vsel %vm1090, %v1082, %v1087
      %v1092 = vrsqrt.pop %v853
      %v1093 = vmul.f32 %v1092, %v853
      %v1094 = vmul.f32 %v1093, %v1092
      %v1095 = vmul.f32 0.5, %v1094
      %v1096 = vsub.f32 1.5, %v1095
      %v1097 = vmul.f32 %v1092, %v1096
      %vm1098 = vweird.f32 %v853
      %vm1099 = vweird.f32 %v1092
      %vm1100 = vmor %vm1098, %vm1099
      %v1101 = vsel %vm1100, %v1092, %v1097
      %v1102 = vrsqrt.pop %v854
      %v1103 = vmul.f32 %v1102, %v854
      %v1104 = vmul.f32 %v1103, %v1102
      %v1105 = vmul.f32 0.5, %v1104
      %v1106 = vsub.f32 1.5, %v1105
      %v1107 = vmul.f32 %v1102, %v1106
      %vm1108 = vweird.f32 %v854
      %vm1109 = vweird.f32 %v1102
      %vm1110 = vmor %vm1108, %vm1109
      %v1111 = vsel %vm1110, %v1102, %v1107
      %v1112 = vrsqrt.pop %v855
      %v1113 = vmul.f32 %v1112, %v855
      %v1114 = vmul.f32 %v1113, %v1112
      %v1115 = vmul.f32 0.5, %v1114
      %v1116 = vsub.f32 1.5, %v1115
      %v1117 = vmul.f32 %v1112, %v1116
      %vm1118 = vweird.f32 %v855
      %vm1119 = vweird.f32 %v1112
      %vm1120 = vmor %vm1118, %vm1119
      %v1121 = vsel %vm1120, %v1112, %v1117
      %v1122 = vrsqrt.pop %v856
      %v1123 = vmul.f32 %v1122, %v856
      %v1124 = vmul.f32 %v1123, %v1122
      %v1125 = vmul.f32 0.5, %v1124
      %v1126 = vsub.f32 1.5, %v1125
      %v1127 = vmul.f32 %v1122, %v1126
      %vm1128 = vweird.f32 %v856
      %vm1129 = vweird.f32 %v1122
      %vm1130 = vmor %vm1128, %vm1129
      %v1131 = vsel %vm1130, %v1122, %v1127
      %v1132 = vrsqrt.pop %v857
      %v1133 = vmul.f32 %v1132, %v857
      %v1134 = vmul.f32 %v1133, %v1132
      %v1135 = vmul.f32 0.5, %v1134
      %v1136 = vsub.f32 1.5, %v1135
      %v1137 = vmul.f32 %v1132, %v1136
      %vm1138 = vweird.f32 %v857
      %vm1139 = vweird.f32 %v1132
      %vm1140 = vmor %vm1138, %vm1139
      %v1141 = vsel %vm1140, %v1132, %v1137
      %v1142 = vrsqrt.pop %v858
      %v1143 = vmul.f32 %v1142, %v858
      %v1144 = vmul.f32 %v1143, %v1142
      %v1145 = vmul.f32 0.5, %v1144
      %v1146 = vsub.f32 1.5, %v1145
      %v1147 = vmul.f32 %v1142, %v1146
      %vm1148 = vweird.f32 %v858
      %vm1149 = vweird.f32 %v1142
      %vm1150 = vmor %vm1148, %vm1149
      %v1151 = vsel %vm1150, %v1142, %v1147
      %v1152 = vrsqrt.pop %v859
      %v1153 = vmul.f32 %v1152, %v859
      %v1154 = vmul.f32 %v1153, %v1152
      %v1155 = vmul.f32 0.5, %v1154
      %v1156 = vsub.f32 1.5, %v1155
      %v1157 = vmul.f32 %v1152, %v1156
      %vm1158 = vweird.f32 %v859
      %vm1159 = vweird.f32 %v1152
      %vm1160 = vmor %vm1158, %vm1159
      %v1161 = vsel %vm1160, %v1152, %v1157
      %v1162 = vrsqrt.pop %v860
      %v1163 = vmul.f32 %v1162, %v860
      %v1164 = vmul.f32 %v1163, %v1162
      %v1165 = vmul.f32 0.5, %v1164
      %v1166 = vsub.f32 1.5, %v1165
      %v1167 = vmul.f32 %v1162, %v1166
      %vm1168 = vweird.f32 %v860
      %vm1169 = vweird.f32 %v1162
      %vm1170 = vmor %vm1168, %vm1169
      %v1171 = vsel %vm1170, %v1162, %v1167
      %v1172 = vrsqrt.pop %v861
      %v1173 = vmul.f32 %v1172, %v861
      %v1174 = vmul.f32 %v1173, %v1172
      %v1175 = vmul.f32 0.5, %v1174
      %v1176 = vsub.f32 1.5, %v1175
      %v1177 = vmul.f32 %v1172, %v1176
      %vm1178 = vweird.f32 %v861
      %vm1179 = vweird.f32 %v1172
      %vm1180 = vmor %vm1178, %vm1179
      %v1181 = vsel %vm1180, %v1172, %v1177
      %v1182 = vmul.f32 %v638, %v871
      %v1183 = vmul.f32 %v639, %v881
      %v1184 = vmul.f32 %v640, %v891
      %v1185 = vmul.f32 %v641, %v901
      %v1186 = vmul.f32 %v642, %v911
      %v1187 = vmul.f32 %v643, %v921
      %v1188 = vmul.f32 %v644, %v931
      %v1189 = vmul.f32 %v645, %v941
      %v1190 = vmul.f32 %v646, %v951
      %v1191 = vmul.f32 %v647, %v961
      %v1192 = vmul.f32 %v648, %v971
      %v1193 = vmul.f32 %v649, %v981
      %v1194 = vmul.f32 %v650, %v991
      %v1195 = vmul.f32 %v651, %v1001
      %v1196 = vmul.f32 %v652, %v1011
      %v1197 = vmul.f32 %v653, %v1021
      %v1198 = vmul.f32 %v654, %v1031
      %v1199 = vmul.f32 %v655, %v1041
      %v1200 = vmul.f32 %v656, %v1051
      %v1201 = vmul.f32 %v657, %v1061
      %v1202 = vmul.f32 %v658, %v1071
      %v1203 = vmul.f32 %v659, %v1081
      %v1204 = vmul.f32 %v660, %v1091
      %v1205 = vmul.f32 %v661, %v1101
      %v1206 = vmul.f32 %v662, %v1111
      %v1207 = vmul.f32 %v663, %v1121
      %v1208 = vmul.f32 %v664, %v1131
      %v1209 = vmul.f32 %v665, %v1141
      %v1210 = vmul.f32 %v666, %v1151
      %v1211 = vmul.f32 %v667, %v1161
      %v1212 = vmul.f32 %v668, %v1171
      %v1213 = vmul.f32 %v669, %v1181
      %v1214 = vld [vmem:[%s2] sm:$0x1]
      %v1215 = vperm.slane %v1214, 0
      %v1216 = vmul.f32 %v1182, %v1215
      %v1217 = vmul.f32 %v1183, %v1215
      %v1218 = vmul.f32 %v1184, %v1215
      %v1219 = vmul.f32 %v1185, %v1215
      %v1220 = vmul.f32 %v1186, %v1215
      %v1221 = vmul.f32 %v1187, %v1215
      %v1222 = vmul.f32 %v1188, %v1215
      %v1223 = vmul.f32 %v1189, %v1215
      %v1224 = vmul.f32 %v1190, %v1215
      %v1225 = vmul.f32 %v1191, %v1215
      %v1226 = vmul.f32 %v1192, %v1215
      %v1227 = vmul.f32 %v1193, %v1215
      %v1228 = vmul.f32 %v1194, %v1215
      %v1229 = vmul.f32 %v1195, %v1215
      %v1230 = vmul.f32 %v1196, %v1215
      %v1231 = vmul.f32 %v1197, %v1215
      %v1232 = vmul.f32 %v1198, %v1215
      %v1233 = vmul.f32 %v1199, %v1215
      %v1234 = vmul.f32 %v1200, %v1215
      %v1235 = vmul.f32 %v1201, %v1215
      %v1236 = vmul.f32 %v1202, %v1215
      %v1237 = vmul.f32 %v1203, %v1215
      %v1238 = vmul.f32 %v1204, %v1215
      %v1239 = vmul.f32 %v1205, %v1215
      %v1240 = vmul.f32 %v1206, %v1215
      %v1241 = vmul.f32 %v1207, %v1215
      %v1242 = vmul.f32 %v1208, %v1215
      %v1243 = vmul.f32 %v1209, %v1215
      %v1244 = vmul.f32 %v1210, %v1215
      %v1245 = vmul.f32 %v1211, %v1215
      %v1246 = vmul.f32 %v1212, %v1215
      %v1247 = vmul.f32 %v1213, %v1215
      %v1248 = vld [vmem:[%s3] sm:$0x1]
      %v1249 = vperm.slane %v1248, 0
      %v1250 = vadd.f32 %v1216, %v1249
      %v1251 = vadd.f32 %v1217, %v1249
      %v1252 = vadd.f32 %v1218, %v1249
      %v1253 = vadd.f32 %v1219, %v1249
      %v1254 = vadd.f32 %v1220, %v1249
      %v1255 = vadd.f32 %v1221, %v1249
      %v1256 = vadd.f32 %v1222, %v1249
      %v1257 = vadd.f32 %v1223, %v1249
      %v1258 = vadd.f32 %v1224, %v1249
      %v1259 = vadd.f32 %v1225, %v1249
      %v1260 = vadd.f32 %v1226, %v1249
      %v1261 = vadd.f32 %v1227, %v1249
      %v1262 = vadd.f32 %v1228, %v1249
      %v1263 = vadd.f32 %v1229, %v1249
      %v1264 = vadd.f32 %v1230, %v1249
      %v1265 = vadd.f32 %v1231, %v1249
      %v1266 = vadd.f32 %v1232, %v1249
      %v1267 = vadd.f32 %v1233, %v1249
      %v1268 = vadd.f32 %v1234, %v1249
      %v1269 = vadd.f32 %v1235, %v1249
      %v1270 = vadd.f32 %v1236, %v1249
      %v1271 = vadd.f32 %v1237, %v1249
      %v1272 = vadd.f32 %v1238, %v1249
      %v1273 = vadd.f32 %v1239, %v1249
      %v1274 = vadd.f32 %v1240, %v1249
      %v1275 = vadd.f32 %v1241, %v1249
      %v1276 = vadd.f32 %v1242, %v1249
      %v1277 = vadd.f32 %v1243, %v1249
      %v1278 = vadd.f32 %v1244, %v1249
      %v1279 = vadd.f32 %v1245, %v1249
      %v1280 = vadd.f32 %v1246, %v1249
      %v1281 = vadd.f32 %v1247, %v1249
      %s1282 = scalar_lea.vmem [#allocation2], 72
      %1283 = vst.msk [vmem:[%s1282 + $0x3] sm:$0xff] %vm405, %v1250
      %1284 = vst.msk [vmem:[%s1282 + $0xb] sm:$0xff] %vm405, %v1251
      %1285 = vst.msk [vmem:[%s1282 + $0x1b] sm:$0xff] %vm405, %v1252
      %1286 = vst.msk [vmem:[%s1282 + $0x23] sm:$0xff] %vm405, %v1253
      %1287 = vst.msk [vmem:[%s1282 + $0x33] sm:$0xff] %vm405, %v1254
      %1288 = vst.msk [vmem:[%s1282 + $0x3b] sm:$0xff] %vm405, %v1255
      %1289 = vst.msk [vmem:[%s1282 + $0x4b] sm:$0xff] %vm405, %v1256
      %1290 = vst.msk [vmem:[%s1282 + $0x53] sm:$0xff] %vm405, %v1257
      %1291 = vst.msk [vmem:[%s1282 + $0x63] sm:$0xff] %vm405, %v1258
      %1292 = vst.msk [vmem:[%s1282 + $0x6b] sm:$0xff] %vm405, %v1259
      %1293 = vst.msk [vmem:[%s1282 + $0x7b] sm:$0xff] %vm405, %v1260
      %1294 = vst.msk [vmem:[%s1282 + $0x83] sm:$0xff] %vm405, %v1261
      %1295 = vst.msk [vmem:[%s1282 + $0x93] sm:$0xff] %vm405, %v1262
      %1296 = vst.msk [vmem:[%s1282 + $0x9b] sm:$0xff] %vm405, %v1263
      %1297 = vst.msk [vmem:[%s1282 + $0xab] sm:$0xff] %vm405, %v1264
      %1298 = vst.msk [vmem:[%s1282 + $0xb3] sm:$0xff] %vm405, %v1265
      %1299 = vst.msk [vmem:[%s1282 + $0xc3] sm:$0xff] %vm405, %v1266
      %1300 = vst.msk [vmem:[%s1282 + $0xcb] sm:$0xff] %vm405, %v1267
      %1301 = vst.msk [vmem:[%s1282 + $0xdb] sm:$0xff] %vm405, %v1268
      %1302 = vst.msk [vmem:[%s1282 + $0xe3] sm:$0xff] %vm405, %v1269
      %1303 = vst.msk [vmem:[%s1282 + $0xf3] sm:$0xff] %vm405, %v1270
      %1304 = vst.msk [vmem:[%s1282 + $0xfb] sm:$0xff] %vm405, %v1271
      %1305 = vst.msk [vmem:[%s1282 + $0x10b] sm:$0xff] %vm405, %v1272
      %1306 = vst.msk [vmem:[%s1282 + $0x113] sm:$0xff] %vm405, %v1273
      %1307 = vst.msk [vmem:[%s1282 + $0x123] sm:$0xff] %vm405, %v1274
      %1308 = vst.msk [vmem:[%s1282 + $0x12b] sm:$0xff] %vm405, %v1275
      %1309 = vst.msk [vmem:[%s1282 + $0x13b] sm:$0xff] %vm405, %v1276
      %1310 = vst.msk [vmem:[%s1282 + $0x143] sm:$0xff] %vm405, %v1277
      %1311 = vst.msk [vmem:[%s1282 + $0x153] sm:$0xff] %vm405, %v1278
      %1312 = vst.msk [vmem:[%s1282 + $0x15b] sm:$0xff] %vm405, %v1279
      %1313 = vst.msk [vmem:[%s1282 + $0x16b] sm:$0xff] %vm405, %v1280
      %1314 = vst.msk [vmem:[%s1282 + $0x173] sm:$0xff] %vm405, %v1281
      %v1315 = vld [vmem:[%s1282] sm:$0xff]
      %v1316 = vld [vmem:[%s1282 + $0x8] sm:$0xff]
      %v1317 = vld [vmem:[%s1282 + $0x18] sm:$0xff]
      %v1318 = vld [vmem:[%s1282 + $0x20] sm:$0xff]
      %v1319 = vld [vmem:[%s1282 + $0x30] sm:$0xff]
      %v1320 = vld [vmem:[%s1282 + $0x38] sm:$0xff]
      %v1321 = vld [vmem:[%s1282 + $0x48] sm:$0xff]
      %v1322 = vld [vmem:[%s1282 + $0x50] sm:$0xff]
      %v1323 = vld [vmem:[%s1282 + $0x60] sm:$0xff]
      %v1324 = vld [vmem:[%s1282 + $0x68] sm:$0xff]
      %v1325 = vld [vmem:[%s1282 + $0x78] sm:$0xff]
      %v1326 = vld [vmem:[%s1282 + $0x80] sm:$0xff]
      %v1327 = vld [vmem:[%s1282 + $0x90] sm:$0xff]
      %v1328 = vld [vmem:[%s1282 + $0x98] sm:$0xff]
      %v1329 = vld [vmem:[%s1282 + $0xa8] sm:$0xff]
      %v1330 = vld [vmem:[%s1282 + $0xb0] sm:$0xff]
      %v1331 = vld [vmem:[%s1282 + $0xc0] sm:$0xff]
      %v1332 = vld [vmem:[%s1282 + $0xc8] sm:$0xff]
      %v1333 = vld [vmem:[%s1282 + $0xd8] sm:$0xff]
      %v1334 = vld [vmem:[%s1282 + $0xe0] sm:$0xff]
      %v1335 = vld [vmem:[%s1282 + $0xf0] sm:$0xff]
      %v1336 = vld [vmem:[%s1282 + $0xf8] sm:$0xff]
      %v1337 = vld [vmem:[%s1282 + $0x108] sm:$0xff]
      %v1338 = vld [vmem:[%s1282 + $0x110] sm:$0xff]
      %v1339 = vld [vmem:[%s1282 + $0x120] sm:$0xff]
      %v1340 = vld [vmem:[%s1282 + $0x128] sm:$0xff]
      %v1341 = vld [vmem:[%s1282 + $0x138] sm:$0xff]
      %v1342 = vld [vmem:[%s1282 + $0x140] sm:$0xff]
      %v1343 = vld [vmem:[%s1282 + $0x150] sm:$0xff]
      %v1344 = vld [vmem:[%s1282 + $0x158] sm:$0xff]
      %v1345 = vld [vmem:[%s1282 + $0x168] sm:$0xff]
      %v1346 = vld [vmem:[%s1282 + $0x170] sm:$0xff]
      %v1347 = vld [vmem:[%s4] sm:$0x1]
      %v1348 = vperm.slane %v1347, 0
      %v1349 = vmul.f32 %v1315, %v1348
      %v1350 = vmul.f32 %v1316, %v1348
      %v1351 = vmul.f32 %v1317, %v1348
      %v1352 = vmul.f32 %v1318, %v1348
      %v1353 = vmul.f32 %v1319, %v1348
      %v1354 = vmul.f32 %v1320, %v1348
      %v1355 = vmul.f32 %v1321, %v1348
      %v1356 = vmul.f32 %v1322, %v1348
      %v1357 = vmul.f32 %v1323, %v1348
      %v1358 = vmul.f32 %v1324, %v1348
      %v1359 = vmul.f32 %v1325, %v1348
      %v1360 = vmul.f32 %v1326, %v1348
      %v1361 = vmul.f32 %v1327, %v1348
      %v1362 = vmul.f32 %v1328, %v1348
      %v1363 = vmul.f32 %v1329, %v1348
      %v1364 = vmul.f32 %v1330, %v1348
      %v1365 = vmul.f32 %v1331, %v1348
      %v1366 = vmul.f32 %v1332, %v1348
      %v1367 = vmul.f32 %v1333, %v1348
      %v1368 = vmul.f32 %v1334, %v1348
      %v1369 = vmul.f32 %v1335, %v1348
      %v1370 = vmul.f32 %v1336, %v1348
      %v1371 = vmul.f32 %v1337, %v1348
      %v1372 = vmul.f32 %v1338, %v1348
      %v1373 = vmul.f32 %v1339, %v1348
      %v1374 = vmul.f32 %v1340, %v1348
      %v1375 = vmul.f32 %v1341, %v1348
      %v1376 = vmul.f32 %v1342, %v1348
      %v1377 = vmul.f32 %v1343, %v1348
      %v1378 = vmul.f32 %v1344, %v1348
      %v1379 = vmul.f32 %v1345, %v1348
      %v1380 = vmul.f32 %v1346, %v1348
      %v1381 = vld [vmem:[%s1282 + $0x1] sm:$0xff]
      %v1382 = vld [vmem:[%s1282 + $0x9] sm:$0xff]
      %v1383 = vld [vmem:[%s1282 + $0x19] sm:$0xff]
      %v1384 = vld [vmem:[%s1282 + $0x21] sm:$0xff]
      %v1385 = vld [vmem:[%s1282 + $0x31] sm:$0xff]
      %v1386 = vld [vmem:[%s1282 + $0x39] sm:$0xff]
      %v1387 = vld [vmem:[%s1282 + $0x49] sm:$0xff]
      %v1388 = vld [vmem:[%s1282 + $0x51] sm:$0xff]
      %v1389 = vld [vmem:[%s1282 + $0x61] sm:$0xff]
      %v1390 = vld [vmem:[%s1282 + $0x69] sm:$0xff]
      %v1391 = vld [vmem:[%s1282 + $0x79] sm:$0xff]
      %v1392 = vld [vmem:[%s1282 + $0x81] sm:$0xff]
      %v1393 = vld [vmem:[%s1282 + $0x91] sm:$0xff]
      %v1394 = vld [vmem:[%s1282 + $0x99] sm:$0xff]
      %v1395 = vld [vmem:[%s1282 + $0xa9] sm:$0xff]
      %v1396 = vld [vmem:[%s1282 + $0xb1] sm:$0xff]
      %v1397 = vld [vmem:[%s1282 + $0xc1] sm:$0xff]
      %v1398 = vld [vmem:[%s1282 + $0xc9] sm:$0xff]
      %v1399 = vld [vmem:[%s1282 + $0xd9] sm:$0xff]
      %v1400 = vld [vmem:[%s1282 + $0xe1] sm:$0xff]
      %v1401 = vld [vmem:[%s1282 + $0xf1] sm:$0xff]
      %v1402 = vld [vmem:[%s1282 + $0xf9] sm:$0xff]
      %v1403 = vld [vmem:[%s1282 + $0x109] sm:$0xff]
      %v1404 = vld [vmem:[%s1282 + $0x111] sm:$0xff]
      %v1405 = vld [vmem:[%s1282 + $0x121] sm:$0xff]
      %v1406 = vld [vmem:[%s1282 + $0x129] sm:$0xff]
      %v1407 = vld [vmem:[%s1282 + $0x139] sm:$0xff]
      %v1408 = vld [vmem:[%s1282 + $0x141] sm:$0xff]
      %v1409 = vld [vmem:[%s1282 + $0x151] sm:$0xff]
      %v1410 = vld [vmem:[%s1282 + $0x159] sm:$0xff]
      %v1411 = vld [vmem:[%s1282 + $0x169] sm:$0xff]
      %v1412 = vld [vmem:[%s1282 + $0x171] sm:$0xff]
      %v1413 = vld [vmem:[%s4 + $0x1] sm:$0x1]
      %v1414 = vperm.slane %v1413, 0
      %v1415 = vmul.f32 %v1381, %v1414
      %v1416 = vmul.f32 %v1382, %v1414
      %v1417 = vmul.f32 %v1383, %v1414
      %v1418 = vmul.f32 %v1384, %v1414
      %v1419 = vmul.f32 %v1385, %v1414
      %v1420 = vmul.f32 %v1386, %v1414
      %v1421 = vmul.f32 %v1387, %v1414
      %v1422 = vmul.f32 %v1388, %v1414
      %v1423 = vmul.f32 %v1389, %v1414
      %v1424 = vmul.f32 %v1390, %v1414
      %v1425 = vmul.f32 %v1391, %v1414
      %v1426 = vmul.f32 %v1392, %v1414
      %v1427 = vmul.f32 %v1393, %v1414
      %v1428 = vmul.f32 %v1394, %v1414
      %v1429 = vmul.f32 %v1395, %v1414
      %v1430 = vmul.f32 %v1396, %v1414
      %v1431 = vmul.f32 %v1397, %v1414
      %v1432 = vmul.f32 %v1398, %v1414
      %v1433 = vmul.f32 %v1399, %v1414
      %v1434 = vmul.f32 %v1400, %v1414
      %v1435 = vmul.f32 %v1401, %v1414
      %v1436 = vmul.f32 %v1402, %v1414
      %v1437 = vmul.f32 %v1403, %v1414
      %v1438 = vmul.f32 %v1404, %v1414
      %v1439 = vmul.f32 %v1405, %v1414
      %v1440 = vmul.f32 %v1406, %v1414
      %v1441 = vmul.f32 %v1407, %v1414
      %v1442 = vmul.f32 %v1408, %v1414
      %v1443 = vmul.f32 %v1409, %v1414
      %v1444 = vmul.f32 %v1410, %v1414
      %v1445 = vmul.f32 %v1411, %v1414
      %v1446 = vmul.f32 %v1412, %v1414
      %v1447 = vadd.f32 %v1349, %v1415
      %v1448 = vadd.f32 %v1350, %v1416
      %v1449 = vadd.f32 %v1351, %v1417
      %v1450 = vadd.f32 %v1352, %v1418
      %v1451 = vadd.f32 %v1353, %v1419
      %v1452 = vadd.f32 %v1354, %v1420
      %v1453 = vadd.f32 %v1355, %v1421
      %v1454 = vadd.f32 %v1356, %v1422
      %v1455 = vadd.f32 %v1357, %v1423
      %v1456 = vadd.f32 %v1358, %v1424
      %v1457 = vadd.f32 %v1359, %v1425
      %v1458 = vadd.f32 %v1360, %v1426
      %v1459 = vadd.f32 %v1361, %v1427
      %v1460 = vadd.f32 %v1362, %v1428
      %v1461 = vadd.f32 %v1363, %v1429
      %v1462 = vadd.f32 %v1364, %v1430
      %v1463 = vadd.f32 %v1365, %v1431
      %v1464 = vadd.f32 %v1366, %v1432
      %v1465 = vadd.f32 %v1367, %v1433
      %v1466 = vadd.f32 %v1368, %v1434
      %v1467 = vadd.f32 %v1369, %v1435
      %v1468 = vadd.f32 %v1370, %v1436
      %v1469 = vadd.f32 %v1371, %v1437
      %v1470 = vadd.f32 %v1372, %v1438
      %v1471 = vadd.f32 %v1373, %v1439
      %v1472 = vadd.f32 %v1374, %v1440
      %v1473 = vadd.f32 %v1375, %v1441
      %v1474 = vadd.f32 %v1376, %v1442
      %v1475 = vadd.f32 %v1377, %v1443
      %v1476 = vadd.f32 %v1378, %v1444
      %v1477 = vadd.f32 %v1379, %v1445
      %v1478 = vadd.f32 %v1380, %v1446
      %v1479 = vld [vmem:[%s1282 + $0x2] sm:$0xff]
      %v1480 = vld [vmem:[%s1282 + $0xa] sm:$0xff]
      %v1481 = vld [vmem:[%s1282 + $0x1a] sm:$0xff]
      %v1482 = vld [vmem:[%s1282 + $0x22] sm:$0xff]
      %v1483 = vld [vmem:[%s1282 + $0x32] sm:$0xff]
      %v1484 = vld [vmem:[%s1282 + $0x3a] sm:$0xff]
      %v1485 = vld [vmem:[%s1282 + $0x4a] sm:$0xff]
      %v1486 = vld [vmem:[%s1282 + $0x52] sm:$0xff]
      %v1487 = vld [vmem:[%s1282 + $0x62] sm:$0xff]
      %v1488 = vld [vmem:[%s1282 + $0x6a] sm:$0xff]
      %v1489 = vld [vmem:[%s1282 + $0x7a] sm:$0xff]
      %v1490 = vld [vmem:[%s1282 + $0x82] sm:$0xff]
      %v1491 = vld [vmem:[%s1282 + $0x92] sm:$0xff]
      %v1492 = vld [vmem:[%s1282 + $0x9a] sm:$0xff]
      %v1493 = vld [vmem:[%s1282 + $0xaa] sm:$0xff]
      %v1494 = vld [vmem:[%s1282 + $0xb2] sm:$0xff]
      %v1495 = vld [vmem:[%s1282 + $0xc2] sm:$0xff]
      %v1496 = vld [vmem:[%s1282 + $0xca] sm:$0xff]
      %v1497 = vld [vmem:[%s1282 + $0xda] sm:$0xff]
      %v1498 = vld [vmem:[%s1282 + $0xe2] sm:$0xff]
      %v1499 = vld [vmem:[%s1282 + $0xf2] sm:$0xff]
      %v1500 = vld [vmem:[%s1282 + $0xfa] sm:$0xff]
      %v1501 = vld [vmem:[%s1282 + $0x10a] sm:$0xff]
      %v1502 = vld [vmem:[%s1282 + $0x112] sm:$0xff]
      %v1503 = vld [vmem:[%s1282 + $0x122] sm:$0xff]
      %v1504 = vld [vmem:[%s1282 + $0x12a] sm:$0xff]
      %v1505 = vld [vmem:[%s1282 + $0x13a] sm:$0xff]
      %v1506 = vld [vmem:[%s1282 + $0x142] sm:$0xff]
      %v1507 = vld [vmem:[%s1282 + $0x152] sm:$0xff]
      %v1508 = vld [vmem:[%s1282 + $0x15a] sm:$0xff]
      %v1509 = vld [vmem:[%s1282 + $0x16a] sm:$0xff]
      %v1510 = vld [vmem:[%s1282 + $0x172] sm:$0xff]
      %v1511 = vld [vmem:[%s4 + $0x2] sm:$0x1]
      %v1512 = vperm.slane %v1511, 0
      %v1513 = vmul.f32 %v1479, %v1512
      %v1514 = vmul.f32 %v1480, %v1512
      %v1515 = vmul.f32 %v1481, %v1512
      %v1516 = vmul.f32 %v1482, %v1512
      %v1517 = vmul.f32 %v1483, %v1512
      %v1518 = vmul.f32 %v1484, %v1512
      %v1519 = vmul.f32 %v1485, %v1512
      %v1520 = vmul.f32 %v1486, %v1512
      %v1521 = vmul.f32 %v1487, %v1512
      %v1522 = vmul.f32 %v1488, %v1512
      %v1523 = vmul.f32 %v1489, %v1512
      %v1524 = vmul.f32 %v1490, %v1512
      %v1525 = vmul.f32 %v1491, %v1512
      %v1526 = vmul.f32 %v1492, %v1512
      %v1527 = vmul.f32 %v1493, %v1512
      %v1528 = vmul.f32 %v1494, %v1512
      %v1529 = vmul.f32 %v1495, %v1512
      %v1530 = vmul.f32 %v1496, %v1512
      %v1531 = vmul.f32 %v1497, %v1512
      %v1532 = vmul.f32 %v1498, %v1512
      %v1533 = vmul.f32 %v1499, %v1512
      %v1534 = vmul.f32 %v1500, %v1512
      %v1535 = vmul.f32 %v1501, %v1512
      %v1536 = vmul.f32 %v1502, %v1512
      %v1537 = vmul.f32 %v1503, %v1512
      %v1538 = vmul.f32 %v1504, %v1512
      %v1539 = vmul.f32 %v1505, %v1512
      %v1540 = vmul.f32 %v1506, %v1512
      %v1541 = vmul.f32 %v1507, %v1512
      %v1542 = vmul.f32 %v1508, %v1512
      %v1543 = vmul.f32 %v1509, %v1512
      %v1544 = vmul.f32 %v1510, %v1512
      %v1545 = vadd.f32 %v1447, %v1513
      %v1546 = vadd.f32 %v1448, %v1514
      %v1547 = vadd.f32 %v1449, %v1515
      %v1548 = vadd.f32 %v1450, %v1516
      %v1549 = vadd.f32 %v1451, %v1517
      %v1550 = vadd.f32 %v1452, %v1518
      %v1551 = vadd.f32 %v1453, %v1519
      %v1552 = vadd.f32 %v1454, %v1520
      %v1553 = vadd.f32 %v1455, %v1521
      %v1554 = vadd.f32 %v1456, %v1522
      %v1555 = vadd.f32 %v1457, %v1523
      %v1556 = vadd.f32 %v1458, %v1524
      %v1557 = vadd.f32 %v1459, %v1525
      %v1558 = vadd.f32 %v1460, %v1526
      %v1559 = vadd.f32 %v1461, %v1527
      %v1560 = vadd.f32 %v1462, %v1528
      %v1561 = vadd.f32 %v1463, %v1529
      %v1562 = vadd.f32 %v1464, %v1530
      %v1563 = vadd.f32 %v1465, %v1531
      %v1564 = vadd.f32 %v1466, %v1532
      %v1565 = vadd.f32 %v1467, %v1533
      %v1566 = vadd.f32 %v1468, %v1534
      %v1567 = vadd.f32 %v1469, %v1535
      %v1568 = vadd.f32 %v1470, %v1536
      %v1569 = vadd.f32 %v1471, %v1537
      %v1570 = vadd.f32 %v1472, %v1538
      %v1571 = vadd.f32 %v1473, %v1539
      %v1572 = vadd.f32 %v1474, %v1540
      %v1573 = vadd.f32 %v1475, %v1541
      %v1574 = vadd.f32 %v1476, %v1542
      %v1575 = vadd.f32 %v1477, %v1543
      %v1576 = vadd.f32 %v1478, %v1544
      %v1577 = vld [vmem:[%s1282 + $0x3] sm:$0xff]
      %v1578 = vld [vmem:[%s1282 + $0xb] sm:$0xff]
      %v1579 = vld [vmem:[%s1282 + $0x1b] sm:$0xff]
      %v1580 = vld [vmem:[%s1282 + $0x23] sm:$0xff]
      %v1581 = vld [vmem:[%s1282 + $0x33] sm:$0xff]
      %v1582 = vld [vmem:[%s1282 + $0x3b] sm:$0xff]
      %v1583 = vld [vmem:[%s1282 + $0x4b] sm:$0xff]
      %v1584 = vld [vmem:[%s1282 + $0x53] sm:$0xff]
      %v1585 = vld [vmem:[%s1282 + $0x63] sm:$0xff]
      %v1586 = vld [vmem:[%s1282 + $0x6b] sm:$0xff]
      %v1587 = vld [vmem:[%s1282 + $0x7b] sm:$0xff]
      %v1588 = vld [vmem:[%s1282 + $0x83] sm:$0xff]
      %v1589 = vld [vmem:[%s1282 + $0x93] sm:$0xff]
      %v1590 = vld [vmem:[%s1282 + $0x9b] sm:$0xff]
      %v1591 = vld [vmem:[%s1282 + $0xab] sm:$0xff]
      %v1592 = vld [vmem:[%s1282 + $0xb3] sm:$0xff]
      %v1593 = vld [vmem:[%s1282 + $0xc3] sm:$0xff]
      %v1594 = vld [vmem:[%s1282 + $0xcb] sm:$0xff]
      %v1595 = vld [vmem:[%s1282 + $0xdb] sm:$0xff]
      %v1596 = vld [vmem:[%s1282 + $0xe3] sm:$0xff]
      %v1597 = vld [vmem:[%s1282 + $0xf3] sm:$0xff]
      %v1598 = vld [vmem:[%s1282 + $0xfb] sm:$0xff]
      %v1599 = vld [vmem:[%s1282 + $0x10b] sm:$0xff]
      %v1600 = vld [vmem:[%s1282 + $0x113] sm:$0xff]
      %v1601 = vld [vmem:[%s1282 + $0x123] sm:$0xff]
      %v1602 = vld [vmem:[%s1282 + $0x12b] sm:$0xff]
      %v1603 = vld [vmem:[%s1282 + $0x13b] sm:$0xff]
      %v1604 = vld [vmem:[%s1282 + $0x143] sm:$0xff]
      %v1605 = vld [vmem:[%s1282 + $0x153] sm:$0xff]
      %v1606 = vld [vmem:[%s1282 + $0x15b] sm:$0xff]
      %v1607 = vld [vmem:[%s1282 + $0x16b] sm:$0xff]
      %v1608 = vld [vmem:[%s1282 + $0x173] sm:$0xff]
      %v1609 = vld [vmem:[%s4 + $0x3] sm:$0x1]
      %v1610 = vperm.slane %v1609, 0
      %v1611 = vmul.f32 %v1577, %v1610
      %v1612 = vmul.f32 %v1578, %v1610
      %v1613 = vmul.f32 %v1579, %v1610
      %v1614 = vmul.f32 %v1580, %v1610
      %v1615 = vmul.f32 %v1581, %v1610
      %v1616 = vmul.f32 %v1582, %v1610
      %v1617 = vmul.f32 %v1583, %v1610
      %v1618 = vmul.f32 %v1584, %v1610
      %v1619 = vmul.f32 %v1585, %v1610
      %v1620 = vmul.f32 %v1586, %v1610
      %v1621 = vmul.f32 %v1587, %v1610
      %v1622 = vmul.f32 %v1588, %v1610
      %v1623 = vmul.f32 %v1589, %v1610
      %v1624 = vmul.f32 %v1590, %v1610
      %v1625 = vmul.f32 %v1591, %v1610
      %v1626 = vmul.f32 %v1592, %v1610
      %v1627 = vmul.f32 %v1593, %v1610
      %v1628 = vmul.f32 %v1594, %v1610
      %v1629 = vmul.f32 %v1595, %v1610
      %v1630 = vmul.f32 %v1596, %v1610
      %v1631 = vmul.f32 %v1597, %v1610
      %v1632 = vmul.f32 %v1598, %v1610
      %v1633 = vmul.f32 %v1599, %v1610
      %v1634 = vmul.f32 %v1600, %v1610
      %v1635 = vmul.f32 %v1601, %v1610
      %v1636 = vmul.f32 %v1602, %v1610
      %v1637 = vmul.f32 %v1603, %v1610
      %v1638 = vmul.f32 %v1604, %v1610
      %v1639 = vmul.f32 %v1605, %v1610
      %v1640 = vmul.f32 %v1606, %v1610
      %v1641 = vmul.f32 %v1607, %v1610
      %v1642 = vmul.f32 %v1608, %v1610
      %v1643 = vadd.f32 %v1545, %v1611
      %v1644 = vadd.f32 %v1546, %v1612
      %v1645 = vadd.f32 %v1547, %v1613
      %v1646 = vadd.f32 %v1548, %v1614
      %v1647 = vadd.f32 %v1549, %v1615
      %v1648 = vadd.f32 %v1550, %v1616
      %v1649 = vadd.f32 %v1551, %v1617
      %v1650 = vadd.f32 %v1552, %v1618
      %v1651 = vadd.f32 %v1553, %v1619
      %v1652 = vadd.f32 %v1554, %v1620
      %v1653 = vadd.f32 %v1555, %v1621
      %v1654 = vadd.f32 %v1556, %v1622
      %v1655 = vadd.f32 %v1557, %v1623
      %v1656 = vadd.f32 %v1558, %v1624
      %v1657 = vadd.f32 %v1559, %v1625
      %v1658 = vadd.f32 %v1560, %v1626
      %v1659 = vadd.f32 %v1561, %v1627
      %v1660 = vadd.f32 %v1562, %v1628
      %v1661 = vadd.f32 %v1563, %v1629
      %v1662 = vadd.f32 %v1564, %v1630
      %v1663 = vadd.f32 %v1565, %v1631
      %v1664 = vadd.f32 %v1566, %v1632
      %v1665 = vadd.f32 %v1567, %v1633
      %v1666 = vadd.f32 %v1568, %v1634
      %v1667 = vadd.f32 %v1569, %v1635
      %v1668 = vadd.f32 %v1570, %v1636
      %v1669 = vadd.f32 %v1571, %v1637
      %v1670 = vadd.f32 %v1572, %v1638
      %v1671 = vadd.f32 %v1573, %v1639
      %v1672 = vadd.f32 %v1574, %v1640
      %v1673 = vadd.f32 %v1575, %v1641
      %v1674 = vadd.f32 %v1576, %v1642
      %v1675 = vld [vmem:[%s1282 + $0x4] sm:$0xff]
      %v1676 = vld [vmem:[%s1282 + $0xc] sm:$0xff]
      %v1677 = vld [vmem:[%s1282 + $0x1c] sm:$0xff]
      %v1678 = vld [vmem:[%s1282 + $0x24] sm:$0xff]
      %v1679 = vld [vmem:[%s1282 + $0x34] sm:$0xff]
      %v1680 = vld [vmem:[%s1282 + $0x3c] sm:$0xff]
      %v1681 = vld [vmem:[%s1282 + $0x4c] sm:$0xff]
      %v1682 = vld [vmem:[%s1282 + $0x54] sm:$0xff]
      %v1683 = vld [vmem:[%s1282 + $0x64] sm:$0xff]
      %v1684 = vld [vmem:[%s1282 + $0x6c] sm:$0xff]
      %v1685 = vld [vmem:[%s1282 + $0x7c] sm:$0xff]
      %v1686 = vld [vmem:[%s1282 + $0x84] sm:$0xff]
      %v1687 = vld [vmem:[%s1282 + $0x94] sm:$0xff]
      %v1688 = vld [vmem:[%s1282 + $0x9c] sm:$0xff]
      %v1689 = vld [vmem:[%s1282 + $0xac] sm:$0xff]
      %v1690 = vld [vmem:[%s1282 + $0xb4] sm:$0xff]
      %v1691 = vld [vmem:[%s1282 + $0xc4] sm:$0xff]
      %v1692 = vld [vmem:[%s1282 + $0xcc] sm:$0xff]
      %v1693 = vld [vmem:[%s1282 + $0xdc] sm:$0xff]
      %v1694 = vld [vmem:[%s1282 + $0xe4] sm:$0xff]
      %v1695 = vld [vmem:[%s1282 + $0xf4] sm:$0xff]
      %v1696 = vld [vmem:[%s1282 + $0xfc] sm:$0xff]
      %v1697 = vld [vmem:[%s1282 + $0x10c] sm:$0xff]
      %v1698 = vld [vmem:[%s1282 + $0x114] sm:$0xff]
      %v1699 = vld [vmem:[%s1282 + $0x124] sm:$0xff]
      %v1700 = vld [vmem:[%s1282 + $0x12c] sm:$0xff]
      %v1701 = vld [vmem:[%s1282 + $0x13c] sm:$0xff]
      %v1702 = vld [vmem:[%s1282 + $0x144] sm:$0xff]
      %v1703 = vld [vmem:[%s1282 + $0x154] sm:$0xff]
      %v1704 = vld [vmem:[%s1282 + $0x15c] sm:$0xff]
      %v1705 = vld [vmem:[%s1282 + $0x16c] sm:$0xff]
      %v1706 = vld [vmem:[%s1282 + $0x174] sm:$0xff]
      %v1707 = vld [vmem:[%s4 + $0x4] sm:$0x1]
      %v1708 = vperm.slane %v1707, 0
      %v1709 = vmul.f32 %v1675, %v1708
      %v1710 = vmul.f32 %v1676, %v1708
      %v1711 = vmul.f32 %v1677, %v1708
      %v1712 = vmul.f32 %v1678, %v1708
      %v1713 = vmul.f32 %v1679, %v1708
      %v1714 = vmul.f32 %v1680, %v1708
      %v1715 = vmul.f32 %v1681, %v1708
      %v1716 = vmul.f32 %v1682, %v1708
      %v1717 = vmul.f32 %v1683, %v1708
      %v1718 = vmul.f32 %v1684, %v1708
      %v1719 = vmul.f32 %v1685, %v1708
      %v1720 = vmul.f32 %v1686, %v1708
      %v1721 = vmul.f32 %v1687, %v1708
      %v1722 = vmul.f32 %v1688, %v1708
      %v1723 = vmul.f32 %v1689, %v1708
      %v1724 = vmul.f32 %v1690, %v1708
      %v1725 = vmul.f32 %v1691, %v1708
      %v1726 = vmul.f32 %v1692, %v1708
      %v1727 = vmul.f32 %v1693, %v1708
      %v1728 = vmul.f32 %v1694, %v1708
      %v1729 = vmul.f32 %v1695, %v1708
      %v1730 = vmul.f32 %v1696, %v1708
      %v1731 = vmul.f32 %v1697, %v1708
      %v1732 = vmul.f32 %v1698, %v1708
      %v1733 = vmul.f32 %v1699, %v1708
      %v1734 = vmul.f32 %v1700, %v1708
      %v1735 = vmul.f32 %v1701, %v1708
      %v1736 = vmul.f32 %v1702, %v1708
      %v1737 = vmul.f32 %v1703, %v1708
      %v1738 = vmul.f32 %v1704, %v1708
      %v1739 = vmul.f32 %v1705, %v1708
      %v1740 = vmul.f32 %v1706, %v1708
      %v1741 = vadd.f32 %v1643, %v1709
      %v1742 = vadd.f32 %v1644, %v1710
      %v1743 = vadd.f32 %v1645, %v1711
      %v1744 = vadd.f32 %v1646, %v1712
      %v1745 = vadd.f32 %v1647, %v1713
      %v1746 = vadd.f32 %v1648, %v1714
      %v1747 = vadd.f32 %v1649, %v1715
      %v1748 = vadd.f32 %v1650, %v1716
      %v1749 = vadd.f32 %v1651, %v1717
      %v1750 = vadd.f32 %v1652, %v1718
      %v1751 = vadd.f32 %v1653, %v1719
      %v1752 = vadd.f32 %v1654, %v1720
      %v1753 = vadd.f32 %v1655, %v1721
      %v1754 = vadd.f32 %v1656, %v1722
      %v1755 = vadd.f32 %v1657, %v1723
      %v1756 = vadd.f32 %v1658, %v1724
      %v1757 = vadd.f32 %v1659, %v1725
      %v1758 = vadd.f32 %v1660, %v1726
      %v1759 = vadd.f32 %v1661, %v1727
      %v1760 = vadd.f32 %v1662, %v1728
      %v1761 = vadd.f32 %v1663, %v1729
      %v1762 = vadd.f32 %v1664, %v1730
      %v1763 = vadd.f32 %v1665, %v1731
      %v1764 = vadd.f32 %v1666, %v1732
      %v1765 = vadd.f32 %v1667, %v1733
      %v1766 = vadd.f32 %v1668, %v1734
      %v1767 = vadd.f32 %v1669, %v1735
      %v1768 = vadd.f32 %v1670, %v1736
      %v1769 = vadd.f32 %v1671, %v1737
      %v1770 = vadd.f32 %v1672, %v1738
      %v1771 = vadd.f32 %v1673, %v1739
      %v1772 = vadd.f32 %v1674, %v1740
      %v1773 = vld [vmem:[%s1282 + $0x5] sm:$0xff]
      %v1774 = vld [vmem:[%s1282 + $0xd] sm:$0xff]
      %v1775 = vld [vmem:[%s1282 + $0x1d] sm:$0xff]
      %v1776 = vld [vmem:[%s1282 + $0x25] sm:$0xff]
      %v1777 = vld [vmem:[%s1282 + $0x35] sm:$0xff]
      %v1778 = vld [vmem:[%s1282 + $0x3d] sm:$0xff]
      %v1779 = vld [vmem:[%s1282 + $0x4d] sm:$0xff]
      %v1780 = vld [vmem:[%s1282 + $0x55] sm:$0xff]
      %v1781 = vld [vmem:[%s1282 + $0x65] sm:$0xff]
      %v1782 = vld [vmem:[%s1282 + $0x6d] sm:$0xff]
      %v1783 = vld [vmem:[%s1282 + $0x7d] sm:$0xff]
      %v1784 = vld [vmem:[%s1282 + $0x85] sm:$0xff]
      %v1785 = vld [vmem:[%s1282 + $0x95] sm:$0xff]
      %v1786 = vld [vmem:[%s1282 + $0x9d] sm:$0xff]
      %v1787 = vld [vmem:[%s1282 + $0xad] sm:$0xff]
      %v1788 = vld [vmem:[%s1282 + $0xb5] sm:$0xff]
      %v1789 = vld [vmem:[%s1282 + $0xc5] sm:$0xff]
      %v1790 = vld [vmem:[%s1282 + $0xcd] sm:$0xff]
      %v1791 = vld [vmem:[%s1282 + $0xdd] sm:$0xff]
      %v1792 = vld [vmem:[%s1282 + $0xe5] sm:$0xff]
      %v1793 = vld [vmem:[%s1282 + $0xf5] sm:$0xff]
      %v1794 = vld [vmem:[%s1282 + $0xfd] sm:$0xff]
      %v1795 = vld [vmem:[%s1282 + $0x10d] sm:$0xff]
      %v1796 = vld [vmem:[%s1282 + $0x115] sm:$0xff]
      %v1797 = vld [vmem:[%s1282 + $0x125] sm:$0xff]
      %v1798 = vld [vmem:[%s1282 + $0x12d] sm:$0xff]
      %v1799 = vld [vmem:[%s1282 + $0x13d] sm:$0xff]
      %v1800 = vld [vmem:[%s1282 + $0x145] sm:$0xff]
      %v1801 = vld [vmem:[%s1282 + $0x155] sm:$0xff]
      %v1802 = vld [vmem:[%s1282 + $0x15d] sm:$0xff]
      %v1803 = vld [vmem:[%s1282 + $0x16d] sm:$0xff]
      %v1804 = vld [vmem:[%s1282 + $0x175] sm:$0xff]
      %v1805 = vld [vmem:[%s4 + $0x5] sm:$0x1]
      %v1806 = vperm.slane %v1805, 0
      %v1807 = vmul.f32 %v1773, %v1806
      %v1808 = vmul.f32 %v1774, %v1806
      %v1809 = vmul.f32 %v1775, %v1806
      %v1810 = vmul.f32 %v1776, %v1806
      %v1811 = vmul.f32 %v1777, %v1806
      %v1812 = vmul.f32 %v1778, %v1806
      %v1813 = vmul.f32 %v1779, %v1806
      %v1814 = vmul.f32 %v1780, %v1806
      %v1815 = vmul.f32 %v1781, %v1806
      %v1816 = vmul.f32 %v1782, %v1806
      %v1817 = vmul.f32 %v1783, %v1806
      %v1818 = vmul.f32 %v1784, %v1806
      %v1819 = vmul.f32 %v1785, %v1806
      %v1820 = vmul.f32 %v1786, %v1806
      %v1821 = vmul.f32 %v1787, %v1806
      %v1822 = vmul.f32 %v1788, %v1806
      %v1823 = vmul.f32 %v1789, %v1806
      %v1824 = vmul.f32 %v1790, %v1806
      %v1825 = vmul.f32 %v1791, %v1806
      %v1826 = vmul.f32 %v1792, %v1806
      %v1827 = vmul.f32 %v1793, %v1806
      %v1828 = vmul.f32 %v1794, %v1806
      %v1829 = vmul.f32 %v1795, %v1806
      %v1830 = vmul.f32 %v1796, %v1806
      %v1831 = vmul.f32 %v1797, %v1806
      %v1832 = vmul.f32 %v1798, %v1806
      %v1833 = vmul.f32 %v1799, %v1806
      %v1834 = vmul.f32 %v1800, %v1806
      %v1835 = vmul.f32 %v1801, %v1806
      %v1836 = vmul.f32 %v1802, %v1806
      %v1837 = vmul.f32 %v1803, %v1806
      %v1838 = vmul.f32 %v1804, %v1806
      %v1839 = vadd.f32 %v1741, %v1807
      %v1840 = vadd.f32 %v1742, %v1808
      %v1841 = vadd.f32 %v1743, %v1809
      %v1842 = vadd.f32 %v1744, %v1810
      %v1843 = vadd.f32 %v1745, %v1811
      %v1844 = vadd.f32 %v1746, %v1812
      %v1845 = vadd.f32 %v1747, %v1813
      %v1846 = vadd.f32 %v1748, %v1814
      %v1847 = vadd.f32 %v1749, %v1815
      %v1848 = vadd.f32 %v1750, %v1816
      %v1849 = vadd.f32 %v1751, %v1817
      %v1850 = vadd.f32 %v1752, %v1818
      %v1851 = vadd.f32 %v1753, %v1819
      %v1852 = vadd.f32 %v1754, %v1820
      %v1853 = vadd.f32 %v1755, %v1821
      %v1854 = vadd.f32 %v1756, %v1822
      %v1855 = vadd.f32 %v1757, %v1823
      %v1856 = vadd.f32 %v1758, %v1824
      %v1857 = vadd.f32 %v1759, %v1825
      %v1858 = vadd.f32 %v1760, %v1826
      %v1859 = vadd.f32 %v1761, %v1827
      %v1860 = vadd.f32 %v1762, %v1828
      %v1861 = vadd.f32 %v1763, %v1829
      %v1862 = vadd.f32 %v1764, %v1830
      %v1863 = vadd.f32 %v1765, %v1831
      %v1864 = vadd.f32 %v1766, %v1832
      %v1865 = vadd.f32 %v1767, %v1833
      %v1866 = vadd.f32 %v1768, %v1834
      %v1867 = vadd.f32 %v1769, %v1835
      %v1868 = vadd.f32 %v1770, %v1836
      %v1869 = vadd.f32 %v1771, %v1837
      %v1870 = vadd.f32 %v1772, %v1838
      %v1871 = vld [vmem:[%s1282 + $0x6] sm:$0xff]
      %v1872 = vld [vmem:[%s1282 + $0xe] sm:$0xff]
      %v1873 = vld [vmem:[%s1282 + $0x1e] sm:$0xff]
      %v1874 = vld [vmem:[%s1282 + $0x26] sm:$0xff]
      %v1875 = vld [vmem:[%s1282 + $0x36] sm:$0xff]
      %v1876 = vld [vmem:[%s1282 + $0x3e] sm:$0xff]
      %v1877 = vld [vmem:[%s1282 + $0x4e] sm:$0xff]
      %v1878 = vld [vmem:[%s1282 + $0x56] sm:$0xff]
      %v1879 = vld [vmem:[%s1282 + $0x66] sm:$0xff]
      %v1880 = vld [vmem:[%s1282 + $0x6e] sm:$0xff]
      %v1881 = vld [vmem:[%s1282 + $0x7e] sm:$0xff]
      %v1882 = vld [vmem:[%s1282 + $0x86] sm:$0xff]
      %v1883 = vld [vmem:[%s1282 + $0x96] sm:$0xff]
      %v1884 = vld [vmem:[%s1282 + $0x9e] sm:$0xff]
      %v1885 = vld [vmem:[%s1282 + $0xae] sm:$0xff]
      %v1886 = vld [vmem:[%s1282 + $0xb6] sm:$0xff]
      %v1887 = vld [vmem:[%s1282 + $0xc6] sm:$0xff]
      %v1888 = vld [vmem:[%s1282 + $0xce] sm:$0xff]
      %v1889 = vld [vmem:[%s1282 + $0xde] sm:$0xff]
      %v1890 = vld [vmem:[%s1282 + $0xe6] sm:$0xff]
      %v1891 = vld [vmem:[%s1282 + $0xf6] sm:$0xff]
      %v1892 = vld [vmem:[%s1282 + $0xfe] sm:$0xff]
      %v1893 = vld [vmem:[%s1282 + $0x10e] sm:$0xff]
      %v1894 = vld [vmem:[%s1282 + $0x116] sm:$0xff]
      %v1895 = vld [vmem:[%s1282 + $0x126] sm:$0xff]
      %v1896 = vld [vmem:[%s1282 + $0x12e] sm:$0xff]
      %v1897 = vld [vmem:[%s1282 + $0x13e] sm:$0xff]
      %v1898 = vld [vmem:[%s1282 + $0x146] sm:$0xff]
      %v1899 = vld [vmem:[%s1282 + $0x156] sm:$0xff]
      %v1900 = vld [vmem:[%s1282 + $0x15e] sm:$0xff]
      %v1901 = vld [vmem:[%s1282 + $0x16e] sm:$0xff]
      %v1902 = vld [vmem:[%s1282 + $0x176] sm:$0xff]
      %v1903 = vld [vmem:[%s4 + $0x6] sm:$0x1]
      %v1904 = vperm.slane %v1903, 0
      %v1905 = vmul.f32 %v1871, %v1904
      %v1906 = vmul.f32 %v1872, %v1904
      %v1907 = vmul.f32 %v1873, %v1904
      %v1908 = vmul.f32 %v1874, %v1904
      %v1909 = vmul.f32 %v1875, %v1904
      %v1910 = vmul.f32 %v1876, %v1904
      %v1911 = vmul.f32 %v1877, %v1904
      %v1912 = vmul.f32 %v1878, %v1904
      %v1913 = vmul.f32 %v1879, %v1904
      %v1914 = vmul.f32 %v1880, %v1904
      %v1915 = vmul.f32 %v1881, %v1904
      %v1916 = vmul.f32 %v1882, %v1904
      %v1917 = vmul.f32 %v1883, %v1904
      %v1918 = vmul.f32 %v1884, %v1904
      %v1919 = vmul.f32 %v1885, %v1904
      %v1920 = vmul.f32 %v1886, %v1904
      %v1921 = vmul.f32 %v1887, %v1904
      %v1922 = vmul.f32 %v1888, %v1904
      %v1923 = vmul.f32 %v1889, %v1904
      %v1924 = vmul.f32 %v1890, %v1904
      %v1925 = vmul.f32 %v1891, %v1904
      %v1926 = vmul.f32 %v1892, %v1904
      %v1927 = vmul.f32 %v1893, %v1904
      %v1928 = vmul.f32 %v1894, %v1904
      %v1929 = vmul.f32 %v1895, %v1904
      %v1930 = vmul.f32 %v1896, %v1904
      %v1931 = vmul.f32 %v1897, %v1904
      %v1932 = vmul.f32 %v1898, %v1904
      %v1933 = vmul.f32 %v1899, %v1904
      %v1934 = vmul.f32 %v1900, %v1904
      %v1935 = vmul.f32 %v1901, %v1904
      %v1936 = vmul.f32 %v1902, %v1904
      %v1937 = vadd.f32 %v1839, %v1905
      %v1938 = vadd.f32 %v1840, %v1906
      %v1939 = vadd.f32 %v1841, %v1907
      %v1940 = vadd.f32 %v1842, %v1908
      %v1941 = vadd.f32 %v1843, %v1909
      %v1942 = vadd.f32 %v1844, %v1910
      %v1943 = vadd.f32 %v1845, %v1911
      %v1944 = vadd.f32 %v1846, %v1912
      %v1945 = vadd.f32 %v1847, %v1913
      %v1946 = vadd.f32 %v1848, %v1914
      %v1947 = vadd.f32 %v1849, %v1915
      %v1948 = vadd.f32 %v1850, %v1916
      %v1949 = vadd.f32 %v1851, %v1917
      %v1950 = vadd.f32 %v1852, %v1918
      %v1951 = vadd.f32 %v1853, %v1919
      %v1952 = vadd.f32 %v1854, %v1920
      %v1953 = vadd.f32 %v1855, %v1921
      %v1954 = vadd.f32 %v1856, %v1922
      %v1955 = vadd.f32 %v1857, %v1923
      %v1956 = vadd.f32 %v1858, %v1924
      %v1957 = vadd.f32 %v1859, %v1925
      %v1958 = vadd.f32 %v1860, %v1926
      %v1959 = vadd.f32 %v1861, %v1927
      %v1960 = vadd.f32 %v1862, %v1928
      %v1961 = vadd.f32 %v1863, %v1929
      %v1962 = vadd.f32 %v1864, %v1930
      %v1963 = vadd.f32 %v1865, %v1931
      %v1964 = vadd.f32 %v1866, %v1932
      %v1965 = vadd.f32 %v1867, %v1933
      %v1966 = vadd.f32 %v1868, %v1934
      %v1967 = vadd.f32 %v1869, %v1935
      %v1968 = vadd.f32 %v1870, %v1936
      %v1969 = vld [vmem:[#allocation2 + $0x3] sm:$0xff]
      %v1970 = vld [vmem:[#allocation2 + $0xb] sm:$0xff]
      %v1971 = vld [vmem:[#allocation2 + $0x1b] sm:$0xff]
      %v1972 = vld [vmem:[#allocation2 + $0x23] sm:$0xff]
      %v1973 = vld [vmem:[#allocation2 + $0x33] sm:$0xff]
      %v1974 = vld [vmem:[#allocation2 + $0x3b] sm:$0xff]
      %v1975 = vld [vmem:[#allocation2 + $0x4b] sm:$0xff]
      %v1976 = vld [vmem:[#allocation2 + $0x53] sm:$0xff]
      %v1977 = vld [vmem:[#allocation2 + $0x63] sm:$0xff]
      %v1978 = vld [vmem:[#allocation2 + $0x6b] sm:$0xff]
      %v1979 = vld [vmem:[#allocation2 + $0x7b] sm:$0xff]
      %v1980 = vld [vmem:[#allocation2 + $0x83] sm:$0xff]
      %v1981 = vld [vmem:[#allocation2 + $0x93] sm:$0xff]
      %v1982 = vld [vmem:[#allocation2 + $0x9b] sm:$0xff]
      %v1983 = vld [vmem:[#allocation2 + $0xab] sm:$0xff]
      %v1984 = vld [vmem:[#allocation2 + $0xb3] sm:$0xff]
      %v1985 = vld [vmem:[#allocation2 + $0xc3] sm:$0xff]
      %v1986 = vld [vmem:[#allocation2 + $0xcb] sm:$0xff]
      %v1987 = vld [vmem:[#allocation2 + $0xdb] sm:$0xff]
      %v1988 = vld [vmem:[#allocation2 + $0xe3] sm:$0xff]
      %v1989 = vld [vmem:[#allocation2 + $0xf3] sm:$0xff]
      %v1990 = vld [vmem:[#allocation2 + $0xfb] sm:$0xff]
      %v1991 = vld [vmem:[#allocation2 + $0x10b] sm:$0xff]
      %v1992 = vld [vmem:[#allocation2 + $0x113] sm:$0xff]
      %v1993 = vld [vmem:[#allocation2 + $0x123] sm:$0xff]
      %v1994 = vld [vmem:[#allocation2 + $0x12b] sm:$0xff]
      %v1995 = vld [vmem:[#allocation2 + $0x13b] sm:$0xff]
      %v1996 = vld [vmem:[#allocation2 + $0x143] sm:$0xff]
      %v1997 = vld [vmem:[#allocation2 + $0x153] sm:$0xff]
      %v1998 = vld [vmem:[#allocation2 + $0x15b] sm:$0xff]
      %v1999 = vld [vmem:[#allocation2 + $0x16b] sm:$0xff]
      %v2000 = vld [vmem:[#allocation2 + $0x173] sm:$0xff]
      %v2001 = vld [vmem:[%s5] sm:$0x1]
      %v2002 = vperm.slane %v2001, 0
      %v2003 = vmul.f32 %v1969, %v2002
      %v2004 = vmul.f32 %v1970, %v2002
      %v2005 = vmul.f32 %v1971, %v2002
      %v2006 = vmul.f32 %v1972, %v2002
      %v2007 = vmul.f32 %v1973, %v2002
      %v2008 = vmul.f32 %v1974, %v2002
      %v2009 = vmul.f32 %v1975, %v2002
      %v2010 = vmul.f32 %v1976, %v2002
      %v2011 = vmul.f32 %v1977, %v2002
      %v2012 = vmul.f32 %v1978, %v2002
      %v2013 = vmul.f32 %v1979, %v2002
      %v2014 = vmul.f32 %v1980, %v2002
      %v2015 = vmul.f32 %v1981, %v2002
      %v2016 = vmul.f32 %v1982, %v2002
      %v2017 = vmul.f32 %v1983, %v2002
      %v2018 = vmul.f32 %v1984, %v2002
      %v2019 = vmul.f32 %v1985, %v2002
      %v2020 = vmul.f32 %v1986, %v2002
      %v2021 = vmul.f32 %v1987, %v2002
      %v2022 = vmul.f32 %v1988, %v2002
      %v2023 = vmul.f32 %v1989, %v2002
      %v2024 = vmul.f32 %v1990, %v2002
      %v2025 = vmul.f32 %v1991, %v2002
      %v2026 = vmul.f32 %v1992, %v2002
      %v2027 = vmul.f32 %v1993, %v2002
      %v2028 = vmul.f32 %v1994, %v2002
      %v2029 = vmul.f32 %v1995, %v2002
      %v2030 = vmul.f32 %v1996, %v2002
      %v2031 = vmul.f32 %v1997, %v2002
      %v2032 = vmul.f32 %v1998, %v2002
      %v2033 = vmul.f32 %v1999, %v2002
      %v2034 = vmul.f32 %v2000, %v2002
      %v2035 = vadd.f32 %v1937, %v2003
      %v2036 = vadd.f32 %v1938, %v2004
      %v2037 = vadd.f32 %v1939, %v2005
      %v2038 = vadd.f32 %v1940, %v2006
      %v2039 = vadd.f32 %v1941, %v2007
      %v2040 = vadd.f32 %v1942, %v2008
      %v2041 = vadd.f32 %v1943, %v2009
      %v2042 = vadd.f32 %v1944, %v2010
      %v2043 = vadd.f32 %v1945, %v2011
      %v2044 = vadd.f32 %v1946, %v2012
      %v2045 = vadd.f32 %v1947, %v2013
      %v2046 = vadd.f32 %v1948, %v2014
      %v2047 = vadd.f32 %v1949, %v2015
      %v2048 = vadd.f32 %v1950, %v2016
      %v2049 = vadd.f32 %v1951, %v2017
      %v2050 = vadd.f32 %v1952, %v2018
      %v2051 = vadd.f32 %v1953, %v2019
      %v2052 = vadd.f32 %v1954, %v2020
      %v2053 = vadd.f32 %v1955, %v2021
      %v2054 = vadd.f32 %v1956, %v2022
      %v2055 = vadd.f32 %v1957, %v2023
      %v2056 = vadd.f32 %v1958, %v2024
      %v2057 = vadd.f32 %v1959, %v2025
      %v2058 = vadd.f32 %v1960, %v2026
      %v2059 = vadd.f32 %v1961, %v2027
      %v2060 = vadd.f32 %v1962, %v2028
      %v2061 = vadd.f32 %v1963, %v2029
      %v2062 = vadd.f32 %v1964, %v2030
      %v2063 = vadd.f32 %v1965, %v2031
      %v2064 = vadd.f32 %v1966, %v2032
      %v2065 = vadd.f32 %v1967, %v2033
      %v2066 = vadd.f32 %v1968, %v2034
      %s2067 = scalar_lea.vmem [#allocation2], 24
      %v2068 = vld [vmem:[%s2067 + $0x3] sm:$0xff]
      %v2069 = vld [vmem:[%s2067 + $0xb] sm:$0xff]
      %v2070 = vld [vmem:[%s2067 + $0x1b] sm:$0xff]
      %v2071 = vld [vmem:[%s2067 + $0x23] sm:$0xff]
      %v2072 = vld [vmem:[%s2067 + $0x33] sm:$0xff]
      %v2073 = vld [vmem:[%s2067 + $0x3b] sm:$0xff]
      %v2074 = vld [vmem:[%s2067 + $0x4b] sm:$0xff]
      %v2075 = vld [vmem:[%s2067 + $0x53] sm:$0xff]
      %v2076 = vld [vmem:[%s2067 + $0x63] sm:$0xff]
      %v2077 = vld [vmem:[%s2067 + $0x6b] sm:$0xff]
      %v2078 = vld [vmem:[%s2067 + $0x7b] sm:$0xff]
      %v2079 = vld [vmem:[%s2067 + $0x83] sm:$0xff]
      %v2080 = vld [vmem:[%s2067 + $0x93] sm:$0xff]
      %v2081 = vld [vmem:[%s2067 + $0x9b] sm:$0xff]
      %v2082 = vld [vmem:[%s2067 + $0xab] sm:$0xff]
      %v2083 = vld [vmem:[%s2067 + $0xb3] sm:$0xff]
      %v2084 = vld [vmem:[%s2067 + $0xc3] sm:$0xff]
      %v2085 = vld [vmem:[%s2067 + $0xcb] sm:$0xff]
      %v2086 = vld [vmem:[%s2067 + $0xdb] sm:$0xff]
      %v2087 = vld [vmem:[%s2067 + $0xe3] sm:$0xff]
      %v2088 = vld [vmem:[%s2067 + $0xf3] sm:$0xff]
      %v2089 = vld [vmem:[%s2067 + $0xfb] sm:$0xff]
      %v2090 = vld [vmem:[%s2067 + $0x10b] sm:$0xff]
      %v2091 = vld [vmem:[%s2067 + $0x113] sm:$0xff]
      %v2092 = vld [vmem:[%s2067 + $0x123] sm:$0xff]
      %v2093 = vld [vmem:[%s2067 + $0x12b] sm:$0xff]
      %v2094 = vld [vmem:[%s2067 + $0x13b] sm:$0xff]
      %v2095 = vld [vmem:[%s2067 + $0x143] sm:$0xff]
      %v2096 = vld [vmem:[%s2067 + $0x153] sm:$0xff]
      %v2097 = vld [vmem:[%s2067 + $0x15b] sm:$0xff]
      %v2098 = vld [vmem:[%s2067 + $0x16b] sm:$0xff]
      %v2099 = vld [vmem:[%s2067 + $0x173] sm:$0xff]
      %v2100 = vld [vmem:[%s5 + $0x1] sm:$0x1]
      %v2101 = vperm.slane %v2100, 0
      %v2102 = vmul.f32 %v2068, %v2101
      %v2103 = vmul.f32 %v2069, %v2101
      %v2104 = vmul.f32 %v2070, %v2101
      %v2105 = vmul.f32 %v2071, %v2101
      %v2106 = vmul.f32 %v2072, %v2101
      %v2107 = vmul.f32 %v2073, %v2101
      %v2108 = vmul.f32 %v2074, %v2101
      %v2109 = vmul.f32 %v2075, %v2101
      %v2110 = vmul.f32 %v2076, %v2101
      %v2111 = vmul.f32 %v2077, %v2101
      %v2112 = vmul.f32 %v2078, %v2101
      %v2113 = vmul.f32 %v2079, %v2101
      %v2114 = vmul.f32 %v2080, %v2101
      %v2115 = vmul.f32 %v2081, %v2101
      %v2116 = vmul.f32 %v2082, %v2101
      %v2117 = vmul.f32 %v2083, %v2101
      %v2118 = vmul.f32 %v2084, %v2101
      %v2119 = vmul.f32 %v2085, %v2101
      %v2120 = vmul.f32 %v2086, %v2101
      %v2121 = vmul.f32 %v2087, %v2101
      %v2122 = vmul.f32 %v2088, %v2101
      %v2123 = vmul.f32 %v2089, %v2101
      %v2124 = vmul.f32 %v2090, %v2101
      %v2125 = vmul.f32 %v2091, %v2101
      %v2126 = vmul.f32 %v2092, %v2101
      %v2127 = vmul.f32 %v2093, %v2101
      %v2128 = vmul.f32 %v2094, %v2101
      %v2129 = vmul.f32 %v2095, %v2101
      %v2130 = vmul.f32 %v2096, %v2101
      %v2131 = vmul.f32 %v2097, %v2101
      %v2132 = vmul.f32 %v2098, %v2101
      %v2133 = vmul.f32 %v2099, %v2101
      %v2134 = vadd.f32 %v2035, %v2102
      %v2135 = vadd.f32 %v2036, %v2103
      %v2136 = vadd.f32 %v2037, %v2104
      %v2137 = vadd.f32 %v2038, %v2105
      %v2138 = vadd.f32 %v2039, %v2106
      %v2139 = vadd.f32 %v2040, %v2107
      %v2140 = vadd.f32 %v2041, %v2108
      %v2141 = vadd.f32 %v2042, %v2109
      %v2142 = vadd.f32 %v2043, %v2110
      %v2143 = vadd.f32 %v2044, %v2111
      %v2144 = vadd.f32 %v2045, %v2112
      %v2145 = vadd.f32 %v2046, %v2113
      %v2146 = vadd.f32 %v2047, %v2114
      %v2147 = vadd.f32 %v2048, %v2115
      %v2148 = vadd.f32 %v2049, %v2116
      %v2149 = vadd.f32 %v2050, %v2117
      %v2150 = vadd.f32 %v2051, %v2118
      %v2151 = vadd.f32 %v2052, %v2119
      %v2152 = vadd.f32 %v2053, %v2120
      %v2153 = vadd.f32 %v2054, %v2121
      %v2154 = vadd.f32 %v2055, %v2122
      %v2155 = vadd.f32 %v2056, %v2123
      %v2156 = vadd.f32 %v2057, %v2124
      %v2157 = vadd.f32 %v2058, %v2125
      %v2158 = vadd.f32 %v2059, %v2126
      %v2159 = vadd.f32 %v2060, %v2127
      %v2160 = vadd.f32 %v2061, %v2128
      %v2161 = vadd.f32 %v2062, %v2129
      %v2162 = vadd.f32 %v2063, %v2130
      %v2163 = vadd.f32 %v2064, %v2131
      %v2164 = vadd.f32 %v2065, %v2132
      %v2165 = vadd.f32 %v2066, %v2133
      %s2166 = scalar_lea.vmem [#allocation2], 48
      %v2167 = vld [vmem:[%s2166 + $0x3] sm:$0xff]
      %v2168 = vld [vmem:[%s2166 + $0xb] sm:$0xff]
      %v2169 = vld [vmem:[%s2166 + $0x1b] sm:$0xff]
      %v2170 = vld [vmem:[%s2166 + $0x23] sm:$0xff]
      %v2171 = vld [vmem:[%s2166 + $0x33] sm:$0xff]
      %v2172 = vld [vmem:[%s2166 + $0x3b] sm:$0xff]
      %v2173 = vld [vmem:[%s2166 + $0x4b] sm:$0xff]
      %v2174 = vld [vmem:[%s2166 + $0x53] sm:$0xff]
      %v2175 = vld [vmem:[%s2166 + $0x63] sm:$0xff]
      %v2176 = vld [vmem:[%s2166 + $0x6b] sm:$0xff]
      %v2177 = vld [vmem:[%s2166 + $0x7b] sm:$0xff]
      %v2178 = vld [vmem:[%s2166 + $0x83] sm:$0xff]
      %v2179 = vld [vmem:[%s2166 + $0x93] sm:$0xff]
      %v2180 = vld [vmem:[%s2166 + $0x9b] sm:$0xff]
      %v2181 = vld [vmem:[%s2166 + $0xab] sm:$0xff]
      %v2182 = vld [vmem:[%s2166 + $0xb3] sm:$0xff]
      %v2183 = vld [vmem:[%s2166 + $0xc3] sm:$0xff]
      %v2184 = vld [vmem:[%s2166 + $0xcb] sm:$0xff]
      %v2185 = vld [vmem:[%s2166 + $0xdb] sm:$0xff]
      %v2186 = vld [vmem:[%s2166 + $0xe3] sm:$0xff]
      %v2187 = vld [vmem:[%s2166 + $0xf3] sm:$0xff]
      %v2188 = vld [vmem:[%s2166 + $0xfb] sm:$0xff]
      %v2189 = vld [vmem:[%s2166 + $0x10b] sm:$0xff]
      %v2190 = vld [vmem:[%s2166 + $0x113] sm:$0xff]
      %v2191 = vld [vmem:[%s2166 + $0x123] sm:$0xff]
      %v2192 = vld [vmem:[%s2166 + $0x12b] sm:$0xff]
      %v2193 = vld [vmem:[%s2166 + $0x13b] sm:$0xff]
      %v2194 = vld [vmem:[%s2166 + $0x143] sm:$0xff]
      %v2195 = vld [vmem:[%s2166 + $0x153] sm:$0xff]
      %v2196 = vld [vmem:[%s2166 + $0x15b] sm:$0xff]
      %v2197 = vld [vmem:[%s2166 + $0x16b] sm:$0xff]
      %v2198 = vld [vmem:[%s2166 + $0x173] sm:$0xff]
      %v2199 = vld [vmem:[%s5 + $0x2] sm:$0x1]
      %v2200 = vperm.slane %v2199, 0
      %v2201 = vmul.f32 %v2167, %v2200
      %v2202 = vmul.f32 %v2168, %v2200
      %v2203 = vmul.f32 %v2169, %v2200
      %v2204 = vmul.f32 %v2170, %v2200
      %v2205 = vmul.f32 %v2171, %v2200
      %v2206 = vmul.f32 %v2172, %v2200
      %v2207 = vmul.f32 %v2173, %v2200
      %v2208 = vmul.f32 %v2174, %v2200
      %v2209 = vmul.f32 %v2175, %v2200
      %v2210 = vmul.f32 %v2176, %v2200
      %v2211 = vmul.f32 %v2177, %v2200
      %v2212 = vmul.f32 %v2178, %v2200
      %v2213 = vmul.f32 %v2179, %v2200
      %v2214 = vmul.f32 %v2180, %v2200
      %v2215 = vmul.f32 %v2181, %v2200
      %v2216 = vmul.f32 %v2182, %v2200
      %v2217 = vmul.f32 %v2183, %v2200
      %v2218 = vmul.f32 %v2184, %v2200
      %v2219 = vmul.f32 %v2185, %v2200
      %v2220 = vmul.f32 %v2186, %v2200
      %v2221 = vmul.f32 %v2187, %v2200
      %v2222 = vmul.f32 %v2188, %v2200
      %v2223 = vmul.f32 %v2189, %v2200
      %v2224 = vmul.f32 %v2190, %v2200
      %v2225 = vmul.f32 %v2191, %v2200
      %v2226 = vmul.f32 %v2192, %v2200
      %v2227 = vmul.f32 %v2193, %v2200
      %v2228 = vmul.f32 %v2194, %v2200
      %v2229 = vmul.f32 %v2195, %v2200
      %v2230 = vmul.f32 %v2196, %v2200
      %v2231 = vmul.f32 %v2197, %v2200
      %v2232 = vmul.f32 %v2198, %v2200
      %v2233 = vadd.f32 %v2134, %v2201
      %v2234 = vadd.f32 %v2135, %v2202
      %v2235 = vadd.f32 %v2136, %v2203
      %v2236 = vadd.f32 %v2137, %v2204
      %v2237 = vadd.f32 %v2138, %v2205
      %v2238 = vadd.f32 %v2139, %v2206
      %v2239 = vadd.f32 %v2140, %v2207
      %v2240 = vadd.f32 %v2141, %v2208
      %v2241 = vadd.f32 %v2142, %v2209
      %v2242 = vadd.f32 %v2143, %v2210
      %v2243 = vadd.f32 %v2144, %v2211
      %v2244 = vadd.f32 %v2145, %v2212
      %v2245 = vadd.f32 %v2146, %v2213
      %v2246 = vadd.f32 %v2147, %v2214
      %v2247 = vadd.f32 %v2148, %v2215
      %v2248 = vadd.f32 %v2149, %v2216
      %v2249 = vadd.f32 %v2150, %v2217
      %v2250 = vadd.f32 %v2151, %v2218
      %v2251 = vadd.f32 %v2152, %v2219
      %v2252 = vadd.f32 %v2153, %v2220
      %v2253 = vadd.f32 %v2154, %v2221
      %v2254 = vadd.f32 %v2155, %v2222
      %v2255 = vadd.f32 %v2156, %v2223
      %v2256 = vadd.f32 %v2157, %v2224
      %v2257 = vadd.f32 %v2158, %v2225
      %v2258 = vadd.f32 %v2159, %v2226
      %v2259 = vadd.f32 %v2160, %v2227
      %v2260 = vadd.f32 %v2161, %v2228
      %v2261 = vadd.f32 %v2162, %v2229
      %v2262 = vadd.f32 %v2163, %v2230
      %v2263 = vadd.f32 %v2164, %v2231
      %v2264 = vadd.f32 %v2165, %v2232
      %v2265 = vld [vmem:[%s5 + $0x3] sm:$0x1]
      %v2266 = vperm.slane %v2265, 0
      %v2267 = vmul.f32 %v1577, %v2266
      %v2268 = vmul.f32 %v1578, %v2266
      %v2269 = vmul.f32 %v1579, %v2266
      %v2270 = vmul.f32 %v1580, %v2266
      %v2271 = vmul.f32 %v1581, %v2266
      %v2272 = vmul.f32 %v1582, %v2266
      %v2273 = vmul.f32 %v1583, %v2266
      %v2274 = vmul.f32 %v1584, %v2266
      %v2275 = vmul.f32 %v1585, %v2266
      %v2276 = vmul.f32 %v1586, %v2266
      %v2277 = vmul.f32 %v1587, %v2266
      %v2278 = vmul.f32 %v1588, %v2266
      %v2279 = vmul.f32 %v1589, %v2266
      %v2280 = vmul.f32 %v1590, %v2266
      %v2281 = vmul.f32 %v1591, %v2266
      %v2282 = vmul.f32 %v1592, %v2266
      %v2283 = vmul.f32 %v1593, %v2266
      %v2284 = vmul.f32 %v1594, %v2266
      %v2285 = vmul.f32 %v1595, %v2266
      %v2286 = vmul.f32 %v1596, %v2266
      %v2287 = vmul.f32 %v1597, %v2266
      %v2288 = vmul.f32 %v1598, %v2266
      %v2289 = vmul.f32 %v1599, %v2266
      %v2290 = vmul.f32 %v1600, %v2266
      %v2291 = vmul.f32 %v1601, %v2266
      %v2292 = vmul.f32 %v1602, %v2266
      %v2293 = vmul.f32 %v1603, %v2266
      %v2294 = vmul.f32 %v1604, %v2266
      %v2295 = vmul.f32 %v1605, %v2266
      %v2296 = vmul.f32 %v1606, %v2266
      %v2297 = vmul.f32 %v1607, %v2266
      %v2298 = vmul.f32 %v1608, %v2266
      %v2299 = vadd.f32 %v2233, %v2267
      %v2300 = vadd.f32 %v2234, %v2268
      %v2301 = vadd.f32 %v2235, %v2269
      %v2302 = vadd.f32 %v2236, %v2270
      %v2303 = vadd.f32 %v2237, %v2271
      %v2304 = vadd.f32 %v2238, %v2272
      %v2305 = vadd.f32 %v2239, %v2273
      %v2306 = vadd.f32 %v2240, %v2274
      %v2307 = vadd.f32 %v2241, %v2275
      %v2308 = vadd.f32 %v2242, %v2276
      %v2309 = vadd.f32 %v2243, %v2277
      %v2310 = vadd.f32 %v2244, %v2278
      %v2311 = vadd.f32 %v2245, %v2279
      %v2312 = vadd.f32 %v2246, %v2280
      %v2313 = vadd.f32 %v2247, %v2281
      %v2314 = vadd.f32 %v2248, %v2282
      %v2315 = vadd.f32 %v2249, %v2283
      %v2316 = vadd.f32 %v2250, %v2284
      %v2317 = vadd.f32 %v2251, %v2285
      %v2318 = vadd.f32 %v2252, %v2286
      %v2319 = vadd.f32 %v2253, %v2287
      %v2320 = vadd.f32 %v2254, %v2288
      %v2321 = vadd.f32 %v2255, %v2289
      %v2322 = vadd.f32 %v2256, %v2290
      %v2323 = vadd.f32 %v2257, %v2291
      %v2324 = vadd.f32 %v2258, %v2292
      %v2325 = vadd.f32 %v2259, %v2293
      %v2326 = vadd.f32 %v2260, %v2294
      %v2327 = vadd.f32 %v2261, %v2295
      %v2328 = vadd.f32 %v2262, %v2296
      %v2329 = vadd.f32 %v2263, %v2297
      %v2330 = vadd.f32 %v2264, %v2298
      %s2331 = scalar_lea.vmem [#allocation2], 96
      %v2332 = vld [vmem:[%s2331 + $0x3] sm:$0xff]
      %v2333 = vld [vmem:[%s2331 + $0xb] sm:$0xff]
      %v2334 = vld [vmem:[%s2331 + $0x1b] sm:$0xff]
      %v2335 = vld [vmem:[%s2331 + $0x23] sm:$0xff]
      %v2336 = vld [vmem:[%s2331 + $0x33] sm:$0xff]
      %v2337 = vld [vmem:[%s2331 + $0x3b] sm:$0xff]
      %v2338 = vld [vmem:[%s2331 + $0x4b] sm:$0xff]
      %v2339 = vld [vmem:[%s2331 + $0x53] sm:$0xff]
      %v2340 = vld [vmem:[%s2331 + $0x63] sm:$0xff]
      %v2341 = vld [vmem:[%s2331 + $0x6b] sm:$0xff]
      %v2342 = vld [vmem:[%s2331 + $0x7b] sm:$0xff]
      %v2343 = vld [vmem:[%s2331 + $0x83] sm:$0xff]
      %v2344 = vld [vmem:[%s2331 + $0x93] sm:$0xff]
      %v2345 = vld [vmem:[%s2331 + $0x9b] sm:$0xff]
      %v2346 = vld [vmem:[%s2331 + $0xab] sm:$0xff]
      %v2347 = vld [vmem:[%s2331 + $0xb3] sm:$0xff]
      %v2348 = vld [vmem:[%s2331 + $0xc3] sm:$0xff]
      %v2349 = vld [vmem:[%s2331 + $0xcb] sm:$0xff]
      %v2350 = vld [vmem:[%s2331 + $0xdb] sm:$0xff]
      %v2351 = vld [vmem:[%s2331 + $0xe3] sm:$0xff]
      %v2352 = vld [vmem:[%s2331 + $0xf3] sm:$0xff]
      %v2353 = vld [vmem:[%s2331 + $0xfb] sm:$0xff]
      %v2354 = vld [vmem:[%s2331 + $0x10b] sm:$0xff]
      %v2355 = vld [vmem:[%s2331 + $0x113] sm:$0xff]
      %v2356 = vld [vmem:[%s2331 + $0x123] sm:$0xff]
      %v2357 = vld [vmem:[%s2331 + $0x12b] sm:$0xff]
      %v2358 = vld [vmem:[%s2331 + $0x13b] sm:$0xff]
      %v2359 = vld [vmem:[%s2331 + $0x143] sm:$0xff]
      %v2360 = vld [vmem:[%s2331 + $0x153] sm:$0xff]
      %v2361 = vld [vmem:[%s2331 + $0x15b] sm:$0xff]
      %v2362 = vld [vmem:[%s2331 + $0x16b] sm:$0xff]
      %v2363 = vld [vmem:[%s2331 + $0x173] sm:$0xff]
      %v2364 = vld [vmem:[%s5 + $0x4] sm:$0x1]
      %v2365 = vperm.slane %v2364, 0
      %v2366 = vmul.f32 %v2332, %v2365
      %v2367 = vmul.f32 %v2333, %v2365
      %v2368 = vmul.f32 %v2334, %v2365
      %v2369 = vmul.f32 %v2335, %v2365
      %v2370 = vmul.f32 %v2336, %v2365
      %v2371 = vmul.f32 %v2337, %v2365
      %v2372 = vmul.f32 %v2338, %v2365
      %v2373 = vmul.f32 %v2339, %v2365
      %v2374 = vmul.f32 %v2340, %v2365
      %v2375 = vmul.f32 %v2341, %v2365
      %v2376 = vmul.f32 %v2342, %v2365
      %v2377 = vmul.f32 %v2343, %v2365
      %v2378 = vmul.f32 %v2344, %v2365
      %v2379 = vmul.f32 %v2345, %v2365
      %v2380 = vmul.f32 %v2346, %v2365
      %v2381 = vmul.f32 %v2347, %v2365
      %v2382 = vmul.f32 %v2348, %v2365
      %v2383 = vmul.f32 %v2349, %v2365
      %v2384 = vmul.f32 %v2350, %v2365
      %v2385 = vmul.f32 %v2351, %v2365
      %v2386 = vmul.f32 %v2352, %v2365
      %v2387 = vmul.f32 %v2353, %v2365
      %v2388 = vmul.f32 %v2354, %v2365
      %v2389 = vmul.f32 %v2355, %v2365
      %v2390 = vmul.f32 %v2356, %v2365
      %v2391 = vmul.f32 %v2357, %v2365
      %v2392 = vmul.f32 %v2358, %v2365
      %v2393 = vmul.f32 %v2359, %v2365
      %v2394 = vmul.f32 %v2360, %v2365
      %v2395 = vmul.f32 %v2361, %v2365
      %v2396 = vmul.f32 %v2362, %v2365
      %v2397 = vmul.f32 %v2363, %v2365
      %v2398 = vadd.f32 %v2299, %v2366
      %v2399 = vadd.f32 %v2300, %v2367
      %v2400 = vadd.f32 %v2301, %v2368
      %v2401 = vadd.f32 %v2302, %v2369
      %v2402 = vadd.f32 %v2303, %v2370
      %v2403 = vadd.f32 %v2304, %v2371
      %v2404 = vadd.f32 %v2305, %v2372
      %v2405 = vadd.f32 %v2306, %v2373
      %v2406 = vadd.f32 %v2307, %v2374
      %v2407 = vadd.f32 %v2308, %v2375
      %v2408 = vadd.f32 %v2309, %v2376
      %v2409 = vadd.f32 %v2310, %v2377
      %v2410 = vadd.f32 %v2311, %v2378
      %v2411 = vadd.f32 %v2312, %v2379
      %v2412 = vadd.f32 %v2313, %v2380
      %v2413 = vadd.f32 %v2314, %v2381
      %v2414 = vadd.f32 %v2315, %v2382
      %v2415 = vadd.f32 %v2316, %v2383
      %v2416 = vadd.f32 %v2317, %v2384
      %v2417 = vadd.f32 %v2318, %v2385
      %v2418 = vadd.f32 %v2319, %v2386
      %v2419 = vadd.f32 %v2320, %v2387
      %v2420 = vadd.f32 %v2321, %v2388
      %v2421 = vadd.f32 %v2322, %v2389
      %v2422 = vadd.f32 %v2323, %v2390
      %v2423 = vadd.f32 %v2324, %v2391
      %v2424 = vadd.f32 %v2325, %v2392
      %v2425 = vadd.f32 %v2326, %v2393
      %v2426 = vadd.f32 %v2327, %v2394
      %v2427 = vadd.f32 %v2328, %v2395
      %v2428 = vadd.f32 %v2329, %v2396
      %v2429 = vadd.f32 %v2330, %v2397
      %s2430 = scalar_lea.vmem [#allocation2], 120
      %v2431 = vld [vmem:[%s2430 + $0x3] sm:$0xff]
      %v2432 = vld [vmem:[%s2430 + $0xb] sm:$0xff]
      %v2433 = vld [vmem:[%s2430 + $0x1b] sm:$0xff]
      %v2434 = vld [vmem:[%s2430 + $0x23] sm:$0xff]
      %v2435 = vld [vmem:[%s2430 + $0x33] sm:$0xff]
      %v2436 = vld [vmem:[%s2430 + $0x3b] sm:$0xff]
      %v2437 = vld [vmem:[%s2430 + $0x4b] sm:$0xff]
      %v2438 = vld [vmem:[%s2430 + $0x53] sm:$0xff]
      %v2439 = vld [vmem:[%s2430 + $0x63] sm:$0xff]
      %v2440 = vld [vmem:[%s2430 + $0x6b] sm:$0xff]
      %v2441 = vld [vmem:[%s2430 + $0x7b] sm:$0xff]
      %v2442 = vld [vmem:[%s2430 + $0x83] sm:$0xff]
      %v2443 = vld [vmem:[%s2430 + $0x93] sm:$0xff]
      %v2444 = vld [vmem:[%s2430 + $0x9b] sm:$0xff]
      %v2445 = vld [vmem:[%s2430 + $0xab] sm:$0xff]
      %v2446 = vld [vmem:[%s2430 + $0xb3] sm:$0xff]
      %v2447 = vld [vmem:[%s2430 + $0xc3] sm:$0xff]
      %v2448 = vld [vmem:[%s2430 + $0xcb] sm:$0xff]
      %v2449 = vld [vmem:[%s2430 + $0xdb] sm:$0xff]
      %v2450 = vld [vmem:[%s2430 + $0xe3] sm:$0xff]
      %v2451 = vld [vmem:[%s2430 + $0xf3] sm:$0xff]
      %v2452 = vld [vmem:[%s2430 + $0xfb] sm:$0xff]
      %v2453 = vld [vmem:[%s2430 + $0x10b] sm:$0xff]
      %v2454 = vld [vmem:[%s2430 + $0x113] sm:$0xff]
      %v2455 = vld [vmem:[%s2430 + $0x123] sm:$0xff]
      %v2456 = vld [vmem:[%s2430 + $0x12b] sm:$0xff]
      %v2457 = vld [vmem:[%s2430 + $0x13b] sm:$0xff]
      %v2458 = vld [vmem:[%s2430 + $0x143] sm:$0xff]
      %v2459 = vld [vmem:[%s2430 + $0x153] sm:$0xff]
      %v2460 = vld [vmem:[%s2430 + $0x15b] sm:$0xff]
      %v2461 = vld [vmem:[%s2430 + $0x16b] sm:$0xff]
      %v2462 = vld [vmem:[%s2430 + $0x173] sm:$0xff]
      %v2463 = vld [vmem:[%s5 + $0x5] sm:$0x1]
      %v2464 = vperm.slane %v2463, 0
      %v2465 = vmul.f32 %v2431, %v2464
      %v2466 = vmul.f32 %v2432, %v2464
      %v2467 = vmul.f32 %v2433, %v2464
      %v2468 = vmul.f32 %v2434, %v2464
      %v2469 = vmul.f32 %v2435, %v2464
      %v2470 = vmul.f32 %v2436, %v2464
      %v2471 = vmul.f32 %v2437, %v2464
      %v2472 = vmul.f32 %v2438, %v2464
      %v2473 = vmul.f32 %v2439, %v2464
      %v2474 = vmul.f32 %v2440, %v2464
      %v2475 = vmul.f32 %v2441, %v2464
      %v2476 = vmul.f32 %v2442, %v2464
      %v2477 = vmul.f32 %v2443, %v2464
      %v2478 = vmul.f32 %v2444, %v2464
      %v2479 = vmul.f32 %v2445, %v2464
      %v2480 = vmul.f32 %v2446, %v2464
      %v2481 = vmul.f32 %v2447, %v2464
      %v2482 = vmul.f32 %v2448, %v2464
      %v2483 = vmul.f32 %v2449, %v2464
      %v2484 = vmul.f32 %v2450, %v2464
      %v2485 = vmul.f32 %v2451, %v2464
      %v2486 = vmul.f32 %v2452, %v2464
      %v2487 = vmul.f32 %v2453, %v2464
      %v2488 = vmul.f32 %v2454, %v2464
      %v2489 = vmul.f32 %v2455, %v2464
      %v2490 = vmul.f32 %v2456, %v2464
      %v2491 = vmul.f32 %v2457, %v2464
      %v2492 = vmul.f32 %v2458, %v2464
      %v2493 = vmul.f32 %v2459, %v2464
      %v2494 = vmul.f32 %v2460, %v2464
      %v2495 = vmul.f32 %v2461, %v2464
      %v2496 = vmul.f32 %v2462, %v2464
      %v2497 = vadd.f32 %v2398, %v2465
      %v2498 = vadd.f32 %v2399, %v2466
      %v2499 = vadd.f32 %v2400, %v2467
      %v2500 = vadd.f32 %v2401, %v2468
      %v2501 = vadd.f32 %v2402, %v2469
      %v2502 = vadd.f32 %v2403, %v2470
      %v2503 = vadd.f32 %v2404, %v2471
      %v2504 = vadd.f32 %v2405, %v2472
      %v2505 = vadd.f32 %v2406, %v2473
      %v2506 = vadd.f32 %v2407, %v2474
      %v2507 = vadd.f32 %v2408, %v2475
      %v2508 = vadd.f32 %v2409, %v2476
      %v2509 = vadd.f32 %v2410, %v2477
      %v2510 = vadd.f32 %v2411, %v2478
      %v2511 = vadd.f32 %v2412, %v2479
      %v2512 = vadd.f32 %v2413, %v2480
      %v2513 = vadd.f32 %v2414, %v2481
      %v2514 = vadd.f32 %v2415, %v2482
      %v2515 = vadd.f32 %v2416, %v2483
      %v2516 = vadd.f32 %v2417, %v2484
      %v2517 = vadd.f32 %v2418, %v2485
      %v2518 = vadd.f32 %v2419, %v2486
      %v2519 = vadd.f32 %v2420, %v2487
      %v2520 = vadd.f32 %v2421, %v2488
      %v2521 = vadd.f32 %v2422, %v2489
      %v2522 = vadd.f32 %v2423, %v2490
      %v2523 = vadd.f32 %v2424, %v2491
      %v2524 = vadd.f32 %v2425, %v2492
      %v2525 = vadd.f32 %v2426, %v2493
      %v2526 = vadd.f32 %v2427, %v2494
      %v2527 = vadd.f32 %v2428, %v2495
      %v2528 = vadd.f32 %v2429, %v2496
      %s2529 = scalar_lea.vmem [#allocation2], 144
      %v2530 = vld [vmem:[%s2529 + $0x3] sm:$0xff]
      %v2531 = vld [vmem:[%s2529 + $0xb] sm:$0xff]
      %v2532 = vld [vmem:[%s2529 + $0x1b] sm:$0xff]
      %v2533 = vld [vmem:[%s2529 + $0x23] sm:$0xff]
      %v2534 = vld [vmem:[%s2529 + $0x33] sm:$0xff]
      %v2535 = vld [vmem:[%s2529 + $0x3b] sm:$0xff]
      %v2536 = vld [vmem:[%s2529 + $0x4b] sm:$0xff]
      %v2537 = vld [vmem:[%s2529 + $0x53] sm:$0xff]
      %v2538 = vld [vmem:[%s2529 + $0x63] sm:$0xff]
      %v2539 = vld [vmem:[%s2529 + $0x6b] sm:$0xff]
      %v2540 = vld [vmem:[%s2529 + $0x7b] sm:$0xff]
      %v2541 = vld [vmem:[%s2529 + $0x83] sm:$0xff]
      %v2542 = vld [vmem:[%s2529 + $0x93] sm:$0xff]
      %v2543 = vld [vmem:[%s2529 + $0x9b] sm:$0xff]
      %v2544 = vld [vmem:[%s2529 + $0xab] sm:$0xff]
      %v2545 = vld [vmem:[%s2529 + $0xb3] sm:$0xff]
      %v2546 = vld [vmem:[%s2529 + $0xc3] sm:$0xff]
      %v2547 = vld [vmem:[%s2529 + $0xcb] sm:$0xff]
      %v2548 = vld [vmem:[%s2529 + $0xdb] sm:$0xff]
      %v2549 = vld [vmem:[%s2529 + $0xe3] sm:$0xff]
      %v2550 = vld [vmem:[%s2529 + $0xf3] sm:$0xff]
      %v2551 = vld [vmem:[%s2529 + $0xfb] sm:$0xff]
      %v2552 = vld [vmem:[%s2529 + $0x10b] sm:$0xff]
      %v2553 = vld [vmem:[%s2529 + $0x113] sm:$0xff]
      %v2554 = vld [vmem:[%s2529 + $0x123] sm:$0xff]
      %v2555 = vld [vmem:[%s2529 + $0x12b] sm:$0xff]
      %v2556 = vld [vmem:[%s2529 + $0x13b] sm:$0xff]
      %v2557 = vld [vmem:[%s2529 + $0x143] sm:$0xff]
      %v2558 = vld [vmem:[%s2529 + $0x153] sm:$0xff]
      %v2559 = vld [vmem:[%s2529 + $0x15b] sm:$0xff]
      %v2560 = vld [vmem:[%s2529 + $0x16b] sm:$0xff]
      %v2561 = vld [vmem:[%s2529 + $0x173] sm:$0xff]
      %v2562 = vld [vmem:[%s5 + $0x6] sm:$0x1]
      %v2563 = vperm.slane %v2562, 0
      %v2564 = vmul.f32 %v2530, %v2563
      %v2565 = vmul.f32 %v2531, %v2563
      %v2566 = vmul.f32 %v2532, %v2563
      %v2567 = vmul.f32 %v2533, %v2563
      %v2568 = vmul.f32 %v2534, %v2563
      %v2569 = vmul.f32 %v2535, %v2563
      %v2570 = vmul.f32 %v2536, %v2563
      %v2571 = vmul.f32 %v2537, %v2563
      %v2572 = vmul.f32 %v2538, %v2563
      %v2573 = vmul.f32 %v2539, %v2563
      %v2574 = vmul.f32 %v2540, %v2563
      %v2575 = vmul.f32 %v2541, %v2563
      %v2576 = vmul.f32 %v2542, %v2563
      %v2577 = vmul.f32 %v2543, %v2563
      %v2578 = vmul.f32 %v2544, %v2563
      %v2579 = vmul.f32 %v2545, %v2563
      %v2580 = vmul.f32 %v2546, %v2563
      %v2581 = vmul.f32 %v2547, %v2563
      %v2582 = vmul.f32 %v2548, %v2563
      %v2583 = vmul.f32 %v2549, %v2563
      %v2584 = vmul.f32 %v2550, %v2563
      %v2585 = vmul.f32 %v2551, %v2563
      %v2586 = vmul.f32 %v2552, %v2563
      %v2587 = vmul.f32 %v2553, %v2563
      %v2588 = vmul.f32 %v2554, %v2563
      %v2589 = vmul.f32 %v2555, %v2563
      %v2590 = vmul.f32 %v2556, %v2563
      %v2591 = vmul.f32 %v2557, %v2563
      %v2592 = vmul.f32 %v2558, %v2563
      %v2593 = vmul.f32 %v2559, %v2563
      %v2594 = vmul.f32 %v2560, %v2563
      %v2595 = vmul.f32 %v2561, %v2563
      %v2596 = vadd.f32 %v2497, %v2564
      %v2597 = vadd.f32 %v2498, %v2565
      %v2598 = vadd.f32 %v2499, %v2566
      %v2599 = vadd.f32 %v2500, %v2567
      %v2600 = vadd.f32 %v2501, %v2568
      %v2601 = vadd.f32 %v2502, %v2569
      %v2602 = vadd.f32 %v2503, %v2570
      %v2603 = vadd.f32 %v2504, %v2571
      %v2604 = vadd.f32 %v2505, %v2572
      %v2605 = vadd.f32 %v2506, %v2573
      %v2606 = vadd.f32 %v2507, %v2574
      %v2607 = vadd.f32 %v2508, %v2575
      %v2608 = vadd.f32 %v2509, %v2576
      %v2609 = vadd.f32 %v2510, %v2577
      %v2610 = vadd.f32 %v2511, %v2578
      %v2611 = vadd.f32 %v2512, %v2579
      %v2612 = vadd.f32 %v2513, %v2580
      %v2613 = vadd.f32 %v2514, %v2581
      %v2614 = vadd.f32 %v2515, %v2582
      %v2615 = vadd.f32 %v2516, %v2583
      %v2616 = vadd.f32 %v2517, %v2584
      %v2617 = vadd.f32 %v2518, %v2585
      %v2618 = vadd.f32 %v2519, %v2586
      %v2619 = vadd.f32 %v2520, %v2587
      %v2620 = vadd.f32 %v2521, %v2588
      %v2621 = vadd.f32 %v2522, %v2589
      %v2622 = vadd.f32 %v2523, %v2590
      %v2623 = vadd.f32 %v2524, %v2591
      %v2624 = vadd.f32 %v2525, %v2592
      %v2625 = vadd.f32 %v2526, %v2593
      %v2626 = vadd.f32 %v2527, %v2594
      %v2627 = vadd.f32 %v2528, %v2595
      %v2628 = vld [vmem:[%s6] sm:$0xff]
      %v2629 = vld [vmem:[%s7] sm:$0x1]
      %v2630 = vperm.slane %v2629, 0
      %v2632 = vsel %vm405, %v2596, 0
      %v2635 = vsel %vm405, %v2597, 0
      %v2638 = vsel %vm405, %v2598, 0
      %v2641 = vsel %vm405, %v2599, 0
      %v2644 = vsel %vm405, %v2600, 0
      %v2647 = vsel %vm405, %v2601, 0
      %v2650 = vsel %vm405, %v2602, 0
      %v2653 = vsel %vm405, %v2603, 0
      %v2656 = vsel %vm405, %v2604, 0
      %v2659 = vsel %vm405, %v2605, 0
      %v2662 = vsel %vm405, %v2606, 0
      %v2665 = vsel %vm405, %v2607, 0
      %v2668 = vsel %vm405, %v2608, 0
      %v2671 = vsel %vm405, %v2609, 0
      %v2674 = vsel %vm405, %v2610, 0
      %v2677 = vsel %vm405, %v2611, 0
      %v2680 = vsel %vm405, %v2612, 0
      %v2683 = vsel %vm405, %v2613, 0
      %v2686 = vsel %vm405, %v2614, 0
      %v2689 = vsel %vm405, %v2615, 0
      %v2692 = vsel %vm405, %v2616, 0
      %v2695 = vsel %vm405, %v2617, 0
      %v2698 = vsel %vm405, %v2618, 0
      %v2701 = vsel %vm405, %v2619, 0
      %v2704 = vsel %vm405, %v2620, 0
      %v2707 = vsel %vm405, %v2621, 0
      %v2710 = vsel %vm405, %v2622, 0
      %v2713 = vsel %vm405, %v2623, 0
      %v2716 = vsel %vm405, %v2624, 0
      %v2719 = vsel %vm405, %v2625, 0
      %v2722 = vsel %vm405, %v2626, 0
      %v2725 = vsel %vm405, %v2627, 0
      %2727 = vmatpush.msra.mxu0 0.0
      %2728 = vmatpush.msra.mxu0 0.0
      %2729 = vmatpush.msra.mxu0 0.0
      %2730 = vmatpush.msra.mxu0 0.0
      %2731 = vmatpush.msra.mxu0 0.0
      %2732 = vmatpush.msra.mxu0 0.0
      %2733 = vmatpush.msra.mxu0 0.0
      %2734 = vmatpush.msra.mxu0 0.0
      %2735 = vmatpush.msra.mxu0 0.0
      %2736 = vmatpush.msra.mxu0 0.0
      %2737 = vmatpush.msra.mxu0 0.0
      %2738 = vmatpush.msra.mxu0 0.0
      %2739 = vmatpush.msra.mxu0 0.0
      %2740 = vmatpush.msra.mxu0 0.0
      %2741 = vmatpush.msra.mxu0 0.0
      %2742 = vmatpush.msra.mxu0 %v2628
      %2743 = vmatmul.f32.gmra.mxu0 %v2632
      %v2744 = vpop.f32.mrf.mxu0
      %v2745 = vadd.f32 %v2630, %v2744
      %2746 = vmatmul.f32.gmra.mxu0 %v2635
      %v2747 = vpop.f32.mrf.mxu0
      %v2748 = vadd.f32 %v2630, %v2747
      %2749 = vmatmul.f32.gmra.mxu0 %v2638
      %v2750 = vpop.f32.mrf.mxu0
      %v2751 = vadd.f32 %v2630, %v2750
      %2752 = vmatmul.f32.gmra.mxu0 %v2641
      %v2753 = vpop.f32.mrf.mxu0
      %v2754 = vadd.f32 %v2630, %v2753
      %2755 = vmatmul.f32.gmra.mxu0 %v2644
      %v2756 = vpop.f32.mrf.mxu0
      %v2757 = vadd.f32 %v2630, %v2756
      %2758 = vmatmul.f32.gmra.mxu0 %v2647
      %v2759 = vpop.f32.mrf.mxu0
      %v2760 = vadd.f32 %v2630, %v2759
      %2761 = vmatmul.f32.gmra.mxu0 %v2650
      %v2762 = vpop.f32.mrf.mxu0
      %v2763 = vadd.f32 %v2630, %v2762
      %2764 = vmatmul.f32.gmra.mxu0 %v2653
      %v2765 = vpop.f32.mrf.mxu0
      %v2766 = vadd.f32 %v2630, %v2765
      %2767 = vmatmul.f32.gmra.mxu0 %v2656
      %v2768 = vpop.f32.mrf.mxu0
      %v2769 = vadd.f32 %v2630, %v2768
      %2770 = vmatmul.f32.gmra.mxu0 %v2659
      %v2771 = vpop.f32.mrf.mxu0
      %v2772 = vadd.f32 %v2630, %v2771
      %2773 = vmatmul.f32.gmra.mxu0 %v2662
      %v2774 = vpop.f32.mrf.mxu0
      %v2775 = vadd.f32 %v2630, %v2774
      %2776 = vmatmul.f32.gmra.mxu0 %v2665
      %v2777 = vpop.f32.mrf.mxu0
      %v2778 = vadd.f32 %v2630, %v2777
      %2779 = vmatmul.f32.gmra.mxu0 %v2668
      %v2780 = vpop.f32.mrf.mxu0
      %v2781 = vadd.f32 %v2630, %v2780
      %2782 = vmatmul.f32.gmra.mxu0 %v2671
      %v2783 = vpop.f32.mrf.mxu0
      %v2784 = vadd.f32 %v2630, %v2783
      %2785 = vmatmul.f32.gmra.mxu0 %v2674
      %v2786 = vpop.f32.mrf.mxu0
      %v2787 = vadd.f32 %v2630, %v2786
      %2788 = vmatmul.f32.gmra.mxu0 %v2677
      %v2789 = vpop.f32.mrf.mxu0
      %v2790 = vadd.f32 %v2630, %v2789
      %2791 = vmatmul.f32.gmra.mxu0 %v2680
      %v2792 = vpop.f32.mrf.mxu0
      %v2793 = vadd.f32 %v2630, %v2792
      %2794 = vmatmul.f32.gmra.mxu0 %v2683
      %v2795 = vpop.f32.mrf.mxu0
      %v2796 = vadd.f32 %v2630, %v2795
      %2797 = vmatmul.f32.gmra.mxu0 %v2686
      %v2798 = vpop.f32.mrf.mxu0
      %v2799 = vadd.f32 %v2630, %v2798
      %2800 = vmatmul.f32.gmra.mxu0 %v2689
      %v2801 = vpop.f32.mrf.mxu0
      %v2802 = vadd.f32 %v2630, %v2801
      %2803 = vmatmul.f32.gmra.mxu0 %v2692
      %v2804 = vpop.f32.mrf.mxu0
      %v2805 = vadd.f32 %v2630, %v2804
      %2806 = vmatmul.f32.gmra.mxu0 %v2695
      %v2807 = vpop.f32.mrf.mxu0
      %v2808 = vadd.f32 %v2630, %v2807
      %2809 = vmatmul.f32.gmra.mxu0 %v2698
      %v2810 = vpop.f32.mrf.mxu0
      %v2811 = vadd.f32 %v2630, %v2810
      %2812 = vmatmul.f32.gmra.mxu0 %v2701
      %v2813 = vpop.f32.mrf.mxu0
      %v2814 = vadd.f32 %v2630, %v2813
      %2815 = vmatmul.f32.gmra.mxu0 %v2704
      %v2816 = vpop.f32.mrf.mxu0
      %v2817 = vadd.f32 %v2630, %v2816
      %2818 = vmatmul.f32.gmra.mxu0 %v2707
      %v2819 = vpop.f32.mrf.mxu0
      %v2820 = vadd.f32 %v2630, %v2819
      %2821 = vmatmul.f32.gmra.mxu0 %v2710
      %v2822 = vpop.f32.mrf.mxu0
      %v2823 = vadd.f32 %v2630, %v2822
      %2824 = vmatmul.f32.gmra.mxu0 %v2713
      %v2825 = vpop.f32.mrf.mxu0
      %v2826 = vadd.f32 %v2630, %v2825
      %2827 = vmatmul.f32.gmra.mxu0 %v2716
      %v2828 = vpop.f32.mrf.mxu0
      %v2829 = vadd.f32 %v2630, %v2828
      %2830 = vmatmul.f32.gmra.mxu0 %v2719
      %v2831 = vpop.f32.mrf.mxu0
      %v2832 = vadd.f32 %v2630, %v2831
      %2833 = vmatmul.f32.gmra.mxu0 %v2722
      %v2834 = vpop.f32.mrf.mxu0
      %v2835 = vadd.f32 %v2630, %v2834
      %2836 = vmatmul.f32.gmra.mxu0 %v2725
      %v2837 = vpop.f32.mrf.mxu0
      %v2838 = vadd.f32 %v2630, %v2837
      %2839 = vdwg.mxu0
      %2840 = vst.msk [vmem:[%s394] sm:$0xff] %vm405, %v2745
      %2841 = vst.msk [vmem:[%s394 + $0x8] sm:$0xff] %vm405, %v2748
      %2842 = vst.msk [vmem:[%s394 + $0x10] sm:$0xff] %vm405, %v2751
      %2843 = vst.msk [vmem:[%s394 + $0x18] sm:$0xff] %vm405, %v2754
      %2844 = vst.msk [vmem:[%s394 + $0x20] sm:$0xff] %vm405, %v2757
      %2845 = vst.msk [vmem:[%s394 + $0x28] sm:$0xff] %vm405, %v2760
      %2846 = vst.msk [vmem:[%s394 + $0x30] sm:$0xff] %vm405, %v2763
      %2847 = vst.msk [vmem:[%s394 + $0x38] sm:$0xff] %vm405, %v2766
      %2848 = vst.msk [vmem:[%s394 + $0x40] sm:$0xff] %vm405, %v2769
      %2849 = vst.msk [vmem:[%s394 + $0x48] sm:$0xff] %vm405, %v2772
      %2850 = vst.msk [vmem:[%s394 + $0x50] sm:$0xff] %vm405, %v2775
      %2851 = vst.msk [vmem:[%s394 + $0x58] sm:$0xff] %vm405, %v2778
      %2852 = vst.msk [vmem:[%s394 + $0x60] sm:$0xff] %vm405, %v2781
      %2853 = vst.msk [vmem:[%s394 + $0x68] sm:$0xff] %vm405, %v2784
      %2854 = vst.msk [vmem:[%s394 + $0x70] sm:$0xff] %vm405, %v2787
      %2855 = vst.msk [vmem:[%s394 + $0x78] sm:$0xff] %vm405, %v2790
      %2856 = vst.msk [vmem:[%s394 + $0x80] sm:$0xff] %vm405, %v2793
      %2857 = vst.msk [vmem:[%s394 + $0x88] sm:$0xff] %vm405, %v2796
      %2858 = vst.msk [vmem:[%s394 + $0x90] sm:$0xff] %vm405, %v2799
      %2859 = vst.msk [vmem:[%s394 + $0x98] sm:$0xff] %vm405, %v2802
      %2860 = vst.msk [vmem:[%s394 + $0xa0] sm:$0xff] %vm405, %v2805
      %2861 = vst.msk [vmem:[%s394 + $0xa8] sm:$0xff] %vm405, %v2808
      %2862 = vst.msk [vmem:[%s394 + $0xb0] sm:$0xff] %vm405, %v2811
      %2863 = vst.msk [vmem:[%s394 + $0xb8] sm:$0xff] %vm405, %v2814
      %2864 = vst.msk [vmem:[%s394 + $0xc0] sm:$0xff] %vm405, %v2817
      %2865 = vst.msk [vmem:[%s394 + $0xc8] sm:$0xff] %vm405, %v2820
      %2866 = vst.msk [vmem:[%s394 + $0xd0] sm:$0xff] %vm405, %v2823
      %2867 = vst.msk [vmem:[%s394 + $0xd8] sm:$0xff] %vm405, %v2826
      %2868 = vst.msk [vmem:[%s394 + $0xe0] sm:$0xff] %vm405, %v2829
      %2869 = vst.msk [vmem:[%s394 + $0xe8] sm:$0xff] %vm405, %v2832
      %2870 = vst.msk [vmem:[%s394 + $0xf0] sm:$0xff] %vm405, %v2835
      %2871 = vst.msk [vmem:[%s394 + $0xf8] sm:$0xff] %vm405, %v2838
      %v2872 = vld [vmem:[%s389] sm:$0xff]
      %v2873 = vld [vmem:[%s389 + $0x8] sm:$0xff]
      %v2874 = vld [vmem:[%s389 + $0x10] sm:$0xff]
      %v2875 = vld [vmem:[%s389 + $0x18] sm:$0xff]
      %v2876 = vld [vmem:[%s389 + $0x20] sm:$0xff]
      %v2877 = vld [vmem:[%s389 + $0x28] sm:$0xff]
      %v2878 = vld [vmem:[%s389 + $0x30] sm:$0xff]
      %v2879 = vld [vmem:[%s389 + $0x38] sm:$0xff]
      %v2880 = vld [vmem:[%s389 + $0x40] sm:$0xff]
      %v2881 = vld [vmem:[%s389 + $0x48] sm:$0xff]
      %v2882 = vld [vmem:[%s389 + $0x50] sm:$0xff]
      %v2883 = vld [vmem:[%s389 + $0x58] sm:$0xff]
      %v2884 = vld [vmem:[%s389 + $0x60] sm:$0xff]
      %v2885 = vld [vmem:[%s389 + $0x68] sm:$0xff]
      %v2886 = vld [vmem:[%s389 + $0x70] sm:$0xff]
      %v2887 = vld [vmem:[%s389 + $0x78] sm:$0xff]
      %v2888 = vld [vmem:[%s389 + $0x80] sm:$0xff]
      %v2889 = vld [vmem:[%s389 + $0x88] sm:$0xff]
      %v2890 = vld [vmem:[%s389 + $0x90] sm:$0xff]
      %v2891 = vld [vmem:[%s389 + $0x98] sm:$0xff]
      %v2892 = vld [vmem:[%s389 + $0xa0] sm:$0xff]
      %v2893 = vld [vmem:[%s389 + $0xa8] sm:$0xff]
      %v2894 = vld [vmem:[%s389 + $0xb0] sm:$0xff]
      %v2895 = vld [vmem:[%s389 + $0xb8] sm:$0xff]
      %v2896 = vld [vmem:[%s389 + $0xc0] sm:$0xff]
      %v2897 = vld [vmem:[%s389 + $0xc8] sm:$0xff]
      %v2898 = vld [vmem:[%s389 + $0xd0] sm:$0xff]
      %v2899 = vld [vmem:[%s389 + $0xd8] sm:$0xff]
      %v2900 = vld [vmem:[%s389 + $0xe0] sm:$0xff]
      %v2901 = vld [vmem:[%s389 + $0xe8] sm:$0xff]
      %v2902 = vld [vmem:[%s389 + $0xf0] sm:$0xff]
      %v2903 = vld [vmem:[%s389 + $0xf8] sm:$0xff]
      %v2904 = vsel %vm405, %v2872, 0.0
      %2905 = vadd.xlane.f32.xlu0 %v2904
      %v2906 = vpop.xlane.xlu0 %2905
      %v2907 = vsel %vm405, %v2873, 0.0
      %2908 = vadd.xlane.f32.xlu0 %v2907
      %v2909 = vpop.xlane.xlu0 %2908
      %v2910 = vsel %vm405, %v2874, 0.0
      %2911 = vadd.xlane.f32.xlu0 %v2910
      %v2912 = vpop.xlane.xlu0 %2911
      %v2913 = vsel %vm405, %v2875, 0.0
      %2914 = vadd.xlane.f32.xlu0 %v2913
      %v2915 = vpop.xlane.xlu0 %2914
      %v2916 = vsel %vm405, %v2876, 0.0
      %2917 = vadd.xlane.f32.xlu0 %v2916
      %v2918 = vpop.xlane.xlu0 %2917
      %v2919 = vsel %vm405, %v2877, 0.0
      %2920 = vadd.xlane.f32.xlu0 %v2919
      %v2921 = vpop.xlane.xlu0 %2920
      %v2922 = vsel %vm405, %v2878, 0.0
      %2923 = vadd.xlane.f32.xlu0 %v2922
      %v2924 = vpop.xlane.xlu0 %2923
      %v2925 = vsel %vm405, %v2879, 0.0
      %2926 = vadd.xlane.f32.xlu0 %v2925
      %v2927 = vpop.xlane.xlu0 %2926
      %v2928 = vsel %vm405, %v2880, 0.0
      %2929 = vadd.xlane.f32.xlu0 %v2928
      %v2930 = vpop.xlane.xlu0 %2929
      %v2931 = vsel %vm405, %v2881, 0.0
      %2932 = vadd.xlane.f32.xlu0 %v2931
      %v2933 = vpop.xlane.xlu0 %2932
      %v2934 = vsel %vm405, %v2882, 0.0
      %2935 = vadd.xlane.f32.xlu0 %v2934
      %v2936 = vpop.xlane.xlu0 %2935
      %v2937 = vsel %vm405, %v2883, 0.0
      %2938 = vadd.xlane.f32.xlu0 %v2937
      %v2939 = vpop.xlane.xlu0 %2938
      %v2940 = vsel %vm405, %v2884, 0.0
      %2941 = vadd.xlane.f32.xlu0 %v2940
      %v2942 = vpop.xlane.xlu0 %2941
      %v2943 = vsel %vm405, %v2885, 0.0
      %2944 = vadd.xlane.f32.xlu0 %v2943
      %v2945 = vpop.xlane.xlu0 %2944
      %v2946 = vsel %vm405, %v2886, 0.0
      %2947 = vadd.xlane.f32.xlu0 %v2946
      %v2948 = vpop.xlane.xlu0 %2947
      %v2949 = vsel %vm405, %v2887, 0.0
      %2950 = vadd.xlane.f32.xlu0 %v2949
      %v2951 = vpop.xlane.xlu0 %2950
      %v2952 = vsel %vm405, %v2888, 0.0
      %2953 = vadd.xlane.f32.xlu0 %v2952
      %v2954 = vpop.xlane.xlu0 %2953
      %v2955 = vsel %vm405, %v2889, 0.0
      %2956 = vadd.xlane.f32.xlu0 %v2955
      %v2957 = vpop.xlane.xlu0 %2956
      %v2958 = vsel %vm405, %v2890, 0.0
      %2959 = vadd.xlane.f32.xlu0 %v2958
      %v2960 = vpop.xlane.xlu0 %2959
      %v2961 = vsel %vm405, %v2891, 0.0
      %2962 = vadd.xlane.f32.xlu0 %v2961
      %v2963 = vpop.xlane.xlu0 %2962
      %v2964 = vsel %vm405, %v2892, 0.0
      %2965 = vadd.xlane.f32.xlu0 %v2964
      %v2966 = vpop.xlane.xlu0 %2965
      %v2967 = vsel %vm405, %v2893, 0.0
      %2968 = vadd.xlane.f32.xlu0 %v2967
      %v2969 = vpop.xlane.xlu0 %2968
      %v2970 = vsel %vm405, %v2894, 0.0
      %2971 = vadd.xlane.f32.xlu0 %v2970
      %v2972 = vpop.xlane.xlu0 %2971
      %v2973 = vsel %vm405, %v2895, 0.0
      %2974 = vadd.xlane.f32.xlu0 %v2973
      %v2975 = vpop.xlane.xlu0 %2974
      %v2976 = vsel %vm405, %v2896, 0.0
      %2977 = vadd.xlane.f32.xlu0 %v2976
      %v2978 = vpop.xlane.xlu0 %2977
      %v2979 = vsel %vm405, %v2897, 0.0
      %2980 = vadd.xlane.f32.xlu0 %v2979
      %v2981 = vpop.xlane.xlu0 %2980
      %v2982 = vsel %vm405, %v2898, 0.0
      %2983 = vadd.xlane.f32.xlu0 %v2982
      %v2984 = vpop.xlane.xlu0 %2983
      %v2985 = vsel %vm405, %v2899, 0.0
      %2986 = vadd.xlane.f32.xlu0 %v2985
      %v2987 = vpop.xlane.xlu0 %2986
      %v2988 = vsel %vm405, %v2900, 0.0
      %2989 = vadd.xlane.f32.xlu0 %v2988
      %v2990 = vpop.xlane.xlu0 %2989
      %v2991 = vsel %vm405, %v2901, 0.0
      %2992 = vadd.xlane.f32.xlu0 %v2991
      %v2993 = vpop.xlane.xlu0 %2992
      %v2994 = vsel %vm405, %v2902, 0.0
      %2995 = vadd.xlane.f32.xlu0 %v2994
      %v2996 = vpop.xlane.xlu0 %2995
      %v2997 = vsel %vm405, %v2903, 0.0
      %2998 = vadd.xlane.f32.xlu0 %v2997
      %v2999 = vpop.xlane.xlu0 %2998
      %v3000 = vmul.f32 %v2906, %v605
      %v3001 = vmul.f32 %v2909, %v605
      %v3002 = vmul.f32 %v2912, %v605
      %v3003 = vmul.f32 %v2915, %v605
      %v3004 = vmul.f32 %v2918, %v605
      %v3005 = vmul.f32 %v2921, %v605
      %v3006 = vmul.f32 %v2924, %v605
      %v3007 = vmul.f32 %v2927, %v605
      %v3008 = vmul.f32 %v2930, %v605
      %v3009 = vmul.f32 %v2933, %v605
      %v3010 = vmul.f32 %v2936, %v605
      %v3011 = vmul.f32 %v2939, %v605
      %v3012 = vmul.f32 %v2942, %v605
      %v3013 = vmul.f32 %v2945, %v605
      %v3014 = vmul.f32 %v2948, %v605
      %v3015 = vmul.f32 %v2951, %v605
      %v3016 = vmul.f32 %v2954, %v605
      %v3017 = vmul.f32 %v2957, %v605
      %v3018 = vmul.f32 %v2960, %v605
      %v3019 = vmul.f32 %v2963, %v605
      %v3020 = vmul.f32 %v2966, %v605
      %v3021 = vmul.f32 %v2969, %v605
      %v3022 = vmul.f32 %v2972, %v605
      %v3023 = vmul.f32 %v2975, %v605
      %v3024 = vmul.f32 %v2978, %v605
      %v3025 = vmul.f32 %v2981, %v605
      %v3026 = vmul.f32 %v2984, %v605
      %v3027 = vmul.f32 %v2987, %v605
      %v3028 = vmul.f32 %v2990, %v605
      %v3029 = vmul.f32 %v2993, %v605
      %v3030 = vmul.f32 %v2996, %v605
      %v3031 = vmul.f32 %v2999, %v605
      %v3032 = vsub.f32 %v2872, %v3000
      %v3033 = vsub.f32 %v2873, %v3001
      %v3034 = vsub.f32 %v2874, %v3002
      %v3035 = vsub.f32 %v2875, %v3003
      %v3036 = vsub.f32 %v2876, %v3004
      %v3037 = vsub.f32 %v2877, %v3005
      %v3038 = vsub.f32 %v2878, %v3006
      %v3039 = vsub.f32 %v2879, %v3007
      %v3040 = vsub.f32 %v2880, %v3008
      %v3041 = vsub.f32 %v2881, %v3009
      %v3042 = vsub.f32 %v2882, %v3010
      %v3043 = vsub.f32 %v2883, %v3011
      %v3044 = vsub.f32 %v2884, %v3012
      %v3045 = vsub.f32 %v2885, %v3013
      %v3046 = vsub.f32 %v2886, %v3014
      %v3047 = vsub.f32 %v2887, %v3015
      %v3048 = vsub.f32 %v2888, %v3016
      %v3049 = vsub.f32 %v2889, %v3017
      %v3050 = vsub.f32 %v2890, %v3018
      %v3051 = vsub.f32 %v2891, %v3019
      %v3052 = vsub.f32 %v2892, %v3020
      %v3053 = vsub.f32 %v2893, %v3021
      %v3054 = vsub.f32 %v2894, %v3022
      %v3055 = vsub.f32 %v2895, %v3023
      %v3056 = vsub.f32 %v2896, %v3024
      %v3057 = vsub.f32 %v2897, %v3025
      %v3058 = vsub.f32 %v2898, %v3026
      %v3059 = vsub.f32 %v2899, %v3027
      %v3060 = vsub.f32 %v2900, %v3028
      %v3061 = vsub.f32 %v2901, %v3029
      %v3062 = vsub.f32 %v2902, %v3030
      %v3063 = vsub.f32 %v2903, %v3031
      %v3064 = vmul.f32 %v3032, %v3032
      %v3065 = vmul.f32 %v3033, %v3033
      %v3066 = vmul.f32 %v3034, %v3034
      %v3067 = vmul.f32 %v3035, %v3035
      %v3068 = vmul.f32 %v3036, %v3036
      %v3069 = vmul.f32 %v3037, %v3037
      %v3070 = vmul.f32 %v3038, %v3038
      %v3071 = vmul.f32 %v3039, %v3039
      %v3072 = vmul.f32 %v3040, %v3040
      %v3073 = vmul.f32 %v3041, %v3041
      %v3074 = vmul.f32 %v3042, %v3042
      %v3075 = vmul.f32 %v3043, %v3043
      %v3076 = vmul.f32 %v3044, %v3044
      %v3077 = vmul.f32 %v3045, %v3045
      %v3078 = vmul.f32 %v3046, %v3046
      %v3079 = vmul.f32 %v3047, %v3047
      %v3080 = vmul.f32 %v3048, %v3048
      %v3081 = vmul.f32 %v3049, %v3049
      %v3082 = vmul.f32 %v3050, %v3050
      %v3083 = vmul.f32 %v3051, %v3051
      %v3084 = vmul.f32 %v3052, %v3052
      %v3085 = vmul.f32 %v3053, %v3053
      %v3086 = vmul.f32 %v3054, %v3054
      %v3087 = vmul.f32 %v3055, %v3055
      %v3088 = vmul.f32 %v3056, %v3056
      %v3089 = vmul.f32 %v3057, %v3057
      %v3090 = vmul.f32 %v3058, %v3058
      %v3091 = vmul.f32 %v3059, %v3059
      %v3092 = vmul.f32 %v3060, %v3060
      %v3093 = vmul.f32 %v3061, %v3061
      %v3094 = vmul.f32 %v3062, %v3062
      %v3095 = vmul.f32 %v3063, %v3063
      %v3096 = vsel %vm405, %v3064, 0.0
      %3097 = vadd.xlane.f32.xlu0 %v3096
      %v3098 = vpop.xlane.xlu0 %3097
      %v3099 = vsel %vm405, %v3065, 0.0
      %3100 = vadd.xlane.f32.xlu0 %v3099
      %v3101 = vpop.xlane.xlu0 %3100
      %v3102 = vsel %vm405, %v3066, 0.0
      %3103 = vadd.xlane.f32.xlu0 %v3102
      %v3104 = vpop.xlane.xlu0 %3103
      %v3105 = vsel %vm405, %v3067, 0.0
      %3106 = vadd.xlane.f32.xlu0 %v3105
      %v3107 = vpop.xlane.xlu0 %3106
      %v3108 = vsel %vm405, %v3068, 0.0
      %3109 = vadd.xlane.f32.xlu0 %v3108
      %v3110 = vpop.xlane.xlu0 %3109
      %v3111 = vsel %vm405, %v3069, 0.0
      %3112 = vadd.xlane.f32.xlu0 %v3111
      %v3113 = vpop.xlane.xlu0 %3112
      %v3114 = vsel %vm405, %v3070, 0.0
      %3115 = vadd.xlane.f32.xlu0 %v3114
      %v3116 = vpop.xlane.xlu0 %3115
      %v3117 = vsel %vm405, %v3071, 0.0
      %3118 = vadd.xlane.f32.xlu0 %v3117
      %v3119 = vpop.xlane.xlu0 %3118
      %v3120 = vsel %vm405, %v3072, 0.0
      %3121 = vadd.xlane.f32.xlu0 %v3120
      %v3122 = vpop.xlane.xlu0 %3121
      %v3123 = vsel %vm405, %v3073, 0.0
      %3124 = vadd.xlane.f32.xlu0 %v3123
      %v3125 = vpop.xlane.xlu0 %3124
      %v3126 = vsel %vm405, %v3074, 0.0
      %3127 = vadd.xlane.f32.xlu0 %v3126
      %v3128 = vpop.xlane.xlu0 %3127
      %v3129 = vsel %vm405, %v3075, 0.0
      %3130 = vadd.xlane.f32.xlu0 %v3129
      %v3131 = vpop.xlane.xlu0 %3130
      %v3132 = vsel %vm405, %v3076, 0.0
      %3133 = vadd.xlane.f32.xlu0 %v3132
      %v3134 = vpop.xlane.xlu0 %3133
      %v3135 = vsel %vm405, %v3077, 0.0
      %3136 = vadd.xlane.f32.xlu0 %v3135
      %v3137 = vpop.xlane.xlu0 %3136
      %v3138 = vsel %vm405, %v3078, 0.0
      %3139 = vadd.xlane.f32.xlu0 %v3138
      %v3140 = vpop.xlane.xlu0 %3139
      %v3141 = vsel %vm405, %v3079, 0.0
      %3142 = vadd.xlane.f32.xlu0 %v3141
      %v3143 = vpop.xlane.xlu0 %3142
      %v3144 = vsel %vm405, %v3080, 0.0
      %3145 = vadd.xlane.f32.xlu0 %v3144
      %v3146 = vpop.xlane.xlu0 %3145
      %v3147 = vsel %vm405, %v3081, 0.0
      %3148 = vadd.xlane.f32.xlu0 %v3147
      %v3149 = vpop.xlane.xlu0 %3148
      %v3150 = vsel %vm405, %v3082, 0.0
      %3151 = vadd.xlane.f32.xlu0 %v3150
      %v3152 = vpop.xlane.xlu0 %3151
      %v3153 = vsel %vm405, %v3083, 0.0
      %3154 = vadd.xlane.f32.xlu0 %v3153
      %v3155 = vpop.xlane.xlu0 %3154
      %v3156 = vsel %vm405, %v3084, 0.0
      %3157 = vadd.xlane.f32.xlu0 %v3156
      %v3158 = vpop.xlane.xlu0 %3157
      %v3159 = vsel %vm405, %v3085, 0.0
      %3160 = vadd.xlane.f32.xlu0 %v3159
      %v3161 = vpop.xlane.xlu0 %3160
      %v3162 = vsel %vm405, %v3086, 0.0
      %3163 = vadd.xlane.f32.xlu0 %v3162
      %v3164 = vpop.xlane.xlu0 %3163
      %v3165 = vsel %vm405, %v3087, 0.0
      %3166 = vadd.xlane.f32.xlu0 %v3165
      %v3167 = vpop.xlane.xlu0 %3166
      %v3168 = vsel %vm405, %v3088, 0.0
      %3169 = vadd.xlane.f32.xlu0 %v3168
      %v3170 = vpop.xlane.xlu0 %3169
      %v3171 = vsel %vm405, %v3089, 0.0
      %3172 = vadd.xlane.f32.xlu0 %v3171
      %v3173 = vpop.xlane.xlu0 %3172
      %v3174 = vsel %vm405, %v3090, 0.0
      %3175 = vadd.xlane.f32.xlu0 %v3174
      %v3176 = vpop.xlane.xlu0 %3175
      %v3177 = vsel %vm405, %v3091, 0.0
      %3178 = vadd.xlane.f32.xlu0 %v3177
      %v3179 = vpop.xlane.xlu0 %3178
      %v3180 = vsel %vm405, %v3092, 0.0
      %3181 = vadd.xlane.f32.xlu0 %v3180
      %v3182 = vpop.xlane.xlu0 %3181
      %v3183 = vsel %vm405, %v3093, 0.0
      %3184 = vadd.xlane.f32.xlu0 %v3183
      %v3185 = vpop.xlane.xlu0 %3184
      %v3186 = vsel %vm405, %v3094, 0.0
      %3187 = vadd.xlane.f32.xlu0 %v3186
      %v3188 = vpop.xlane.xlu0 %3187
      %v3189 = vsel %vm405, %v3095, 0.0
      %3190 = vadd.xlane.f32.xlu0 %v3189
      %v3191 = vpop.xlane.xlu0 %3190
      %v3192 = vmul.f32 %v3098, %v605
      %v3193 = vmul.f32 %v3101, %v605
      %v3194 = vmul.f32 %v3104, %v605
      %v3195 = vmul.f32 %v3107, %v605
      %v3196 = vmul.f32 %v3110, %v605
      %v3197 = vmul.f32 %v3113, %v605
      %v3198 = vmul.f32 %v3116, %v605
      %v3199 = vmul.f32 %v3119, %v605
      %v3200 = vmul.f32 %v3122, %v605
      %v3201 = vmul.f32 %v3125, %v605
      %v3202 = vmul.f32 %v3128, %v605
      %v3203 = vmul.f32 %v3131, %v605
      %v3204 = vmul.f32 %v3134, %v605
      %v3205 = vmul.f32 %v3137, %v605
      %v3206 = vmul.f32 %v3140, %v605
      %v3207 = vmul.f32 %v3143, %v605
      %v3208 = vmul.f32 %v3146, %v605
      %v3209 = vmul.f32 %v3149, %v605
      %v3210 = vmul.f32 %v3152, %v605
      %v3211 = vmul.f32 %v3155, %v605
      %v3212 = vmul.f32 %v3158, %v605
      %v3213 = vmul.f32 %v3161, %v605
      %v3214 = vmul.f32 %v3164, %v605
      %v3215 = vmul.f32 %v3167, %v605
      %v3216 = vmul.f32 %v3170, %v605
      %v3217 = vmul.f32 %v3173, %v605
      %v3218 = vmul.f32 %v3176, %v605
      %v3219 = vmul.f32 %v3179, %v605
      %v3220 = vmul.f32 %v3182, %v605
      %v3221 = vmul.f32 %v3185, %v605
      %v3222 = vmul.f32 %v3188, %v605
      %v3223 = vmul.f32 %v3191, %v605
      %v3224 = vadd.f32 %v3192, 1e-05
      %v3225 = vadd.f32 %v3193, 1e-05
      %v3226 = vadd.f32 %v3194, 1e-05
      %v3227 = vadd.f32 %v3195, 1e-05
      %v3228 = vadd.f32 %v3196, 1e-05
      %v3229 = vadd.f32 %v3197, 1e-05
      %v3230 = vadd.f32 %v3198, 1e-05
      %v3231 = vadd.f32 %v3199, 1e-05
      %v3232 = vadd.f32 %v3200, 1e-05
      %v3233 = vadd.f32 %v3201, 1e-05
      %v3234 = vadd.f32 %v3202, 1e-05
      %v3235 = vadd.f32 %v3203, 1e-05
      %v3236 = vadd.f32 %v3204, 1e-05
      %v3237 = vadd.f32 %v3205, 1e-05
      %v3238 = vadd.f32 %v3206, 1e-05
      %v3239 = vadd.f32 %v3207, 1e-05
      %v3240 = vadd.f32 %v3208, 1e-05
      %v3241 = vadd.f32 %v3209, 1e-05
      %v3242 = vadd.f32 %v3210, 1e-05
      %v3243 = vadd.f32 %v3211, 1e-05
      %v3244 = vadd.f32 %v3212, 1e-05
      %v3245 = vadd.f32 %v3213, 1e-05
      %v3246 = vadd.f32 %v3214, 1e-05
      %v3247 = vadd.f32 %v3215, 1e-05
      %v3248 = vadd.f32 %v3216, 1e-05
      %v3249 = vadd.f32 %v3217, 1e-05
      %v3250 = vadd.f32 %v3218, 1e-05
      %v3251 = vadd.f32 %v3219, 1e-05
      %v3252 = vadd.f32 %v3220, 1e-05
      %v3253 = vadd.f32 %v3221, 1e-05
      %v3254 = vadd.f32 %v3222, 1e-05
      %v3255 = vadd.f32 %v3223, 1e-05
      %v3256 = vrsqrt.pop %v3224
      %v3257 = vmul.f32 %v3256, %v3224
      %v3258 = vmul.f32 %v3257, %v3256
      %v3259 = vmul.f32 0.5, %v3258
      %v3260 = vsub.f32 1.5, %v3259
      %v3261 = vmul.f32 %v3256, %v3260
      %vm3262 = vweird.f32 %v3224
      %vm3263 = vweird.f32 %v3256
      %vm3264 = vmor %vm3262, %vm3263
      %v3265 = vsel %vm3264, %v3256, %v3261
      %v3266 = vrsqrt.pop %v3225
      %v3267 = vmul.f32 %v3266, %v3225
      %v3268 = vmul.f32 %v3267, %v3266
      %v3269 = vmul.f32 0.5, %v3268
      %v3270 = vsub.f32 1.5, %v3269
      %v3271 = vmul.f32 %v3266, %v3270
      %vm3272 = vweird.f32 %v3225
      %vm3273 = vweird.f32 %v3266
      %vm3274 = vmor %vm3272, %vm3273
      %v3275 = vsel %vm3274, %v3266, %v3271
      %v3276 = vrsqrt.pop %v3226
      %v3277 = vmul.f32 %v3276, %v3226
      %v3278 = vmul.f32 %v3277, %v3276
      %v3279 = vmul.f32 0.5, %v3278
      %v3280 = vsub.f32 1.5, %v3279
      %v3281 = vmul.f32 %v3276, %v3280
      %vm3282 = vweird.f32 %v3226
      %vm3283 = vweird.f32 %v3276
      %vm3284 = vmor %vm3282, %vm3283
      %v3285 = vsel %vm3284, %v3276, %v3281
      %v3286 = vrsqrt.pop %v3227
      %v3287 = vmul.f32 %v3286, %v3227
      %v3288 = vmul.f32 %v3287, %v3286
      %v3289 = vmul.f32 0.5, %v3288
      %v3290 = vsub.f32 1.5, %v3289
      %v3291 = vmul.f32 %v3286, %v3290
      %vm3292 = vweird.f32 %v3227
      %vm3293 = vweird.f32 %v3286
      %vm3294 = vmor %vm3292, %vm3293
      %v3295 = vsel %vm3294, %v3286, %v3291
      %v3296 = vrsqrt.pop %v3228
      %v3297 = vmul.f32 %v3296, %v3228
      %v3298 = vmul.f32 %v3297, %v3296
      %v3299 = vmul.f32 0.5, %v3298
      %v3300 = vsub.f32 1.5, %v3299
      %v3301 = vmul.f32 %v3296, %v3300
      %vm3302 = vweird.f32 %v3228
      %vm3303 = vweird.f32 %v3296
      %vm3304 = vmor %vm3302, %vm3303
      %v3305 = vsel %vm3304, %v3296, %v3301
      %v3306 = vrsqrt.pop %v3229
      %v3307 = vmul.f32 %v3306, %v3229
      %v3308 = vmul.f32 %v3307, %v3306
      %v3309 = vmul.f32 0.5, %v3308
      %v3310 = vsub.f32 1.5, %v3309
      %v3311 = vmul.f32 %v3306, %v3310
      %vm3312 = vweird.f32 %v3229
      %vm3313 = vweird.f32 %v3306
      %vm3314 = vmor %vm3312, %vm3313
      %v3315 = vsel %vm3314, %v3306, %v3311
      %v3316 = vrsqrt.pop %v3230
      %v3317 = vmul.f32 %v3316, %v3230
      %v3318 = vmul.f32 %v3317, %v3316
      %v3319 = vmul.f32 0.5, %v3318
      %v3320 = vsub.f32 1.5, %v3319
      %v3321 = vmul.f32 %v3316, %v3320
      %vm3322 = vweird.f32 %v3230
      %vm3323 = vweird.f32 %v3316
      %vm3324 = vmor %vm3322, %vm3323
      %v3325 = vsel %vm3324, %v3316, %v3321
      %v3326 = vrsqrt.pop %v3231
      %v3327 = vmul.f32 %v3326, %v3231
      %v3328 = vmul.f32 %v3327, %v3326
      %v3329 = vmul.f32 0.5, %v3328
      %v3330 = vsub.f32 1.5, %v3329
      %v3331 = vmul.f32 %v3326, %v3330
      %vm3332 = vweird.f32 %v3231
      %vm3333 = vweird.f32 %v3326
      %vm3334 = vmor %vm3332, %vm3333
      %v3335 = vsel %vm3334, %v3326, %v3331
      %v3336 = vrsqrt.pop %v3232
      %v3337 = vmul.f32 %v3336, %v3232
      %v3338 = vmul.f32 %v3337, %v3336
      %v3339 = vmul.f32 0.5, %v3338
      %v3340 = vsub.f32 1.5, %v3339
      %v3341 = vmul.f32 %v3336, %v3340
      %vm3342 = vweird.f32 %v3232
      %vm3343 = vweird.f32 %v3336
      %vm3344 = vmor %vm3342, %vm3343
      %v3345 = vsel %vm3344, %v3336, %v3341
      %v3346 = vrsqrt.pop %v3233
      %v3347 = vmul.f32 %v3346, %v3233
      %v3348 = vmul.f32 %v3347, %v3346
      %v3349 = vmul.f32 0.5, %v3348
      %v3350 = vsub.f32 1.5, %v3349
      %v3351 = vmul.f32 %v3346, %v3350
      %vm3352 = vweird.f32 %v3233
      %vm3353 = vweird.f32 %v3346
      %vm3354 = vmor %vm3352, %vm3353
      %v3355 = vsel %vm3354, %v3346, %v3351
      %v3356 = vrsqrt.pop %v3234
      %v3357 = vmul.f32 %v3356, %v3234
      %v3358 = vmul.f32 %v3357, %v3356
      %v3359 = vmul.f32 0.5, %v3358
      %v3360 = vsub.f32 1.5, %v3359
      %v3361 = vmul.f32 %v3356, %v3360
      %vm3362 = vweird.f32 %v3234
      %vm3363 = vweird.f32 %v3356
      %vm3364 = vmor %vm3362, %vm3363
      %v3365 = vsel %vm3364, %v3356, %v3361
      %v3366 = vrsqrt.pop %v3235
      %v3367 = vmul.f32 %v3366, %v3235
      %v3368 = vmul.f32 %v3367, %v3366
      %v3369 = vmul.f32 0.5, %v3368
      %v3370 = vsub.f32 1.5, %v3369
      %v3371 = vmul.f32 %v3366, %v3370
      %vm3372 = vweird.f32 %v3235
      %vm3373 = vweird.f32 %v3366
      %vm3374 = vmor %vm3372, %vm3373
      %v3375 = vsel %vm3374, %v3366, %v3371
      %v3376 = vrsqrt.pop %v3236
      %v3377 = vmul.f32 %v3376, %v3236
      %v3378 = vmul.f32 %v3377, %v3376
      %v3379 = vmul.f32 0.5, %v3378
      %v3380 = vsub.f32 1.5, %v3379
      %v3381 = vmul.f32 %v3376, %v3380
      %vm3382 = vweird.f32 %v3236
      %vm3383 = vweird.f32 %v3376
      %vm3384 = vmor %vm3382, %vm3383
      %v3385 = vsel %vm3384, %v3376, %v3381
      %v3386 = vrsqrt.pop %v3237
      %v3387 = vmul.f32 %v3386, %v3237
      %v3388 = vmul.f32 %v3387, %v3386
      %v3389 = vmul.f32 0.5, %v3388
      %v3390 = vsub.f32 1.5, %v3389
      %v3391 = vmul.f32 %v3386, %v3390
      %vm3392 = vweird.f32 %v3237
      %vm3393 = vweird.f32 %v3386
      %vm3394 = vmor %vm3392, %vm3393
      %v3395 = vsel %vm3394, %v3386, %v3391
      %v3396 = vrsqrt.pop %v3238
      %v3397 = vmul.f32 %v3396, %v3238
      %v3398 = vmul.f32 %v3397, %v3396
      %v3399 = vmul.f32 0.5, %v3398
      %v3400 = vsub.f32 1.5, %v3399
      %v3401 = vmul.f32 %v3396, %v3400
      %vm3402 = vweird.f32 %v3238
      %vm3403 = vweird.f32 %v3396
      %vm3404 = vmor %vm3402, %vm3403
      %v3405 = vsel %vm3404, %v3396, %v3401
      %v3406 = vrsqrt.pop %v3239
      %v3407 = vmul.f32 %v3406, %v3239
      %v3408 = vmul.f32 %v3407, %v3406
      %v3409 = vmul.f32 0.5, %v3408
      %v3410 = vsub.f32 1.5, %v3409
      %v3411 = vmul.f32 %v3406, %v3410
      %vm3412 = vweird.f32 %v3239
      %vm3413 = vweird.f32 %v3406
      %vm3414 = vmor %vm3412, %vm3413
      %v3415 = vsel %vm3414, %v3406, %v3411
      %v3416 = vrsqrt.pop %v3240
      %v3417 = vmul.f32 %v3416, %v3240
      %v3418 = vmul.f32 %v3417, %v3416
      %v3419 = vmul.f32 0.5, %v3418
      %v3420 = vsub.f32 1.5, %v3419
      %v3421 = vmul.f32 %v3416, %v3420
      %vm3422 = vweird.f32 %v3240
      %vm3423 = vweird.f32 %v3416
      %vm3424 = vmor %vm3422, %vm3423
      %v3425 = vsel %vm3424, %v3416, %v3421
      %v3426 = vrsqrt.pop %v3241
      %v3427 = vmul.f32 %v3426, %v3241
      %v3428 = vmul.f32 %v3427, %v3426
      %v3429 = vmul.f32 0.5, %v3428
      %v3430 = vsub.f32 1.5, %v3429
      %v3431 = vmul.f32 %v3426, %v3430
      %vm3432 = vweird.f32 %v3241
      %vm3433 = vweird.f32 %v3426
      %vm3434 = vmor %vm3432, %vm3433
      %v3435 = vsel %vm3434, %v3426, %v3431
      %v3436 = vrsqrt.pop %v3242
      %v3437 = vmul.f32 %v3436, %v3242
      %v3438 = vmul.f32 %v3437, %v3436
      %v3439 = vmul.f32 0.5, %v3438
      %v3440 = vsub.f32 1.5, %v3439
      %v3441 = vmul.f32 %v3436, %v3440
      %vm3442 = vweird.f32 %v3242
      %vm3443 = vweird.f32 %v3436
      %vm3444 = vmor %vm3442, %vm3443
      %v3445 = vsel %vm3444, %v3436, %v3441
      %v3446 = vrsqrt.pop %v3243
      %v3447 = vmul.f32 %v3446, %v3243
      %v3448 = vmul.f32 %v3447, %v3446
      %v3449 = vmul.f32 0.5, %v3448
      %v3450 = vsub.f32 1.5, %v3449
      %v3451 = vmul.f32 %v3446, %v3450
      %vm3452 = vweird.f32 %v3243
      %vm3453 = vweird.f32 %v3446
      %vm3454 = vmor %vm3452, %vm3453
      %v3455 = vsel %vm3454, %v3446, %v3451
      %v3456 = vrsqrt.pop %v3244
      %v3457 = vmul.f32 %v3456, %v3244
      %v3458 = vmul.f32 %v3457, %v3456
      %v3459 = vmul.f32 0.5, %v3458
      %v3460 = vsub.f32 1.5, %v3459
      %v3461 = vmul.f32 %v3456, %v3460
      %vm3462 = vweird.f32 %v3244
      %vm3463 = vweird.f32 %v3456
      %vm3464 = vmor %vm3462, %vm3463
      %v3465 = vsel %vm3464, %v3456, %v3461
      %v3466 = vrsqrt.pop %v3245
      %v3467 = vmul.f32 %v3466, %v3245
      %v3468 = vmul.f32 %v3467, %v3466
      %v3469 = vmul.f32 0.5, %v3468
      %v3470 = vsub.f32 1.5, %v3469
      %v3471 = vmul.f32 %v3466, %v3470
      %vm3472 = vweird.f32 %v3245
      %vm3473 = vweird.f32 %v3466
      %vm3474 = vmor %vm3472, %vm3473
      %v3475 = vsel %vm3474, %v3466, %v3471
      %v3476 = vrsqrt.pop %v3246
      %v3477 = vmul.f32 %v3476, %v3246
      %v3478 = vmul.f32 %v3477, %v3476
      %v3479 = vmul.f32 0.5, %v3478
      %v3480 = vsub.f32 1.5, %v3479
      %v3481 = vmul.f32 %v3476, %v3480
      %vm3482 = vweird.f32 %v3246
      %vm3483 = vweird.f32 %v3476
      %vm3484 = vmor %vm3482, %vm3483
      %v3485 = vsel %vm3484, %v3476, %v3481
      %v3486 = vrsqrt.pop %v3247
      %v3487 = vmul.f32 %v3486, %v3247
      %v3488 = vmul.f32 %v3487, %v3486
      %v3489 = vmul.f32 0.5, %v3488
      %v3490 = vsub.f32 1.5, %v3489
      %v3491 = vmul.f32 %v3486, %v3490
      %vm3492 = vweird.f32 %v3247
      %vm3493 = vweird.f32 %v3486
      %vm3494 = vmor %vm3492, %vm3493
      %v3495 = vsel %vm3494, %v3486, %v3491
      %v3496 = vrsqrt.pop %v3248
      %v3497 = vmul.f32 %v3496, %v3248
      %v3498 = vmul.f32 %v3497, %v3496
      %v3499 = vmul.f32 0.5, %v3498
      %v3500 = vsub.f32 1.5, %v3499
      %v3501 = vmul.f32 %v3496, %v3500
      %vm3502 = vweird.f32 %v3248
      %vm3503 = vweird.f32 %v3496
      %vm3504 = vmor %vm3502, %vm3503
      %v3505 = vsel %vm3504, %v3496, %v3501
      %v3506 = vrsqrt.pop %v3249
      %v3507 = vmul.f32 %v3506, %v3249
      %v3508 = vmul.f32 %v3507, %v3506
      %v3509 = vmul.f32 0.5, %v3508
      %v3510 = vsub.f32 1.5, %v3509
      %v3511 = vmul.f32 %v3506, %v3510
      %vm3512 = vweird.f32 %v3249
      %vm3513 = vweird.f32 %v3506
      %vm3514 = vmor %vm3512, %vm3513
      %v3515 = vsel %vm3514, %v3506, %v3511
      %v3516 = vrsqrt.pop %v3250
      %v3517 = vmul.f32 %v3516, %v3250
      %v3518 = vmul.f32 %v3517, %v3516
      %v3519 = vmul.f32 0.5, %v3518
      %v3520 = vsub.f32 1.5, %v3519
      %v3521 = vmul.f32 %v3516, %v3520
      %vm3522 = vweird.f32 %v3250
      %vm3523 = vweird.f32 %v3516
      %vm3524 = vmor %vm3522, %vm3523
      %v3525 = vsel %vm3524, %v3516, %v3521
      %v3526 = vrsqrt.pop %v3251
      %v3527 = vmul.f32 %v3526, %v3251
      %v3528 = vmul.f32 %v3527, %v3526
      %v3529 = vmul.f32 0.5, %v3528
      %v3530 = vsub.f32 1.5, %v3529
      %v3531 = vmul.f32 %v3526, %v3530
      %vm3532 = vweird.f32 %v3251
      %vm3533 = vweird.f32 %v3526
      %vm3534 = vmor %vm3532, %vm3533
      %v3535 = vsel %vm3534, %v3526, %v3531
      %v3536 = vrsqrt.pop %v3252
      %v3537 = vmul.f32 %v3536, %v3252
      %v3538 = vmul.f32 %v3537, %v3536
      %v3539 = vmul.f32 0.5, %v3538
      %v3540 = vsub.f32 1.5, %v3539
      %v3541 = vmul.f32 %v3536, %v3540
      %vm3542 = vweird.f32 %v3252
      %vm3543 = vweird.f32 %v3536
      %vm3544 = vmor %vm3542, %vm3543
      %v3545 = vsel %vm3544, %v3536, %v3541
      %v3546 = vrsqrt.pop %v3253
      %v3547 = vmul.f32 %v3546, %v3253
      %v3548 = vmul.f32 %v3547, %v3546
      %v3549 = vmul.f32 0.5, %v3548
      %v3550 = vsub.f32 1.5, %v3549
      %v3551 = vmul.f32 %v3546, %v3550
      %vm3552 = vweird.f32 %v3253
      %vm3553 = vweird.f32 %v3546
      %vm3554 = vmor %vm3552, %vm3553
      %v3555 = vsel %vm3554, %v3546, %v3551
      %v3556 = vrsqrt.pop %v3254
      %v3557 = vmul.f32 %v3556, %v3254
      %v3558 = vmul.f32 %v3557, %v3556
      %v3559 = vmul.f32 0.5, %v3558
      %v3560 = vsub.f32 1.5, %v3559
      %v3561 = vmul.f32 %v3556, %v3560
      %vm3562 = vweird.f32 %v3254
      %vm3563 = vweird.f32 %v3556
      %vm3564 = vmor %vm3562, %vm3563
      %v3565 = vsel %vm3564, %v3556, %v3561
      %v3566 = vrsqrt.pop %v3255
      %v3567 = vmul.f32 %v3566, %v3255
      %v3568 = vmul.f32 %v3567, %v3566
      %v3569 = vmul.f32 0.5, %v3568
      %v3570 = vsub.f32 1.5, %v3569
      %v3571 = vmul.f32 %v3566, %v3570
      %vm3572 = vweird.f32 %v3255
      %vm3573 = vweird.f32 %v3566
      %vm3574 = vmor %vm3572, %vm3573
      %v3575 = vsel %vm3574, %v3566, %v3571
      %v3576 = vmul.f32 %v3032, %v3265
      %v3577 = vmul.f32 %v3033, %v3275
      %v3578 = vmul.f32 %v3034, %v3285
      %v3579 = vmul.f32 %v3035, %v3295
      %v3580 = vmul.f32 %v3036, %v3305
      %v3581 = vmul.f32 %v3037, %v3315
      %v3582 = vmul.f32 %v3038, %v3325
      %v3583 = vmul.f32 %v3039, %v3335
      %v3584 = vmul.f32 %v3040, %v3345
      %v3585 = vmul.f32 %v3041, %v3355
      %v3586 = vmul.f32 %v3042, %v3365
      %v3587 = vmul.f32 %v3043, %v3375
      %v3588 = vmul.f32 %v3044, %v3385
      %v3589 = vmul.f32 %v3045, %v3395
      %v3590 = vmul.f32 %v3046, %v3405
      %v3591 = vmul.f32 %v3047, %v3415
      %v3592 = vmul.f32 %v3048, %v3425
      %v3593 = vmul.f32 %v3049, %v3435
      %v3594 = vmul.f32 %v3050, %v3445
      %v3595 = vmul.f32 %v3051, %v3455
      %v3596 = vmul.f32 %v3052, %v3465
      %v3597 = vmul.f32 %v3053, %v3475
      %v3598 = vmul.f32 %v3054, %v3485
      %v3599 = vmul.f32 %v3055, %v3495
      %v3600 = vmul.f32 %v3056, %v3505
      %v3601 = vmul.f32 %v3057, %v3515
      %v3602 = vmul.f32 %v3058, %v3525
      %v3603 = vmul.f32 %v3059, %v3535
      %v3604 = vmul.f32 %v3060, %v3545
      %v3605 = vmul.f32 %v3061, %v3555
      %v3606 = vmul.f32 %v3062, %v3565
      %v3607 = vmul.f32 %v3063, %v3575
      %v3608 = vld [vmem:[%s2 + $0x1] sm:$0x1]
      %v3609 = vperm.slane %v3608, 0
      %v3610 = vmul.f32 %v3576, %v3609
      %v3611 = vmul.f32 %v3577, %v3609
      %v3612 = vmul.f32 %v3578, %v3609
      %v3613 = vmul.f32 %v3579, %v3609
      %v3614 = vmul.f32 %v3580, %v3609
      %v3615 = vmul.f32 %v3581, %v3609
      %v3616 = vmul.f32 %v3582, %v3609
      %v3617 = vmul.f32 %v3583, %v3609
      %v3618 = vmul.f32 %v3584, %v3609
      %v3619 = vmul.f32 %v3585, %v3609
      %v3620 = vmul.f32 %v3586, %v3609
      %v3621 = vmul.f32 %v3587, %v3609
      %v3622 = vmul.f32 %v3588, %v3609
      %v3623 = vmul.f32 %v3589, %v3609
      %v3624 = vmul.f32 %v3590, %v3609
      %v3625 = vmul.f32 %v3591, %v3609
      %v3626 = vmul.f32 %v3592, %v3609
      %v3627 = vmul.f32 %v3593, %v3609
      %v3628 = vmul.f32 %v3594, %v3609
      %v3629 = vmul.f32 %v3595, %v3609
      %v3630 = vmul.f32 %v3596, %v3609
      %v3631 = vmul.f32 %v3597, %v3609
      %v3632 = vmul.f32 %v3598, %v3609
      %v3633 = vmul.f32 %v3599, %v3609
      %v3634 = vmul.f32 %v3600, %v3609
      %v3635 = vmul.f32 %v3601, %v3609
      %v3636 = vmul.f32 %v3602, %v3609
      %v3637 = vmul.f32 %v3603, %v3609
      %v3638 = vmul.f32 %v3604, %v3609
      %v3639 = vmul.f32 %v3605, %v3609
      %v3640 = vmul.f32 %v3606, %v3609
      %v3641 = vmul.f32 %v3607, %v3609
      %v3642 = vld [vmem:[%s3 + $0x1] sm:$0x1]
      %v3643 = vperm.slane %v3642, 0
      %v3644 = vadd.f32 %v3610, %v3643
      %v3645 = vadd.f32 %v3611, %v3643
      %v3646 = vadd.f32 %v3612, %v3643
      %v3647 = vadd.f32 %v3613, %v3643
      %v3648 = vadd.f32 %v3614, %v3643
      %v3649 = vadd.f32 %v3615, %v3643
      %v3650 = vadd.f32 %v3616, %v3643
      %v3651 = vadd.f32 %v3617, %v3643
      %v3652 = vadd.f32 %v3618, %v3643
      %v3653 = vadd.f32 %v3619, %v3643
      %v3654 = vadd.f32 %v3620, %v3643
      %v3655 = vadd.f32 %v3621, %v3643
      %v3656 = vadd.f32 %v3622, %v3643
      %v3657 = vadd.f32 %v3623, %v3643
      %v3658 = vadd.f32 %v3624, %v3643
      %v3659 = vadd.f32 %v3625, %v3643
      %v3660 = vadd.f32 %v3626, %v3643
      %v3661 = vadd.f32 %v3627, %v3643
      %v3662 = vadd.f32 %v3628, %v3643
      %v3663 = vadd.f32 %v3629, %v3643
      %v3664 = vadd.f32 %v3630, %v3643
      %v3665 = vadd.f32 %v3631, %v3643
      %v3666 = vadd.f32 %v3632, %v3643
      %v3667 = vadd.f32 %v3633, %v3643
      %v3668 = vadd.f32 %v3634, %v3643
      %v3669 = vadd.f32 %v3635, %v3643
      %v3670 = vadd.f32 %v3636, %v3643
      %v3671 = vadd.f32 %v3637, %v3643
      %v3672 = vadd.f32 %v3638, %v3643
      %v3673 = vadd.f32 %v3639, %v3643
      %v3674 = vadd.f32 %v3640, %v3643
      %v3675 = vadd.f32 %v3641, %v3643
      %3676 = vst.msk [vmem:[%s1282 + $0x3] sm:$0xff] %vm405, %v3644
      %3677 = vst.msk [vmem:[%s1282 + $0xb] sm:$0xff] %vm405, %v3645
      %3678 = vst.msk [vmem:[%s1282 + $0x1b] sm:$0xff] %vm405, %v3646
      %3679 = vst.msk [vmem:[%s1282 + $0x23] sm:$0xff] %vm405, %v3647
      %3680 = vst.msk [vmem:[%s1282 + $0x33] sm:$0xff] %vm405, %v3648
      %3681 = vst.msk [vmem:[%s1282 + $0x3b] sm:$0xff] %vm405, %v3649
      %3682 = vst.msk [vmem:[%s1282 + $0x4b] sm:$0xff] %vm405, %v3650
      %3683 = vst.msk [vmem:[%s1282 + $0x53] sm:$0xff] %vm405, %v3651
      %3684 = vst.msk [vmem:[%s1282 + $0x63] sm:$0xff] %vm405, %v3652
      %3685 = vst.msk [vmem:[%s1282 + $0x6b] sm:$0xff] %vm405, %v3653
      %3686 = vst.msk [vmem:[%s1282 + $0x7b] sm:$0xff] %vm405, %v3654
      %3687 = vst.msk [vmem:[%s1282 + $0x83] sm:$0xff] %vm405, %v3655
      %3688 = vst.msk [vmem:[%s1282 + $0x93] sm:$0xff] %vm405, %v3656
      %3689 = vst.msk [vmem:[%s1282 + $0x9b] sm:$0xff] %vm405, %v3657
      %3690 = vst.msk [vmem:[%s1282 + $0xab] sm:$0xff] %vm405, %v3658
      %3691 = vst.msk [vmem:[%s1282 + $0xb3] sm:$0xff] %vm405, %v3659
      %3692 = vst.msk [vmem:[%s1282 + $0xc3] sm:$0xff] %vm405, %v3660
      %3693 = vst.msk [vmem:[%s1282 + $0xcb] sm:$0xff] %vm405, %v3661
      %3694 = vst.msk [vmem:[%s1282 + $0xdb] sm:$0xff] %vm405, %v3662
      %3695 = vst.msk [vmem:[%s1282 + $0xe3] sm:$0xff] %vm405, %v3663
      %3696 = vst.msk [vmem:[%s1282 + $0xf3] sm:$0xff] %vm405, %v3664
      %3697 = vst.msk [vmem:[%s1282 + $0xfb] sm:$0xff] %vm405, %v3665
      %3698 = vst.msk [vmem:[%s1282 + $0x10b] sm:$0xff] %vm405, %v3666
      %3699 = vst.msk [vmem:[%s1282 + $0x113] sm:$0xff] %vm405, %v3667
      %3700 = vst.msk [vmem:[%s1282 + $0x123] sm:$0xff] %vm405, %v3668
      %3701 = vst.msk [vmem:[%s1282 + $0x12b] sm:$0xff] %vm405, %v3669
      %3702 = vst.msk [vmem:[%s1282 + $0x13b] sm:$0xff] %vm405, %v3670
      %3703 = vst.msk [vmem:[%s1282 + $0x143] sm:$0xff] %vm405, %v3671
      %3704 = vst.msk [vmem:[%s1282 + $0x153] sm:$0xff] %vm405, %v3672
      %3705 = vst.msk [vmem:[%s1282 + $0x15b] sm:$0xff] %vm405, %v3673
      %3706 = vst.msk [vmem:[%s1282 + $0x16b] sm:$0xff] %vm405, %v3674
      %3707 = vst.msk [vmem:[%s1282 + $0x173] sm:$0xff] %vm405, %v3675
      %v3708 = vld [vmem:[%s1282] sm:$0xff]
      %v3709 = vld [vmem:[%s1282 + $0x8] sm:$0xff]
      %v3710 = vld [vmem:[%s1282 + $0x18] sm:$0xff]
      %v3711 = vld [vmem:[%s1282 + $0x20] sm:$0xff]
      %v3712 = vld [vmem:[%s1282 + $0x30] sm:$0xff]
      %v3713 = vld [vmem:[%s1282 + $0x38] sm:$0xff]
      %v3714 = vld [vmem:[%s1282 + $0x48] sm:$0xff]
      %v3715 = vld [vmem:[%s1282 + $0x50] sm:$0xff]
      %v3716 = vld [vmem:[%s1282 + $0x60] sm:$0xff]
      %v3717 = vld [vmem:[%s1282 + $0x68] sm:$0xff]
      %v3718 = vld [vmem:[%s1282 + $0x78] sm:$0xff]
      %v3719 = vld [vmem:[%s1282 + $0x80] sm:$0xff]
      %v3720 = vld [vmem:[%s1282 + $0x90] sm:$0xff]
      %v3721 = vld [vmem:[%s1282 + $0x98] sm:$0xff]
      %v3722 = vld [vmem:[%s1282 + $0xa8] sm:$0xff]
      %v3723 = vld [vmem:[%s1282 + $0xb0] sm:$0xff]
      %v3724 = vld [vmem:[%s1282 + $0xc0] sm:$0xff]
      %v3725 = vld [vmem:[%s1282 + $0xc8] sm:$0xff]
      %v3726 = vld [vmem:[%s1282 + $0xd8] sm:$0xff]
      %v3727 = vld [vmem:[%s1282 + $0xe0] sm:$0xff]
      %v3728 = vld [vmem:[%s1282 + $0xf0] sm:$0xff]
      %v3729 = vld [vmem:[%s1282 + $0xf8] sm:$0xff]
      %v3730 = vld [vmem:[%s1282 + $0x108] sm:$0xff]
      %v3731 = vld [vmem:[%s1282 + $0x110] sm:$0xff]
      %v3732 = vld [vmem:[%s1282 + $0x120] sm:$0xff]
      %v3733 = vld [vmem:[%s1282 + $0x128] sm:$0xff]
      %v3734 = vld [vmem:[%s1282 + $0x138] sm:$0xff]
      %v3735 = vld [vmem:[%s1282 + $0x140] sm:$0xff]
      %v3736 = vld [vmem:[%s1282 + $0x150] sm:$0xff]
      %v3737 = vld [vmem:[%s1282 + $0x158] sm:$0xff]
      %v3738 = vld [vmem:[%s1282 + $0x168] sm:$0xff]
      %v3739 = vld [vmem:[%s1282 + $0x170] sm:$0xff]
      %s3740 = scalar_lea.vmem %s4, 8
      %v3741 = vld [vmem:[%s3740] sm:$0x1]
      %v3742 = vperm.slane %v3741, 0
      %v3743 = vmul.f32 %v3708, %v3742
      %v3744 = vmul.f32 %v3709, %v3742
      %v3745 = vmul.f32 %v3710, %v3742
      %v3746 = vmul.f32 %v3711, %v3742
      %v3747 = vmul.f32 %v3712, %v3742
      %v3748 = vmul.f32 %v3713, %v3742
      %v3749 = vmul.f32 %v3714, %v3742
      %v3750 = vmul.f32 %v3715, %v3742
      %v3751 = vmul.f32 %v3716, %v3742
      %v3752 = vmul.f32 %v3717, %v3742
      %v3753 = vmul.f32 %v3718, %v3742
      %v3754 = vmul.f32 %v3719, %v3742
      %v3755 = vmul.f32 %v3720, %v3742
      %v3756 = vmul.f32 %v3721, %v3742
      %v3757 = vmul.f32 %v3722, %v3742
      %v3758 = vmul.f32 %v3723, %v3742
      %v3759 = vmul.f32 %v3724, %v3742
      %v3760 = vmul.f32 %v3725, %v3742
      %v3761 = vmul.f32 %v3726, %v3742
      %v3762 = vmul.f32 %v3727, %v3742
      %v3763 = vmul.f32 %v3728, %v3742
      %v3764 = vmul.f32 %v3729, %v3742
      %v3765 = vmul.f32 %v3730, %v3742
      %v3766 = vmul.f32 %v3731, %v3742
      %v3767 = vmul.f32 %v3732, %v3742
      %v3768 = vmul.f32 %v3733, %v3742
      %v3769 = vmul.f32 %v3734, %v3742
      %v3770 = vmul.f32 %v3735, %v3742
      %v3771 = vmul.f32 %v3736, %v3742
      %v3772 = vmul.f32 %v3737, %v3742
      %v3773 = vmul.f32 %v3738, %v3742
      %v3774 = vmul.f32 %v3739, %v3742
      %v3775 = vld [vmem:[%s1282 + $0x1] sm:$0xff]
      %v3776 = vld [vmem:[%s1282 + $0x9] sm:$0xff]
      %v3777 = vld [vmem:[%s1282 + $0x19] sm:$0xff]
      %v3778 = vld [vmem:[%s1282 + $0x21] sm:$0xff]
      %v3779 = vld [vmem:[%s1282 + $0x31] sm:$0xff]
      %v3780 = vld [vmem:[%s1282 + $0x39] sm:$0xff]
      %v3781 = vld [vmem:[%s1282 + $0x49] sm:$0xff]
      %v3782 = vld [vmem:[%s1282 + $0x51] sm:$0xff]
      %v3783 = vld [vmem:[%s1282 + $0x61] sm:$0xff]
      %v3784 = vld [vmem:[%s1282 + $0x69] sm:$0xff]
      %v3785 = vld [vmem:[%s1282 + $0x79] sm:$0xff]
      %v3786 = vld [vmem:[%s1282 + $0x81] sm:$0xff]
      %v3787 = vld [vmem:[%s1282 + $0x91] sm:$0xff]
      %v3788 = vld [vmem:[%s1282 + $0x99] sm:$0xff]
      %v3789 = vld [vmem:[%s1282 + $0xa9] sm:$0xff]
      %v3790 = vld [vmem:[%s1282 + $0xb1] sm:$0xff]
      %v3791 = vld [vmem:[%s1282 + $0xc1] sm:$0xff]
      %v3792 = vld [vmem:[%s1282 + $0xc9] sm:$0xff]
      %v3793 = vld [vmem:[%s1282 + $0xd9] sm:$0xff]
      %v3794 = vld [vmem:[%s1282 + $0xe1] sm:$0xff]
      %v3795 = vld [vmem:[%s1282 + $0xf1] sm:$0xff]
      %v3796 = vld [vmem:[%s1282 + $0xf9] sm:$0xff]
      %v3797 = vld [vmem:[%s1282 + $0x109] sm:$0xff]
      %v3798 = vld [vmem:[%s1282 + $0x111] sm:$0xff]
      %v3799 = vld [vmem:[%s1282 + $0x121] sm:$0xff]
      %v3800 = vld [vmem:[%s1282 + $0x129] sm:$0xff]
      %v3801 = vld [vmem:[%s1282 + $0x139] sm:$0xff]
      %v3802 = vld [vmem:[%s1282 + $0x141] sm:$0xff]
      %v3803 = vld [vmem:[%s1282 + $0x151] sm:$0xff]
      %v3804 = vld [vmem:[%s1282 + $0x159] sm:$0xff]
      %v3805 = vld [vmem:[%s1282 + $0x169] sm:$0xff]
      %v3806 = vld [vmem:[%s1282 + $0x171] sm:$0xff]
      %v3807 = vld [vmem:[%s3740 + $0x1] sm:$0x1]
      %v3808 = vperm.slane %v3807, 0
      %v3809 = vmul.f32 %v3775, %v3808
      %v3810 = vmul.f32 %v3776, %v3808
      %v3811 = vmul.f32 %v3777, %v3808
      %v3812 = vmul.f32 %v3778, %v3808
      %v3813 = vmul.f32 %v3779, %v3808
      %v3814 = vmul.f32 %v3780, %v3808
      %v3815 = vmul.f32 %v3781, %v3808
      %v3816 = vmul.f32 %v3782, %v3808
      %v3817 = vmul.f32 %v3783, %v3808
      %v3818 = vmul.f32 %v3784, %v3808
      %v3819 = vmul.f32 %v3785, %v3808
      %v3820 = vmul.f32 %v3786, %v3808
      %v3821 = vmul.f32 %v3787, %v3808
      %v3822 = vmul.f32 %v3788, %v3808
      %v3823 = vmul.f32 %v3789, %v3808
      %v3824 = vmul.f32 %v3790, %v3808
      %v3825 = vmul.f32 %v3791, %v3808
      %v3826 = vmul.f32 %v3792, %v3808
      %v3827 = vmul.f32 %v3793, %v3808
      %v3828 = vmul.f32 %v3794, %v3808
      %v3829 = vmul.f32 %v3795, %v3808
      %v3830 = vmul.f32 %v3796, %v3808
      %v3831 = vmul.f32 %v3797, %v3808
      %v3832 = vmul.f32 %v3798, %v3808
      %v3833 = vmul.f32 %v3799, %v3808
      %v3834 = vmul.f32 %v3800, %v3808
      %v3835 = vmul.f32 %v3801, %v3808
      %v3836 = vmul.f32 %v3802, %v3808
      %v3837 = vmul.f32 %v3803, %v3808
      %v3838 = vmul.f32 %v3804, %v3808
      %v3839 = vmul.f32 %v3805, %v3808
      %v3840 = vmul.f32 %v3806, %v3808
      %v3841 = vadd.f32 %v3743, %v3809
      %v3842 = vadd.f32 %v3744, %v3810
      %v3843 = vadd.f32 %v3745, %v3811
      %v3844 = vadd.f32 %v3746, %v3812
      %v3845 = vadd.f32 %v3747, %v3813
      %v3846 = vadd.f32 %v3748, %v3814
      %v3847 = vadd.f32 %v3749, %v3815
      %v3848 = vadd.f32 %v3750, %v3816
      %v3849 = vadd.f32 %v3751, %v3817
      %v3850 = vadd.f32 %v3752, %v3818
      %v3851 = vadd.f32 %v3753, %v3819
      %v3852 = vadd.f32 %v3754, %v3820
      %v3853 = vadd.f32 %v3755, %v3821
      %v3854 = vadd.f32 %v3756, %v3822
      %v3855 = vadd.f32 %v3757, %v3823
      %v3856 = vadd.f32 %v3758, %v3824
      %v3857 = vadd.f32 %v3759, %v3825
      %v3858 = vadd.f32 %v3760, %v3826
      %v3859 = vadd.f32 %v3761, %v3827
      %v3860 = vadd.f32 %v3762, %v3828
      %v3861 = vadd.f32 %v3763, %v3829
      %v3862 = vadd.f32 %v3764, %v3830
      %v3863 = vadd.f32 %v3765, %v3831
      %v3864 = vadd.f32 %v3766, %v3832
      %v3865 = vadd.f32 %v3767, %v3833
      %v3866 = vadd.f32 %v3768, %v3834
      %v3867 = vadd.f32 %v3769, %v3835
      %v3868 = vadd.f32 %v3770, %v3836
      %v3869 = vadd.f32 %v3771, %v3837
      %v3870 = vadd.f32 %v3772, %v3838
      %v3871 = vadd.f32 %v3773, %v3839
      %v3872 = vadd.f32 %v3774, %v3840
      %v3873 = vld [vmem:[%s1282 + $0x2] sm:$0xff]
      %v3874 = vld [vmem:[%s1282 + $0xa] sm:$0xff]
      %v3875 = vld [vmem:[%s1282 + $0x1a] sm:$0xff]
      %v3876 = vld [vmem:[%s1282 + $0x22] sm:$0xff]
      %v3877 = vld [vmem:[%s1282 + $0x32] sm:$0xff]
      %v3878 = vld [vmem:[%s1282 + $0x3a] sm:$0xff]
      %v3879 = vld [vmem:[%s1282 + $0x4a] sm:$0xff]
      %v3880 = vld [vmem:[%s1282 + $0x52] sm:$0xff]
      %v3881 = vld [vmem:[%s1282 + $0x62] sm:$0xff]
      %v3882 = vld [vmem:[%s1282 + $0x6a] sm:$0xff]
      %v3883 = vld [vmem:[%s1282 + $0x7a] sm:$0xff]
      %v3884 = vld [vmem:[%s1282 + $0x82] sm:$0xff]
      %v3885 = vld [vmem:[%s1282 + $0x92] sm:$0xff]
      %v3886 = vld [vmem:[%s1282 + $0x9a] sm:$0xff]
      %v3887 = vld [vmem:[%s1282 + $0xaa] sm:$0xff]
      %v3888 = vld [vmem:[%s1282 + $0xb2] sm:$0xff]
      %v3889 = vld [vmem:[%s1282 + $0xc2] sm:$0xff]
      %v3890 = vld [vmem:[%s1282 + $0xca] sm:$0xff]
      %v3891 = vld [vmem:[%s1282 + $0xda] sm:$0xff]
      %v3892 = vld [vmem:[%s1282 + $0xe2] sm:$0xff]
      %v3893 = vld [vmem:[%s1282 + $0xf2] sm:$0xff]
      %v3894 = vld [vmem:[%s1282 + $0xfa] sm:$0xff]
      %v3895 = vld [vmem:[%s1282 + $0x10a] sm:$0xff]
      %v3896 = vld [vmem:[%s1282 + $0x112] sm:$0xff]
      %v3897 = vld [vmem:[%s1282 + $0x122] sm:$0xff]
      %v3898 = vld [vmem:[%s1282 + $0x12a] sm:$0xff]
      %v3899 = vld [vmem:[%s1282 + $0x13a] sm:$0xff]
      %v3900 = vld [vmem:[%s1282 + $0x142] sm:$0xff]
      %v3901 = vld [vmem:[%s1282 + $0x152] sm:$0xff]
      %v3902 = vld [vmem:[%s1282 + $0x15a] sm:$0xff]
      %v3903 = vld [vmem:[%s1282 + $0x16a] sm:$0xff]
      %v3904 = vld [vmem:[%s1282 + $0x172] sm:$0xff]
      %v3905 = vld [vmem:[%s3740 + $0x2] sm:$0x1]
      %v3906 = vperm.slane %v3905, 0
      %v3907 = vmul.f32 %v3873, %v3906
      %v3908 = vmul.f32 %v3874, %v3906
      %v3909 = vmul.f32 %v3875, %v3906
      %v3910 = vmul.f32 %v3876, %v3906
      %v3911 = vmul.f32 %v3877, %v3906
      %v3912 = vmul.f32 %v3878, %v3906
      %v3913 = vmul.f32 %v3879, %v3906
      %v3914 = vmul.f32 %v3880, %v3906
      %v3915 = vmul.f32 %v3881, %v3906
      %v3916 = vmul.f32 %v3882, %v3906
      %v3917 = vmul.f32 %v3883, %v3906
      %v3918 = vmul.f32 %v3884, %v3906
      %v3919 = vmul.f32 %v3885, %v3906
      %v3920 = vmul.f32 %v3886, %v3906
      %v3921 = vmul.f32 %v3887, %v3906
      %v3922 = vmul.f32 %v3888, %v3906
      %v3923 = vmul.f32 %v3889, %v3906
      %v3924 = vmul.f32 %v3890, %v3906
      %v3925 = vmul.f32 %v3891, %v3906
      %v3926 = vmul.f32 %v3892, %v3906
      %v3927 = vmul.f32 %v3893, %v3906
      %v3928 = vmul.f32 %v3894, %v3906
      %v3929 = vmul.f32 %v3895, %v3906
      %v3930 = vmul.f32 %v3896, %v3906
      %v3931 = vmul.f32 %v3897, %v3906
      %v3932 = vmul.f32 %v3898, %v3906
      %v3933 = vmul.f32 %v3899, %v3906
      %v3934 = vmul.f32 %v3900, %v3906
      %v3935 = vmul.f32 %v3901, %v3906
      %v3936 = vmul.f32 %v3902, %v3906
      %v3937 = vmul.f32 %v3903, %v3906
      %v3938 = vmul.f32 %v3904, %v3906
      %v3939 = vadd.f32 %v3841, %v3907
      %v3940 = vadd.f32 %v3842, %v3908
      %v3941 = vadd.f32 %v3843, %v3909
      %v3942 = vadd.f32 %v3844, %v3910
      %v3943 = vadd.f32 %v3845, %v3911
      %v3944 = vadd.f32 %v3846, %v3912
      %v3945 = vadd.f32 %v3847, %v3913
      %v3946 = vadd.f32 %v3848, %v3914
      %v3947 = vadd.f32 %v3849, %v3915
      %v3948 = vadd.f32 %v3850, %v3916
      %v3949 = vadd.f32 %v3851, %v3917
      %v3950 = vadd.f32 %v3852, %v3918
      %v3951 = vadd.f32 %v3853, %v3919
      %v3952 = vadd.f32 %v3854, %v3920
      %v3953 = vadd.f32 %v3855, %v3921
      %v3954 = vadd.f32 %v3856, %v3922
      %v3955 = vadd.f32 %v3857, %v3923
      %v3956 = vadd.f32 %v3858, %v3924
      %v3957 = vadd.f32 %v3859, %v3925
      %v3958 = vadd.f32 %v3860, %v3926
      %v3959 = vadd.f32 %v3861, %v3927
      %v3960 = vadd.f32 %v3862, %v3928
      %v3961 = vadd.f32 %v3863, %v3929
      %v3962 = vadd.f32 %v3864, %v3930
      %v3963 = vadd.f32 %v3865, %v3931
      %v3964 = vadd.f32 %v3866, %v3932
      %v3965 = vadd.f32 %v3867, %v3933
      %v3966 = vadd.f32 %v3868, %v3934
      %v3967 = vadd.f32 %v3869, %v3935
      %v3968 = vadd.f32 %v3870, %v3936
      %v3969 = vadd.f32 %v3871, %v3937
      %v3970 = vadd.f32 %v3872, %v3938
      %v3971 = vld [vmem:[%s1282 + $0x3] sm:$0xff]
      %v3972 = vld [vmem:[%s1282 + $0xb] sm:$0xff]
      %v3973 = vld [vmem:[%s1282 + $0x1b] sm:$0xff]
      %v3974 = vld [vmem:[%s1282 + $0x23] sm:$0xff]
      %v3975 = vld [vmem:[%s1282 + $0x33] sm:$0xff]
      %v3976 = vld [vmem:[%s1282 + $0x3b] sm:$0xff]
      %v3977 = vld [vmem:[%s1282 + $0x4b] sm:$0xff]
      %v3978 = vld [vmem:[%s1282 + $0x53] sm:$0xff]
      %v3979 = vld [vmem:[%s1282 + $0x63] sm:$0xff]
      %v3980 = vld [vmem:[%s1282 + $0x6b] sm:$0xff]
      %v3981 = vld [vmem:[%s1282 + $0x7b] sm:$0xff]
      %v3982 = vld [vmem:[%s1282 + $0x83] sm:$0xff]
      %v3983 = vld [vmem:[%s1282 + $0x93] sm:$0xff]
      %v3984 = vld [vmem:[%s1282 + $0x9b] sm:$0xff]
      %v3985 = vld [vmem:[%s1282 + $0xab] sm:$0xff]
      %v3986 = vld [vmem:[%s1282 + $0xb3] sm:$0xff]
      %v3987 = vld [vmem:[%s1282 + $0xc3] sm:$0xff]
      %v3988 = vld [vmem:[%s1282 + $0xcb] sm:$0xff]
      %v3989 = vld [vmem:[%s1282 + $0xdb] sm:$0xff]
      %v3990 = vld [vmem:[%s1282 + $0xe3] sm:$0xff]
      %v3991 = vld [vmem:[%s1282 + $0xf3] sm:$0xff]
      %v3992 = vld [vmem:[%s1282 + $0xfb] sm:$0xff]
      %v3993 = vld [vmem:[%s1282 + $0x10b] sm:$0xff]
      %v3994 = vld [vmem:[%s1282 + $0x113] sm:$0xff]
      %v3995 = vld [vmem:[%s1282 + $0x123] sm:$0xff]
      %v3996 = vld [vmem:[%s1282 + $0x12b] sm:$0xff]
      %v3997 = vld [vmem:[%s1282 + $0x13b] sm:$0xff]
      %v3998 = vld [vmem:[%s1282 + $0x143] sm:$0xff]
      %v3999 = vld [vmem:[%s1282 + $0x153] sm:$0xff]
      %v4000 = vld [vmem:[%s1282 + $0x15b] sm:$0xff]
      %v4001 = vld [vmem:[%s1282 + $0x16b] sm:$0xff]
      %v4002 = vld [vmem:[%s1282 + $0x173] sm:$0xff]
      %v4003 = vld [vmem:[%s3740 + $0x3] sm:$0x1]
      %v4004 = vperm.slane %v4003, 0
      %v4005 = vmul.f32 %v3971, %v4004
      %v4006 = vmul.f32 %v3972, %v4004
      %v4007 = vmul.f32 %v3973, %v4004
      %v4008 = vmul.f32 %v3974, %v4004
      %v4009 = vmul.f32 %v3975, %v4004
      %v4010 = vmul.f32 %v3976, %v4004
      %v4011 = vmul.f32 %v3977, %v4004
      %v4012 = vmul.f32 %v3978, %v4004
      %v4013 = vmul.f32 %v3979, %v4004
      %v4014 = vmul.f32 %v3980, %v4004
      %v4015 = vmul.f32 %v3981, %v4004
      %v4016 = vmul.f32 %v3982, %v4004
      %v4017 = vmul.f32 %v3983, %v4004
      %v4018 = vmul.f32 %v3984, %v4004
      %v4019 = vmul.f32 %v3985, %v4004
      %v4020 = vmul.f32 %v3986, %v4004
      %v4021 = vmul.f32 %v3987, %v4004
      %v4022 = vmul.f32 %v3988, %v4004
      %v4023 = vmul.f32 %v3989, %v4004
      %v4024 = vmul.f32 %v3990, %v4004
      %v4025 = vmul.f32 %v3991, %v4004
      %v4026 = vmul.f32 %v3992, %v4004
      %v4027 = vmul.f32 %v3993, %v4004
      %v4028 = vmul.f32 %v3994, %v4004
      %v4029 = vmul.f32 %v3995, %v4004
      %v4030 = vmul.f32 %v3996, %v4004
      %v4031 = vmul.f32 %v3997, %v4004
      %v4032 = vmul.f32 %v3998, %v4004
      %v4033 = vmul.f32 %v3999, %v4004
      %v4034 = vmul.f32 %v4000, %v4004
      %v4035 = vmul.f32 %v4001, %v4004
      %v4036 = vmul.f32 %v4002, %v4004
      %v4037 = vadd.f32 %v3939, %v4005
      %v4038 = vadd.f32 %v3940, %v4006
      %v4039 = vadd.f32 %v3941, %v4007
      %v4040 = vadd.f32 %v3942, %v4008
      %v4041 = vadd.f32 %v3943, %v4009
      %v4042 = vadd.f32 %v3944, %v4010
      %v4043 = vadd.f32 %v3945, %v4011
      %v4044 = vadd.f32 %v3946, %v4012
      %v4045 = vadd.f32 %v3947, %v4013
      %v4046 = vadd.f32 %v3948, %v4014
      %v4047 = vadd.f32 %v3949, %v4015
      %v4048 = vadd.f32 %v3950, %v4016
      %v4049 = vadd.f32 %v3951, %v4017
      %v4050 = vadd.f32 %v3952, %v4018
      %v4051 = vadd.f32 %v3953, %v4019
      %v4052 = vadd.f32 %v3954, %v4020
      %v4053 = vadd.f32 %v3955, %v4021
      %v4054 = vadd.f32 %v3956, %v4022
      %v4055 = vadd.f32 %v3957, %v4023
      %v4056 = vadd.f32 %v3958, %v4024
      %v4057 = vadd.f32 %v3959, %v4025
      %v4058 = vadd.f32 %v3960, %v4026
      %v4059 = vadd.f32 %v3961, %v4027
      %v4060 = vadd.f32 %v3962, %v4028
      %v4061 = vadd.f32 %v3963, %v4029
      %v4062 = vadd.f32 %v3964, %v4030
      %v4063 = vadd.f32 %v3965, %v4031
      %v4064 = vadd.f32 %v3966, %v4032
      %v4065 = vadd.f32 %v3967, %v4033
      %v4066 = vadd.f32 %v3968, %v4034
      %v4067 = vadd.f32 %v3969, %v4035
      %v4068 = vadd.f32 %v3970, %v4036
      %v4069 = vld [vmem:[%s1282 + $0x4] sm:$0xff]
      %v4070 = vld [vmem:[%s1282 + $0xc] sm:$0xff]
      %v4071 = vld [vmem:[%s1282 + $0x1c] sm:$0xff]
      %v4072 = vld [vmem:[%s1282 + $0x24] sm:$0xff]
      %v4073 = vld [vmem:[%s1282 + $0x34] sm:$0xff]
      %v4074 = vld [vmem:[%s1282 + $0x3c] sm:$0xff]
      %v4075 = vld [vmem:[%s1282 + $0x4c] sm:$0xff]
      %v4076 = vld [vmem:[%s1282 + $0x54] sm:$0xff]
      %v4077 = vld [vmem:[%s1282 + $0x64] sm:$0xff]
      %v4078 = vld [vmem:[%s1282 + $0x6c] sm:$0xff]
      %v4079 = vld [vmem:[%s1282 + $0x7c] sm:$0xff]
      %v4080 = vld [vmem:[%s1282 + $0x84] sm:$0xff]
      %v4081 = vld [vmem:[%s1282 + $0x94] sm:$0xff]
      %v4082 = vld [vmem:[%s1282 + $0x9c] sm:$0xff]
      %v4083 = vld [vmem:[%s1282 + $0xac] sm:$0xff]
      %v4084 = vld [vmem:[%s1282 + $0xb4] sm:$0xff]
      %v4085 = vld [vmem:[%s1282 + $0xc4] sm:$0xff]
      %v4086 = vld [vmem:[%s1282 + $0xcc] sm:$0xff]
      %v4087 = vld [vmem:[%s1282 + $0xdc] sm:$0xff]
      %v4088 = vld [vmem:[%s1282 + $0xe4] sm:$0xff]
      %v4089 = vld [vmem:[%s1282 + $0xf4] sm:$0xff]
      %v4090 = vld [vmem:[%s1282 + $0xfc] sm:$0xff]
      %v4091 = vld [vmem:[%s1282 + $0x10c] sm:$0xff]
      %v4092 = vld [vmem:[%s1282 + $0x114] sm:$0xff]
      %v4093 = vld [vmem:[%s1282 + $0x124] sm:$0xff]
      %v4094 = vld [vmem:[%s1282 + $0x12c] sm:$0xff]
      %v4095 = vld [vmem:[%s1282 + $0x13c] sm:$0xff]
      %v4096 = vld [vmem:[%s1282 + $0x144] sm:$0xff]
      %v4097 = vld [vmem:[%s1282 + $0x154] sm:$0xff]
      %v4098 = vld [vmem:[%s1282 + $0x15c] sm:$0xff]
      %v4099 = vld [vmem:[%s1282 + $0x16c] sm:$0xff]
      %v4100 = vld [vmem:[%s1282 + $0x174] sm:$0xff]
      %v4101 = vld [vmem:[%s3740 + $0x4] sm:$0x1]
      %v4102 = vperm.slane %v4101, 0
      %v4103 = vmul.f32 %v4069, %v4102
      %v4104 = vmul.f32 %v4070, %v4102
      %v4105 = vmul.f32 %v4071, %v4102
      %v4106 = vmul.f32 %v4072, %v4102
      %v4107 = vmul.f32 %v4073, %v4102
      %v4108 = vmul.f32 %v4074, %v4102
      %v4109 = vmul.f32 %v4075, %v4102
      %v4110 = vmul.f32 %v4076, %v4102
      %v4111 = vmul.f32 %v4077, %v4102
      %v4112 = vmul.f32 %v4078, %v4102
      %v4113 = vmul.f32 %v4079, %v4102
      %v4114 = vmul.f32 %v4080, %v4102
      %v4115 = vmul.f32 %v4081, %v4102
      %v4116 = vmul.f32 %v4082, %v4102
      %v4117 = vmul.f32 %v4083, %v4102
      %v4118 = vmul.f32 %v4084, %v4102
      %v4119 = vmul.f32 %v4085, %v4102
      %v4120 = vmul.f32 %v4086, %v4102
      %v4121 = vmul.f32 %v4087, %v4102
      %v4122 = vmul.f32 %v4088, %v4102
      %v4123 = vmul.f32 %v4089, %v4102
      %v4124 = vmul.f32 %v4090, %v4102
      %v4125 = vmul.f32 %v4091, %v4102
      %v4126 = vmul.f32 %v4092, %v4102
      %v4127 = vmul.f32 %v4093, %v4102
      %v4128 = vmul.f32 %v4094, %v4102
      %v4129 = vmul.f32 %v4095, %v4102
      %v4130 = vmul.f32 %v4096, %v4102
      %v4131 = vmul.f32 %v4097, %v4102
      %v4132 = vmul.f32 %v4098, %v4102
      %v4133 = vmul.f32 %v4099, %v4102
      %v4134 = vmul.f32 %v4100, %v4102
      %v4135 = vadd.f32 %v4037, %v4103
      %v4136 = vadd.f32 %v4038, %v4104
      %v4137 = vadd.f32 %v4039, %v4105
      %v4138 = vadd.f32 %v4040, %v4106
      %v4139 = vadd.f32 %v4041, %v4107
      %v4140 = vadd.f32 %v4042, %v4108
      %v4141 = vadd.f32 %v4043, %v4109
      %v4142 = vadd.f32 %v4044, %v4110
      %v4143 = vadd.f32 %v4045, %v4111
      %v4144 = vadd.f32 %v4046, %v4112
      %v4145 = vadd.f32 %v4047, %v4113
      %v4146 = vadd.f32 %v4048, %v4114
      %v4147 = vadd.f32 %v4049, %v4115
      %v4148 = vadd.f32 %v4050, %v4116
      %v4149 = vadd.f32 %v4051, %v4117
      %v4150 = vadd.f32 %v4052, %v4118
      %v4151 = vadd.f32 %v4053, %v4119
      %v4152 = vadd.f32 %v4054, %v4120
      %v4153 = vadd.f32 %v4055, %v4121
      %v4154 = vadd.f32 %v4056, %v4122
      %v4155 = vadd.f32 %v4057, %v4123
      %v4156 = vadd.f32 %v4058, %v4124
      %v4157 = vadd.f32 %v4059, %v4125
      %v4158 = vadd.f32 %v4060, %v4126
      %v4159 = vadd.f32 %v4061, %v4127
      %v4160 = vadd.f32 %v4062, %v4128
      %v4161 = vadd.f32 %v4063, %v4129
      %v4162 = vadd.f32 %v4064, %v4130
      %v4163 = vadd.f32 %v4065, %v4131
      %v4164 = vadd.f32 %v4066, %v4132
      %v4165 = vadd.f32 %v4067, %v4133
      %v4166 = vadd.f32 %v4068, %v4134
      %v4167 = vld [vmem:[%s1282 + $0x5] sm:$0xff]
      %v4168 = vld [vmem:[%s1282 + $0xd] sm:$0xff]
      %v4169 = vld [vmem:[%s1282 + $0x1d] sm:$0xff]
      %v4170 = vld [vmem:[%s1282 + $0x25] sm:$0xff]
      %v4171 = vld [vmem:[%s1282 + $0x35] sm:$0xff]
      %v4172 = vld [vmem:[%s1282 + $0x3d] sm:$0xff]
      %v4173 = vld [vmem:[%s1282 + $0x4d] sm:$0xff]
      %v4174 = vld [vmem:[%s1282 + $0x55] sm:$0xff]
      %v4175 = vld [vmem:[%s1282 + $0x65] sm:$0xff]
      %v4176 = vld [vmem:[%s1282 + $0x6d] sm:$0xff]
      %v4177 = vld [vmem:[%s1282 + $0x7d] sm:$0xff]
      %v4178 = vld [vmem:[%s1282 + $0x85] sm:$0xff]
      %v4179 = vld [vmem:[%s1282 + $0x95] sm:$0xff]
      %v4180 = vld [vmem:[%s1282 + $0x9d] sm:$0xff]
      %v4181 = vld [vmem:[%s1282 + $0xad] sm:$0xff]
      %v4182 = vld [vmem:[%s1282 + $0xb5] sm:$0xff]
      %v4183 = vld [vmem:[%s1282 + $0xc5] sm:$0xff]
      %v4184 = vld [vmem:[%s1282 + $0xcd] sm:$0xff]
      %v4185 = vld [vmem:[%s1282 + $0xdd] sm:$0xff]
      %v4186 = vld [vmem:[%s1282 + $0xe5] sm:$0xff]
      %v4187 = vld [vmem:[%s1282 + $0xf5] sm:$0xff]
      %v4188 = vld [vmem:[%s1282 + $0xfd] sm:$0xff]
      %v4189 = vld [vmem:[%s1282 + $0x10d] sm:$0xff]
      %v4190 = vld [vmem:[%s1282 + $0x115] sm:$0xff]
      %v4191 = vld [vmem:[%s1282 + $0x125] sm:$0xff]
      %v4192 = vld [vmem:[%s1282 + $0x12d] sm:$0xff]
      %v4193 = vld [vmem:[%s1282 + $0x13d] sm:$0xff]
      %v4194 = vld [vmem:[%s1282 + $0x145] sm:$0xff]
      %v4195 = vld [vmem:[%s1282 + $0x155] sm:$0xff]
      %v4196 = vld [vmem:[%s1282 + $0x15d] sm:$0xff]
      %v4197 = vld [vmem:[%s1282 + $0x16d] sm:$0xff]
      %v4198 = vld [vmem:[%s1282 + $0x175] sm:$0xff]
      %v4199 = vld [vmem:[%s3740 + $0x5] sm:$0x1]
      %v4200 = vperm.slane %v4199, 0
      %v4201 = vmul.f32 %v4167, %v4200
      %v4202 = vmul.f32 %v4168, %v4200
      %v4203 = vmul.f32 %v4169, %v4200
      %v4204 = vmul.f32 %v4170, %v4200
      %v4205 = vmul.f32 %v4171, %v4200
      %v4206 = vmul.f32 %v4172, %v4200
      %v4207 = vmul.f32 %v4173, %v4200
      %v4208 = vmul.f32 %v4174, %v4200
      %v4209 = vmul.f32 %v4175, %v4200
      %v4210 = vmul.f32 %v4176, %v4200
      %v4211 = vmul.f32 %v4177, %v4200
      %v4212 = vmul.f32 %v4178, %v4200
      %v4213 = vmul.f32 %v4179, %v4200
      %v4214 = vmul.f32 %v4180, %v4200
      %v4215 = vmul.f32 %v4181, %v4200
      %v4216 = vmul.f32 %v4182, %v4200
      %v4217 = vmul.f32 %v4183, %v4200
      %v4218 = vmul.f32 %v4184, %v4200
      %v4219 = vmul.f32 %v4185, %v4200
      %v4220 = vmul.f32 %v4186, %v4200
      %v4221 = vmul.f32 %v4187, %v4200
      %v4222 = vmul.f32 %v4188, %v4200
      %v4223 = vmul.f32 %v4189, %v4200
      %v4224 = vmul.f32 %v4190, %v4200
      %v4225 = vmul.f32 %v4191, %v4200
      %v4226 = vmul.f32 %v4192, %v4200
      %v4227 = vmul.f32 %v4193, %v4200
      %v4228 = vmul.f32 %v4194, %v4200
      %v4229 = vmul.f32 %v4195, %v4200
      %v4230 = vmul.f32 %v4196, %v4200
      %v4231 = vmul.f32 %v4197, %v4200
      %v4232 = vmul.f32 %v4198, %v4200
      %v4233 = vadd.f32 %v4135, %v4201
      %v4234 = vadd.f32 %v4136, %v4202
      %v4235 = vadd.f32 %v4137, %v4203
      %v4236 = vadd.f32 %v4138, %v4204
      %v4237 = vadd.f32 %v4139, %v4205
      %v4238 = vadd.f32 %v4140, %v4206
      %v4239 = vadd.f32 %v4141, %v4207
      %v4240 = vadd.f32 %v4142, %v4208
      %v4241 = vadd.f32 %v4143, %v4209
      %v4242 = vadd.f32 %v4144, %v4210
      %v4243 = vadd.f32 %v4145, %v4211
      %v4244 = vadd.f32 %v4146, %v4212
      %v4245 = vadd.f32 %v4147, %v4213
      %v4246 = vadd.f32 %v4148, %v4214
      %v4247 = vadd.f32 %v4149, %v4215
      %v4248 = vadd.f32 %v4150, %v4216
      %v4249 = vadd.f32 %v4151, %v4217
      %v4250 = vadd.f32 %v4152, %v4218
      %v4251 = vadd.f32 %v4153, %v4219
      %v4252 = vadd.f32 %v4154, %v4220
      %v4253 = vadd.f32 %v4155, %v4221
      %v4254 = vadd.f32 %v4156, %v4222
      %v4255 = vadd.f32 %v4157, %v4223
      %v4256 = vadd.f32 %v4158, %v4224
      %v4257 = vadd.f32 %v4159, %v4225
      %v4258 = vadd.f32 %v4160, %v4226
      %v4259 = vadd.f32 %v4161, %v4227
      %v4260 = vadd.f32 %v4162, %v4228
      %v4261 = vadd.f32 %v4163, %v4229
      %v4262 = vadd.f32 %v4164, %v4230
      %v4263 = vadd.f32 %v4165, %v4231
      %v4264 = vadd.f32 %v4166, %v4232
      %v4265 = vld [vmem:[%s1282 + $0x6] sm:$0xff]
      %v4266 = vld [vmem:[%s1282 + $0xe] sm:$0xff]
      %v4267 = vld [vmem:[%s1282 + $0x1e] sm:$0xff]
      %v4268 = vld [vmem:[%s1282 + $0x26] sm:$0xff]
      %v4269 = vld [vmem:[%s1282 + $0x36] sm:$0xff]
      %v4270 = vld [vmem:[%s1282 + $0x3e] sm:$0xff]
      %v4271 = vld [vmem:[%s1282 + $0x4e] sm:$0xff]
      %v4272 = vld [vmem:[%s1282 + $0x56] sm:$0xff]
      %v4273 = vld [vmem:[%s1282 + $0x66] sm:$0xff]
      %v4274 = vld [vmem:[%s1282 + $0x6e] sm:$0xff]
      %v4275 = vld [vmem:[%s1282 + $0x7e] sm:$0xff]
      %v4276 = vld [vmem:[%s1282 + $0x86] sm:$0xff]
      %v4277 = vld [vmem:[%s1282 + $0x96] sm:$0xff]
      %v4278 = vld [vmem:[%s1282 + $0x9e] sm:$0xff]
      %v4279 = vld [vmem:[%s1282 + $0xae] sm:$0xff]
      %v4280 = vld [vmem:[%s1282 + $0xb6] sm:$0xff]
      %v4281 = vld [vmem:[%s1282 + $0xc6] sm:$0xff]
      %v4282 = vld [vmem:[%s1282 + $0xce] sm:$0xff]
      %v4283 = vld [vmem:[%s1282 + $0xde] sm:$0xff]
      %v4284 = vld [vmem:[%s1282 + $0xe6] sm:$0xff]
      %v4285 = vld [vmem:[%s1282 + $0xf6] sm:$0xff]
      %v4286 = vld [vmem:[%s1282 + $0xfe] sm:$0xff]
      %v4287 = vld [vmem:[%s1282 + $0x10e] sm:$0xff]
      %v4288 = vld [vmem:[%s1282 + $0x116] sm:$0xff]
      %v4289 = vld [vmem:[%s1282 + $0x126] sm:$0xff]
      %v4290 = vld [vmem:[%s1282 + $0x12e] sm:$0xff]
      %v4291 = vld [vmem:[%s1282 + $0x13e] sm:$0xff]
      %v4292 = vld [vmem:[%s1282 + $0x146] sm:$0xff]
      %v4293 = vld [vmem:[%s1282 + $0x156] sm:$0xff]
      %v4294 = vld [vmem:[%s1282 + $0x15e] sm:$0xff]
      %v4295 = vld [vmem:[%s1282 + $0x16e] sm:$0xff]
      %v4296 = vld [vmem:[%s1282 + $0x176] sm:$0xff]
      %v4297 = vld [vmem:[%s3740 + $0x6] sm:$0x1]
      %v4298 = vperm.slane %v4297, 0
      %v4299 = vmul.f32 %v4265, %v4298
      %v4300 = vmul.f32 %v4266, %v4298
      %v4301 = vmul.f32 %v4267, %v4298
      %v4302 = vmul.f32 %v4268, %v4298
      %v4303 = vmul.f32 %v4269, %v4298
      %v4304 = vmul.f32 %v4270, %v4298
      %v4305 = vmul.f32 %v4271, %v4298
      %v4306 = vmul.f32 %v4272, %v4298
      %v4307 = vmul.f32 %v4273, %v4298
      %v4308 = vmul.f32 %v4274, %v4298
      %v4309 = vmul.f32 %v4275, %v4298
      %v4310 = vmul.f32 %v4276, %v4298
      %v4311 = vmul.f32 %v4277, %v4298
      %v4312 = vmul.f32 %v4278, %v4298
      %v4313 = vmul.f32 %v4279, %v4298
      %v4314 = vmul.f32 %v4280, %v4298
      %v4315 = vmul.f32 %v4281, %v4298
      %v4316 = vmul.f32 %v4282, %v4298
      %v4317 = vmul.f32 %v4283, %v4298
      %v4318 = vmul.f32 %v4284, %v4298
      %v4319 = vmul.f32 %v4285, %v4298
      %v4320 = vmul.f32 %v4286, %v4298
      %v4321 = vmul.f32 %v4287, %v4298
      %v4322 = vmul.f32 %v4288, %v4298
      %v4323 = vmul.f32 %v4289, %v4298
      %v4324 = vmul.f32 %v4290, %v4298
      %v4325 = vmul.f32 %v4291, %v4298
      %v4326 = vmul.f32 %v4292, %v4298
      %v4327 = vmul.f32 %v4293, %v4298
      %v4328 = vmul.f32 %v4294, %v4298
      %v4329 = vmul.f32 %v4295, %v4298
      %v4330 = vmul.f32 %v4296, %v4298
      %v4331 = vadd.f32 %v4233, %v4299
      %v4332 = vadd.f32 %v4234, %v4300
      %v4333 = vadd.f32 %v4235, %v4301
      %v4334 = vadd.f32 %v4236, %v4302
      %v4335 = vadd.f32 %v4237, %v4303
      %v4336 = vadd.f32 %v4238, %v4304
      %v4337 = vadd.f32 %v4239, %v4305
      %v4338 = vadd.f32 %v4240, %v4306
      %v4339 = vadd.f32 %v4241, %v4307
      %v4340 = vadd.f32 %v4242, %v4308
      %v4341 = vadd.f32 %v4243, %v4309
      %v4342 = vadd.f32 %v4244, %v4310
      %v4343 = vadd.f32 %v4245, %v4311
      %v4344 = vadd.f32 %v4246, %v4312
      %v4345 = vadd.f32 %v4247, %v4313
      %v4346 = vadd.f32 %v4248, %v4314
      %v4347 = vadd.f32 %v4249, %v4315
      %v4348 = vadd.f32 %v4250, %v4316
      %v4349 = vadd.f32 %v4251, %v4317
      %v4350 = vadd.f32 %v4252, %v4318
      %v4351 = vadd.f32 %v4253, %v4319
      %v4352 = vadd.f32 %v4254, %v4320
      %v4353 = vadd.f32 %v4255, %v4321
      %v4354 = vadd.f32 %v4256, %v4322
      %v4355 = vadd.f32 %v4257, %v4323
      %v4356 = vadd.f32 %v4258, %v4324
      %v4357 = vadd.f32 %v4259, %v4325
      %v4358 = vadd.f32 %v4260, %v4326
      %v4359 = vadd.f32 %v4261, %v4327
      %v4360 = vadd.f32 %v4262, %v4328
      %v4361 = vadd.f32 %v4263, %v4329
      %v4362 = vadd.f32 %v4264, %v4330
      %v4363 = vld [vmem:[#allocation2 + $0x3] sm:$0xff]
      %v4364 = vld [vmem:[#allocation2 + $0xb] sm:$0xff]
      %v4365 = vld [vmem:[#allocation2 + $0x1b] sm:$0xff]
      %v4366 = vld [vmem:[#allocation2 + $0x23] sm:$0xff]
      %v4367 = vld [vmem:[#allocation2 + $0x33] sm:$0xff]
      %v4368 = vld [vmem:[#allocation2 + $0x3b] sm:$0xff]
      %v4369 = vld [vmem:[#allocation2 + $0x4b] sm:$0xff]
      %v4370 = vld [vmem:[#allocation2 + $0x53] sm:$0xff]
      %v4371 = vld [vmem:[#allocation2 + $0x63] sm:$0xff]
      %v4372 = vld [vmem:[#allocation2 + $0x6b] sm:$0xff]
      %v4373 = vld [vmem:[#allocation2 + $0x7b] sm:$0xff]
      %v4374 = vld [vmem:[#allocation2 + $0x83] sm:$0xff]
      %v4375 = vld [vmem:[#allocation2 + $0x93] sm:$0xff]
      %v4376 = vld [vmem:[#allocation2 + $0x9b] sm:$0xff]
      %v4377 = vld [vmem:[#allocation2 + $0xab] sm:$0xff]
      %v4378 = vld [vmem:[#allocation2 + $0xb3] sm:$0xff]
      %v4379 = vld [vmem:[#allocation2 + $0xc3] sm:$0xff]
      %v4380 = vld [vmem:[#allocation2 + $0xcb] sm:$0xff]
      %v4381 = vld [vmem:[#allocation2 + $0xdb] sm:$0xff]
      %v4382 = vld [vmem:[#allocation2 + $0xe3] sm:$0xff]
      %v4383 = vld [vmem:[#allocation2 + $0xf3] sm:$0xff]
      %v4384 = vld [vmem:[#allocation2 + $0xfb] sm:$0xff]
      %v4385 = vld [vmem:[#allocation2 + $0x10b] sm:$0xff]
      %v4386 = vld [vmem:[#allocation2 + $0x113] sm:$0xff]
      %v4387 = vld [vmem:[#allocation2 + $0x123] sm:$0xff]
      %v4388 = vld [vmem:[#allocation2 + $0x12b] sm:$0xff]
      %v4389 = vld [vmem:[#allocation2 + $0x13b] sm:$0xff]
      %v4390 = vld [vmem:[#allocation2 + $0x143] sm:$0xff]
      %v4391 = vld [vmem:[#allocation2 + $0x153] sm:$0xff]
      %v4392 = vld [vmem:[#allocation2 + $0x15b] sm:$0xff]
      %v4393 = vld [vmem:[#allocation2 + $0x16b] sm:$0xff]
      %v4394 = vld [vmem:[#allocation2 + $0x173] sm:$0xff]
      %s4395 = scalar_lea.vmem %s5, 8
      %v4396 = vld [vmem:[%s4395] sm:$0x1]
      %v4397 = vperm.slane %v4396, 0
      %v4398 = vmul.f32 %v4363, %v4397
      %v4399 = vmul.f32 %v4364, %v4397
      %v4400 = vmul.f32 %v4365, %v4397
      %v4401 = vmul.f32 %v4366, %v4397
      %v4402 = vmul.f32 %v4367, %v4397
      %v4403 = vmul.f32 %v4368, %v4397
      %v4404 = vmul.f32 %v4369, %v4397
      %v4405 = vmul.f32 %v4370, %v4397
      %v4406 = vmul.f32 %v4371, %v4397
      %v4407 = vmul.f32 %v4372, %v4397
      %v4408 = vmul.f32 %v4373, %v4397
      %v4409 = vmul.f32 %v4374, %v4397
      %v4410 = vmul.f32 %v4375, %v4397
      %v4411 = vmul.f32 %v4376, %v4397
      %v4412 = vmul.f32 %v4377, %v4397
      %v4413 = vmul.f32 %v4378, %v4397
      %v4414 = vmul.f32 %v4379, %v4397
      %v4415 = vmul.f32 %v4380, %v4397
      %v4416 = vmul.f32 %v4381, %v4397
      %v4417 = vmul.f32 %v4382, %v4397
      %v4418 = vmul.f32 %v4383, %v4397
      %v4419 = vmul.f32 %v4384, %v4397
      %v4420 = vmul.f32 %v4385, %v4397
      %v4421 = vmul.f32 %v4386, %v4397
      %v4422 = vmul.f32 %v4387, %v4397
      %v4423 = vmul.f32 %v4388, %v4397
      %v4424 = vmul.f32 %v4389, %v4397
      %v4425 = vmul.f32 %v4390, %v4397
      %v4426 = vmul.f32 %v4391, %v4397
      %v4427 = vmul.f32 %v4392, %v4397
      %v4428 = vmul.f32 %v4393, %v4397
      %v4429 = vmul.f32 %v4394, %v4397
      %v4430 = vadd.f32 %v4331, %v4398
      %v4431 = vadd.f32 %v4332, %v4399
      %v4432 = vadd.f32 %v4333, %v4400
      %v4433 = vadd.f32 %v4334, %v4401
      %v4434 = vadd.f32 %v4335, %v4402
      %v4435 = vadd.f32 %v4336, %v4403
      %v4436 = vadd.f32 %v4337, %v4404
      %v4437 = vadd.f32 %v4338, %v4405
      %v4438 = vadd.f32 %v4339, %v4406
      %v4439 = vadd.f32 %v4340, %v4407
      %v4440 = vadd.f32 %v4341, %v4408
      %v4441 = vadd.f32 %v4342, %v4409
      %v4442 = vadd.f32 %v4343, %v4410
      %v4443 = vadd.f32 %v4344, %v4411
      %v4444 = vadd.f32 %v4345, %v4412
      %v4445 = vadd.f32 %v4346, %v4413
      %v4446 = vadd.f32 %v4347, %v4414
      %v4447 = vadd.f32 %v4348, %v4415
      %v4448 = vadd.f32 %v4349, %v4416
      %v4449 = vadd.f32 %v4350, %v4417
      %v4450 = vadd.f32 %v4351, %v4418
      %v4451 = vadd.f32 %v4352, %v4419
      %v4452 = vadd.f32 %v4353, %v4420
      %v4453 = vadd.f32 %v4354, %v4421
      %v4454 = vadd.f32 %v4355, %v4422
      %v4455 = vadd.f32 %v4356, %v4423
      %v4456 = vadd.f32 %v4357, %v4424
      %v4457 = vadd.f32 %v4358, %v4425
      %v4458 = vadd.f32 %v4359, %v4426
      %v4459 = vadd.f32 %v4360, %v4427
      %v4460 = vadd.f32 %v4361, %v4428
      %v4461 = vadd.f32 %v4362, %v4429
      %v4462 = vld [vmem:[%s2067 + $0x3] sm:$0xff]
      %v4463 = vld [vmem:[%s2067 + $0xb] sm:$0xff]
      %v4464 = vld [vmem:[%s2067 + $0x1b] sm:$0xff]
      %v4465 = vld [vmem:[%s2067 + $0x23] sm:$0xff]
      %v4466 = vld [vmem:[%s2067 + $0x33] sm:$0xff]
      %v4467 = vld [vmem:[%s2067 + $0x3b] sm:$0xff]
      %v4468 = vld [vmem:[%s2067 + $0x4b] sm:$0xff]
      %v4469 = vld [vmem:[%s2067 + $0x53] sm:$0xff]
      %v4470 = vld [vmem:[%s2067 + $0x63] sm:$0xff]
      %v4471 = vld [vmem:[%s2067 + $0x6b] sm:$0xff]
      %v4472 = vld [vmem:[%s2067 + $0x7b] sm:$0xff]
      %v4473 = vld [vmem:[%s2067 + $0x83] sm:$0xff]
      %v4474 = vld [vmem:[%s2067 + $0x93] sm:$0xff]
      %v4475 = vld [vmem:[%s2067 + $0x9b] sm:$0xff]
      %v4476 = vld [vmem:[%s2067 + $0xab] sm:$0xff]
      %v4477 = vld [vmem:[%s2067 + $0xb3] sm:$0xff]
      %v4478 = vld [vmem:[%s2067 + $0xc3] sm:$0xff]
      %v4479 = vld [vmem:[%s2067 + $0xcb] sm:$0xff]
      %v4480 = vld [vmem:[%s2067 + $0xdb] sm:$0xff]
      %v4481 = vld [vmem:[%s2067 + $0xe3] sm:$0xff]
      %v4482 = vld [vmem:[%s2067 + $0xf3] sm:$0xff]
      %v4483 = vld [vmem:[%s2067 + $0xfb] sm:$0xff]
      %v4484 = vld [vmem:[%s2067 + $0x10b] sm:$0xff]
      %v4485 = vld [vmem:[%s2067 + $0x113] sm:$0xff]
      %v4486 = vld [vmem:[%s2067 + $0x123] sm:$0xff]
      %v4487 = vld [vmem:[%s2067 + $0x12b] sm:$0xff]
      %v4488 = vld [vmem:[%s2067 + $0x13b] sm:$0xff]
      %v4489 = vld [vmem:[%s2067 + $0x143] sm:$0xff]
      %v4490 = vld [vmem:[%s2067 + $0x153] sm:$0xff]
      %v4491 = vld [vmem:[%s2067 + $0x15b] sm:$0xff]
      %v4492 = vld [vmem:[%s2067 + $0x16b] sm:$0xff]
      %v4493 = vld [vmem:[%s2067 + $0x173] sm:$0xff]
      %v4494 = vld [vmem:[%s4395 + $0x1] sm:$0x1]
      %v4495 = vperm.slane %v4494, 0
      %v4496 = vmul.f32 %v4462, %v4495
      %v4497 = vmul.f32 %v4463, %v4495
      %v4498 = vmul.f32 %v4464, %v4495
      %v4499 = vmul.f32 %v4465, %v4495
      %v4500 = vmul.f32 %v4466, %v4495
      %v4501 = vmul.f32 %v4467, %v4495
      %v4502 = vmul.f32 %v4468, %v4495
      %v4503 = vmul.f32 %v4469, %v4495
      %v4504 = vmul.f32 %v4470, %v4495
      %v4505 = vmul.f32 %v4471, %v4495
      %v4506 = vmul.f32 %v4472, %v4495
      %v4507 = vmul.f32 %v4473, %v4495
      %v4508 = vmul.f32 %v4474, %v4495
      %v4509 = vmul.f32 %v4475, %v4495
      %v4510 = vmul.f32 %v4476, %v4495
      %v4511 = vmul.f32 %v4477, %v4495
      %v4512 = vmul.f32 %v4478, %v4495
      %v4513 = vmul.f32 %v4479, %v4495
      %v4514 = vmul.f32 %v4480, %v4495
      %v4515 = vmul.f32 %v4481, %v4495
      %v4516 = vmul.f32 %v4482, %v4495
      %v4517 = vmul.f32 %v4483, %v4495
      %v4518 = vmul.f32 %v4484, %v4495
      %v4519 = vmul.f32 %v4485, %v4495
      %v4520 = vmul.f32 %v4486, %v4495
      %v4521 = vmul.f32 %v4487, %v4495
      %v4522 = vmul.f32 %v4488, %v4495
      %v4523 = vmul.f32 %v4489, %v4495
      %v4524 = vmul.f32 %v4490, %v4495
      %v4525 = vmul.f32 %v4491, %v4495
      %v4526 = vmul.f32 %v4492, %v4495
      %v4527 = vmul.f32 %v4493, %v4495
      %v4528 = vadd.f32 %v4430, %v4496
      %v4529 = vadd.f32 %v4431, %v4497
      %v4530 = vadd.f32 %v4432, %v4498
      %v4531 = vadd.f32 %v4433, %v4499
      %v4532 = vadd.f32 %v4434, %v4500
      %v4533 = vadd.f32 %v4435, %v4501
      %v4534 = vadd.f32 %v4436, %v4502
      %v4535 = vadd.f32 %v4437, %v4503
      %v4536 = vadd.f32 %v4438, %v4504
      %v4537 = vadd.f32 %v4439, %v4505
      %v4538 = vadd.f32 %v4440, %v4506
      %v4539 = vadd.f32 %v4441, %v4507
      %v4540 = vadd.f32 %v4442, %v4508
      %v4541 = vadd.f32 %v4443, %v4509
      %v4542 = vadd.f32 %v4444, %v4510
      %v4543 = vadd.f32 %v4445, %v4511
      %v4544 = vadd.f32 %v4446, %v4512
      %v4545 = vadd.f32 %v4447, %v4513
      %v4546 = vadd.f32 %v4448, %v4514
      %v4547 = vadd.f32 %v4449, %v4515
      %v4548 = vadd.f32 %v4450, %v4516
      %v4549 = vadd.f32 %v4451, %v4517
      %v4550 = vadd.f32 %v4452, %v4518
      %v4551 = vadd.f32 %v4453, %v4519
      %v4552 = vadd.f32 %v4454, %v4520
      %v4553 = vadd.f32 %v4455, %v4521
      %v4554 = vadd.f32 %v4456, %v4522
      %v4555 = vadd.f32 %v4457, %v4523
      %v4556 = vadd.f32 %v4458, %v4524
      %v4557 = vadd.f32 %v4459, %v4525
      %v4558 = vadd.f32 %v4460, %v4526
      %v4559 = vadd.f32 %v4461, %v4527
      %v4560 = vld [vmem:[%s2166 + $0x3] sm:$0xff]
      %v4561 = vld [vmem:[%s2166 + $0xb] sm:$0xff]
      %v4562 = vld [vmem:[%s2166 + $0x1b] sm:$0xff]
      %v4563 = vld [vmem:[%s2166 + $0x23] sm:$0xff]
      %v4564 = vld [vmem:[%s2166 + $0x33] sm:$0xff]
      %v4565 = vld [vmem:[%s2166 + $0x3b] sm:$0xff]
      %v4566 = vld [vmem:[%s2166 + $0x4b] sm:$0xff]
      %v4567 = vld [vmem:[%s2166 + $0x53] sm:$0xff]
      %v4568 = vld [vmem:[%s2166 + $0x63] sm:$0xff]
      %v4569 = vld [vmem:[%s2166 + $0x6b] sm:$0xff]
      %v4570 = vld [vmem:[%s2166 + $0x7b] sm:$0xff]
      %v4571 = vld [vmem:[%s2166 + $0x83] sm:$0xff]
      %v4572 = vld [vmem:[%s2166 + $0x93] sm:$0xff]
      %v4573 = vld [vmem:[%s2166 + $0x9b] sm:$0xff]
      %v4574 = vld [vmem:[%s2166 + $0xab] sm:$0xff]
      %v4575 = vld [vmem:[%s2166 + $0xb3] sm:$0xff]
      %v4576 = vld [vmem:[%s2166 + $0xc3] sm:$0xff]
      %v4577 = vld [vmem:[%s2166 + $0xcb] sm:$0xff]
      %v4578 = vld [vmem:[%s2166 + $0xdb] sm:$0xff]
      %v4579 = vld [vmem:[%s2166 + $0xe3] sm:$0xff]
      %v4580 = vld [vmem:[%s2166 + $0xf3] sm:$0xff]
      %v4581 = vld [vmem:[%s2166 + $0xfb] sm:$0xff]
      %v4582 = vld [vmem:[%s2166 + $0x10b] sm:$0xff]
      %v4583 = vld [vmem:[%s2166 + $0x113] sm:$0xff]
      %v4584 = vld [vmem:[%s2166 + $0x123] sm:$0xff]
      %v4585 = vld [vmem:[%s2166 + $0x12b] sm:$0xff]
      %v4586 = vld [vmem:[%s2166 + $0x13b] sm:$0xff]
      %v4587 = vld [vmem:[%s2166 + $0x143] sm:$0xff]
      %v4588 = vld [vmem:[%s2166 + $0x153] sm:$0xff]
      %v4589 = vld [vmem:[%s2166 + $0x15b] sm:$0xff]
      %v4590 = vld [vmem:[%s2166 + $0x16b] sm:$0xff]
      %v4591 = vld [vmem:[%s2166 + $0x173] sm:$0xff]
      %v4592 = vld [vmem:[%s4395 + $0x2] sm:$0x1]
      %v4593 = vperm.slane %v4592, 0
      %v4594 = vmul.f32 %v4560, %v4593
      %v4595 = vmul.f32 %v4561, %v4593
      %v4596 = vmul.f32 %v4562, %v4593
      %v4597 = vmul.f32 %v4563, %v4593
      %v4598 = vmul.f32 %v4564, %v4593
      %v4599 = vmul.f32 %v4565, %v4593
      %v4600 = vmul.f32 %v4566, %v4593
      %v4601 = vmul.f32 %v4567, %v4593
      %v4602 = vmul.f32 %v4568, %v4593
      %v4603 = vmul.f32 %v4569, %v4593
      %v4604 = vmul.f32 %v4570, %v4593
      %v4605 = vmul.f32 %v4571, %v4593
      %v4606 = vmul.f32 %v4572, %v4593
      %v4607 = vmul.f32 %v4573, %v4593
      %v4608 = vmul.f32 %v4574, %v4593
      %v4609 = vmul.f32 %v4575, %v4593
      %v4610 = vmul.f32 %v4576, %v4593
      %v4611 = vmul.f32 %v4577, %v4593
      %v4612 = vmul.f32 %v4578, %v4593
      %v4613 = vmul.f32 %v4579, %v4593
      %v4614 = vmul.f32 %v4580, %v4593
      %v4615 = vmul.f32 %v4581, %v4593
      %v4616 = vmul.f32 %v4582, %v4593
      %v4617 = vmul.f32 %v4583, %v4593
      %v4618 = vmul.f32 %v4584, %v4593
      %v4619 = vmul.f32 %v4585, %v4593
      %v4620 = vmul.f32 %v4586, %v4593
      %v4621 = vmul.f32 %v4587, %v4593
      %v4622 = vmul.f32 %v4588, %v4593
      %v4623 = vmul.f32 %v4589, %v4593
      %v4624 = vmul.f32 %v4590, %v4593
      %v4625 = vmul.f32 %v4591, %v4593
      %v4626 = vadd.f32 %v4528, %v4594
      %v4627 = vadd.f32 %v4529, %v4595
      %v4628 = vadd.f32 %v4530, %v4596
      %v4629 = vadd.f32 %v4531, %v4597
      %v4630 = vadd.f32 %v4532, %v4598
      %v4631 = vadd.f32 %v4533, %v4599
      %v4632 = vadd.f32 %v4534, %v4600
      %v4633 = vadd.f32 %v4535, %v4601
      %v4634 = vadd.f32 %v4536, %v4602
      %v4635 = vadd.f32 %v4537, %v4603
      %v4636 = vadd.f32 %v4538, %v4604
      %v4637 = vadd.f32 %v4539, %v4605
      %v4638 = vadd.f32 %v4540, %v4606
      %v4639 = vadd.f32 %v4541, %v4607
      %v4640 = vadd.f32 %v4542, %v4608
      %v4641 = vadd.f32 %v4543, %v4609
      %v4642 = vadd.f32 %v4544, %v4610
      %v4643 = vadd.f32 %v4545, %v4611
      %v4644 = vadd.f32 %v4546, %v4612
      %v4645 = vadd.f32 %v4547, %v4613
      %v4646 = vadd.f32 %v4548, %v4614
      %v4647 = vadd.f32 %v4549, %v4615
      %v4648 = vadd.f32 %v4550, %v4616
      %v4649 = vadd.f32 %v4551, %v4617
      %v4650 = vadd.f32 %v4552, %v4618
      %v4651 = vadd.f32 %v4553, %v4619
      %v4652 = vadd.f32 %v4554, %v4620
      %v4653 = vadd.f32 %v4555, %v4621
      %v4654 = vadd.f32 %v4556, %v4622
      %v4655 = vadd.f32 %v4557, %v4623
      %v4656 = vadd.f32 %v4558, %v4624
      %v4657 = vadd.f32 %v4559, %v4625
      %v4658 = vld [vmem:[%s4395 + $0x3] sm:$0x1]
      %v4659 = vperm.slane %v4658, 0
      %v4660 = vmul.f32 %v3971, %v4659
      %v4661 = vmul.f32 %v3972, %v4659
      %v4662 = vmul.f32 %v3973, %v4659
      %v4663 = vmul.f32 %v3974, %v4659
      %v4664 = vmul.f32 %v3975, %v4659
      %v4665 = vmul.f32 %v3976, %v4659
      %v4666 = vmul.f32 %v3977, %v4659
      %v4667 = vmul.f32 %v3978, %v4659
      %v4668 = vmul.f32 %v3979, %v4659
      %v4669 = vmul.f32 %v3980, %v4659
      %v4670 = vmul.f32 %v3981, %v4659
      %v4671 = vmul.f32 %v3982, %v4659
      %v4672 = vmul.f32 %v3983, %v4659
      %v4673 = vmul.f32 %v3984, %v4659
      %v4674 = vmul.f32 %v3985, %v4659
      %v4675 = vmul.f32 %v3986, %v4659
      %v4676 = vmul.f32 %v3987, %v4659
      %v4677 = vmul.f32 %v3988, %v4659
      %v4678 = vmul.f32 %v3989, %v4659
      %v4679 = vmul.f32 %v3990, %v4659
      %v4680 = vmul.f32 %v3991, %v4659
      %v4681 = vmul.f32 %v3992, %v4659
      %v4682 = vmul.f32 %v3993, %v4659
      %v4683 = vmul.f32 %v3994, %v4659
      %v4684 = vmul.f32 %v3995, %v4659
      %v4685 = vmul.f32 %v3996, %v4659
      %v4686 = vmul.f32 %v3997, %v4659
      %v4687 = vmul.f32 %v3998, %v4659
      %v4688 = vmul.f32 %v3999, %v4659
      %v4689 = vmul.f32 %v4000, %v4659
      %v4690 = vmul.f32 %v4001, %v4659
      %v4691 = vmul.f32 %v4002, %v4659
      %v4692 = vadd.f32 %v4626, %v4660
      %v4693 = vadd.f32 %v4627, %v4661
      %v4694 = vadd.f32 %v4628, %v4662
      %v4695 = vadd.f32 %v4629, %v4663
      %v4696 = vadd.f32 %v4630, %v4664
      %v4697 = vadd.f32 %v4631, %v4665
      %v4698 = vadd.f32 %v4632, %v4666
      %v4699 = vadd.f32 %v4633, %v4667
      %v4700 = vadd.f32 %v4634, %v4668
      %v4701 = vadd.f32 %v4635, %v4669
      %v4702 = vadd.f32 %v4636, %v4670
      %v4703 = vadd.f32 %v4637, %v4671
      %v4704 = vadd.f32 %v4638, %v4672
      %v4705 = vadd.f32 %v4639, %v4673
      %v4706 = vadd.f32 %v4640, %v4674
      %v4707 = vadd.f32 %v4641, %v4675
      %v4708 = vadd.f32 %v4642, %v4676
      %v4709 = vadd.f32 %v4643, %v4677
      %v4710 = vadd.f32 %v4644, %v4678
      %v4711 = vadd.f32 %v4645, %v4679
      %v4712 = vadd.f32 %v4646, %v4680
      %v4713 = vadd.f32 %v4647, %v4681
      %v4714 = vadd.f32 %v4648, %v4682
      %v4715 = vadd.f32 %v4649, %v4683
      %v4716 = vadd.f32 %v4650, %v4684
      %v4717 = vadd.f32 %v4651, %v4685
      %v4718 = vadd.f32 %v4652, %v4686
      %v4719 = vadd.f32 %v4653, %v4687
      %v4720 = vadd.f32 %v4654, %v4688
      %v4721 = vadd.f32 %v4655, %v4689
      %v4722 = vadd.f32 %v4656, %v4690
      %v4723 = vadd.f32 %v4657, %v4691
      %v4724 = vld [vmem:[%s2331 + $0x3] sm:$0xff]
      %v4725 = vld [vmem:[%s2331 + $0xb] sm:$0xff]
      %v4726 = vld [vmem:[%s2331 + $0x1b] sm:$0xff]
      %v4727 = vld [vmem:[%s2331 + $0x23] sm:$0xff]
      %v4728 = vld [vmem:[%s2331 + $0x33] sm:$0xff]
      %v4729 = vld [vmem:[%s2331 + $0x3b] sm:$0xff]
      %v4730 = vld [vmem:[%s2331 + $0x4b] sm:$0xff]
      %v4731 = vld [vmem:[%s2331 + $0x53] sm:$0xff]
      %v4732 = vld [vmem:[%s2331 + $0x63] sm:$0xff]
      %v4733 = vld [vmem:[%s2331 + $0x6b] sm:$0xff]
      %v4734 = vld [vmem:[%s2331 + $0x7b] sm:$0xff]
      %v4735 = vld [vmem:[%s2331 + $0x83] sm:$0xff]
      %v4736 = vld [vmem:[%s2331 + $0x93] sm:$0xff]
      %v4737 = vld [vmem:[%s2331 + $0x9b] sm:$0xff]
      %v4738 = vld [vmem:[%s2331 + $0xab] sm:$0xff]
      %v4739 = vld [vmem:[%s2331 + $0xb3] sm:$0xff]
      %v4740 = vld [vmem:[%s2331 + $0xc3] sm:$0xff]
      %v4741 = vld [vmem:[%s2331 + $0xcb] sm:$0xff]
      %v4742 = vld [vmem:[%s2331 + $0xdb] sm:$0xff]
      %v4743 = vld [vmem:[%s2331 + $0xe3] sm:$0xff]
      %v4744 = vld [vmem:[%s2331 + $0xf3] sm:$0xff]
      %v4745 = vld [vmem:[%s2331 + $0xfb] sm:$0xff]
      %v4746 = vld [vmem:[%s2331 + $0x10b] sm:$0xff]
      %v4747 = vld [vmem:[%s2331 + $0x113] sm:$0xff]
      %v4748 = vld [vmem:[%s2331 + $0x123] sm:$0xff]
      %v4749 = vld [vmem:[%s2331 + $0x12b] sm:$0xff]
      %v4750 = vld [vmem:[%s2331 + $0x13b] sm:$0xff]
      %v4751 = vld [vmem:[%s2331 + $0x143] sm:$0xff]
      %v4752 = vld [vmem:[%s2331 + $0x153] sm:$0xff]
      %v4753 = vld [vmem:[%s2331 + $0x15b] sm:$0xff]
      %v4754 = vld [vmem:[%s2331 + $0x16b] sm:$0xff]
      %v4755 = vld [vmem:[%s2331 + $0x173] sm:$0xff]
      %v4756 = vld [vmem:[%s4395 + $0x4] sm:$0x1]
      %v4757 = vperm.slane %v4756, 0
      %v4758 = vmul.f32 %v4724, %v4757
      %v4759 = vmul.f32 %v4725, %v4757
      %v4760 = vmul.f32 %v4726, %v4757
      %v4761 = vmul.f32 %v4727, %v4757
      %v4762 = vmul.f32 %v4728, %v4757
      %v4763 = vmul.f32 %v4729, %v4757
      %v4764 = vmul.f32 %v4730, %v4757
      %v4765 = vmul.f32 %v4731, %v4757
      %v4766 = vmul.f32 %v4732, %v4757
      %v4767 = vmul.f32 %v4733, %v4757
      %v4768 = vmul.f32 %v4734, %v4757
      %v4769 = vmul.f32 %v4735, %v4757
      %v4770 = vmul.f32 %v4736, %v4757
      %v4771 = vmul.f32 %v4737, %v4757
      %v4772 = vmul.f32 %v4738, %v4757
      %v4773 = vmul.f32 %v4739, %v4757
      %v4774 = vmul.f32 %v4740, %v4757
      %v4775 = vmul.f32 %v4741, %v4757
      %v4776 = vmul.f32 %v4742, %v4757
      %v4777 = vmul.f32 %v4743, %v4757
      %v4778 = vmul.f32 %v4744, %v4757
      %v4779 = vmul.f32 %v4745, %v4757
      %v4780 = vmul.f32 %v4746, %v4757
      %v4781 = vmul.f32 %v4747, %v4757
      %v4782 = vmul.f32 %v4748, %v4757
      %v4783 = vmul.f32 %v4749, %v4757
      %v4784 = vmul.f32 %v4750, %v4757
      %v4785 = vmul.f32 %v4751, %v4757
      %v4786 = vmul.f32 %v4752, %v4757
      %v4787 = vmul.f32 %v4753, %v4757
      %v4788 = vmul.f32 %v4754, %v4757
      %v4789 = vmul.f32 %v4755, %v4757
      %v4790 = vadd.f32 %v4692, %v4758
      %v4791 = vadd.f32 %v4693, %v4759
      %v4792 = vadd.f32 %v4694, %v4760
      %v4793 = vadd.f32 %v4695, %v4761
      %v4794 = vadd.f32 %v4696, %v4762
      %v4795 = vadd.f32 %v4697, %v4763
      %v4796 = vadd.f32 %v4698, %v4764
      %v4797 = vadd.f32 %v4699, %v4765
      %v4798 = vadd.f32 %v4700, %v4766
      %v4799 = vadd.f32 %v4701, %v4767
      %v4800 = vadd.f32 %v4702, %v4768
      %v4801 = vadd.f32 %v4703, %v4769
      %v4802 = vadd.f32 %v4704, %v4770
      %v4803 = vadd.f32 %v4705, %v4771
      %v4804 = vadd.f32 %v4706, %v4772
      %v4805 = vadd.f32 %v4707, %v4773
      %v4806 = vadd.f32 %v4708, %v4774
      %v4807 = vadd.f32 %v4709, %v4775
      %v4808 = vadd.f32 %v4710, %v4776
      %v4809 = vadd.f32 %v4711, %v4777
      %v4810 = vadd.f32 %v4712, %v4778
      %v4811 = vadd.f32 %v4713, %v4779
      %v4812 = vadd.f32 %v4714, %v4780
      %v4813 = vadd.f32 %v4715, %v4781
      %v4814 = vadd.f32 %v4716, %v4782
      %v4815 = vadd.f32 %v4717, %v4783
      %v4816 = vadd.f32 %v4718, %v4784
      %v4817 = vadd.f32 %v4719, %v4785
      %v4818 = vadd.f32 %v4720, %v4786
      %v4819 = vadd.f32 %v4721, %v4787
      %v4820 = vadd.f32 %v4722, %v4788
      %v4821 = vadd.f32 %v4723, %v4789
      %v4822 = vld [vmem:[%s2430 + $0x3] sm:$0xff]
      %v4823 = vld [vmem:[%s2430 + $0xb] sm:$0xff]
      %v4824 = vld [vmem:[%s2430 + $0x1b] sm:$0xff]
      %v4825 = vld [vmem:[%s2430 + $0x23] sm:$0xff]
      %v4826 = vld [vmem:[%s2430 + $0x33] sm:$0xff]
      %v4827 = vld [vmem:[%s2430 + $0x3b] sm:$0xff]
      %v4828 = vld [vmem:[%s2430 + $0x4b] sm:$0xff]
      %v4829 = vld [vmem:[%s2430 + $0x53] sm:$0xff]
      %v4830 = vld [vmem:[%s2430 + $0x63] sm:$0xff]
      %v4831 = vld [vmem:[%s2430 + $0x6b] sm:$0xff]
      %v4832 = vld [vmem:[%s2430 + $0x7b] sm:$0xff]
      %v4833 = vld [vmem:[%s2430 + $0x83] sm:$0xff]
      %v4834 = vld [vmem:[%s2430 + $0x93] sm:$0xff]
      %v4835 = vld [vmem:[%s2430 + $0x9b] sm:$0xff]
      %v4836 = vld [vmem:[%s2430 + $0xab] sm:$0xff]
      %v4837 = vld [vmem:[%s2430 + $0xb3] sm:$0xff]
      %v4838 = vld [vmem:[%s2430 + $0xc3] sm:$0xff]
      %v4839 = vld [vmem:[%s2430 + $0xcb] sm:$0xff]
      %v4840 = vld [vmem:[%s2430 + $0xdb] sm:$0xff]
      %v4841 = vld [vmem:[%s2430 + $0xe3] sm:$0xff]
      %v4842 = vld [vmem:[%s2430 + $0xf3] sm:$0xff]
      %v4843 = vld [vmem:[%s2430 + $0xfb] sm:$0xff]
      %v4844 = vld [vmem:[%s2430 + $0x10b] sm:$0xff]
      %v4845 = vld [vmem:[%s2430 + $0x113] sm:$0xff]
      %v4846 = vld [vmem:[%s2430 + $0x123] sm:$0xff]
      %v4847 = vld [vmem:[%s2430 + $0x12b] sm:$0xff]
      %v4848 = vld [vmem:[%s2430 + $0x13b] sm:$0xff]
      %v4849 = vld [vmem:[%s2430 + $0x143] sm:$0xff]
      %v4850 = vld [vmem:[%s2430 + $0x153] sm:$0xff]
      %v4851 = vld [vmem:[%s2430 + $0x15b] sm:$0xff]
      %v4852 = vld [vmem:[%s2430 + $0x16b] sm:$0xff]
      %v4853 = vld [vmem:[%s2430 + $0x173] sm:$0xff]
      %v4854 = vld [vmem:[%s4395 + $0x5] sm:$0x1]
      %v4855 = vperm.slane %v4854, 0
      %v4856 = vmul.f32 %v4822, %v4855
      %v4857 = vmul.f32 %v4823, %v4855
      %v4858 = vmul.f32 %v4824, %v4855
      %v4859 = vmul.f32 %v4825, %v4855
      %v4860 = vmul.f32 %v4826, %v4855
      %v4861 = vmul.f32 %v4827, %v4855
      %v4862 = vmul.f32 %v4828, %v4855
      %v4863 = vmul.f32 %v4829, %v4855
      %v4864 = vmul.f32 %v4830, %v4855
      %v4865 = vmul.f32 %v4831, %v4855
      %v4866 = vmul.f32 %v4832, %v4855
      %v4867 = vmul.f32 %v4833, %v4855
      %v4868 = vmul.f32 %v4834, %v4855
      %v4869 = vmul.f32 %v4835, %v4855
      %v4870 = vmul.f32 %v4836, %v4855
      %v4871 = vmul.f32 %v4837, %v4855
      %v4872 = vmul.f32 %v4838, %v4855
      %v4873 = vmul.f32 %v4839, %v4855
      %v4874 = vmul.f32 %v4840, %v4855
      %v4875 = vmul.f32 %v4841, %v4855
      %v4876 = vmul.f32 %v4842, %v4855
      %v4877 = vmul.f32 %v4843, %v4855
      %v4878 = vmul.f32 %v4844, %v4855
      %v4879 = vmul.f32 %v4845, %v4855
      %v4880 = vmul.f32 %v4846, %v4855
      %v4881 = vmul.f32 %v4847, %v4855
      %v4882 = vmul.f32 %v4848, %v4855
      %v4883 = vmul.f32 %v4849, %v4855
      %v4884 = vmul.f32 %v4850, %v4855
      %v4885 = vmul.f32 %v4851, %v4855
      %v4886 = vmul.f32 %v4852, %v4855
      %v4887 = vmul.f32 %v4853, %v4855
      %v4888 = vadd.f32 %v4790, %v4856
      %v4889 = vadd.f32 %v4791, %v4857
      %v4890 = vadd.f32 %v4792, %v4858
      %v4891 = vadd.f32 %v4793, %v4859
      %v4892 = vadd.f32 %v4794, %v4860
      %v4893 = vadd.f32 %v4795, %v4861
      %v4894 = vadd.f32 %v4796, %v4862
      %v4895 = vadd.f32 %v4797, %v4863
      %v4896 = vadd.f32 %v4798, %v4864
      %v4897 = vadd.f32 %v4799, %v4865
      %v4898 = vadd.f32 %v4800, %v4866
      %v4899 = vadd.f32 %v4801, %v4867
      %v4900 = vadd.f32 %v4802, %v4868
      %v4901 = vadd.f32 %v4803, %v4869
      %v4902 = vadd.f32 %v4804, %v4870
      %v4903 = vadd.f32 %v4805, %v4871
      %v4904 = vadd.f32 %v4806, %v4872
      %v4905 = vadd.f32 %v4807, %v4873
      %v4906 = vadd.f32 %v4808, %v4874
      %v4907 = vadd.f32 %v4809, %v4875
      %v4908 = vadd.f32 %v4810, %v4876
      %v4909 = vadd.f32 %v4811, %v4877
      %v4910 = vadd.f32 %v4812, %v4878
      %v4911 = vadd.f32 %v4813, %v4879
      %v4912 = vadd.f32 %v4814, %v4880
      %v4913 = vadd.f32 %v4815, %v4881
      %v4914 = vadd.f32 %v4816, %v4882
      %v4915 = vadd.f32 %v4817, %v4883
      %v4916 = vadd.f32 %v4818, %v4884
      %v4917 = vadd.f32 %v4819, %v4885
      %v4918 = vadd.f32 %v4820, %v4886
      %v4919 = vadd.f32 %v4821, %v4887
      %v4920 = vld [vmem:[%s2529 + $0x3] sm:$0xff]
      %v4921 = vld [vmem:[%s2529 + $0xb] sm:$0xff]
      %v4922 = vld [vmem:[%s2529 + $0x1b] sm:$0xff]
      %v4923 = vld [vmem:[%s2529 + $0x23] sm:$0xff]
      %v4924 = vld [vmem:[%s2529 + $0x33] sm:$0xff]
      %v4925 = vld [vmem:[%s2529 + $0x3b] sm:$0xff]
      %v4926 = vld [vmem:[%s2529 + $0x4b] sm:$0xff]
      %v4927 = vld [vmem:[%s2529 + $0x53] sm:$0xff]
      %v4928 = vld [vmem:[%s2529 + $0x63] sm:$0xff]
      %v4929 = vld [vmem:[%s2529 + $0x6b] sm:$0xff]
      %v4930 = vld [vmem:[%s2529 + $0x7b] sm:$0xff]
      %v4931 = vld [vmem:[%s2529 + $0x83] sm:$0xff]
      %v4932 = vld [vmem:[%s2529 + $0x93] sm:$0xff]
      %v4933 = vld [vmem:[%s2529 + $0x9b] sm:$0xff]
      %v4934 = vld [vmem:[%s2529 + $0xab] sm:$0xff]
      %v4935 = vld [vmem:[%s2529 + $0xb3] sm:$0xff]
      %v4936 = vld [vmem:[%s2529 + $0xc3] sm:$0xff]
      %v4937 = vld [vmem:[%s2529 + $0xcb] sm:$0xff]
      %v4938 = vld [vmem:[%s2529 + $0xdb] sm:$0xff]
      %v4939 = vld [vmem:[%s2529 + $0xe3] sm:$0xff]
      %v4940 = vld [vmem:[%s2529 + $0xf3] sm:$0xff]
      %v4941 = vld [vmem:[%s2529 + $0xfb] sm:$0xff]
      %v4942 = vld [vmem:[%s2529 + $0x10b] sm:$0xff]
      %v4943 = vld [vmem:[%s2529 + $0x113] sm:$0xff]
      %v4944 = vld [vmem:[%s2529 + $0x123] sm:$0xff]
      %v4945 = vld [vmem:[%s2529 + $0x12b] sm:$0xff]
      %v4946 = vld [vmem:[%s2529 + $0x13b] sm:$0xff]
      %v4947 = vld [vmem:[%s2529 + $0x143] sm:$0xff]
      %v4948 = vld [vmem:[%s2529 + $0x153] sm:$0xff]
      %v4949 = vld [vmem:[%s2529 + $0x15b] sm:$0xff]
      %v4950 = vld [vmem:[%s2529 + $0x16b] sm:$0xff]
      %v4951 = vld [vmem:[%s2529 + $0x173] sm:$0xff]
      %v4952 = vld [vmem:[%s4395 + $0x6] sm:$0x1]
      %v4953 = vperm.slane %v4952, 0
      %v4954 = vmul.f32 %v4920, %v4953
      %v4955 = vmul.f32 %v4921, %v4953
      %v4956 = vmul.f32 %v4922, %v4953
      %v4957 = vmul.f32 %v4923, %v4953
      %v4958 = vmul.f32 %v4924, %v4953
      %v4959 = vmul.f32 %v4925, %v4953
      %v4960 = vmul.f32 %v4926, %v4953
      %v4961 = vmul.f32 %v4927, %v4953
      %v4962 = vmul.f32 %v4928, %v4953
      %v4963 = vmul.f32 %v4929, %v4953
      %v4964 = vmul.f32 %v4930, %v4953
      %v4965 = vmul.f32 %v4931, %v4953
      %v4966 = vmul.f32 %v4932, %v4953
      %v4967 = vmul.f32 %v4933, %v4953
      %v4968 = vmul.f32 %v4934, %v4953
      %v4969 = vmul.f32 %v4935, %v4953
      %v4970 = vmul.f32 %v4936, %v4953
      %v4971 = vmul.f32 %v4937, %v4953
      %v4972 = vmul.f32 %v4938, %v4953
      %v4973 = vmul.f32 %v4939, %v4953
      %v4974 = vmul.f32 %v4940, %v4953
      %v4975 = vmul.f32 %v4941, %v4953
      %v4976 = vmul.f32 %v4942, %v4953
      %v4977 = vmul.f32 %v4943, %v4953
      %v4978 = vmul.f32 %v4944, %v4953
      %v4979 = vmul.f32 %v4945, %v4953
      %v4980 = vmul.f32 %v4946, %v4953
      %v4981 = vmul.f32 %v4947, %v4953
      %v4982 = vmul.f32 %v4948, %v4953
      %v4983 = vmul.f32 %v4949, %v4953
      %v4984 = vmul.f32 %v4950, %v4953
      %v4985 = vmul.f32 %v4951, %v4953
      %v4986 = vadd.f32 %v4888, %v4954
      %v4987 = vadd.f32 %v4889, %v4955
      %v4988 = vadd.f32 %v4890, %v4956
      %v4989 = vadd.f32 %v4891, %v4957
      %v4990 = vadd.f32 %v4892, %v4958
      %v4991 = vadd.f32 %v4893, %v4959
      %v4992 = vadd.f32 %v4894, %v4960
      %v4993 = vadd.f32 %v4895, %v4961
      %v4994 = vadd.f32 %v4896, %v4962
      %v4995 = vadd.f32 %v4897, %v4963
      %v4996 = vadd.f32 %v4898, %v4964
      %v4997 = vadd.f32 %v4899, %v4965
      %v4998 = vadd.f32 %v4900, %v4966
      %v4999 = vadd.f32 %v4901, %v4967
      %v5000 = vadd.f32 %v4902, %v4968
      %v5001 = vadd.f32 %v4903, %v4969
      %v5002 = vadd.f32 %v4904, %v4970
      %v5003 = vadd.f32 %v4905, %v4971
      %v5004 = vadd.f32 %v4906, %v4972
      %v5005 = vadd.f32 %v4907, %v4973
      %v5006 = vadd.f32 %v4908, %v4974
      %v5007 = vadd.f32 %v4909, %v4975
      %v5008 = vadd.f32 %v4910, %v4976
      %v5009 = vadd.f32 %v4911, %v4977
      %v5010 = vadd.f32 %v4912, %v4978
      %v5011 = vadd.f32 %v4913, %v4979
      %v5012 = vadd.f32 %v4914, %v4980
      %v5013 = vadd.f32 %v4915, %v4981
      %v5014 = vadd.f32 %v4916, %v4982
      %v5015 = vadd.f32 %v4917, %v4983
      %v5016 = vadd.f32 %v4918, %v4984
      %v5017 = vadd.f32 %v4919, %v4985
      %v5018 = vld [vmem:[%s6] sm:$0xff]
      %v5019 = vld [vmem:[%s7 + $0x1] sm:$0x1]
      %v5020 = vperm.slane %v5019, 0
      %v5022 = vsel %vm405, %v4986, 0
      %v5025 = vsel %vm405, %v4987, 0
      %v5028 = vsel %vm405, %v4988, 0
      %v5031 = vsel %vm405, %v4989, 0
      %v5034 = vsel %vm405, %v4990, 0
      %v5037 = vsel %vm405, %v4991, 0
      %v5040 = vsel %vm405, %v4992, 0
      %v5043 = vsel %vm405, %v4993, 0
      %v5046 = vsel %vm405, %v4994, 0
      %v5049 = vsel %vm405, %v4995, 0
      %v5052 = vsel %vm405, %v4996, 0
      %v5055 = vsel %vm405, %v4997, 0
      %v5058 = vsel %vm405, %v4998, 0
      %v5061 = vsel %vm405, %v4999, 0
      %v5064 = vsel %vm405, %v5000, 0
      %v5067 = vsel %vm405, %v5001, 0
      %v5070 = vsel %vm405, %v5002, 0
      %v5073 = vsel %vm405, %v5003, 0
      %v5076 = vsel %vm405, %v5004, 0
      %v5079 = vsel %vm405, %v5005, 0
      %v5082 = vsel %vm405, %v5006, 0
      %v5085 = vsel %vm405, %v5007, 0
      %v5088 = vsel %vm405, %v5008, 0
      %v5091 = vsel %vm405, %v5009, 0
      %v5094 = vsel %vm405, %v5010, 0
      %v5097 = vsel %vm405, %v5011, 0
      %v5100 = vsel %vm405, %v5012, 0
      %v5103 = vsel %vm405, %v5013, 0
      %v5106 = vsel %vm405, %v5014, 0
      %v5109 = vsel %vm405, %v5015, 0
      %v5112 = vsel %vm405, %v5016, 0
      %v5115 = vsel %vm405, %v5017, 0
      %5117 = vmatpush.msra.mxu0 0.0
      %5118 = vmatpush.msra.mxu0 0.0
      %5119 = vmatpush.msra.mxu0 0.0
      %5120 = vmatpush.msra.mxu0 0.0
      %5121 = vmatpush.msra.mxu0 0.0
      %5122 = vmatpush.msra.mxu0 0.0
      %5123 = vmatpush.msra.mxu0 0.0
      %5124 = vmatpush.msra.mxu0 0.0
      %5125 = vmatpush.msra.mxu0 0.0
      %5126 = vmatpush.msra.mxu0 0.0
      %5127 = vmatpush.msra.mxu0 0.0
      %5128 = vmatpush.msra.mxu0 0.0
      %5129 = vmatpush.msra.mxu0 0.0
      %5130 = vmatpush.msra.mxu0 0.0
      %5131 = vmatpush.msra.mxu0 0.0
      %5132 = vmatpush.msra.mxu0 %v5018
      %5133 = vmatmul.f32.gmra.mxu0 %v5022
      %v5134 = vpop.f32.mrf.mxu0
      %v5135 = vadd.f32 %v5020, %v5134
      %5136 = vmatmul.f32.gmra.mxu0 %v5025
      %v5137 = vpop.f32.mrf.mxu0
      %v5138 = vadd.f32 %v5020, %v5137
      %5139 = vmatmul.f32.gmra.mxu0 %v5028
      %v5140 = vpop.f32.mrf.mxu0
      %v5141 = vadd.f32 %v5020, %v5140
      %5142 = vmatmul.f32.gmra.mxu0 %v5031
      %v5143 = vpop.f32.mrf.mxu0
      %v5144 = vadd.f32 %v5020, %v5143
      %5145 = vmatmul.f32.gmra.mxu0 %v5034
      %v5146 = vpop.f32.mrf.mxu0
      %v5147 = vadd.f32 %v5020, %v5146
      %5148 = vmatmul.f32.gmra.mxu0 %v5037
      %v5149 = vpop.f32.mrf.mxu0
      %v5150 = vadd.f32 %v5020, %v5149
      %5151 = vmatmul.f32.gmra.mxu0 %v5040
      %v5152 = vpop.f32.mrf.mxu0
      %v5153 = vadd.f32 %v5020, %v5152
      %5154 = vmatmul.f32.gmra.mxu0 %v5043
      %v5155 = vpop.f32.mrf.mxu0
      %v5156 = vadd.f32 %v5020, %v5155
      %5157 = vmatmul.f32.gmra.mxu0 %v5046
      %v5158 = vpop.f32.mrf.mxu0
      %v5159 = vadd.f32 %v5020, %v5158
      %5160 = vmatmul.f32.gmra.mxu0 %v5049
      %v5161 = vpop.f32.mrf.mxu0
      %v5162 = vadd.f32 %v5020, %v5161
      %5163 = vmatmul.f32.gmra.mxu0 %v5052
      %v5164 = vpop.f32.mrf.mxu0
      %v5165 = vadd.f32 %v5020, %v5164
      %5166 = vmatmul.f32.gmra.mxu0 %v5055
      %v5167 = vpop.f32.mrf.mxu0
      %v5168 = vadd.f32 %v5020, %v5167
      %5169 = vmatmul.f32.gmra.mxu0 %v5058
      %v5170 = vpop.f32.mrf.mxu0
      %v5171 = vadd.f32 %v5020, %v5170
      %5172 = vmatmul.f32.gmra.mxu0 %v5061
      %v5173 = vpop.f32.mrf.mxu0
      %v5174 = vadd.f32 %v5020, %v5173
      %5175 = vmatmul.f32.gmra.mxu0 %v5064
      %v5176 = vpop.f32.mrf.mxu0
      %v5177 = vadd.f32 %v5020, %v5176
      %5178 = vmatmul.f32.gmra.mxu0 %v5067
      %v5179 = vpop.f32.mrf.mxu0
      %v5180 = vadd.f32 %v5020, %v5179
      %5181 = vmatmul.f32.gmra.mxu0 %v5070
      %v5182 = vpop.f32.mrf.mxu0
      %v5183 = vadd.f32 %v5020, %v5182
      %5184 = vmatmul.f32.gmra.mxu0 %v5073
      %v5185 = vpop.f32.mrf.mxu0
      %v5186 = vadd.f32 %v5020, %v5185
      %5187 = vmatmul.f32.gmra.mxu0 %v5076
      %v5188 = vpop.f32.mrf.mxu0
      %v5189 = vadd.f32 %v5020, %v5188
      %5190 = vmatmul.f32.gmra.mxu0 %v5079
      %v5191 = vpop.f32.mrf.mxu0
      %v5192 = vadd.f32 %v5020, %v5191
      %5193 = vmatmul.f32.gmra.mxu0 %v5082
      %v5194 = vpop.f32.mrf.mxu0
      %v5195 = vadd.f32 %v5020, %v5194
      %5196 = vmatmul.f32.gmra.mxu0 %v5085
      %v5197 = vpop.f32.mrf.mxu0
      %v5198 = vadd.f32 %v5020, %v5197
      %5199 = vmatmul.f32.gmra.mxu0 %v5088
      %v5200 = vpop.f32.mrf.mxu0
      %v5201 = vadd.f32 %v5020, %v5200
      %5202 = vmatmul.f32.gmra.mxu0 %v5091
      %v5203 = vpop.f32.mrf.mxu0
      %v5204 = vadd.f32 %v5020, %v5203
      %5205 = vmatmul.f32.gmra.mxu0 %v5094
      %v5206 = vpop.f32.mrf.mxu0
      %v5207 = vadd.f32 %v5020, %v5206
      %5208 = vmatmul.f32.gmra.mxu0 %v5097
      %v5209 = vpop.f32.mrf.mxu0
      %v5210 = vadd.f32 %v5020, %v5209
      %5211 = vmatmul.f32.gmra.mxu0 %v5100
      %v5212 = vpop.f32.mrf.mxu0
      %v5213 = vadd.f32 %v5020, %v5212
      %5214 = vmatmul.f32.gmra.mxu0 %v5103
      %v5215 = vpop.f32.mrf.mxu0
      %v5216 = vadd.f32 %v5020, %v5215
      %5217 = vmatmul.f32.gmra.mxu0 %v5106
      %v5218 = vpop.f32.mrf.mxu0
      %v5219 = vadd.f32 %v5020, %v5218
      %5220 = vmatmul.f32.gmra.mxu0 %v5109
      %v5221 = vpop.f32.mrf.mxu0
      %v5222 = vadd.f32 %v5020, %v5221
      %5223 = vmatmul.f32.gmra.mxu0 %v5112
      %v5224 = vpop.f32.mrf.mxu0
      %v5225 = vadd.f32 %v5020, %v5224
      %5226 = vmatmul.f32.gmra.mxu0 %v5115
      %v5227 = vpop.f32.mrf.mxu0
      %v5228 = vadd.f32 %v5020, %v5227
      %5229 = vdwg.mxu0
      %5230 = vst.msk [vmem:[%s399] sm:$0xff] %vm405, %v5135
      %5231 = vst.msk [vmem:[%s399 + $0x8] sm:$0xff] %vm405, %v5138
      %5232 = vst.msk [vmem:[%s399 + $0x10] sm:$0xff] %vm405, %v5141
      %5233 = vst.msk [vmem:[%s399 + $0x18] sm:$0xff] %vm405, %v5144
      %5234 = vst.msk [vmem:[%s399 + $0x20] sm:$0xff] %vm405, %v5147
      %5235 = vst.msk [vmem:[%s399 + $0x28] sm:$0xff] %vm405, %v5150
      %5236 = vst.msk [vmem:[%s399 + $0x30] sm:$0xff] %vm405, %v5153
      %5237 = vst.msk [vmem:[%s399 + $0x38] sm:$0xff] %vm405, %v5156
      %5238 = vst.msk [vmem:[%s399 + $0x40] sm:$0xff] %vm405, %v5159
      %5239 = vst.msk [vmem:[%s399 + $0x48] sm:$0xff] %vm405, %v5162
      %5240 = vst.msk [vmem:[%s399 + $0x50] sm:$0xff] %vm405, %v5165
      %5241 = vst.msk [vmem:[%s399 + $0x58] sm:$0xff] %vm405, %v5168
      %5242 = vst.msk [vmem:[%s399 + $0x60] sm:$0xff] %vm405, %v5171
      %5243 = vst.msk [vmem:[%s399 + $0x68] sm:$0xff] %vm405, %v5174
      %5244 = vst.msk [vmem:[%s399 + $0x70] sm:$0xff] %vm405, %v5177
      %5245 = vst.msk [vmem:[%s399 + $0x78] sm:$0xff] %vm405, %v5180
      %5246 = vst.msk [vmem:[%s399 + $0x80] sm:$0xff] %vm405, %v5183
      %5247 = vst.msk [vmem:[%s399 + $0x88] sm:$0xff] %vm405, %v5186
      %5248 = vst.msk [vmem:[%s399 + $0x90] sm:$0xff] %vm405, %v5189
      %5249 = vst.msk [vmem:[%s399 + $0x98] sm:$0xff] %vm405, %v5192
      %5250 = vst.msk [vmem:[%s399 + $0xa0] sm:$0xff] %vm405, %v5195
      %5251 = vst.msk [vmem:[%s399 + $0xa8] sm:$0xff] %vm405, %v5198
      %5252 = vst.msk [vmem:[%s399 + $0xb0] sm:$0xff] %vm405, %v5201
      %5253 = vst.msk [vmem:[%s399 + $0xb8] sm:$0xff] %vm405, %v5204
      %5254 = vst.msk [vmem:[%s399 + $0xc0] sm:$0xff] %vm405, %v5207
      %5255 = vst.msk [vmem:[%s399 + $0xc8] sm:$0xff] %vm405, %v5210
      %5256 = vst.msk [vmem:[%s399 + $0xd0] sm:$0xff] %vm405, %v5213
      %5257 = vst.msk [vmem:[%s399 + $0xd8] sm:$0xff] %vm405, %v5216
      %5258 = vst.msk [vmem:[%s399 + $0xe0] sm:$0xff] %vm405, %v5219
      %5259 = vst.msk [vmem:[%s399 + $0xe8] sm:$0xff] %vm405, %v5222
      %5260 = vst.msk [vmem:[%s399 + $0xf0] sm:$0xff] %vm405, %v5225
      %5261 = vst.msk [vmem:[%s399 + $0xf8] sm:$0xff] %vm405, %v5228
      %v5262 = vadd.f32 %v1250, %v3644
      %v5263 = vadd.f32 %v1251, %v3645
      %v5264 = vadd.f32 %v1252, %v3646
      %v5265 = vadd.f32 %v1253, %v3647
      %v5266 = vadd.f32 %v1254, %v3648
      %v5267 = vadd.f32 %v1255, %v3649
      %v5268 = vadd.f32 %v1256, %v3650
      %v5269 = vadd.f32 %v1257, %v3651
      %v5270 = vadd.f32 %v1258, %v3652
      %v5271 = vadd.f32 %v1259, %v3653
      %v5272 = vadd.f32 %v1260, %v3654
      %v5273 = vadd.f32 %v1261, %v3655
      %v5274 = vadd.f32 %v1262, %v3656
      %v5275 = vadd.f32 %v1263, %v3657
      %v5276 = vadd.f32 %v1264, %v3658
      %v5277 = vadd.f32 %v1265, %v3659
      %v5278 = vadd.f32 %v1266, %v3660
      %v5279 = vadd.f32 %v1267, %v3661
      %v5280 = vadd.f32 %v1268, %v3662
      %v5281 = vadd.f32 %v1269, %v3663
      %v5282 = vadd.f32 %v1270, %v3664
      %v5283 = vadd.f32 %v1271, %v3665
      %v5284 = vadd.f32 %v1272, %v3666
      %v5285 = vadd.f32 %v1273, %v3667
      %v5286 = vadd.f32 %v1274, %v3668
      %v5287 = vadd.f32 %v1275, %v3669
      %v5288 = vadd.f32 %v1276, %v3670
      %v5289 = vadd.f32 %v1277, %v3671
      %v5290 = vadd.f32 %v1278, %v3672
      %v5291 = vadd.f32 %v1279, %v3673
      %v5292 = vadd.f32 %v1280, %v3674
      %v5293 = vadd.f32 %v1281, %v3675
      %5294 = vst.msk [vmem:[%s404] sm:$0xff] %vm405, %v5262
      %5295 = vst.msk [vmem:[%s404 + $0x8] sm:$0xff] %vm405, %v5263
      %5296 = vst.msk [vmem:[%s404 + $0x10] sm:$0xff] %vm405, %v5264
      %5297 = vst.msk [vmem:[%s404 + $0x18] sm:$0xff] %vm405, %v5265
      %5298 = vst.msk [vmem:[%s404 + $0x20] sm:$0xff] %vm405, %v5266
      %5299 = vst.msk [vmem:[%s404 + $0x28] sm:$0xff] %vm405, %v5267
      %5300 = vst.msk [vmem:[%s404 + $0x30] sm:$0xff] %vm405, %v5268
      %5301 = vst.msk [vmem:[%s404 + $0x38] sm:$0xff] %vm405, %v5269
      %5302 = vst.msk [vmem:[%s404 + $0x40] sm:$0xff] %vm405, %v5270
      %5303 = vst.msk [vmem:[%s404 + $0x48] sm:$0xff] %vm405, %v5271
      %5304 = vst.msk [vmem:[%s404 + $0x50] sm:$0xff] %vm405, %v5272
      %5305 = vst.msk [vmem:[%s404 + $0x58] sm:$0xff] %vm405, %v5273
      %5306 = vst.msk [vmem:[%s404 + $0x60] sm:$0xff] %vm405, %v5274
      %5307 = vst.msk [vmem:[%s404 + $0x68] sm:$0xff] %vm405, %v5275
      %5308 = vst.msk [vmem:[%s404 + $0x70] sm:$0xff] %vm405, %v5276
      %5309 = vst.msk [vmem:[%s404 + $0x78] sm:$0xff] %vm405, %v5277
      %5310 = vst.msk [vmem:[%s404 + $0x80] sm:$0xff] %vm405, %v5278
      %5311 = vst.msk [vmem:[%s404 + $0x88] sm:$0xff] %vm405, %v5279
      %5312 = vst.msk [vmem:[%s404 + $0x90] sm:$0xff] %vm405, %v5280
      %5313 = vst.msk [vmem:[%s404 + $0x98] sm:$0xff] %vm405, %v5281
      %5314 = vst.msk [vmem:[%s404 + $0xa0] sm:$0xff] %vm405, %v5282
      %5315 = vst.msk [vmem:[%s404 + $0xa8] sm:$0xff] %vm405, %v5283
      %5316 = vst.msk [vmem:[%s404 + $0xb0] sm:$0xff] %vm405, %v5284
      %5317 = vst.msk [vmem:[%s404 + $0xb8] sm:$0xff] %vm405, %v5285
      %5318 = vst.msk [vmem:[%s404 + $0xc0] sm:$0xff] %vm405, %v5286
      %5319 = vst.msk [vmem:[%s404 + $0xc8] sm:$0xff] %vm405, %v5287
      %5320 = vst.msk [vmem:[%s404 + $0xd0] sm:$0xff] %vm405, %v5288
      %5321 = vst.msk [vmem:[%s404 + $0xd8] sm:$0xff] %vm405, %v5289
      %5322 = vst.msk [vmem:[%s404 + $0xe0] sm:$0xff] %vm405, %v5290
      %5323 = vst.msk [vmem:[%s404 + $0xe8] sm:$0xff] %vm405, %v5291
      %5324 = vst.msk [vmem:[%s404 + $0xf0] sm:$0xff] %vm405, %v5292
      %5325 = vst.msk [vmem:[%s404 + $0xf8] sm:$0xff] %vm405, %v5293
      %p5326 = scmp.lt.s32.totalorder %s22, 1
      %s5327 = scalar_select %p5326, %s22, 1
      %s5328 = smul.addr %s5327, 32
      %s5329 = smul.addr %s5328, 8
      %s5330 = scalar_lea.vmem %s8, %s5329
      %p5331 = scmp.lt.s32.totalorder %s22, 1
      %s5332 = scalar_select %p5331, %s22, 1
      %s5333 = smul.addr %s5332, 32
      %s5334 = smul.addr %s5333, 8
      %s5335 = scalar_lea.vmem %s9, %s5334
      %p5336 = scmp.lt.s32.totalorder %s22, 1
      %s5337 = scalar_select %p5336, %s22, 1
      %s5338 = smul.addr %s5337, 32
      %s5339 = smul.addr %s5338, 8
      %s5340 = scalar_lea.vmem %s10, %s5339
      // Predicated region
      $region53: #{cross_atten_forward.4} parent=51 // pred_check
        %p5341 = pneg %p218
      $region54: #{cross_atten_forward.4} parent=51 // pred_check_branch
        %5343 = sbr.rel (%p5341) target = $region56
      $region55: #{cross_atten_forward.4} parent=51 // pred_region
        _
      $region56: #{cross_atten_forward.4} parent=51 // pred_fallthru
        _
      // Predicated region
      $region57: #{cross_atten_forward.4} parent=51 // pred_check
        %p5344 = pneg %p244
      $region58: #{cross_atten_forward.4} parent=51 // pred_check_branch
        %5346 = sbr.rel (%p5344) target = $region60
      $region59: #{cross_atten_forward.4} parent=51 // pred_region
        _
      $region60: #{cross_atten_forward.4} parent=51 // pred_fallthru
        _
      // Predicated region
      $region61: #{cross_atten_forward.4} parent=51 // pred_check
        %p5347 = pneg %p270
      $region62: #{cross_atten_forward.4} parent=51 // pred_check_branch
        %5349 = sbr.rel (%p5347) target = $region64
      $region63: #{cross_atten_forward.4} parent=51 // pred_region
        _
      $region64: #{cross_atten_forward.4} parent=51 // pred_fallthru
        _
    $region52: #{cross_atten_forward.4} parent=5 // pred_fallthru
      _
    %p5350 = scmp.le.s32.totalorder 2, %s17
    // Predicated region
    $region65: #{cross_atten_forward.4} parent=5 // pred_check
      %p5351 = pneg %p5350
    $region66: #{cross_atten_forward.4} parent=5 // pred_check_branch
      %5353 = sbr.rel (%p5351) target = $region68
    $region67: #{cross_atten_forward.4} parent=5 // pred_region
      %s5354 = ssub.s32 %s17, 2
      // Predicated region
      $region69: #{cross_atten_forward.4} parent=67 // pred_check
        %p5355 = pneg %p224
      $region70: #{cross_atten_forward.4} parent=67 // pred_check_branch
        %5357 = sbr.rel (%p5355) target = $region72
      $region71: #{cross_atten_forward.4} parent=67 // pred_region
        %p5358 = scmp.lt.s32.totalorder %s23, 1
        %s5359 = scalar_select %p5358, %s23, 1
        %s5360 = smul.addr %s5359, 32
        %s5361 = smul.addr %s5360, 8
        %s5362 = scalar_lea.vmem %s8, %s5361
      $region72: #{cross_atten_forward.4} parent=67 // pred_fallthru
        _
      // Predicated region
      $region73: #{cross_atten_forward.4} parent=67 // pred_check
        %p5363 = pneg %p250
      $region74: #{cross_atten_forward.4} parent=67 // pred_check_branch
        %5365 = sbr.rel (%p5363) target = $region76
      $region75: #{cross_atten_forward.4} parent=67 // pred_region
        %p5366 = scmp.lt.s32.totalorder %s23, 1
        %s5367 = scalar_select %p5366, %s23, 1
        %s5368 = smul.addr %s5367, 32
        %s5369 = smul.addr %s5368, 8
        %s5370 = scalar_lea.vmem %s9, %s5369
      $region76: #{cross_atten_forward.4} parent=67 // pred_fallthru
        _
      // Predicated region
      $region77: #{cross_atten_forward.4} parent=67 // pred_check
        %p5371 = pneg %p276
      $region78: #{cross_atten_forward.4} parent=67 // pred_check_branch
        %5373 = sbr.rel (%p5371) target = $region80
      $region79: #{cross_atten_forward.4} parent=67 // pred_region
        %p5374 = scmp.lt.s32.totalorder %s23, 1
        %s5375 = scalar_select %p5374, %s23, 1
        %s5376 = smul.addr %s5375, 32
        %s5377 = smul.addr %s5376, 8
        %s5378 = scalar_lea.vmem %s10, %s5377
      $region80: #{cross_atten_forward.4} parent=67 // pred_fallthru
        _
    $region68: #{cross_atten_forward.4} parent=5 // pred_fallthru
      _
  $region6: #{cross_atten_forward.4} parent=0 // loop_footer
    %s21 = sadd.s32 1, %s17
  $region7: #{cross_atten_forward.4} parent=0 // loop_footer_branch
    %16 = sbr.rel target = $region3
  $region8: #{cross_atten_forward.4} parent=0 // loop_exit
    _

</llo_original>
